<compile_context>
chip_gen: v7x
topology: tpu7x:2x2x1
jax: 0.10.0
libtpu: 0.0.40
codegen_flags: <defaults>
</compile_context>

<pallas_src>
import math

import jax
import jax.numpy as jnp
from jax import lax
from jax.experimental import pallas as pl
from jax.experimental.pallas import tpu as pltpu

EMBEDDING_SIZE = 384
DROPOUT = 0.2            # identity at inference
NUM_HEADS = 6
HEAD_SIZE = EMBEDDING_SIZE // NUM_HEADS     # 64
CHUNK_SIZE = 256
LN_EPS = 1e-5


# ---------------------------------------------------------------------------
# Fully fused TransformerBlock kernel.
# One grid step handles BT batch elements:
#   LN1 -> QKV -> per-(batch,head) causal attention -> proj -> +x
#       -> LN2 -> Linear/ReLU/Linear -> +x
# ---------------------------------------------------------------------------
def _transformer_block_kernel(x_ref, mask_ref,
                              g1_ref, b1_ref, wqkv_ref, wp_ref, bp_ref,
                              g2_ref, b2_ref, w1_ref, fb1_ref, w2_ref, fb2_ref,
                              o_ref):
    BT, S, E = x_ref.shape
    H, D = NUM_HEADS, HEAD_SIZE
    R = BT * S
    bf16 = jnp.bfloat16

    x = x_ref[...].reshape(R, E)                       # (R, E) f32

    # ---- LayerNorm 1 (f32) ----
    mean = jnp.mean(x, axis=-1, keepdims=True)
    cent = x - mean
    var = jnp.mean(cent * cent, axis=-1, keepdims=True)
    xn = cent * lax.rsqrt(var + LN_EPS) * g1_ref[...] + b1_ref[...]

    # ---- fused QKV for all heads / all packed batches (bf16 MXU, f32 acc) ----
    # Attention scale is pre-folded into the Q columns of Wqkv.
    qkv = jnp.dot(xn.astype(bf16), wqkv_ref[...],
                  preferred_element_type=jnp.float32)   # (R, 3E)

    mask = mask_ref[...]                                # (S, S) additive bias

    # ---- per-sequence causal attention (static loops: BT * H iterations) ----
    att_rows = []
    for b in range(BT):
        r0 = b * S
        qb = qkv[r0:r0 + S, 0:E]
        kb = qkv[r0:r0 + S, E:2 * E]
        vb = qkv[r0:r0 + S, 2 * E:3 * E]
        outs = []
        for h in range(H):
            qh = qb[:, h * D:(h + 1) * D].astype(bf16)          # (S, D)
            kh = kb[:, h * D:(h + 1) * D].astype(bf16)
            vh = vb[:, h * D:(h + 1) * D].astype(bf16)
            # q @ k^T without explicit transpose (contract dim 1 of both).
            s = lax.dot_general(qh, kh, (((1,), (1,)), ((), ())),
                                preferred_element_type=jnp.float32)
            s = s + mask                                        # causal bias
            m = jnp.max(s, axis=-1, keepdims=True)
            e = jnp.exp(s - m)                                  # masked -> 0
            inv = pl.reciprocal(jnp.sum(e, axis=-1, keepdims=True), approx=True)
            # attention dropout: identity at inference
            # normalize AFTER p@v (inv is per-row scalar; identical math)
            oh = jnp.dot(e.astype(bf16), vh,
                         preferred_element_type=jnp.float32) * inv
            outs.append(oh.astype(bf16))
        att_rows.append(jnp.concatenate(outs, axis=-1))          # (S, E) bf16
    att = att_rows[0] if BT == 1 else jnp.concatenate(att_rows, axis=0)

    # ---- output projection (weight pre-transposed to (in,out)) + residual ----
    proj = jnp.dot(att, wp_ref[...],
                   preferred_element_type=jnp.float32) + bp_ref[...]
    # projection dropout: identity at inference
    y = x + proj                                         # (R, E) f32

    # ---- LayerNorm 2 (f32) ----
    mean2 = jnp.mean(y, axis=-1, keepdims=True)
    cent2 = y - mean2
    var2 = jnp.mean(cent2 * cent2, axis=-1, keepdims=True)
    yn = cent2 * lax.rsqrt(var2 + LN_EPS) * g2_ref[...] + b2_ref[...]

    # ---- FeedForward: Linear(E,4E) -> ReLU -> Linear(4E,E) ----
    hid = jnp.dot(yn.astype(bf16), w1_ref[...],
                  preferred_element_type=jnp.float32) + fb1_ref[...]
    hid = jnp.maximum(hid, 0.0)
    ffn = jnp.dot(hid.astype(bf16), w2_ref[...],
                  preferred_element_type=jnp.float32) + fb2_ref[...]
    # FFN dropout: identity at inference

    o_ref[...] = (y + ffn).reshape(BT, S, E).astype(o_ref.dtype)


def transformer_block_forward(x, p):
    """x: (B, S, E) f32  ->  TransformerBlock(x), shape (B, S, E) f32."""
    B, S, E = x.shape
    assert E == EMBEDDING_SIZE

    # Batch packing: process BT sequences per grid step so matmul M-dim is
    # BT*S (<= 256 rows).  Requires S % 8 == 0 for a layout-free row collapse.
    if S % 8 == 0:
        bt = max(1, min(B, max(1, 256 // S)))
        while B % bt != 0:
            bt -= 1
    else:
        bt = 1
    grid = (B // bt,)

    # Additive causal mask (0 on/below diagonal, -1e30 above; NaN-safe).
    row = lax.broadcasted_iota(jnp.int32, (S, S), 0)
    col = lax.broadcasted_iota(jnp.int32, (S, S), 1)
    mask = jnp.where(col <= row, 0.0, -1e30).astype(jnp.float32)

    const = lambda i: (0, 0)   # weights / biases: constant block index
    return pl.pallas_call(
        _transformer_block_kernel,
        out_shape=jax.ShapeDtypeStruct((B, S, E), x.dtype),
        grid_spec=pltpu.PrefetchScalarGridSpec(
            num_scalar_prefetch=0,
            grid=grid,
            in_specs=[
                pl.BlockSpec((bt, S, E), lambda i: (i, 0, 0)),   # x
                pl.BlockSpec((S, S), const),                     # causal bias
                pl.BlockSpec((1, E), const),                     # ln1 gamma
                pl.BlockSpec((1, E), const),                     # ln1 beta
                pl.BlockSpec((E, 3 * E), const),                 # Wqkv (bf16)
                pl.BlockSpec((E, E), const),                     # Wproj (bf16)
                pl.BlockSpec((1, E), const),                     # bproj
                pl.BlockSpec((1, E), const),                     # ln2 gamma
                pl.BlockSpec((1, E), const),                     # ln2 beta
                pl.BlockSpec((E, 4 * E), const),                 # W1 (bf16)
                pl.BlockSpec((1, 4 * E), const),                 # b1
                pl.BlockSpec((4 * E, E), const),                 # W2 (bf16)
                pl.BlockSpec((1, E), const),                     # b2
            ],
            out_specs=pl.BlockSpec((bt, S, E), lambda i: (i, 0, 0)),
        ),
        compiler_params=pltpu.CompilerParams(
            dimension_semantics=("parallel",),   # megacore sharding on v7x
        ),
    )(x, mask, p["ln1_g"], p["ln1_b"], p["wqkv"], p["wp"], p["bp"],
      p["ln2_g"], p["ln2_b"], p["w1"], p["b1"], p["w2"], p["b2"])


def init_params(key):
    """Deterministic init mirroring torch defaults (uniform +-1/sqrt(fan_in)).

    Linear weights are stored pre-transposed to (in, out) layout and cast to
    bf16 (MXU operands); biases / LayerNorm params stay f32.  The attention
    scale E**-0.5 (the PyTorch module scales by embedding_size) is folded into
    the Q columns of Wqkv.
    """
    E, H, D = EMBEDDING_SIZE, NUM_HEADS, HEAD_SIZE
    F = H * D                        # == E
    ks = jax.random.split(key, 9)
    bE = 1.0 / math.sqrt(E)
    bF = 1.0 / math.sqrt(F)
    b4E = 1.0 / math.sqrt(4 * E)
    u = lambda k, shape, b: jax.random.uniform(k, shape, jnp.float32, -b, b)

    scale = E ** (-0.5)
    wq = u(ks[0], (E, F), bE) * scale          # scale folded into Q weights
    wk = u(ks[1], (E, F), bE)
    wv = u(ks[2], (E, F), bE)
    wqkv = jnp.concatenate([wq, wk, wv], axis=1)        # (E, 3E)
    wp = u(ks[3], (F, F), bF)                           # (in, out)
    bp = u(ks[4], (1, F), bF)
    w1 = u(ks[5], (E, 4 * E), bE)
    b1 = u(ks[6], (1, 4 * E), bE)
    w2 = u(ks[7], (4 * E, E), b4E)
    b2 = u(ks[8], (1, E), b4E)

    return {
        "ln1_g": jnp.ones((1, E), jnp.float32),
        "ln1_b": jnp.zeros((1, E), jnp.float32),
        "ln2_g": jnp.ones((1, E), jnp.float32),
        "ln2_b": jnp.zeros((1, E), jnp.float32),
        "wqkv": wqkv.astype(jnp.bfloat16),
        "wp": wp.astype(jnp.bfloat16),
        "bp": bp,
        "w1": w1.astype(jnp.bfloat16),
        "b1": b1,
        "w2": w2.astype(jnp.bfloat16),
        "b2": b2,
    }


# ---------------------------------------------------------------------------
# Pure-JAX reference (same math: bf16 matmul operands, f32 accumulation,
# scale already folded into Wqkv's Q columns).
# ---------------------------------------------------------------------------
def _reference_forward(x, p):
    B, S, E = x.shape
    H, D = NUM_HEADS, HEAD_SIZE
    bf16 = jnp.bfloat16

    def layernorm(y, g, b):
        m = jnp.mean(y, axis=-1, keepdims=True)
        v = jnp.mean((y - m) ** 2, axis=-1, keepdims=True)
        return (y - m) / jnp.sqrt(v + LN_EPS) * g[0] + b[0]

    # --- MSA sub-block ---
    xn = layernorm(x, p["ln1_g"], p["ln1_b"])
    qkv = jnp.einsum("bse,ef->bsf", xn.astype(bf16), p["wqkv"],
                     preferred_element_type=jnp.float32)
    q, k, v = qkv[..., :E], qkv[..., E:2 * E], qkv[..., 2 * E:]
    mask = jnp.tril(jnp.ones((S, S)))
    outs = []
    for h in range(H):
        qh = q[..., h * D:(h + 1) * D]
        kh = k[..., h * D:(h + 1) * D]
        vh = v[..., h * D:(h + 1) * D]
        att = jnp.einsum("bqd,bkd->bqk", qh.astype(bf16), kh.astype(bf16),
                         preferred_element_type=jnp.float32)   # scale in Wqkv
        att = jnp.where(mask == 0, -1e30, att)
        att = jax.nn.softmax(att, axis=-1)
        outs.append(jnp.einsum("bqk,bkd->bqd", att.astype(bf16),
                               vh.astype(bf16),
                               preferred_element_type=jnp.float32))
    cat = jnp.concatenate(outs, axis=-1)
    proj = jnp.einsum("bsf,fg->bsg", cat.astype(bf16), p["wp"],
                      preferred_element_type=jnp.float32) + p["bp"][0]
    x = x + proj

    # --- FFN sub-block ---
    xn2 = layernorm(x, p["ln2_g"], p["ln2_b"])
    h1 = jnp.einsum("bse,eh->bsh", xn2.astype(bf16), p["w1"],
                    preferred_element_type=jnp.float32) + p["b1"][0]
    h1 = jnp.maximum(h1, 0.0)
    y = jnp.einsum("bsh,he->bse", h1.astype(bf16), p["w2"],
                   preferred_element_type=jnp.float32) + p["b2"][0]
    return x + y


if __name__ == "__main__":
    key = jax.random.PRNGKey(0)
    k_param, k_x = jax.random.split(key)

    batch, seq = 2, 8                       # seq <= CHUNK_SIZE
    params = init_params(k_param)
    x = jax.random.normal(k_x, (batch, seq, EMBEDDING_SIZE), jnp.float32)

    fwd = jax.jit(transformer_block_forward)
    out = jax.block_until_ready(fwd(x, params))

    ref = _reference_forward(x, params)
    assert out.shape == (batch, seq, EMBEDDING_SIZE)
    err = float(jnp.max(jnp.abs(out - ref)))
    assert jnp.allclose(out, ref, atol=2e-2, rtol=2e-2), (
        f"mismatch vs reference (max abs diff {err})")

    print("KERNEL_OK")
</pallas_src>

<mosaic_0001>
module attributes {stable_mosaic.version = 11 : i64} {
  func.func @_transformer_block_kernel(%arg0: i32, %arg1: memref<2x8x384xf32, #tpu.memory_space<vmem>>, %arg2: memref<8x8xf32, #tpu.memory_space<vmem>>, %arg3: memref<1x384xf32, #tpu.memory_space<vmem>>, %arg4: memref<1x384xf32, #tpu.memory_space<vmem>>, %arg5: memref<384x1152xbf16, #tpu.memory_space<vmem>>, %arg6: memref<384x384xbf16, #tpu.memory_space<vmem>>, %arg7: memref<1x384xf32, #tpu.memory_space<vmem>>, %arg8: memref<1x384xf32, #tpu.memory_space<vmem>>, %arg9: memref<1x384xf32, #tpu.memory_space<vmem>>, %arg10: memref<384x1536xbf16, #tpu.memory_space<vmem>>, %arg11: memref<1x1536xf32, #tpu.memory_space<vmem>>, %arg12: memref<1536x384xbf16, #tpu.memory_space<vmem>>, %arg13: memref<1x384xf32, #tpu.memory_space<vmem>>, %arg14: memref<2x8x384xf32, #tpu.memory_space<vmem>>) attributes {dimension_semantics = [#tpu.dimension_semantics<parallel>], iteration_bounds = array<i64: 1>, scalar_prefetch = 0 : i64, scratch_operands = 0 : i64, tpu.core_type = #tpu.core_type<tc>, window_params = [{transform_indices = @transform_0, window_bounds = array<i64: 2, 8, 384>}, {pipeline_mode = #tpu.pipeline_mode<synchronous>, transform_indices = @transform_1, window_bounds = array<i64: 8, 8>}, {pipeline_mode = #tpu.pipeline_mode<synchronous>, transform_indices = @transform_2, window_bounds = array<i64: 1, 384>}, {pipeline_mode = #tpu.pipeline_mode<synchronous>, transform_indices = @transform_3, window_bounds = array<i64: 1, 384>}, {pipeline_mode = #tpu.pipeline_mode<synchronous>, transform_indices = @transform_4, window_bounds = array<i64: 384, 1152>}, {pipeline_mode = #tpu.pipeline_mode<synchronous>, transform_indices = @transform_5, window_bounds = array<i64: 384, 384>}, {pipeline_mode = #tpu.pipeline_mode<synchronous>, transform_indices = @transform_6, window_bounds = array<i64: 1, 384>}, {pipeline_mode = #tpu.pipeline_mode<synchronous>, transform_indices = @transform_7, window_bounds = array<i64: 1, 384>}, {pipeline_mode = #tpu.pipeline_mode<synchronous>, transform_indices = @transform_8, window_bounds = array<i64: 1, 384>}, {pipeline_mode = #tpu.pipeline_mode<synchronous>, transform_indices = @transform_9, window_bounds = array<i64: 384, 1536>}, {pipeline_mode = #tpu.pipeline_mode<synchronous>, transform_indices = @transform_10, window_bounds = array<i64: 1, 1536>}, {pipeline_mode = #tpu.pipeline_mode<synchronous>, transform_indices = @transform_11, window_bounds = array<i64: 1536, 384>}, {pipeline_mode = #tpu.pipeline_mode<synchronous>, transform_indices = @transform_12, window_bounds = array<i64: 1, 384>}, {transform_indices = @transform_13, window_bounds = array<i64: 2, 8, 384>}]} {
    %c0 = arith.constant 0 : index
    %c0_0 = arith.constant 0 : index
    %c0_1 = arith.constant 0 : index
    %0 = vector.load %arg1[%c0, %c0_0, %c0_1] : memref<2x8x384xf32, #tpu.memory_space<vmem>>, vector<2x8x384xf32>
    %1 = vector.shape_cast %0 : vector<2x8x384xf32> to vector<16x384xf32>
    %cst = arith.constant dense<0.000000e+00> : vector<16xf32>
    %2 = vector.multi_reduction <add>, %1, %cst [1] : vector<16x384xf32> to vector<16xf32>
    %3 = vector.shape_cast %2 : vector<16xf32> to vector<16x1xf32>
    %cst_2 = arith.constant 3.840000e+02 : f32
    %4 = vector.broadcast %cst_2 : f32 to vector<16x1xf32>
    %5 = arith.divf %3, %4 : vector<16x1xf32>
    %6 = vector.broadcast %5 : vector<16x1xf32> to vector<16x384xf32>
    %7 = arith.subf %1, %6 : vector<16x384xf32>
    %8 = arith.mulf %7, %7 : vector<16x384xf32>
    %cst_3 = arith.constant dense<0.000000e+00> : vector<16xf32>
    %9 = vector.multi_reduction <add>, %8, %cst_3 [1] : vector<16x384xf32> to vector<16xf32>
    %10 = vector.shape_cast %9 : vector<16xf32> to vector<16x1xf32>
    %cst_4 = arith.constant 3.840000e+02 : f32
    %11 = vector.broadcast %cst_4 : f32 to vector<16x1xf32>
    %12 = arith.divf %10, %11 : vector<16x1xf32>
    %cst_5 = arith.constant 9.99999974E-6 : f32
    %13 = vector.broadcast %cst_5 : f32 to vector<16x1xf32>
    %14 = arith.addf %12, %13 : vector<16x1xf32>
    %15 = math.rsqrt %14 : vector<16x1xf32>
    %16 = vector.broadcast %15 : vector<16x1xf32> to vector<16x384xf32>
    %17 = arith.mulf %7, %16 : vector<16x384xf32>
    %c0_6 = arith.constant 0 : index
    %c0_7 = arith.constant 0 : index
    %18 = vector.load %arg3[%c0_6, %c0_7] : memref<1x384xf32, #tpu.memory_space<vmem>>, vector<1x384xf32>
    %19 = vector.broadcast %18 : vector<1x384xf32> to vector<16x384xf32>
    %20 = arith.mulf %17, %19 : vector<16x384xf32>
    %c0_8 = arith.constant 0 : index
    %c0_9 = arith.constant 0 : index
    %21 = vector.load %arg4[%c0_8, %c0_9] : memref<1x384xf32, #tpu.memory_space<vmem>>, vector<1x384xf32>
    %22 = vector.broadcast %21 : vector<1x384xf32> to vector<16x384xf32>
    %23 = arith.addf %20, %22 : vector<16x384xf32>
    %24 = arith.truncf %23 : vector<16x384xf32> to vector<16x384xbf16>
    %c0_10 = arith.constant 0 : index
    %c0_11 = arith.constant 0 : index
    %25 = vector.load %arg5[%c0_10, %c0_11] : memref<384x1152xbf16, #tpu.memory_space<vmem>>, vector<384x1152xbf16>
    %cst_12 = arith.constant dense<0.000000e+00> : vector<16x1152xf32>
    %26 = tpu.matmul %24, %25, %cst_12 {dimension_numbers = #tpu.dot_dimension_numbers<[1], [0], [0], [1], [0, 0, 1, 1], [], []>} : vector<16x384xbf16>, vector<384x1152xbf16>, vector<16x1152xf32> -> vector<16x1152xf32>
    %c0_13 = arith.constant 0 : index
    %c0_14 = arith.constant 0 : index
    %27 = vector.load %arg2[%c0_13, %c0_14] : memref<8x8xf32, #tpu.memory_space<vmem>>, vector<8x8xf32>
    %28 = vector.extract_strided_slice %26 {offsets = [0, 0], sizes = [8, 384], strides = [1, 1]} : vector<16x1152xf32> to vector<8x384xf32>
    %29 = vector.extract_strided_slice %26 {offsets = [0, 384], sizes = [8, 384], strides = [1, 1]} : vector<16x1152xf32> to vector<8x384xf32>
    %30 = vector.extract_strided_slice %26 {offsets = [0, 768], sizes = [8, 384], strides = [1, 1]} : vector<16x1152xf32> to vector<8x384xf32>
    %31 = vector.extract_strided_slice %28 {offsets = [0, 0], sizes = [8, 64], strides = [1, 1]} : vector<8x384xf32> to vector<8x64xf32>
    %32 = arith.truncf %31 : vector<8x64xf32> to vector<8x64xbf16>
    %33 = vector.extract_strided_slice %29 {offsets = [0, 0], sizes = [8, 64], strides = [1, 1]} : vector<8x384xf32> to vector<8x64xf32>
    %34 = arith.truncf %33 : vector<8x64xf32> to vector<8x64xbf16>
    %35 = vector.extract_strided_slice %30 {offsets = [0, 0], sizes = [8, 64], strides = [1, 1]} : vector<8x384xf32> to vector<8x64xf32>
    %36 = arith.truncf %35 : vector<8x64xf32> to vector<8x64xbf16>
    %cst_15 = arith.constant dense<0.000000e+00> : vector<8x8xf32>
    %37 = tpu.matmul %32, %34, %cst_15 {dimension_numbers = #tpu.dot_dimension_numbers<[1], [1], [0], [0], [0, 0, 1, 0], [], []>} : vector<8x64xbf16>, vector<8x64xbf16>, vector<8x8xf32> -> vector<8x8xf32>
    %38 = arith.addf %37, %27 : vector<8x8xf32>
    %cst_16 = arith.constant dense<0xFF800000> : vector<8xf32>
    %39 = vector.multi_reduction <maximumf>, %38, %cst_16 [1] : vector<8x8xf32> to vector<8xf32>
    %40 = vector.shape_cast %39 : vector<8xf32> to vector<8x1xf32>
    %41 = vector.broadcast %40 : vector<8x1xf32> to vector<8x8xf32>
    %42 = arith.subf %38, %41 : vector<8x8xf32>
    %43 = math.exp %42 : vector<8x8xf32>
    %cst_17 = arith.constant dense<0.000000e+00> : vector<8xf32>
    %44 = vector.multi_reduction <add>, %43, %cst_17 [1] : vector<8x8xf32> to vector<8xf32>
    %45 = vector.shape_cast %44 : vector<8xf32> to vector<8x1xf32>
    %46 = tpu.reciprocal %45 {approx = true} : vector<8x1xf32> -> vector<8x1xf32>
    %47 = arith.truncf %43 : vector<8x8xf32> to vector<8x8xbf16>
    %cst_18 = arith.constant dense<0.000000e+00> : vector<8x64xf32>
    %48 = tpu.matmul %47, %36, %cst_18 {dimension_numbers = #tpu.dot_dimension_numbers<[1], [0], [0], [1], [0, 0, 1, 1], [], []>} : vector<8x8xbf16>, vector<8x64xbf16>, vector<8x64xf32> -> vector<8x64xf32>
    %49 = vector.broadcast %46 : vector<8x1xf32> to vector<8x64xf32>
    %50 = arith.mulf %48, %49 : vector<8x64xf32>
    %51 = arith.truncf %50 : vector<8x64xf32> to vector<8x64xbf16>
    %52 = vector.extract_strided_slice %28 {offsets = [0, 64], sizes = [8, 64], strides = [1, 1]} : vector<8x384xf32> to vector<8x64xf32>
    %53 = arith.truncf %52 : vector<8x64xf32> to vector<8x64xbf16>
    %54 = vector.extract_strided_slice %29 {offsets = [0, 64], sizes = [8, 64], strides = [1, 1]} : vector<8x384xf32> to vector<8x64xf32>
    %55 = arith.truncf %54 : vector<8x64xf32> to vector<8x64xbf16>
    %56 = vector.extract_strided_slice %30 {offsets = [0, 64], sizes = [8, 64], strides = [1, 1]} : vector<8x384xf32> to vector<8x64xf32>
    %57 = arith.truncf %56 : vector<8x64xf32> to vector<8x64xbf16>
    %cst_19 = arith.constant dense<0.000000e+00> : vector<8x8xf32>
    %58 = tpu.matmul %53, %55, %cst_19 {dimension_numbers = #tpu.dot_dimension_numbers<[1], [1], [0], [0], [0, 0, 1, 0], [], []>} : vector<8x64xbf16>, vector<8x64xbf16>, vector<8x8xf32> -> vector<8x8xf32>
    %59 = arith.addf %58, %27 : vector<8x8xf32>
    %cst_20 = arith.constant dense<0xFF800000> : vector<8xf32>
    %60 = vector.multi_reduction <maximumf>, %59, %cst_20 [1] : vector<8x8xf32> to vector<8xf32>
    %61 = vector.shape_cast %60 : vector<8xf32> to vector<8x1xf32>
    %62 = vector.broadcast %61 : vector<8x1xf32> to vector<8x8xf32>
    %63 = arith.subf %59, %62 : vector<8x8xf32>
    %64 = math.exp %63 : vector<8x8xf32>
    %cst_21 = arith.constant dense<0.000000e+00> : vector<8xf32>
    %65 = vector.multi_reduction <add>, %64, %cst_21 [1] : vector<8x8xf32> to vector<8xf32>
    %66 = vector.shape_cast %65 : vector<8xf32> to vector<8x1xf32>
    %67 = tpu.reciprocal %66 {approx = true} : vector<8x1xf32> -> vector<8x1xf32>
    %68 = arith.truncf %64 : vector<8x8xf32> to vector<8x8xbf16>
    %cst_22 = arith.constant dense<0.000000e+00> : vector<8x64xf32>
    %69 = tpu.matmul %68, %57, %cst_22 {dimension_numbers = #tpu.dot_dimension_numbers<[1], [0], [0], [1], [0, 0, 1, 1], [], []>} : vector<8x8xbf16>, vector<8x64xbf16>, vector<8x64xf32> -> vector<8x64xf32>
    %70 = vector.broadcast %67 : vector<8x1xf32> to vector<8x64xf32>
    %71 = arith.mulf %69, %70 : vector<8x64xf32>
    %72 = arith.truncf %71 : vector<8x64xf32> to vector<8x64xbf16>
    %73 = vector.extract_strided_slice %28 {offsets = [0, 128], sizes = [8, 64], strides = [1, 1]} : vector<8x384xf32> to vector<8x64xf32>
    %74 = arith.truncf %73 : vector<8x64xf32> to vector<8x64xbf16>
    %75 = vector.extract_strided_slice %29 {offsets = [0, 128], sizes = [8, 64], strides = [1, 1]} : vector<8x384xf32> to vector<8x64xf32>
    %76 = arith.truncf %75 : vector<8x64xf32> to vector<8x64xbf16>
    %77 = vector.extract_strided_slice %30 {offsets = [0, 128], sizes = [8, 64], strides = [1, 1]} : vector<8x384xf32> to vector<8x64xf32>
    %78 = arith.truncf %77 : vector<8x64xf32> to vector<8x64xbf16>
    %cst_23 = arith.constant dense<0.000000e+00> : vector<8x8xf32>
    %79 = tpu.matmul %74, %76, %cst_23 {dimension_numbers = #tpu.dot_dimension_numbers<[1], [1], [0], [0], [0, 0, 1, 0], [], []>} : vector<8x64xbf16>, vector<8x64xbf16>, vector<8x8xf32> -> vector<8x8xf32>
    %80 = arith.addf %79, %27 : vector<8x8xf32>
    %cst_24 = arith.constant dense<0xFF800000> : vector<8xf32>
    %81 = vector.multi_reduction <maximumf>, %80, %cst_24 [1] : vector<8x8xf32> to vector<8xf32>
    %82 = vector.shape_cast %81 : vector<8xf32> to vector<8x1xf32>
    %83 = vector.broadcast %82 : vector<8x1xf32> to vector<8x8xf32>
    %84 = arith.subf %80, %83 : vector<8x8xf32>
    %85 = math.exp %84 : vector<8x8xf32>
    %cst_25 = arith.constant dense<0.000000e+00> : vector<8xf32>
    %86 = vector.multi_reduction <add>, %85, %cst_25 [1] : vector<8x8xf32> to vector<8xf32>
    %87 = vector.shape_cast %86 : vector<8xf32> to vector<8x1xf32>
    %88 = tpu.reciprocal %87 {approx = true} : vector<8x1xf32> -> vector<8x1xf32>
    %89 = arith.truncf %85 : vector<8x8xf32> to vector<8x8xbf16>
    %cst_26 = arith.constant dense<0.000000e+00> : vector<8x64xf32>
    %90 = tpu.matmul %89, %78, %cst_26 {dimension_numbers = #tpu.dot_dimension_numbers<[1], [0], [0], [1], [0, 0, 1, 1], [], []>} : vector<8x8xbf16>, vector<8x64xbf16>, vector<8x64xf32> -> vector<8x64xf32>
    %91 = vector.broadcast %88 : vector<8x1xf32> to vector<8x64xf32>
    %92 = arith.mulf %90, %91 : vector<8x64xf32>
    %93 = arith.truncf %92 : vector<8x64xf32> to vector<8x64xbf16>
    %94 = vector.extract_strided_slice %28 {offsets = [0, 192], sizes = [8, 64], strides = [1, 1]} : vector<8x384xf32> to vector<8x64xf32>
    %95 = arith.truncf %94 : vector<8x64xf32> to vector<8x64xbf16>
    %96 = vector.extract_strided_slice %29 {offsets = [0, 192], sizes = [8, 64], strides = [1, 1]} : vector<8x384xf32> to vector<8x64xf32>
    %97 = arith.truncf %96 : vector<8x64xf32> to vector<8x64xbf16>
    %98 = vector.extract_strided_slice %30 {offsets = [0, 192], sizes = [8, 64], strides = [1, 1]} : vector<8x384xf32> to vector<8x64xf32>
    %99 = arith.truncf %98 : vector<8x64xf32> to vector<8x64xbf16>
    %cst_27 = arith.constant dense<0.000000e+00> : vector<8x8xf32>
    %100 = tpu.matmul %95, %97, %cst_27 {dimension_numbers = #tpu.dot_dimension_numbers<[1], [1], [0], [0], [0, 0, 1, 0], [], []>} : vector<8x64xbf16>, vector<8x64xbf16>, vector<8x8xf32> -> vector<8x8xf32>
    %101 = arith.addf %100, %27 : vector<8x8xf32>
    %cst_28 = arith.constant dense<0xFF800000> : vector<8xf32>
    %102 = vector.multi_reduction <maximumf>, %101, %cst_28 [1] : vector<8x8xf32> to vector<8xf32>
    %103 = vector.shape_cast %102 : vector<8xf32> to vector<8x1xf32>
    %104 = vector.broadcast %103 : vector<8x1xf32> to vector<8x8xf32>
    %105 = arith.subf %101, %104 : vector<8x8xf32>
    %106 = math.exp %105 : vector<8x8xf32>
    %cst_29 = arith.constant dense<0.000000e+00> : vector<8xf32>
    %107 = vector.multi_reduction <add>, %106, %cst_29 [1] : vector<8x8xf32> to vector<8xf32>
    %108 = vector.shape_cast %107 : vector<8xf32> to vector<8x1xf32>
    %109 = tpu.reciprocal %108 {approx = true} : vector<8x1xf32> -> vector<8x1xf32>
    %110 = arith.truncf %106 : vector<8x8xf32> to vector<8x8xbf16>
    %cst_30 = arith.constant dense<0.000000e+00> : vector<8x64xf32>
    %111 = tpu.matmul %110, %99, %cst_30 {dimension_numbers = #tpu.dot_dimension_numbers<[1], [0], [0], [1], [0, 0, 1, 1], [], []>} : vector<8x8xbf16>, vector<8x64xbf16>, vector<8x64xf32> -> vector<8x64xf32>
    %112 = vector.broadcast %109 : vector<8x1xf32> to vector<8x64xf32>
    %113 = arith.mulf %111, %112 : vector<8x64xf32>
    %114 = arith.truncf %113 : vector<8x64xf32> to vector<8x64xbf16>
    %115 = vector.extract_strided_slice %28 {offsets = [0, 256], sizes = [8, 64], strides = [1, 1]} : vector<8x384xf32> to vector<8x64xf32>
    %116 = arith.truncf %115 : vector<8x64xf32> to vector<8x64xbf16>
    %117 = vector.extract_strided_slice %29 {offsets = [0, 256], sizes = [8, 64], strides = [1, 1]} : vector<8x384xf32> to vector<8x64xf32>
    %118 = arith.truncf %117 : vector<8x64xf32> to vector<8x64xbf16>
    %119 = vector.extract_strided_slice %30 {offsets = [0, 256], sizes = [8, 64], strides = [1, 1]} : vector<8x384xf32> to vector<8x64xf32>
    %120 = arith.truncf %119 : vector<8x64xf32> to vector<8x64xbf16>
    %cst_31 = arith.constant dense<0.000000e+00> : vector<8x8xf32>
    %121 = tpu.matmul %116, %118, %cst_31 {dimension_numbers = #tpu.dot_dimension_numbers<[1], [1], [0], [0], [0, 0, 1, 0], [], []>} : vector<8x64xbf16>, vector<8x64xbf16>, vector<8x8xf32> -> vector<8x8xf32>
    %122 = arith.addf %121, %27 : vector<8x8xf32>
    %cst_32 = arith.constant dense<0xFF800000> : vector<8xf32>
    %123 = vector.multi_reduction <maximumf>, %122, %cst_32 [1] : vector<8x8xf32> to vector<8xf32>
    %124 = vector.shape_cast %123 : vector<8xf32> to vector<8x1xf32>
    %125 = vector.broadcast %124 : vector<8x1xf32> to vector<8x8xf32>
    %126 = arith.subf %122, %125 : vector<8x8xf32>
    %127 = math.exp %126 : vector<8x8xf32>
    %cst_33 = arith.constant dense<0.000000e+00> : vector<8xf32>
    %128 = vector.multi_reduction <add>, %127, %cst_33 [1] : vector<8x8xf32> to vector<8xf32>
    %129 = vector.shape_cast %128 : vector<8xf32> to vector<8x1xf32>
    %130 = tpu.reciprocal %129 {approx = true} : vector<8x1xf32> -> vector<8x1xf32>
    %131 = arith.truncf %127 : vector<8x8xf32> to vector<8x8xbf16>
    %cst_34 = arith.constant dense<0.000000e+00> : vector<8x64xf32>
    %132 = tpu.matmul %131, %120, %cst_34 {dimension_numbers = #tpu.dot_dimension_numbers<[1], [0], [0], [1], [0, 0, 1, 1], [], []>} : vector<8x8xbf16>, vector<8x64xbf16>, vector<8x64xf32> -> vector<8x64xf32>
    %133 = vector.broadcast %130 : vector<8x1xf32> to vector<8x64xf32>
    %134 = arith.mulf %132, %133 : vector<8x64xf32>
    %135 = arith.truncf %134 : vector<8x64xf32> to vector<8x64xbf16>
    %136 = vector.extract_strided_slice %28 {offsets = [0, 320], sizes = [8, 64], strides = [1, 1]} : vector<8x384xf32> to vector<8x64xf32>
    %137 = arith.truncf %136 : vector<8x64xf32> to vector<8x64xbf16>
    %138 = vector.extract_strided_slice %29 {offsets = [0, 320], sizes = [8, 64], strides = [1, 1]} : vector<8x384xf32> to vector<8x64xf32>
    %139 = arith.truncf %138 : vector<8x64xf32> to vector<8x64xbf16>
    %140 = vector.extract_strided_slice %30 {offsets = [0, 320], sizes = [8, 64], strides = [1, 1]} : vector<8x384xf32> to vector<8x64xf32>
    %141 = arith.truncf %140 : vector<8x64xf32> to vector<8x64xbf16>
    %cst_35 = arith.constant dense<0.000000e+00> : vector<8x8xf32>
    %142 = tpu.matmul %137, %139, %cst_35 {dimension_numbers = #tpu.dot_dimension_numbers<[1], [1], [0], [0], [0, 0, 1, 0], [], []>} : vector<8x64xbf16>, vector<8x64xbf16>, vector<8x8xf32> -> vector<8x8xf32>
    %143 = arith.addf %142, %27 : vector<8x8xf32>
    %cst_36 = arith.constant dense<0xFF800000> : vector<8xf32>
    %144 = vector.multi_reduction <maximumf>, %143, %cst_36 [1] : vector<8x8xf32> to vector<8xf32>
    %145 = vector.shape_cast %144 : vector<8xf32> to vector<8x1xf32>
    %146 = vector.broadcast %145 : vector<8x1xf32> to vector<8x8xf32>
    %147 = arith.subf %143, %146 : vector<8x8xf32>
    %148 = math.exp %147 : vector<8x8xf32>
    %cst_37 = arith.constant dense<0.000000e+00> : vector<8xf32>
    %149 = vector.multi_reduction <add>, %148, %cst_37 [1] : vector<8x8xf32> to vector<8xf32>
    %150 = vector.shape_cast %149 : vector<8xf32> to vector<8x1xf32>
    %151 = tpu.reciprocal %150 {approx = true} : vector<8x1xf32> -> vector<8x1xf32>
    %152 = arith.truncf %148 : vector<8x8xf32> to vector<8x8xbf16>
    %cst_38 = arith.constant dense<0.000000e+00> : vector<8x64xf32>
    %153 = tpu.matmul %152, %141, %cst_38 {dimension_numbers = #tpu.dot_dimension_numbers<[1], [0], [0], [1], [0, 0, 1, 1], [], []>} : vector<8x8xbf16>, vector<8x64xbf16>, vector<8x64xf32> -> vector<8x64xf32>
    %154 = vector.broadcast %151 : vector<8x1xf32> to vector<8x64xf32>
    %155 = arith.mulf %153, %154 : vector<8x64xf32>
    %156 = arith.truncf %155 : vector<8x64xf32> to vector<8x64xbf16>
    %157 = tpu.concatenate %51, %72, %93, %114, %135, %156 in 1 : vector<8x64xbf16>, vector<8x64xbf16>, vector<8x64xbf16>, vector<8x64xbf16>, vector<8x64xbf16>, vector<8x64xbf16> -> vector<8x384xbf16>
    %158 = vector.extract_strided_slice %26 {offsets = [8, 0], sizes = [8, 384], strides = [1, 1]} : vector<16x1152xf32> to vector<8x384xf32>
    %159 = vector.extract_strided_slice %26 {offsets = [8, 384], sizes = [8, 384], strides = [1, 1]} : vector<16x1152xf32> to vector<8x384xf32>
    %160 = vector.extract_strided_slice %26 {offsets = [8, 768], sizes = [8, 384], strides = [1, 1]} : vector<16x1152xf32> to vector<8x384xf32>
    %161 = vector.extract_strided_slice %158 {offsets = [0, 0], sizes = [8, 64], strides = [1, 1]} : vector<8x384xf32> to vector<8x64xf32>
    %162 = arith.truncf %161 : vector<8x64xf32> to vector<8x64xbf16>
    %163 = vector.extract_strided_slice %159 {offsets = [0, 0], sizes = [8, 64], strides = [1, 1]} : vector<8x384xf32> to vector<8x64xf32>
    %164 = arith.truncf %163 : vector<8x64xf32> to vector<8x64xbf16>
    %165 = vector.extract_strided_slice %160 {offsets = [0, 0], sizes = [8, 64], strides = [1, 1]} : vector<8x384xf32> to vector<8x64xf32>
    %166 = arith.truncf %165 : vector<8x64xf32> to vector<8x64xbf16>
    %cst_39 = arith.constant dense<0.000000e+00> : vector<8x8xf32>
    %167 = tpu.matmul %162, %164, %cst_39 {dimension_numbers = #tpu.dot_dimension_numbers<[1], [1], [0], [0], [0, 0, 1, 0], [], []>} : vector<8x64xbf16>, vector<8x64xbf16>, vector<8x8xf32> -> vector<8x8xf32>
    %168 = arith.addf %167, %27 : vector<8x8xf32>
    %cst_40 = arith.constant dense<0xFF800000> : vector<8xf32>
    %169 = vector.multi_reduction <maximumf>, %168, %cst_40 [1] : vector<8x8xf32> to vector<8xf32>
    %170 = vector.shape_cast %169 : vector<8xf32> to vector<8x1xf32>
    %171 = vector.broadcast %170 : vector<8x1xf32> to vector<8x8xf32>
    %172 = arith.subf %168, %171 : vector<8x8xf32>
    %173 = math.exp %172 : vector<8x8xf32>
    %cst_41 = arith.constant dense<0.000000e+00> : vector<8xf32>
    %174 = vector.multi_reduction <add>, %173, %cst_41 [1] : vector<8x8xf32> to vector<8xf32>
    %175 = vector.shape_cast %174 : vector<8xf32> to vector<8x1xf32>
    %176 = tpu.reciprocal %175 {approx = true} : vector<8x1xf32> -> vector<8x1xf32>
    %177 = arith.truncf %173 : vector<8x8xf32> to vector<8x8xbf16>
    %cst_42 = arith.constant dense<0.000000e+00> : vector<8x64xf32>
    %178 = tpu.matmul %177, %166, %cst_42 {dimension_numbers = #tpu.dot_dimension_numbers<[1], [0], [0], [1], [0, 0, 1, 1], [], []>} : vector<8x8xbf16>, vector<8x64xbf16>, vector<8x64xf32> -> vector<8x64xf32>
    %179 = vector.broadcast %176 : vector<8x1xf32> to vector<8x64xf32>
    %180 = arith.mulf %178, %179 : vector<8x64xf32>
    %181 = arith.truncf %180 : vector<8x64xf32> to vector<8x64xbf16>
    %182 = vector.extract_strided_slice %158 {offsets = [0, 64], sizes = [8, 64], strides = [1, 1]} : vector<8x384xf32> to vector<8x64xf32>
    %183 = arith.truncf %182 : vector<8x64xf32> to vector<8x64xbf16>
    %184 = vector.extract_strided_slice %159 {offsets = [0, 64], sizes = [8, 64], strides = [1, 1]} : vector<8x384xf32> to vector<8x64xf32>
    %185 = arith.truncf %184 : vector<8x64xf32> to vector<8x64xbf16>
    %186 = vector.extract_strided_slice %160 {offsets = [0, 64], sizes = [8, 64], strides = [1, 1]} : vector<8x384xf32> to vector<8x64xf32>
    %187 = arith.truncf %186 : vector<8x64xf32> to vector<8x64xbf16>
    %cst_43 = arith.constant dense<0.000000e+00> : vector<8x8xf32>
    %188 = tpu.matmul %183, %185, %cst_43 {dimension_numbers = #tpu.dot_dimension_numbers<[1], [1], [0], [0], [0, 0, 1, 0], [], []>} : vector<8x64xbf16>, vector<8x64xbf16>, vector<8x8xf32> -> vector<8x8xf32>
    %189 = arith.addf %188, %27 : vector<8x8xf32>
    %cst_44 = arith.constant dense<0xFF800000> : vector<8xf32>
    %190 = vector.multi_reduction <maximumf>, %189, %cst_44 [1] : vector<8x8xf32> to vector<8xf32>
    %191 = vector.shape_cast %190 : vector<8xf32> to vector<8x1xf32>
    %192 = vector.broadcast %191 : vector<8x1xf32> to vector<8x8xf32>
    %193 = arith.subf %189, %192 : vector<8x8xf32>
    %194 = math.exp %193 : vector<8x8xf32>
    %cst_45 = arith.constant dense<0.000000e+00> : vector<8xf32>
    %195 = vector.multi_reduction <add>, %194, %cst_45 [1] : vector<8x8xf32> to vector<8xf32>
    %196 = vector.shape_cast %195 : vector<8xf32> to vector<8x1xf32>
    %197 = tpu.reciprocal %196 {approx = true} : vector<8x1xf32> -> vector<8x1xf32>
    %198 = arith.truncf %194 : vector<8x8xf32> to vector<8x8xbf16>
    %cst_46 = arith.constant dense<0.000000e+00> : vector<8x64xf32>
    %199 = tpu.matmul %198, %187, %cst_46 {dimension_numbers = #tpu.dot_dimension_numbers<[1], [0], [0], [1], [0, 0, 1, 1], [], []>} : vector<8x8xbf16>, vector<8x64xbf16>, vector<8x64xf32> -> vector<8x64xf32>
    %200 = vector.broadcast %197 : vector<8x1xf32> to vector<8x64xf32>
    %201 = arith.mulf %199, %200 : vector<8x64xf32>
    %202 = arith.truncf %201 : vector<8x64xf32> to vector<8x64xbf16>
    %203 = vector.extract_strided_slice %158 {offsets = [0, 128], sizes = [8, 64], strides = [1, 1]} : vector<8x384xf32> to vector<8x64xf32>
    %204 = arith.truncf %203 : vector<8x64xf32> to vector<8x64xbf16>
    %205 = vector.extract_strided_slice %159 {offsets = [0, 128], sizes = [8, 64], strides = [1, 1]} : vector<8x384xf32> to vector<8x64xf32>
    %206 = arith.truncf %205 : vector<8x64xf32> to vector<8x64xbf16>
    %207 = vector.extract_strided_slice %160 {offsets = [0, 128], sizes = [8, 64], strides = [1, 1]} : vector<8x384xf32> to vector<8x64xf32>
    %208 = arith.truncf %207 : vector<8x64xf32> to vector<8x64xbf16>
    %cst_47 = arith.constant dense<0.000000e+00> : vector<8x8xf32>
    %209 = tpu.matmul %204, %206, %cst_47 {dimension_numbers = #tpu.dot_dimension_numbers<[1], [1], [0], [0], [0, 0, 1, 0], [], []>} : vector<8x64xbf16>, vector<8x64xbf16>, vector<8x8xf32> -> vector<8x8xf32>
    %210 = arith.addf %209, %27 : vector<8x8xf32>
    %cst_48 = arith.constant dense<0xFF800000> : vector<8xf32>
    %211 = vector.multi_reduction <maximumf>, %210, %cst_48 [1] : vector<8x8xf32> to vector<8xf32>
    %212 = vector.shape_cast %211 : vector<8xf32> to vector<8x1xf32>
    %213 = vector.broadcast %212 : vector<8x1xf32> to vector<8x8xf32>
    %214 = arith.subf %210, %213 : vector<8x8xf32>
    %215 = math.exp %214 : vector<8x8xf32>
    %cst_49 = arith.constant dense<0.000000e+00> : vector<8xf32>
    %216 = vector.multi_reduction <add>, %215, %cst_49 [1] : vector<8x8xf32> to vector<8xf32>
    %217 = vector.shape_cast %216 : vector<8xf32> to vector<8x1xf32>
    %218 = tpu.reciprocal %217 {approx = true} : vector<8x1xf32> -> vector<8x1xf32>
    %219 = arith.truncf %215 : vector<8x8xf32> to vector<8x8xbf16>
    %cst_50 = arith.constant dense<0.000000e+00> : vector<8x64xf32>
    %220 = tpu.matmul %219, %208, %cst_50 {dimension_numbers = #tpu.dot_dimension_numbers<[1], [0], [0], [1], [0, 0, 1, 1], [], []>} : vector<8x8xbf16>, vector<8x64xbf16>, vector<8x64xf32> -> vector<8x64xf32>
    %221 = vector.broadcast %218 : vector<8x1xf32> to vector<8x64xf32>
    %222 = arith.mulf %220, %221 : vector<8x64xf32>
    %223 = arith.truncf %222 : vector<8x64xf32> to vector<8x64xbf16>
    %224 = vector.extract_strided_slice %158 {offsets = [0, 192], sizes = [8, 64], strides = [1, 1]} : vector<8x384xf32> to vector<8x64xf32>
    %225 = arith.truncf %224 : vector<8x64xf32> to vector<8x64xbf16>
    %226 = vector.extract_strided_slice %159 {offsets = [0, 192], sizes = [8, 64], strides = [1, 1]} : vector<8x384xf32> to vector<8x64xf32>
    %227 = arith.truncf %226 : vector<8x64xf32> to vector<8x64xbf16>
    %228 = vector.extract_strided_slice %160 {offsets = [0, 192], sizes = [8, 64], strides = [1, 1]} : vector<8x384xf32> to vector<8x64xf32>
    %229 = arith.truncf %228 : vector<8x64xf32> to vector<8x64xbf16>
    %cst_51 = arith.constant dense<0.000000e+00> : vector<8x8xf32>
    %230 = tpu.matmul %225, %227, %cst_51 {dimension_numbers = #tpu.dot_dimension_numbers<[1], [1], [0], [0], [0, 0, 1, 0], [], []>} : vector<8x64xbf16>, vector<8x64xbf16>, vector<8x8xf32> -> vector<8x8xf32>
    %231 = arith.addf %230, %27 : vector<8x8xf32>
    %cst_52 = arith.constant dense<0xFF800000> : vector<8xf32>
    %232 = vector.multi_reduction <maximumf>, %231, %cst_52 [1] : vector<8x8xf32> to vector<8xf32>
    %233 = vector.shape_cast %232 : vector<8xf32> to vector<8x1xf32>
    %234 = vector.broadcast %233 : vector<8x1xf32> to vector<8x8xf32>
    %235 = arith.subf %231, %234 : vector<8x8xf32>
    %236 = math.exp %235 : vector<8x8xf32>
    %cst_53 = arith.constant dense<0.000000e+00> : vector<8xf32>
    %237 = vector.multi_reduction <add>, %236, %cst_53 [1] : vector<8x8xf32> to vector<8xf32>
    %238 = vector.shape_cast %237 : vector<8xf32> to vector<8x1xf32>
    %239 = tpu.reciprocal %238 {approx = true} : vector<8x1xf32> -> vector<8x1xf32>
    %240 = arith.truncf %236 : vector<8x8xf32> to vector<8x8xbf16>
    %cst_54 = arith.constant dense<0.000000e+00> : vector<8x64xf32>
    %241 = tpu.matmul %240, %229, %cst_54 {dimension_numbers = #tpu.dot_dimension_numbers<[1], [0], [0], [1], [0, 0, 1, 1], [], []>} : vector<8x8xbf16>, vector<8x64xbf16>, vector<8x64xf32> -> vector<8x64xf32>
    %242 = vector.broadcast %239 : vector<8x1xf32> to vector<8x64xf32>
    %243 = arith.mulf %241, %242 : vector<8x64xf32>
    %244 = arith.truncf %243 : vector<8x64xf32> to vector<8x64xbf16>
    %245 = vector.extract_strided_slice %158 {offsets = [0, 256], sizes = [8, 64], strides = [1, 1]} : vector<8x384xf32> to vector<8x64xf32>
    %246 = arith.truncf %245 : vector<8x64xf32> to vector<8x64xbf16>
    %247 = vector.extract_strided_slice %159 {offsets = [0, 256], sizes = [8, 64], strides = [1, 1]} : vector<8x384xf32> to vector<8x64xf32>
    %248 = arith.truncf %247 : vector<8x64xf32> to vector<8x64xbf16>
    %249 = vector.extract_strided_slice %160 {offsets = [0, 256], sizes = [8, 64], strides = [1, 1]} : vector<8x384xf32> to vector<8x64xf32>
    %250 = arith.truncf %249 : vector<8x64xf32> to vector<8x64xbf16>
    %cst_55 = arith.constant dense<0.000000e+00> : vector<8x8xf32>
    %251 = tpu.matmul %246, %248, %cst_55 {dimension_numbers = #tpu.dot_dimension_numbers<[1], [1], [0], [0], [0, 0, 1, 0], [], []>} : vector<8x64xbf16>, vector<8x64xbf16>, vector<8x8xf32> -> vector<8x8xf32>
    %252 = arith.addf %251, %27 : vector<8x8xf32>
    %cst_56 = arith.constant dense<0xFF800000> : vector<8xf32>
    %253 = vector.multi_reduction <maximumf>, %252, %cst_56 [1] : vector<8x8xf32> to vector<8xf32>
    %254 = vector.shape_cast %253 : vector<8xf32> to vector<8x1xf32>
    %255 = vector.broadcast %254 : vector<8x1xf32> to vector<8x8xf32>
    %256 = arith.subf %252, %255 : vector<8x8xf32>
    %257 = math.exp %256 : vector<8x8xf32>
    %cst_57 = arith.constant dense<0.000000e+00> : vector<8xf32>
    %258 = vector.multi_reduction <add>, %257, %cst_57 [1] : vector<8x8xf32> to vector<8xf32>
    %259 = vector.shape_cast %258 : vector<8xf32> to vector<8x1xf32>
    %260 = tpu.reciprocal %259 {approx = true} : vector<8x1xf32> -> vector<8x1xf32>
    %261 = arith.truncf %257 : vector<8x8xf32> to vector<8x8xbf16>
    %cst_58 = arith.constant dense<0.000000e+00> : vector<8x64xf32>
    %262 = tpu.matmul %261, %250, %cst_58 {dimension_numbers = #tpu.dot_dimension_numbers<[1], [0], [0], [1], [0, 0, 1, 1], [], []>} : vector<8x8xbf16>, vector<8x64xbf16>, vector<8x64xf32> -> vector<8x64xf32>
    %263 = vector.broadcast %260 : vector<8x1xf32> to vector<8x64xf32>
    %264 = arith.mulf %262, %263 : vector<8x64xf32>
    %265 = arith.truncf %264 : vector<8x64xf32> to vector<8x64xbf16>
    %266 = vector.extract_strided_slice %158 {offsets = [0, 320], sizes = [8, 64], strides = [1, 1]} : vector<8x384xf32> to vector<8x64xf32>
    %267 = arith.truncf %266 : vector<8x64xf32> to vector<8x64xbf16>
    %268 = vector.extract_strided_slice %159 {offsets = [0, 320], sizes = [8, 64], strides = [1, 1]} : vector<8x384xf32> to vector<8x64xf32>
    %269 = arith.truncf %268 : vector<8x64xf32> to vector<8x64xbf16>
    %270 = vector.extract_strided_slice %160 {offsets = [0, 320], sizes = [8, 64], strides = [1, 1]} : vector<8x384xf32> to vector<8x64xf32>
    %271 = arith.truncf %270 : vector<8x64xf32> to vector<8x64xbf16>
    %cst_59 = arith.constant dense<0.000000e+00> : vector<8x8xf32>
    %272 = tpu.matmul %267, %269, %cst_59 {dimension_numbers = #tpu.dot_dimension_numbers<[1], [1], [0], [0], [0, 0, 1, 0], [], []>} : vector<8x64xbf16>, vector<8x64xbf16>, vector<8x8xf32> -> vector<8x8xf32>
    %273 = arith.addf %272, %27 : vector<8x8xf32>
    %cst_60 = arith.constant dense<0xFF800000> : vector<8xf32>
    %274 = vector.multi_reduction <maximumf>, %273, %cst_60 [1] : vector<8x8xf32> to vector<8xf32>
    %275 = vector.shape_cast %274 : vector<8xf32> to vector<8x1xf32>
    %276 = vector.broadcast %275 : vector<8x1xf32> to vector<8x8xf32>
    %277 = arith.subf %273, %276 : vector<8x8xf32>
    %278 = math.exp %277 : vector<8x8xf32>
    %cst_61 = arith.constant dense<0.000000e+00> : vector<8xf32>
    %279 = vector.multi_reduction <add>, %278, %cst_61 [1] : vector<8x8xf32> to vector<8xf32>
    %280 = vector.shape_cast %279 : vector<8xf32> to vector<8x1xf32>
    %281 = tpu.reciprocal %280 {approx = true} : vector<8x1xf32> -> vector<8x1xf32>
    %282 = arith.truncf %278 : vector<8x8xf32> to vector<8x8xbf16>
    %cst_62 = arith.constant dense<0.000000e+00> : vector<8x64xf32>
    %283 = tpu.matmul %282, %271, %cst_62 {dimension_numbers = #tpu.dot_dimension_numbers<[1], [0], [0], [1], [0, 0, 1, 1], [], []>} : vector<8x8xbf16>, vector<8x64xbf16>, vector<8x64xf32> -> vector<8x64xf32>
    %284 = vector.broadcast %281 : vector<8x1xf32> to vector<8x64xf32>
    %285 = arith.mulf %283, %284 : vector<8x64xf32>
    %286 = arith.truncf %285 : vector<8x64xf32> to vector<8x64xbf16>
    %287 = tpu.concatenate %181, %202, %223, %244, %265, %286 in 1 : vector<8x64xbf16>, vector<8x64xbf16>, vector<8x64xbf16>, vector<8x64xbf16>, vector<8x64xbf16>, vector<8x64xbf16> -> vector<8x384xbf16>
    %288 = tpu.concatenate %157, %287 in 0 : vector<8x384xbf16>, vector<8x384xbf16> -> vector<16x384xbf16>
    %c0_63 = arith.constant 0 : index
    %c0_64 = arith.constant 0 : index
    %289 = vector.load %arg6[%c0_63, %c0_64] : memref<384x384xbf16, #tpu.memory_space<vmem>>, vector<384x384xbf16>
    %cst_65 = arith.constant dense<0.000000e+00> : vector<16x384xf32>
    %290 = tpu.matmul %288, %289, %cst_65 {dimension_numbers = #tpu.dot_dimension_numbers<[1], [0], [0], [1], [0, 0, 1, 1], [], []>} : vector<16x384xbf16>, vector<384x384xbf16>, vector<16x384xf32> -> vector<16x384xf32>
    %c0_66 = arith.constant 0 : index
    %c0_67 = arith.constant 0 : index
    %291 = vector.load %arg7[%c0_66, %c0_67] : memref<1x384xf32, #tpu.memory_space<vmem>>, vector<1x384xf32>
    %292 = vector.broadcast %291 : vector<1x384xf32> to vector<16x384xf32>
    %293 = arith.addf %290, %292 : vector<16x384xf32>
    %294 = arith.addf %1, %293 : vector<16x384xf32>
    %cst_68 = arith.constant dense<0.000000e+00> : vector<16xf32>
    %295 = vector.multi_reduction <add>, %294, %cst_68 [1] : vector<16x384xf32> to vector<16xf32>
    %296 = vector.shape_cast %295 : vector<16xf32> to vector<16x1xf32>
    %cst_69 = arith.constant 3.840000e+02 : f32
    %297 = vector.broadcast %cst_69 : f32 to vector<16x1xf32>
    %298 = arith.divf %296, %297 : vector<16x1xf32>
    %299 = vector.broadcast %298 : vector<16x1xf32> to vector<16x384xf32>
    %300 = arith.subf %294, %299 : vector<16x384xf32>
    %301 = arith.mulf %300, %300 : vector<16x384xf32>
    %cst_70 = arith.constant dense<0.000000e+00> : vector<16xf32>
    %302 = vector.multi_reduction <add>, %301, %cst_70 [1] : vector<16x384xf32> to vector<16xf32>
    %303 = vector.shape_cast %302 : vector<16xf32> to vector<16x1xf32>
    %cst_71 = arith.constant 3.840000e+02 : f32
    %304 = vector.broadcast %cst_71 : f32 to vector<16x1xf32>
    %305 = arith.divf %303, %304 : vector<16x1xf32>
    %cst_72 = arith.constant 9.99999974E-6 : f32
    %306 = vector.broadcast %cst_72 : f32 to vector<16x1xf32>
    %307 = arith.addf %305, %306 : vector<16x1xf32>
    %308 = math.rsqrt %307 : vector<16x1xf32>
    %309 = vector.broadcast %308 : vector<16x1xf32> to vector<16x384xf32>
    %310 = arith.mulf %300, %309 : vector<16x384xf32>
    %c0_73 = arith.constant 0 : index
    %c0_74 = arith.constant 0 : index
    %311 = vector.load %arg8[%c0_73, %c0_74] : memref<1x384xf32, #tpu.memory_space<vmem>>, vector<1x384xf32>
    %312 = vector.broadcast %311 : vector<1x384xf32> to vector<16x384xf32>
    %313 = arith.mulf %310, %312 : vector<16x384xf32>
    %c0_75 = arith.constant 0 : index
    %c0_76 = arith.constant 0 : index
    %314 = vector.load %arg9[%c0_75, %c0_76] : memref<1x384xf32, #tpu.memory_space<vmem>>, vector<1x384xf32>
    %315 = vector.broadcast %314 : vector<1x384xf32> to vector<16x384xf32>
    %316 = arith.addf %313, %315 : vector<16x384xf32>
    %317 = arith.truncf %316 : vector<16x384xf32> to vector<16x384xbf16>
    %c0_77 = arith.constant 0 : index
    %c0_78 = arith.constant 0 : index
    %318 = vector.load %arg10[%c0_77, %c0_78] : memref<384x1536xbf16, #tpu.memory_space<vmem>>, vector<384x1536xbf16>
    %cst_79 = arith.constant dense<0.000000e+00> : vector<16x1536xf32>
    %319 = tpu.matmul %317, %318, %cst_79 {dimension_numbers = #tpu.dot_dimension_numbers<[1], [0], [0], [1], [0, 0, 1, 1], [], []>} : vector<16x384xbf16>, vector<384x1536xbf16>, vector<16x1536xf32> -> vector<16x1536xf32>
    %c0_80 = arith.constant 0 : index
    %c0_81 = arith.constant 0 : index
    %320 = vector.load %arg11[%c0_80, %c0_81] : memref<1x1536xf32, #tpu.memory_space<vmem>>, vector<1x1536xf32>
    %321 = vector.broadcast %320 : vector<1x1536xf32> to vector<16x1536xf32>
    %322 = arith.addf %319, %321 : vector<16x1536xf32>
    %cst_82 = arith.constant 0.000000e+00 : f32
    %323 = vector.broadcast %cst_82 : f32 to vector<16x1536xf32>
    %324 = arith.maximumf %322, %323 : vector<16x1536xf32>
    %325 = arith.truncf %324 : vector<16x1536xf32> to vector<16x1536xbf16>
    %c0_83 = arith.constant 0 : index
    %c0_84 = arith.constant 0 : index
    %326 = vector.load %arg12[%c0_83, %c0_84] : memref<1536x384xbf16, #tpu.memory_space<vmem>>, vector<1536x384xbf16>
    %cst_85 = arith.constant dense<0.000000e+00> : vector<16x384xf32>
    %327 = tpu.matmul %325, %326, %cst_85 {dimension_numbers = #tpu.dot_dimension_numbers<[1], [0], [0], [1], [0, 0, 1, 1], [], []>} : vector<16x1536xbf16>, vector<1536x384xbf16>, vector<16x384xf32> -> vector<16x384xf32>
    %c0_86 = arith.constant 0 : index
    %c0_87 = arith.constant 0 : index
    %328 = vector.load %arg13[%c0_86, %c0_87] : memref<1x384xf32, #tpu.memory_space<vmem>>, vector<1x384xf32>
    %329 = vector.broadcast %328 : vector<1x384xf32> to vector<16x384xf32>
    %330 = arith.addf %327, %329 : vector<16x384xf32>
    %331 = arith.addf %294, %330 : vector<16x384xf32>
    %332 = vector.shape_cast %331 : vector<16x384xf32> to vector<2x8x384xf32>
    %c0_88 = arith.constant 0 : index
    %c0_89 = arith.constant 0 : index
    %c0_90 = arith.constant 0 : index
    %333 = vector.load %arg14[%c0_88, %c0_89, %c0_90] : memref<2x8x384xf32, #tpu.memory_space<vmem>>, vector<2x8x384xf32>
    tpu.vector_store %arg14[%c0_88, %c0_89, %c0_90], %332 {strides = array<i32>} : memref<2x8x384xf32, #tpu.memory_space<vmem>>, vector<2x8x384xf32>,
    return
  }
  func.func @transform_0(%arg0: i32) -> (i32, i32, i32) {
    %c0_i32 = arith.constant 0 : i32
    %c0_i32_0 = arith.constant 0 : i32
    %c0_i32_1 = arith.constant 0 : i32
    return %arg0, %c0_i32, %c0_i32_0 : i32, i32, i32
  }
  func.func @transform_1(%arg0: i32) -> (i32, i32) {
    %c0_i32 = arith.constant 0 : i32
    %c0_i32_0 = arith.constant 0 : i32
    %c0_i32_1 = arith.constant 0 : i32
    return %c0_i32, %c0_i32_0 : i32, i32
  }
  func.func @transform_2(%arg0: i32) -> (i32, i32) {
    %c0_i32 = arith.constant 0 : i32
    %c0_i32_0 = arith.constant 0 : i32
    %c0_i32_1 = arith.constant 0 : i32
    return %c0_i32, %c0_i32_0 : i32, i32
  }
  func.func @transform_3(%arg0: i32) -> (i32, i32) {
    %c0_i32 = arith.constant 0 : i32
    %c0_i32_0 = arith.constant 0 : i32
    %c0_i32_1 = arith.constant 0 : i32
    return %c0_i32, %c0_i32_0 : i32, i32
  }
  func.func @transform_4(%arg0: i32) -> (i32, i32) {
    %c0_i32 = arith.constant 0 : i32
    %c0_i32_0 = arith.constant 0 : i32
    %c0_i32_1 = arith.constant 0 : i32
    return %c0_i32, %c0_i32_0 : i32, i32
  }
  func.func @transform_5(%arg0: i32) -> (i32, i32) {
    %c0_i32 = arith.constant 0 : i32
    %c0_i32_0 = arith.constant 0 : i32
    %c0_i32_1 = arith.constant 0 : i32
    return %c0_i32, %c0_i32_0 : i32, i32
  }
  func.func @transform_6(%arg0: i32) -> (i32, i32) {
    %c0_i32 = arith.constant 0 : i32
    %c0_i32_0 = arith.constant 0 : i32
    %c0_i32_1 = arith.constant 0 : i32
    return %c0_i32, %c0_i32_0 : i32, i32
  }
  func.func @transform_7(%arg0: i32) -> (i32, i32) {
    %c0_i32 = arith.constant 0 : i32
    %c0_i32_0 = arith.constant 0 : i32
    %c0_i32_1 = arith.constant 0 : i32
    return %c0_i32, %c0_i32_0 : i32, i32
  }
  func.func @transform_8(%arg0: i32) -> (i32, i32) {
    %c0_i32 = arith.constant 0 : i32
    %c0_i32_0 = arith.constant 0 : i32
    %c0_i32_1 = arith.constant 0 : i32
    return %c0_i32, %c0_i32_0 : i32, i32
  }
  func.func @transform_9(%arg0: i32) -> (i32, i32) {
    %c0_i32 = arith.constant 0 : i32
    %c0_i32_0 = arith.constant 0 : i32
    %c0_i32_1 = arith.constant 0 : i32
    return %c0_i32, %c0_i32_0 : i32, i32
  }
  func.func @transform_10(%arg0: i32) -> (i32, i32) {
    %c0_i32 = arith.constant 0 : i32
    %c0_i32_0 = arith.constant 0 : i32
    %c0_i32_1 = arith.constant 0 : i32
    return %c0_i32, %c0_i32_0 : i32, i32
  }
  func.func @transform_11(%arg0: i32) -> (i32, i32) {
    %c0_i32 = arith.constant 0 : i32
    %c0_i32_0 = arith.constant 0 : i32
    %c0_i32_1 = arith.constant 0 : i32
    return %c0_i32, %c0_i32_0 : i32, i32
  }
  func.func @transform_12(%arg0: i32) -> (i32, i32) {
    %c0_i32 = arith.constant 0 : i32
    %c0_i32_0 = arith.constant 0 : i32
    %c0_i32_1 = arith.constant 0 : i32
    return %c0_i32, %c0_i32_0 : i32, i32
  }
  func.func @transform_13(%arg0: i32) -> (i32, i32, i32) {
    %c0_i32 = arith.constant 0 : i32
    %c0_i32_0 = arith.constant 0 : i32
    %c0_i32_1 = arith.constant 0 : i32
    return %arg0, %c0_i32, %c0_i32_0 : i32, i32, i32
  }
}

</mosaic_0001>

<llo_original>
// kernel: transformer_block_forward.1
$region0: #{transformer_block_forward.1}
  #allocation0 [shape = 'u32[]', space=smem, size = 0x4, offset = 0x4, fixed_abs, tag = 'smem constant byte address 0x4 - core index']
  #allocation1 [shape = 'u32[144,128]{1,0:T(1,128)}', space=vmem, size = 0x12000, scoped, tag = 'internal scratch']
  %s0 = inlined_call_operand.hbm [shape: f32[2,8,384], index: 0, kind: input, shape index: {}]
  %s1 = inlined_call_operand.vmem [shape: f32[8,8], index: 1, kind: input, shape index: {}]
  %s2 = inlined_call_operand.hbm [shape: f32[1,384], index: 2, kind: input, shape index: {}]
  %s3 = inlined_call_operand.hbm [shape: f32[1,384], index: 3, kind: input, shape index: {}]
  %s4 = inlined_call_operand.hbm [shape: bf16[384,1152], index: 4, kind: input, shape index: {}]
  %s5 = inlined_call_operand.hbm [shape: bf16[384,384], index: 5, kind: input, shape index: {}]
  %s6 = inlined_call_operand.hbm [shape: f32[1,384], index: 6, kind: input, shape index: {}]
  %s7 = inlined_call_operand.hbm [shape: f32[1,384], index: 7, kind: input, shape index: {}]
  %s8 = inlined_call_operand.hbm [shape: f32[1,384], index: 8, kind: input, shape index: {}]
  %s9 = inlined_call_operand.hbm [shape: bf16[384,1536], index: 9, kind: input, shape index: {}]
  %s10 = inlined_call_operand.hbm [shape: f32[1,1536], index: 10, kind: input, shape index: {}]
  %s11 = inlined_call_operand.hbm [shape: bf16[1536,384], index: 11, kind: input, shape index: {}]
  %s12 = inlined_call_operand.hbm [shape: f32[1,384], index: 12, kind: input, shape index: {}]
  %s13 = inlined_call_operand.hbm [shape: f32[2,8,384], index: 13, kind: output, shape index: {}]
  %s14 = sld [smem:[#allocation0]]
  $region110: #{transformer_block_forward.1} parent=0
    _
  %s16 = ssub.s32 1, %s14
  %s17 = scalar_select 0, %s16, %s14
  $region1: #{transformer_block_forward.1} parent=0
    #allocation2 [shape = 'u8[24576]{0}', space=vmem, size = 0x6000, scoped, tag = 'input window, operand 0, single buffered']
    #allocation3 [shape = 's32[1]{0}', space=sflag, size = 0x4, scoped, tag = 'scoped memory for transformer_block_forward.1']
    #allocation4 [shape = 's32[1]{0}', space=sflag, size = 0x4, scoped, tag = 'scoped memory for transformer_block_forward.1']
    #allocation5 [shape = 'u8[1536]{0}', space=vmem, size = 0x800, scoped, tag = 'input window, operand 2, single buffered']
    #allocation6 [shape = 's32[1]{0}', space=sflag, size = 0x4, scoped, tag = 'scoped memory for transformer_block_forward.1']
    #allocation7 [shape = 'u8[1536]{0}', space=vmem, size = 0x800, scoped, tag = 'input window, operand 3, single buffered']
    #allocation8 [shape = 'u8[884736]{0}', space=vmem, size = 0xd8000, scoped, tag = 'input window, operand 4, single buffered']
    #allocation9 [shape = 's32[1]{0}', space=sflag, size = 0x4, scoped, tag = 'scoped memory for transformer_block_forward.1']
    #allocation10 [shape = 'u8[294912]{0}', space=vmem, size = 0x48000, scoped, tag = 'input window, operand 5, single buffered']
    #allocation11 [shape = 'u8[1536]{0}', space=vmem, size = 0x800, scoped, tag = 'input window, operand 6, single buffered']
    #allocation12 [shape = 's32[1]{0}', space=sflag, size = 0x4, scoped, tag = 'scoped memory for transformer_block_forward.1']
    #allocation13 [shape = 'u8[1536]{0}', space=vmem, size = 0x800, scoped, tag = 'input window, operand 7, single buffered']
    #allocation14 [shape = 'u8[1536]{0}', space=vmem, size = 0x800, scoped, tag = 'input window, operand 8, single buffered']
    #allocation15 [shape = 's32[1]{0}', space=sflag, size = 0x4, scoped, tag = 'scoped memory for transformer_block_forward.1']
    #allocation16 [shape = 'u8[1179648]{0}', space=vmem, size = 0x120000, scoped, tag = 'input window, operand 9, single buffered']
    #allocation17 [shape = 'u8[6144]{0}', space=vmem, size = 0x1800, scoped, tag = 'input window, operand 10, single buffered']
    #allocation18 [shape = 's32[1]{0}', space=sflag, size = 0x4, scoped, tag = 'scoped memory for transformer_block_forward.1']
    #allocation19 [shape = 'u8[1179648]{0}', space=vmem, size = 0x120000, scoped, tag = 'input window, operand 11, single buffered']
    #allocation20 [shape = 'u8[1536]{0}', space=vmem, size = 0x800, scoped, tag = 'input window, operand 12, single buffered']
    #allocation21 [shape = 's32[1]{0}', space=sflag, size = 0x4, scoped, tag = 'scoped memory for transformer_block_forward.1']
    #allocation22 [shape = 'u8[24576]{0}', space=vmem, size = 0x6000, scoped, tag = 'output window, operand 0, single buffered']
    %18 = vsyncpa [#allocation3], 0
    %19 = vsyncpa [#allocation6], 0
    %20 = vsyncpa [#allocation9], 0
    %21 = vsyncpa [#allocation12], 0
    %22 = vsyncpa [#allocation15], 0
    %23 = vsyncpa [#allocation18], 0
    %24 = vsyncpa [#allocation21], 0
    %25 = vsyncpa [#allocation4], 0
    // Predicated region
    $region2: #{transformer_block_forward.1} parent=1 // pred_check
      _
    $region3: #{transformer_block_forward.1} parent=1 // pred_check_branch
      %27 = sbr.rel (0) target = $region5
    $region4: #{transformer_block_forward.1} parent=1 // pred_region
      %s29 = ssub.s32 768, 768
      %30 = vsyncadd [#allocation3], %s29
      %s31 = sshll.u32 [#allocation2], 4
      %s32 = int_to_ptr.vmem [resolvable:$true] %s31
      %37 = dma.hbm_to_vmem [thread:$0]  %s0, 768, %s32, [#allocation3], 384, 384, 24
    $region5: #{transformer_block_forward.1} parent=1 // pred_fallthru
      _
    // Predicated region
    $region6: #{transformer_block_forward.1} parent=1 // pred_check
      _
    $region7: #{transformer_block_forward.1} parent=1 // pred_check_branch
      %39 = sbr.rel (0) target = $region9
    $region8: #{transformer_block_forward.1} parent=1 // pred_region
      _
    $region9: #{transformer_block_forward.1} parent=1 // pred_fallthru
      _
    // Predicated region
    $region10: #{transformer_block_forward.1} parent=1 // pred_check
      _
    $region11: #{transformer_block_forward.1} parent=1 // pred_check_branch
      %41 = sbr.rel (0) target = $region13
    $region12: #{transformer_block_forward.1} parent=1 // pred_region
      %s43 = ssub.s32 48, 48
      %44 = vsyncadd [#allocation6], %s43
      %s46 = sshll.u32 [#allocation5], 4
      %s47 = int_to_ptr.vmem [resolvable:$true] %s46
      %49 = dma.hbm_to_vmem [thread:$0]  %s2, 48, %s47, [#allocation6]
    $region13: #{transformer_block_forward.1} parent=1 // pred_fallthru
      _
    // Predicated region
    $region14: #{transformer_block_forward.1} parent=1 // pred_check
      _
    $region15: #{transformer_block_forward.1} parent=1 // pred_check_branch
      %51 = sbr.rel (0) target = $region17
    $region16: #{transformer_block_forward.1} parent=1 // pred_region
      %s53 = ssub.s32 48, 48
      %54 = vsyncadd [#allocation6], %s53
      %s56 = sshll.u32 [#allocation7], 4
      %s57 = int_to_ptr.vmem [resolvable:$true] %s56
      %59 = dma.hbm_to_vmem [thread:$0]  %s3, 48, %s57, [#allocation6]
    $region17: #{transformer_block_forward.1} parent=1 // pred_fallthru
      _
    // Predicated region
    $region18: #{transformer_block_forward.1} parent=1 // pred_check
      _
    $region19: #{transformer_block_forward.1} parent=1 // pred_check_branch
      %61 = sbr.rel (0) target = $region21
    $region20: #{transformer_block_forward.1} parent=1 // pred_region
      %s63 = ssub.s32 27648, 27648
      %64 = vsyncadd [#allocation9], %s63
      %s65 = sshll.u32 [#allocation8], 4
      %s66 = int_to_ptr.vmem [resolvable:$true] %s65
      %71 = dma.hbm_to_vmem [thread:$0]  %s4, 27648, %s66, [#allocation9], 576, 576, 36
    $region21: #{transformer_block_forward.1} parent=1 // pred_fallthru
      _
    // Predicated region
    $region22: #{transformer_block_forward.1} parent=1 // pred_check
      _
    $region23: #{transformer_block_forward.1} parent=1 // pred_check_branch
      %73 = sbr.rel (0) target = $region25
    $region24: #{transformer_block_forward.1} parent=1 // pred_region
      %s75 = ssub.s32 9216, 9216
      %76 = vsyncadd [#allocation9], %s75
      %s77 = sshll.u32 [#allocation10], 4
      %s78 = int_to_ptr.vmem [resolvable:$true] %s77
      %83 = dma.hbm_to_vmem [thread:$0]  %s5, 9216, %s78, [#allocation9], 192, 192, 12
    $region25: #{transformer_block_forward.1} parent=1 // pred_fallthru
      _
    // Predicated region
    $region26: #{transformer_block_forward.1} parent=1 // pred_check
      _
    $region27: #{transformer_block_forward.1} parent=1 // pred_check_branch
      %85 = sbr.rel (0) target = $region29
    $region28: #{transformer_block_forward.1} parent=1 // pred_region
      %s87 = ssub.s32 48, 48
      %88 = vsyncadd [#allocation12], %s87
      %s90 = sshll.u32 [#allocation11], 4
      %s91 = int_to_ptr.vmem [resolvable:$true] %s90
      %93 = dma.hbm_to_vmem [thread:$0]  %s6, 48, %s91, [#allocation12]
    $region29: #{transformer_block_forward.1} parent=1 // pred_fallthru
      _
    // Predicated region
    $region30: #{transformer_block_forward.1} parent=1 // pred_check
      _
    $region31: #{transformer_block_forward.1} parent=1 // pred_check_branch
      %95 = sbr.rel (0) target = $region33
    $region32: #{transformer_block_forward.1} parent=1 // pred_region
      %s97 = ssub.s32 48, 48
      %98 = vsyncadd [#allocation12], %s97
      %s100 = sshll.u32 [#allocation13], 4
      %s101 = int_to_ptr.vmem [resolvable:$true] %s100
      %103 = dma.hbm_to_vmem [thread:$0]  %s7, 48, %s101, [#allocation12]
    $region33: #{transformer_block_forward.1} parent=1 // pred_fallthru
      _
    // Predicated region
    $region34: #{transformer_block_forward.1} parent=1 // pred_check
      _
    $region35: #{transformer_block_forward.1} parent=1 // pred_check_branch
      %105 = sbr.rel (0) target = $region37
    $region36: #{transformer_block_forward.1} parent=1 // pred_region
      %s107 = ssub.s32 48, 48
      %108 = vsyncadd [#allocation15], %s107
      %s110 = sshll.u32 [#allocation14], 4
      %s111 = int_to_ptr.vmem [resolvable:$true] %s110
      %113 = dma.hbm_to_vmem [thread:$0]  %s8, 48, %s111, [#allocation15]
    $region37: #{transformer_block_forward.1} parent=1 // pred_fallthru
      _
    // Predicated region
    $region38: #{transformer_block_forward.1} parent=1 // pred_check
      _
    $region39: #{transformer_block_forward.1} parent=1 // pred_check_branch
      %115 = sbr.rel (0) target = $region41
    $region40: #{transformer_block_forward.1} parent=1 // pred_region
      %s117 = ssub.s32 36864, 36864
      %118 = vsyncadd [#allocation15], %s117
      %s119 = sshll.u32 [#allocation16], 4
      %s120 = int_to_ptr.vmem [resolvable:$true] %s119
      %125 = dma.hbm_to_vmem [thread:$0]  %s9, 36864, %s120, [#allocation15], 768, 768, 48
    $region41: #{transformer_block_forward.1} parent=1 // pred_fallthru
      _
    // Predicated region
    $region42: #{transformer_block_forward.1} parent=1 // pred_check
      _
    $region43: #{transformer_block_forward.1} parent=1 // pred_check_branch
      %127 = sbr.rel (0) target = $region45
    $region44: #{transformer_block_forward.1} parent=1 // pred_region
      %s129 = ssub.s32 192, 192
      %130 = vsyncadd [#allocation18], %s129
      %s132 = sshll.u32 [#allocation17], 4
      %s133 = int_to_ptr.vmem [resolvable:$true] %s132
      %135 = dma.hbm_to_vmem [thread:$0]  %s10, 192, %s133, [#allocation18]
    $region45: #{transformer_block_forward.1} parent=1 // pred_fallthru
      _
    // Predicated region
    $region46: #{transformer_block_forward.1} parent=1 // pred_check
      _
    $region47: #{transformer_block_forward.1} parent=1 // pred_check_branch
      %137 = sbr.rel (0) target = $region49
    $region48: #{transformer_block_forward.1} parent=1 // pred_region
      %s139 = ssub.s32 36864, 36864
      %140 = vsyncadd [#allocation18], %s139
      %s141 = sshll.u32 [#allocation19], 4
      %s142 = int_to_ptr.vmem [resolvable:$true] %s141
      %147 = dma.hbm_to_vmem [thread:$0]  %s11, 36864, %s142, [#allocation18], 192, 192, 12
    $region49: #{transformer_block_forward.1} parent=1 // pred_fallthru
      _
    // Predicated region
    $region50: #{transformer_block_forward.1} parent=1 // pred_check
      _
    $region51: #{transformer_block_forward.1} parent=1 // pred_check_branch
      %149 = sbr.rel (0) target = $region53
    $region52: #{transformer_block_forward.1} parent=1 // pred_region
      %s151 = ssub.s32 48, 48
      %152 = vsyncadd [#allocation21], %s151
      %s154 = sshll.u32 [#allocation20], 4
      %s155 = int_to_ptr.vmem [resolvable:$true] %s154
      %157 = dma.hbm_to_vmem [thread:$0]  %s12, 48, %s155, [#allocation21]
    $region53: #{transformer_block_forward.1} parent=1 // pred_fallthru
      _
    // Predicated region
    $region54: #{transformer_block_forward.1} parent=1 // pred_check
      _
    $region55: #{transformer_block_forward.1} parent=1 // pred_check_branch
      %159 = sbr.rel (0) target = $region57
    $region56: #{transformer_block_forward.1} parent=1 // pred_region
      %160 = dma.done [#allocation3], 768
    $region57: #{transformer_block_forward.1} parent=1 // pred_fallthru
      _
    // Predicated region
    $region58: #{transformer_block_forward.1} parent=1 // pred_check
      _
    $region59: #{transformer_block_forward.1} parent=1 // pred_check_branch
      %162 = sbr.rel (0) target = $region61
    $region60: #{transformer_block_forward.1} parent=1 // pred_region
      %163 = dma.done [#allocation6], 48
    $region61: #{transformer_block_forward.1} parent=1 // pred_fallthru
      _
    // Predicated region
    $region62: #{transformer_block_forward.1} parent=1 // pred_check
      _
    $region63: #{transformer_block_forward.1} parent=1 // pred_check_branch
      %165 = sbr.rel (0) target = $region65
    $region64: #{transformer_block_forward.1} parent=1 // pred_region
      %166 = dma.done [#allocation6], 48
    $region65: #{transformer_block_forward.1} parent=1 // pred_fallthru
      _
    // Predicated region
    $region66: #{transformer_block_forward.1} parent=1 // pred_check
      _
    $region67: #{transformer_block_forward.1} parent=1 // pred_check_branch
      %168 = sbr.rel (0) target = $region69
    $region68: #{transformer_block_forward.1} parent=1 // pred_region
      %169 = dma.done [#allocation9], 27648
    $region69: #{transformer_block_forward.1} parent=1 // pred_fallthru
      _
    // Predicated region
    $region70: #{transformer_block_forward.1} parent=1 // pred_check
      _
    $region71: #{transformer_block_forward.1} parent=1 // pred_check_branch
      %171 = sbr.rel (0) target = $region73
    $region72: #{transformer_block_forward.1} parent=1 // pred_region
      %172 = dma.done [#allocation9], 9216
    $region73: #{transformer_block_forward.1} parent=1 // pred_fallthru
      _
    // Predicated region
    $region74: #{transformer_block_forward.1} parent=1 // pred_check
      _
    $region75: #{transformer_block_forward.1} parent=1 // pred_check_branch
      %174 = sbr.rel (0) target = $region77
    $region76: #{transformer_block_forward.1} parent=1 // pred_region
      %175 = dma.done [#allocation12], 48
    $region77: #{transformer_block_forward.1} parent=1 // pred_fallthru
      _
    // Predicated region
    $region78: #{transformer_block_forward.1} parent=1 // pred_check
      _
    $region79: #{transformer_block_forward.1} parent=1 // pred_check_branch
      %177 = sbr.rel (0) target = $region81
    $region80: #{transformer_block_forward.1} parent=1 // pred_region
      %178 = dma.done [#allocation12], 48
    $region81: #{transformer_block_forward.1} parent=1 // pred_fallthru
      _
    // Predicated region
    $region82: #{transformer_block_forward.1} parent=1 // pred_check
      _
    $region83: #{transformer_block_forward.1} parent=1 // pred_check_branch
      %180 = sbr.rel (0) target = $region85
    $region84: #{transformer_block_forward.1} parent=1 // pred_region
      %181 = dma.done [#allocation15], 48
    $region85: #{transformer_block_forward.1} parent=1 // pred_fallthru
      _
    // Predicated region
    $region86: #{transformer_block_forward.1} parent=1 // pred_check
      _
    $region87: #{transformer_block_forward.1} parent=1 // pred_check_branch
      %183 = sbr.rel (0) target = $region89
    $region88: #{transformer_block_forward.1} parent=1 // pred_region
      %184 = dma.done [#allocation15], 36864
    $region89: #{transformer_block_forward.1} parent=1 // pred_fallthru
      _
    // Predicated region
    $region90: #{transformer_block_forward.1} parent=1 // pred_check
      _
    $region91: #{transformer_block_forward.1} parent=1 // pred_check_branch
      %186 = sbr.rel (0) target = $region93
    $region92: #{transformer_block_forward.1} parent=1 // pred_region
      %187 = dma.done [#allocation18], 192
    $region93: #{transformer_block_forward.1} parent=1 // pred_fallthru
      _
    // Predicated region
    $region94: #{transformer_block_forward.1} parent=1 // pred_check
      _
    $region95: #{transformer_block_forward.1} parent=1 // pred_check_branch
      %189 = sbr.rel (0) target = $region97
    $region96: #{transformer_block_forward.1} parent=1 // pred_region
      %190 = dma.done [#allocation18], 36864
    $region97: #{transformer_block_forward.1} parent=1 // pred_fallthru
      _
    // Predicated region
    $region98: #{transformer_block_forward.1} parent=1 // pred_check
      _
    $region99: #{transformer_block_forward.1} parent=1 // pred_check_branch
      %192 = sbr.rel (0) target = $region101
    $region100: #{transformer_block_forward.1} parent=1 // pred_region
      %193 = dma.done [#allocation21], 48
    $region101: #{transformer_block_forward.1} parent=1 // pred_fallthru
      _
    %v195 = vld [vmem:[#allocation2] sm:$0xff]
    %v196 = vld [vmem:[#allocation2 + $0x8] sm:$0xff]
    %v197 = vld [vmem:[#allocation2 + $0x10] sm:$0xff]
    %v198 = vld [vmem:[#allocation2 + $0x18] sm:$0xff]
    %v199 = vld [vmem:[#allocation2 + $0x20] sm:$0xff]
    %v200 = vld [vmem:[#allocation2 + $0x28] sm:$0xff]
    %v201 = vadd.f32 %v195, %v196
    %v202 = vadd.f32 %v201, %v197
    %203 = vadd.xlane.f32.xlu0 %v202
    %v204 = vpop.xlane.xlu0 %203
    %v205 = vadd.f32 %v198, %v199
    %v206 = vadd.f32 %v205, %v200
    %207 = vadd.xlane.f32.xlu0 %v206
    %v208 = vpop.xlane.xlu0 %207
    %v209 = vrcp.pop 384.0
    %v210 = vmul.f32 %v204, %v209
    %v211 = vmul.f32 %v208, %v209
    %v212 = vsub.f32 %v195, %v210
    %v213 = vsub.f32 %v196, %v210
    %v214 = vsub.f32 %v197, %v210
    %v215 = vsub.f32 %v198, %v211
    %v216 = vsub.f32 %v199, %v211
    %v217 = vsub.f32 %v200, %v211
    %v218 = vmul.f32 %v212, %v212
    %v219 = vmul.f32 %v213, %v213
    %v220 = vmul.f32 %v214, %v214
    %v221 = vmul.f32 %v215, %v215
    %v222 = vmul.f32 %v216, %v216
    %v223 = vmul.f32 %v217, %v217
    %v224 = vadd.f32 %v218, %v219
    %v225 = vadd.f32 %v224, %v220
    %226 = vadd.xlane.f32.xlu0 %v225
    %v227 = vpop.xlane.xlu0 %226
    %v228 = vadd.f32 %v221, %v222
    %v229 = vadd.f32 %v228, %v223
    %230 = vadd.xlane.f32.xlu0 %v229
    %v231 = vpop.xlane.xlu0 %230
    %v232 = vmul.f32 %v227, %v209
    %v233 = vmul.f32 %v231, %v209
    %v234 = vadd.f32 %v232, 1e-05
    %v235 = vadd.f32 %v233, 1e-05
    %v236 = vrsqrt.pop %v234
    %v237 = vrsqrt.pop %v235
    %v238 = vmul.f32 %v212, %v236
    %v239 = vmul.f32 %v213, %v236
    %v240 = vmul.f32 %v214, %v236
    %v241 = vmul.f32 %v215, %v237
    %v242 = vmul.f32 %v216, %v237
    %v243 = vmul.f32 %v217, %v237
    %v244 = vld [vmem:[#allocation5] sm:$0x7]
    %v246 = vlaneseq
    %v247 = vshrl.u32 %v246, 7
    %v248 = vsub.s32 0, %v247
    %v249 = vrot.slane %v244, %v248
    %v250 = vlaneseq
    %v251 = vshrl.u32 %v250, 7
    %v252 = vsub.s32 1, %v251
    %v253 = vrot.slane %v244, %v252
    %v254 = vlaneseq
    %v255 = vshrl.u32 %v254, 7
    %v256 = vsub.s32 2, %v255
    %v257 = vrot.slane %v244, %v256
    %v261 = vmul.f32 %v238, %v249
    %v262 = vmul.f32 %v239, %v253
    %v263 = vmul.f32 %v240, %v257
    %v264 = vmul.f32 %v241, %v249
    %v265 = vmul.f32 %v242, %v253
    %v266 = vmul.f32 %v243, %v257
    %v267 = vld [vmem:[#allocation7] sm:$0x7]
    %v269 = vlaneseq
    %v270 = vshrl.u32 %v269, 7
    %v271 = vsub.s32 0, %v270
    %v272 = vrot.slane %v267, %v271
    %v273 = vlaneseq
    %v274 = vshrl.u32 %v273, 7
    %v275 = vsub.s32 1, %v274
    %v276 = vrot.slane %v267, %v275
    %v277 = vlaneseq
    %v278 = vshrl.u32 %v277, 7
    %v279 = vsub.s32 2, %v278
    %v280 = vrot.slane %v267, %v279
    %v284 = vadd.f32 %v261, %v272
    %v285 = vadd.f32 %v262, %v276
    %v286 = vadd.f32 %v263, %v280
    %v287 = vadd.f32 %v264, %v272
    %v288 = vadd.f32 %v265, %v276
    %v289 = vadd.f32 %v266, %v280
    %v290 = vpack.c.bf16 %v287, %v284
    %v291 = vpack.c.bf16 %v288, %v285
    %v292 = vpack.c.bf16 %v289, %v286
    %v293 = vld [vmem:[#allocation8] sm:$0xff]
    %v294 = vld [vmem:[#allocation8 + $0x8] sm:$0xff]
    %v295 = vld [vmem:[#allocation8 + $0x10] sm:$0xff]
    %v296 = vld [vmem:[#allocation8 + $0x18] sm:$0xff]
    %v297 = vld [vmem:[#allocation8 + $0x20] sm:$0xf]
    %v298 = vld [vmem:[#allocation8 + $0x24] sm:$0xff]
    %v299 = vld [vmem:[#allocation8 + $0x2c] sm:$0xff]
    %v300 = vld [vmem:[#allocation8 + $0x34] sm:$0xff]
    %v301 = vld [vmem:[#allocation8 + $0x3c] sm:$0xff]
    %v302 = vld [vmem:[#allocation8 + $0x44] sm:$0xf]
    %v303 = vld [vmem:[#allocation8 + $0x48] sm:$0xff]
    %v304 = vld [vmem:[#allocation8 + $0x50] sm:$0xff]
    %v305 = vld [vmem:[#allocation8 + $0x58] sm:$0xff]
    %v306 = vld [vmem:[#allocation8 + $0x60] sm:$0xff]
    %v307 = vld [vmem:[#allocation8 + $0x68] sm:$0xf]
    %v308 = vld [vmem:[#allocation8 + $0x6c] sm:$0xff]
    %v309 = vld [vmem:[#allocation8 + $0x74] sm:$0xff]
    %v310 = vld [vmem:[#allocation8 + $0x7c] sm:$0xff]
    %v311 = vld [vmem:[#allocation8 + $0x84] sm:$0xff]
    %v312 = vld [vmem:[#allocation8 + $0x8c] sm:$0xf]
    %v313 = vld [vmem:[#allocation8 + $0x90] sm:$0xff]
    %v314 = vld [vmem:[#allocation8 + $0x98] sm:$0xff]
    %v315 = vld [vmem:[#allocation8 + $0xa0] sm:$0xff]
    %v316 = vld [vmem:[#allocation8 + $0xa8] sm:$0xff]
    %v317 = vld [vmem:[#allocation8 + $0xb0] sm:$0xf]
    %v318 = vld [vmem:[#allocation8 + $0xb4] sm:$0xff]
    %v319 = vld [vmem:[#allocation8 + $0xbc] sm:$0xff]
    %v320 = vld [vmem:[#allocation8 + $0xc4] sm:$0xff]
    %v321 = vld [vmem:[#allocation8 + $0xcc] sm:$0xff]
    %v322 = vld [vmem:[#allocation8 + $0xd4] sm:$0xf]
    %v323 = vld [vmem:[#allocation8 + $0xd8] sm:$0xff]
    %v324 = vld [vmem:[#allocation8 + $0xe0] sm:$0xff]
    %v325 = vld [vmem:[#allocation8 + $0xe8] sm:$0xff]
    %v326 = vld [vmem:[#allocation8 + $0xf0] sm:$0xff]
    %v327 = vld [vmem:[#allocation8 + $0xf8] sm:$0xf]
    %v328 = vld [vmem:[#allocation8 + $0xfc] sm:$0xff]
    %v329 = vld [vmem:[#allocation8 + $0x104] sm:$0xff]
    %v330 = vld [vmem:[#allocation8 + $0x10c] sm:$0xff]
    %v331 = vld [vmem:[#allocation8 + $0x114] sm:$0xff]
    %v332 = vld [vmem:[#allocation8 + $0x11c] sm:$0xf]
    %v333 = vld [vmem:[#allocation8 + $0x120] sm:$0xff]
    %v334 = vld [vmem:[#allocation8 + $0x128] sm:$0xff]
    %v335 = vld [vmem:[#allocation8 + $0x130] sm:$0xff]
    %v336 = vld [vmem:[#allocation8 + $0x138] sm:$0xff]
    %v337 = vld [vmem:[#allocation8 + $0x140] sm:$0xf]
    %v338 = vld [vmem:[#allocation8 + $0x144] sm:$0xff]
    %v339 = vld [vmem:[#allocation8 + $0x14c] sm:$0xff]
    %v340 = vld [vmem:[#allocation8 + $0x154] sm:$0xff]
    %v341 = vld [vmem:[#allocation8 + $0x15c] sm:$0xff]
    %v342 = vld [vmem:[#allocation8 + $0x164] sm:$0xf]
    %v343 = vld [vmem:[#allocation8 + $0x168] sm:$0xff]
    %v344 = vld [vmem:[#allocation8 + $0x170] sm:$0xff]
    %v345 = vld [vmem:[#allocation8 + $0x178] sm:$0xff]
    %v346 = vld [vmem:[#allocation8 + $0x180] sm:$0xff]
    %v347 = vld [vmem:[#allocation8 + $0x188] sm:$0xf]
    %v348 = vld [vmem:[#allocation8 + $0x18c] sm:$0xff]
    %v349 = vld [vmem:[#allocation8 + $0x194] sm:$0xff]
    %v350 = vld [vmem:[#allocation8 + $0x19c] sm:$0xff]
    %v351 = vld [vmem:[#allocation8 + $0x1a4] sm:$0xff]
    %v352 = vld [vmem:[#allocation8 + $0x1ac] sm:$0xf]
    %v353 = vld [vmem:[#allocation8 + $0x1b0] sm:$0xff]
    %v354 = vld [vmem:[#allocation8 + $0x1b8] sm:$0xff]
    %v355 = vld [vmem:[#allocation8 + $0x1c0] sm:$0xff]
    %v356 = vld [vmem:[#allocation8 + $0x1c8] sm:$0xff]
    %v357 = vld [vmem:[#allocation8 + $0x1d0] sm:$0xf]
    %v358 = vld [vmem:[#allocation8 + $0x1d4] sm:$0xff]
    %v359 = vld [vmem:[#allocation8 + $0x1dc] sm:$0xff]
    %v360 = vld [vmem:[#allocation8 + $0x1e4] sm:$0xff]
    %v361 = vld [vmem:[#allocation8 + $0x1ec] sm:$0xff]
    %v362 = vld [vmem:[#allocation8 + $0x1f4] sm:$0xf]
    %v363 = vld [vmem:[#allocation8 + $0x1f8] sm:$0xff]
    %v364 = vld [vmem:[#allocation8 + $0x200] sm:$0xff]
    %v365 = vld [vmem:[#allocation8 + $0x208] sm:$0xff]
    %v366 = vld [vmem:[#allocation8 + $0x210] sm:$0xff]
    %v367 = vld [vmem:[#allocation8 + $0x218] sm:$0xf]
    %v368 = vld [vmem:[#allocation8 + $0x21c] sm:$0xff]
    %v369 = vld [vmem:[#allocation8 + $0x224] sm:$0xff]
    %v370 = vld [vmem:[#allocation8 + $0x22c] sm:$0xff]
    %v371 = vld [vmem:[#allocation8 + $0x234] sm:$0xff]
    %v372 = vld [vmem:[#allocation8 + $0x23c] sm:$0xf]
    %v373 = vld [vmem:[#allocation8 + $0x240] sm:$0xff]
    %v374 = vld [vmem:[#allocation8 + $0x248] sm:$0xff]
    %v375 = vld [vmem:[#allocation8 + $0x250] sm:$0xff]
    %v376 = vld [vmem:[#allocation8 + $0x258] sm:$0xff]
    %v377 = vld [vmem:[#allocation8 + $0x260] sm:$0xf]
    %v378 = vld [vmem:[#allocation8 + $0x264] sm:$0xff]
    %v379 = vld [vmem:[#allocation8 + $0x26c] sm:$0xff]
    %v380 = vld [vmem:[#allocation8 + $0x274] sm:$0xff]
    %v381 = vld [vmem:[#allocation8 + $0x27c] sm:$0xff]
    %v382 = vld [vmem:[#allocation8 + $0x284] sm:$0xf]
    %v383 = vld [vmem:[#allocation8 + $0x288] sm:$0xff]
    %v384 = vld [vmem:[#allocation8 + $0x290] sm:$0xff]
    %v385 = vld [vmem:[#allocation8 + $0x298] sm:$0xff]
    %v386 = vld [vmem:[#allocation8 + $0x2a0] sm:$0xff]
    %v387 = vld [vmem:[#allocation8 + $0x2a8] sm:$0xf]
    %v388 = vld [vmem:[#allocation8 + $0x2ac] sm:$0xff]
    %v389 = vld [vmem:[#allocation8 + $0x2b4] sm:$0xff]
    %v390 = vld [vmem:[#allocation8 + $0x2bc] sm:$0xff]
    %v391 = vld [vmem:[#allocation8 + $0x2c4] sm:$0xff]
    %v392 = vld [vmem:[#allocation8 + $0x2cc] sm:$0xf]
    %v393 = vld [vmem:[#allocation8 + $0x2d0] sm:$0xff]
    %v394 = vld [vmem:[#allocation8 + $0x2d8] sm:$0xff]
    %v395 = vld [vmem:[#allocation8 + $0x2e0] sm:$0xff]
    %v396 = vld [vmem:[#allocation8 + $0x2e8] sm:$0xff]
    %v397 = vld [vmem:[#allocation8 + $0x2f0] sm:$0xf]
    %v398 = vld [vmem:[#allocation8 + $0x2f4] sm:$0xff]
    %v399 = vld [vmem:[#allocation8 + $0x2fc] sm:$0xff]
    %v400 = vld [vmem:[#allocation8 + $0x304] sm:$0xff]
    %v401 = vld [vmem:[#allocation8 + $0x30c] sm:$0xff]
    %v402 = vld [vmem:[#allocation8 + $0x314] sm:$0xf]
    %v403 = vld [vmem:[#allocation8 + $0x318] sm:$0xff]
    %v404 = vld [vmem:[#allocation8 + $0x320] sm:$0xff]
    %v405 = vld [vmem:[#allocation8 + $0x328] sm:$0xff]
    %v406 = vld [vmem:[#allocation8 + $0x330] sm:$0xff]
    %v407 = vld [vmem:[#allocation8 + $0x338] sm:$0xf]
    %v408 = vld [vmem:[#allocation8 + $0x33c] sm:$0xff]
    %v409 = vld [vmem:[#allocation8 + $0x344] sm:$0xff]
    %v410 = vld [vmem:[#allocation8 + $0x34c] sm:$0xff]
    %v411 = vld [vmem:[#allocation8 + $0x354] sm:$0xff]
    %v412 = vld [vmem:[#allocation8 + $0x35c] sm:$0xf]
    %v413 = vld [vmem:[#allocation8 + $0x360] sm:$0xff]
    %v414 = vld [vmem:[#allocation8 + $0x368] sm:$0xff]
    %v415 = vld [vmem:[#allocation8 + $0x370] sm:$0xff]
    %v416 = vld [vmem:[#allocation8 + $0x378] sm:$0xff]
    %v417 = vld [vmem:[#allocation8 + $0x380] sm:$0xf]
    %v418 = vld [vmem:[#allocation8 + $0x384] sm:$0xff]
    %v419 = vld [vmem:[#allocation8 + $0x38c] sm:$0xff]
    %v420 = vld [vmem:[#allocation8 + $0x394] sm:$0xff]
    %v421 = vld [vmem:[#allocation8 + $0x39c] sm:$0xff]
    %v422 = vld [vmem:[#allocation8 + $0x3a4] sm:$0xf]
    %v423 = vld [vmem:[#allocation8 + $0x3a8] sm:$0xff]
    %v424 = vld [vmem:[#allocation8 + $0x3b0] sm:$0xff]
    %v425 = vld [vmem:[#allocation8 + $0x3b8] sm:$0xff]
    %v426 = vld [vmem:[#allocation8 + $0x3c0] sm:$0xff]
    %v427 = vld [vmem:[#allocation8 + $0x3c8] sm:$0xf]
    %v428 = vld [vmem:[#allocation8 + $0x3cc] sm:$0xff]
    %v429 = vld [vmem:[#allocation8 + $0x3d4] sm:$0xff]
    %v430 = vld [vmem:[#allocation8 + $0x3dc] sm:$0xff]
    %v431 = vld [vmem:[#allocation8 + $0x3e4] sm:$0xff]
    %v432 = vld [vmem:[#allocation8 + $0x3ec] sm:$0xf]
    %v433 = vld [vmem:[#allocation8 + $0x3f0] sm:$0xff]
    %v434 = vld [vmem:[#allocation8 + $0x3f8] sm:$0xff]
    %v435 = vld [vmem:[#allocation8 + $0x400] sm:$0xff]
    %v436 = vld [vmem:[#allocation8 + $0x408] sm:$0xff]
    %v437 = vld [vmem:[#allocation8 + $0x410] sm:$0xf]
    %v438 = vld [vmem:[#allocation8 + $0x414] sm:$0xff]
    %v439 = vld [vmem:[#allocation8 + $0x41c] sm:$0xff]
    %v440 = vld [vmem:[#allocation8 + $0x424] sm:$0xff]
    %v441 = vld [vmem:[#allocation8 + $0x42c] sm:$0xff]
    %v442 = vld [vmem:[#allocation8 + $0x434] sm:$0xf]
    %v443 = vld [vmem:[#allocation8 + $0x438] sm:$0xff]
    %v444 = vld [vmem:[#allocation8 + $0x440] sm:$0xff]
    %v445 = vld [vmem:[#allocation8 + $0x448] sm:$0xff]
    %v446 = vld [vmem:[#allocation8 + $0x450] sm:$0xff]
    %v447 = vld [vmem:[#allocation8 + $0x458] sm:$0xf]
    %v448 = vld [vmem:[#allocation8 + $0x45c] sm:$0xff]
    %v449 = vld [vmem:[#allocation8 + $0x464] sm:$0xff]
    %v450 = vld [vmem:[#allocation8 + $0x46c] sm:$0xff]
    %v451 = vld [vmem:[#allocation8 + $0x474] sm:$0xff]
    %v452 = vld [vmem:[#allocation8 + $0x47c] sm:$0xf]
    %v453 = vld [vmem:[#allocation8 + $0x480] sm:$0xff]
    %v454 = vld [vmem:[#allocation8 + $0x488] sm:$0xff]
    %v455 = vld [vmem:[#allocation8 + $0x490] sm:$0xff]
    %v456 = vld [vmem:[#allocation8 + $0x498] sm:$0xff]
    %v457 = vld [vmem:[#allocation8 + $0x4a0] sm:$0xf]
    %v458 = vld [vmem:[#allocation8 + $0x4a4] sm:$0xff]
    %v459 = vld [vmem:[#allocation8 + $0x4ac] sm:$0xff]
    %v460 = vld [vmem:[#allocation8 + $0x4b4] sm:$0xff]
    %v461 = vld [vmem:[#allocation8 + $0x4bc] sm:$0xff]
    %v462 = vld [vmem:[#allocation8 + $0x4c4] sm:$0xf]
    %v463 = vld [vmem:[#allocation8 + $0x4c8] sm:$0xff]
    %v464 = vld [vmem:[#allocation8 + $0x4d0] sm:$0xff]
    %v465 = vld [vmem:[#allocation8 + $0x4d8] sm:$0xff]
    %v466 = vld [vmem:[#allocation8 + $0x4e0] sm:$0xff]
    %v467 = vld [vmem:[#allocation8 + $0x4e8] sm:$0xf]
    %v468 = vld [vmem:[#allocation8 + $0x4ec] sm:$0xff]
    %v469 = vld [vmem:[#allocation8 + $0x4f4] sm:$0xff]
    %v470 = vld [vmem:[#allocation8 + $0x4fc] sm:$0xff]
    %v471 = vld [vmem:[#allocation8 + $0x504] sm:$0xff]
    %v472 = vld [vmem:[#allocation8 + $0x50c] sm:$0xf]
    %v473 = vld [vmem:[#allocation8 + $0x510] sm:$0xff]
    %v474 = vld [vmem:[#allocation8 + $0x518] sm:$0xff]
    %v475 = vld [vmem:[#allocation8 + $0x520] sm:$0xff]
    %v476 = vld [vmem:[#allocation8 + $0x528] sm:$0xff]
    %v477 = vld [vmem:[#allocation8 + $0x530] sm:$0xf]
    %v478 = vld [vmem:[#allocation8 + $0x534] sm:$0xff]
    %v479 = vld [vmem:[#allocation8 + $0x53c] sm:$0xff]
    %v480 = vld [vmem:[#allocation8 + $0x544] sm:$0xff]
    %v481 = vld [vmem:[#allocation8 + $0x54c] sm:$0xff]
    %v482 = vld [vmem:[#allocation8 + $0x554] sm:$0xf]
    %v483 = vld [vmem:[#allocation8 + $0x558] sm:$0xff]
    %v484 = vld [vmem:[#allocation8 + $0x560] sm:$0xff]
    %v485 = vld [vmem:[#allocation8 + $0x568] sm:$0xff]
    %v486 = vld [vmem:[#allocation8 + $0x570] sm:$0xff]
    %v487 = vld [vmem:[#allocation8 + $0x578] sm:$0xf]
    %v488 = vld [vmem:[#allocation8 + $0x57c] sm:$0xff]
    %v489 = vld [vmem:[#allocation8 + $0x584] sm:$0xff]
    %v490 = vld [vmem:[#allocation8 + $0x58c] sm:$0xff]
    %v491 = vld [vmem:[#allocation8 + $0x594] sm:$0xff]
    %v492 = vld [vmem:[#allocation8 + $0x59c] sm:$0xf]
    %v493 = vld [vmem:[#allocation8 + $0x5a0] sm:$0xff]
    %v494 = vld [vmem:[#allocation8 + $0x5a8] sm:$0xff]
    %v495 = vld [vmem:[#allocation8 + $0x5b0] sm:$0xff]
    %v496 = vld [vmem:[#allocation8 + $0x5b8] sm:$0xff]
    %v497 = vld [vmem:[#allocation8 + $0x5c0] sm:$0xf]
    %v498 = vld [vmem:[#allocation8 + $0x5c4] sm:$0xff]
    %v499 = vld [vmem:[#allocation8 + $0x5cc] sm:$0xff]
    %v500 = vld [vmem:[#allocation8 + $0x5d4] sm:$0xff]
    %v501 = vld [vmem:[#allocation8 + $0x5dc] sm:$0xff]
    %v502 = vld [vmem:[#allocation8 + $0x5e4] sm:$0xf]
    %v503 = vld [vmem:[#allocation8 + $0x5e8] sm:$0xff]
    %v504 = vld [vmem:[#allocation8 + $0x5f0] sm:$0xff]
    %v505 = vld [vmem:[#allocation8 + $0x5f8] sm:$0xff]
    %v506 = vld [vmem:[#allocation8 + $0x600] sm:$0xff]
    %v507 = vld [vmem:[#allocation8 + $0x608] sm:$0xf]
    %v508 = vld [vmem:[#allocation8 + $0x60c] sm:$0xff]
    %v509 = vld [vmem:[#allocation8 + $0x614] sm:$0xff]
    %v510 = vld [vmem:[#allocation8 + $0x61c] sm:$0xff]
    %v511 = vld [vmem:[#allocation8 + $0x624] sm:$0xff]
    %v512 = vld [vmem:[#allocation8 + $0x62c] sm:$0xf]
    %v513 = vld [vmem:[#allocation8 + $0x630] sm:$0xff]
    %v514 = vld [vmem:[#allocation8 + $0x638] sm:$0xff]
    %v515 = vld [vmem:[#allocation8 + $0x640] sm:$0xff]
    %v516 = vld [vmem:[#allocation8 + $0x648] sm:$0xff]
    %v517 = vld [vmem:[#allocation8 + $0x650] sm:$0xf]
    %v518 = vld [vmem:[#allocation8 + $0x654] sm:$0xff]
    %v519 = vld [vmem:[#allocation8 + $0x65c] sm:$0xff]
    %v520 = vld [vmem:[#allocation8 + $0x664] sm:$0xff]
    %v521 = vld [vmem:[#allocation8 + $0x66c] sm:$0xff]
    %v522 = vld [vmem:[#allocation8 + $0x674] sm:$0xf]
    %v523 = vld [vmem:[#allocation8 + $0x678] sm:$0xff]
    %v524 = vld [vmem:[#allocation8 + $0x680] sm:$0xff]
    %v525 = vld [vmem:[#allocation8 + $0x688] sm:$0xff]
    %v526 = vld [vmem:[#allocation8 + $0x690] sm:$0xff]
    %v527 = vld [vmem:[#allocation8 + $0x698] sm:$0xf]
    %v528 = vld [vmem:[#allocation8 + $0x69c] sm:$0xff]
    %v529 = vld [vmem:[#allocation8 + $0x6a4] sm:$0xff]
    %v530 = vld [vmem:[#allocation8 + $0x6ac] sm:$0xff]
    %v531 = vld [vmem:[#allocation8 + $0x6b4] sm:$0xff]
    %v532 = vld [vmem:[#allocation8 + $0x6bc] sm:$0xf]
    %v773 = vunpack.c.l.b16 %v293
    %v774 = vunpack.c.h.b16 %v293
    %v775 = vunpack.c.l.b16 %v294
    %v776 = vunpack.c.h.b16 %v294
    %v777 = vunpack.c.l.b16 %v295
    %v778 = vunpack.c.h.b16 %v295
    %v779 = vunpack.c.l.b16 %v296
    %v780 = vunpack.c.h.b16 %v296
    %v781 = vunpack.c.l.b16 %v297
    %v782 = vunpack.c.l.b16 %v298
    %v783 = vunpack.c.h.b16 %v298
    %v784 = vunpack.c.l.b16 %v299
    %v785 = vunpack.c.h.b16 %v299
    %v786 = vunpack.c.l.b16 %v300
    %v787 = vunpack.c.h.b16 %v300
    %v788 = vunpack.c.l.b16 %v301
    %v789 = vunpack.c.h.b16 %v301
    %v790 = vunpack.c.l.b16 %v302
    %v791 = vunpack.c.l.b16 %v303
    %v792 = vunpack.c.h.b16 %v303
    %v793 = vunpack.c.l.b16 %v304
    %v794 = vunpack.c.h.b16 %v304
    %v795 = vunpack.c.l.b16 %v305
    %v796 = vunpack.c.h.b16 %v305
    %v797 = vunpack.c.l.b16 %v306
    %v798 = vunpack.c.h.b16 %v306
    %v799 = vunpack.c.l.b16 %v307
    %v800 = vunpack.c.l.b16 %v308
    %v801 = vunpack.c.h.b16 %v308
    %v802 = vunpack.c.l.b16 %v309
    %v803 = vunpack.c.h.b16 %v309
    %v804 = vunpack.c.l.b16 %v310
    %v805 = vunpack.c.h.b16 %v310
    %v806 = vunpack.c.l.b16 %v311
    %v807 = vunpack.c.h.b16 %v311
    %v808 = vunpack.c.l.b16 %v312
    %v809 = vunpack.c.l.b16 %v313
    %v810 = vunpack.c.h.b16 %v313
    %v811 = vunpack.c.l.b16 %v314
    %v812 = vunpack.c.h.b16 %v314
    %v813 = vunpack.c.l.b16 %v315
    %v814 = vunpack.c.h.b16 %v315
    %v815 = vunpack.c.l.b16 %v316
    %v816 = vunpack.c.h.b16 %v316
    %v817 = vunpack.c.l.b16 %v317
    %v818 = vunpack.c.l.b16 %v318
    %v819 = vunpack.c.h.b16 %v318
    %v820 = vunpack.c.l.b16 %v319
    %v821 = vunpack.c.h.b16 %v319
    %v822 = vunpack.c.l.b16 %v320
    %v823 = vunpack.c.h.b16 %v320
    %v824 = vunpack.c.l.b16 %v321
    %v825 = vunpack.c.h.b16 %v321
    %v826 = vunpack.c.l.b16 %v322
    %v827 = vunpack.c.l.b16 %v323
    %v828 = vunpack.c.h.b16 %v323
    %v829 = vunpack.c.l.b16 %v324
    %v830 = vunpack.c.h.b16 %v324
    %v831 = vunpack.c.l.b16 %v325
    %v832 = vunpack.c.h.b16 %v325
    %v833 = vunpack.c.l.b16 %v326
    %v834 = vunpack.c.h.b16 %v326
    %v835 = vunpack.c.l.b16 %v327
    %v836 = vunpack.c.l.b16 %v328
    %v837 = vunpack.c.h.b16 %v328
    %v838 = vunpack.c.l.b16 %v329
    %v839 = vunpack.c.h.b16 %v329
    %v840 = vunpack.c.l.b16 %v330
    %v841 = vunpack.c.h.b16 %v330
    %v842 = vunpack.c.l.b16 %v331
    %v843 = vunpack.c.h.b16 %v331
    %v844 = vunpack.c.l.b16 %v332
    %v845 = vunpack.c.l.b16 %v333
    %v846 = vunpack.c.h.b16 %v333
    %v847 = vunpack.c.l.b16 %v334
    %v848 = vunpack.c.h.b16 %v334
    %v849 = vunpack.c.l.b16 %v335
    %v850 = vunpack.c.h.b16 %v335
    %v851 = vunpack.c.l.b16 %v336
    %v852 = vunpack.c.h.b16 %v336
    %v853 = vunpack.c.l.b16 %v337
    %v854 = vunpack.c.l.b16 %v338
    %v855 = vunpack.c.h.b16 %v338
    %v856 = vunpack.c.l.b16 %v339
    %v857 = vunpack.c.h.b16 %v339
    %v858 = vunpack.c.l.b16 %v340
    %v859 = vunpack.c.h.b16 %v340
    %v860 = vunpack.c.l.b16 %v341
    %v861 = vunpack.c.h.b16 %v341
    %v862 = vunpack.c.l.b16 %v342
    %v863 = vunpack.c.l.b16 %v343
    %v864 = vunpack.c.h.b16 %v343
    %v865 = vunpack.c.l.b16 %v344
    %v866 = vunpack.c.h.b16 %v344
    %v867 = vunpack.c.l.b16 %v345
    %v868 = vunpack.c.h.b16 %v345
    %v869 = vunpack.c.l.b16 %v346
    %v870 = vunpack.c.h.b16 %v346
    %v871 = vunpack.c.l.b16 %v347
    %v872 = vunpack.c.l.b16 %v348
    %v873 = vunpack.c.h.b16 %v348
    %v874 = vunpack.c.l.b16 %v349
    %v875 = vunpack.c.h.b16 %v349
    %v876 = vunpack.c.l.b16 %v350
    %v877 = vunpack.c.h.b16 %v350
    %v878 = vunpack.c.l.b16 %v351
    %v879 = vunpack.c.h.b16 %v351
    %v880 = vunpack.c.l.b16 %v352
    %v881 = vunpack.c.l.b16 %v353
    %v882 = vunpack.c.h.b16 %v353
    %v883 = vunpack.c.l.b16 %v354
    %v884 = vunpack.c.h.b16 %v354
    %v885 = vunpack.c.l.b16 %v355
    %v886 = vunpack.c.h.b16 %v355
    %v887 = vunpack.c.l.b16 %v356
    %v888 = vunpack.c.h.b16 %v356
    %v889 = vunpack.c.l.b16 %v357
    %v890 = vunpack.c.l.b16 %v358
    %v891 = vunpack.c.h.b16 %v358
    %v892 = vunpack.c.l.b16 %v359
    %v893 = vunpack.c.h.b16 %v359
    %v894 = vunpack.c.l.b16 %v360
    %v895 = vunpack.c.h.b16 %v360
    %v896 = vunpack.c.l.b16 %v361
    %v897 = vunpack.c.h.b16 %v361
    %v898 = vunpack.c.l.b16 %v362
    %v899 = vunpack.c.l.b16 %v363
    %v900 = vunpack.c.h.b16 %v363
    %v901 = vunpack.c.l.b16 %v364
    %v902 = vunpack.c.h.b16 %v364
    %v903 = vunpack.c.l.b16 %v365
    %v904 = vunpack.c.h.b16 %v365
    %v905 = vunpack.c.l.b16 %v366
    %v906 = vunpack.c.h.b16 %v366
    %v907 = vunpack.c.l.b16 %v367
    %v908 = vunpack.c.l.b16 %v368
    %v909 = vunpack.c.h.b16 %v368
    %v910 = vunpack.c.l.b16 %v369
    %v911 = vunpack.c.h.b16 %v369
    %v912 = vunpack.c.l.b16 %v370
    %v913 = vunpack.c.h.b16 %v370
    %v914 = vunpack.c.l.b16 %v371
    %v915 = vunpack.c.h.b16 %v371
    %v916 = vunpack.c.l.b16 %v372
    %v917 = vunpack.c.l.b16 %v373
    %v918 = vunpack.c.h.b16 %v373
    %v919 = vunpack.c.l.b16 %v374
    %v920 = vunpack.c.h.b16 %v374
    %v921 = vunpack.c.l.b16 %v375
    %v922 = vunpack.c.h.b16 %v375
    %v923 = vunpack.c.l.b16 %v376
    %v924 = vunpack.c.h.b16 %v376
    %v925 = vunpack.c.l.b16 %v377
    %v926 = vunpack.c.l.b16 %v378
    %v927 = vunpack.c.h.b16 %v378
    %v928 = vunpack.c.l.b16 %v379
    %v929 = vunpack.c.h.b16 %v379
    %v930 = vunpack.c.l.b16 %v380
    %v931 = vunpack.c.h.b16 %v380
    %v932 = vunpack.c.l.b16 %v381
    %v933 = vunpack.c.h.b16 %v381
    %v934 = vunpack.c.l.b16 %v382
    %v935 = vunpack.c.l.b16 %v383
    %v936 = vunpack.c.h.b16 %v383
    %v937 = vunpack.c.l.b16 %v384
    %v938 = vunpack.c.h.b16 %v384
    %v939 = vunpack.c.l.b16 %v385
    %v940 = vunpack.c.h.b16 %v385
    %v941 = vunpack.c.l.b16 %v386
    %v942 = vunpack.c.h.b16 %v386
    %v943 = vunpack.c.l.b16 %v387
    %v944 = vunpack.c.l.b16 %v388
    %v945 = vunpack.c.h.b16 %v388
    %v946 = vunpack.c.l.b16 %v389
    %v947 = vunpack.c.h.b16 %v389
    %v948 = vunpack.c.l.b16 %v390
    %v949 = vunpack.c.h.b16 %v390
    %v950 = vunpack.c.l.b16 %v391
    %v951 = vunpack.c.h.b16 %v391
    %v952 = vunpack.c.l.b16 %v392
    %v953 = vunpack.c.l.b16 %v393
    %v954 = vunpack.c.h.b16 %v393
    %v955 = vunpack.c.l.b16 %v394
    %v956 = vunpack.c.h.b16 %v394
    %v957 = vunpack.c.l.b16 %v395
    %v958 = vunpack.c.h.b16 %v395
    %v959 = vunpack.c.l.b16 %v396
    %v960 = vunpack.c.h.b16 %v396
    %v961 = vunpack.c.l.b16 %v397
    %v962 = vunpack.c.l.b16 %v398
    %v963 = vunpack.c.h.b16 %v398
    %v964 = vunpack.c.l.b16 %v399
    %v965 = vunpack.c.h.b16 %v399
    %v966 = vunpack.c.l.b16 %v400
    %v967 = vunpack.c.h.b16 %v400
    %v968 = vunpack.c.l.b16 %v401
    %v969 = vunpack.c.h.b16 %v401
    %v970 = vunpack.c.l.b16 %v402
    %v971 = vunpack.c.l.b16 %v403
    %v972 = vunpack.c.h.b16 %v403
    %v973 = vunpack.c.l.b16 %v404
    %v974 = vunpack.c.h.b16 %v404
    %v975 = vunpack.c.l.b16 %v405
    %v976 = vunpack.c.h.b16 %v405
    %v977 = vunpack.c.l.b16 %v406
    %v978 = vunpack.c.h.b16 %v406
    %v979 = vunpack.c.l.b16 %v407
    %v980 = vunpack.c.l.b16 %v408
    %v981 = vunpack.c.h.b16 %v408
    %v982 = vunpack.c.l.b16 %v409
    %v983 = vunpack.c.h.b16 %v409
    %v984 = vunpack.c.l.b16 %v410
    %v985 = vunpack.c.h.b16 %v410
    %v986 = vunpack.c.l.b16 %v411
    %v987 = vunpack.c.h.b16 %v411
    %v988 = vunpack.c.l.b16 %v412
    %v989 = vunpack.c.l.b16 %v413
    %v990 = vunpack.c.h.b16 %v413
    %v991 = vunpack.c.l.b16 %v414
    %v992 = vunpack.c.h.b16 %v414
    %v993 = vunpack.c.l.b16 %v415
    %v994 = vunpack.c.h.b16 %v415
    %v995 = vunpack.c.l.b16 %v416
    %v996 = vunpack.c.h.b16 %v416
    %v997 = vunpack.c.l.b16 %v417
    %v998 = vunpack.c.l.b16 %v418
    %v999 = vunpack.c.h.b16 %v418
    %v1000 = vunpack.c.l.b16 %v419
    %v1001 = vunpack.c.h.b16 %v419
    %v1002 = vunpack.c.l.b16 %v420
    %v1003 = vunpack.c.h.b16 %v420
    %v1004 = vunpack.c.l.b16 %v421
    %v1005 = vunpack.c.h.b16 %v421
    %v1006 = vunpack.c.l.b16 %v422
    %v1007 = vunpack.c.l.b16 %v423
    %v1008 = vunpack.c.h.b16 %v423
    %v1009 = vunpack.c.l.b16 %v424
    %v1010 = vunpack.c.h.b16 %v424
    %v1011 = vunpack.c.l.b16 %v425
    %v1012 = vunpack.c.h.b16 %v425
    %v1013 = vunpack.c.l.b16 %v426
    %v1014 = vunpack.c.h.b16 %v426
    %v1015 = vunpack.c.l.b16 %v427
    %v1016 = vunpack.c.l.b16 %v428
    %v1017 = vunpack.c.h.b16 %v428
    %v1018 = vunpack.c.l.b16 %v429
    %v1019 = vunpack.c.h.b16 %v429
    %v1020 = vunpack.c.l.b16 %v430
    %v1021 = vunpack.c.h.b16 %v430
    %v1022 = vunpack.c.l.b16 %v431
    %v1023 = vunpack.c.h.b16 %v431
    %v1024 = vunpack.c.l.b16 %v432
    %v1025 = vunpack.c.l.b16 %v433
    %v1026 = vunpack.c.h.b16 %v433
    %v1027 = vunpack.c.l.b16 %v434
    %v1028 = vunpack.c.h.b16 %v434
    %v1029 = vunpack.c.l.b16 %v435
    %v1030 = vunpack.c.h.b16 %v435
    %v1031 = vunpack.c.l.b16 %v436
    %v1032 = vunpack.c.h.b16 %v436
    %v1033 = vunpack.c.l.b16 %v437
    %v1034 = vunpack.c.l.b16 %v438
    %v1035 = vunpack.c.h.b16 %v438
    %v1036 = vunpack.c.l.b16 %v439
    %v1037 = vunpack.c.h.b16 %v439
    %v1038 = vunpack.c.l.b16 %v440
    %v1039 = vunpack.c.h.b16 %v440
    %v1040 = vunpack.c.l.b16 %v441
    %v1041 = vunpack.c.h.b16 %v441
    %v1042 = vunpack.c.l.b16 %v442
    %v1043 = vunpack.c.l.b16 %v443
    %v1044 = vunpack.c.h.b16 %v443
    %v1045 = vunpack.c.l.b16 %v444
    %v1046 = vunpack.c.h.b16 %v444
    %v1047 = vunpack.c.l.b16 %v445
    %v1048 = vunpack.c.h.b16 %v445
    %v1049 = vunpack.c.l.b16 %v446
    %v1050 = vunpack.c.h.b16 %v446
    %v1051 = vunpack.c.l.b16 %v447
    %v1052 = vunpack.c.l.b16 %v448
    %v1053 = vunpack.c.h.b16 %v448
    %v1054 = vunpack.c.l.b16 %v449
    %v1055 = vunpack.c.h.b16 %v449
    %v1056 = vunpack.c.l.b16 %v450
    %v1057 = vunpack.c.h.b16 %v450
    %v1058 = vunpack.c.l.b16 %v451
    %v1059 = vunpack.c.h.b16 %v451
    %v1060 = vunpack.c.l.b16 %v452
    %v1061 = vunpack.c.l.b16 %v453
    %v1062 = vunpack.c.h.b16 %v453
    %v1063 = vunpack.c.l.b16 %v454
    %v1064 = vunpack.c.h.b16 %v454
    %v1065 = vunpack.c.l.b16 %v455
    %v1066 = vunpack.c.h.b16 %v455
    %v1067 = vunpack.c.l.b16 %v456
    %v1068 = vunpack.c.h.b16 %v456
    %v1069 = vunpack.c.l.b16 %v457
    %v1070 = vunpack.c.l.b16 %v458
    %v1071 = vunpack.c.h.b16 %v458
    %v1072 = vunpack.c.l.b16 %v459
    %v1073 = vunpack.c.h.b16 %v459
    %v1074 = vunpack.c.l.b16 %v460
    %v1075 = vunpack.c.h.b16 %v460
    %v1076 = vunpack.c.l.b16 %v461
    %v1077 = vunpack.c.h.b16 %v461
    %v1078 = vunpack.c.l.b16 %v462
    %v1079 = vunpack.c.l.b16 %v463
    %v1080 = vunpack.c.h.b16 %v463
    %v1081 = vunpack.c.l.b16 %v464
    %v1082 = vunpack.c.h.b16 %v464
    %v1083 = vunpack.c.l.b16 %v465
    %v1084 = vunpack.c.h.b16 %v465
    %v1085 = vunpack.c.l.b16 %v466
    %v1086 = vunpack.c.h.b16 %v466
    %v1087 = vunpack.c.l.b16 %v467
    %v1088 = vunpack.c.l.b16 %v468
    %v1089 = vunpack.c.h.b16 %v468
    %v1090 = vunpack.c.l.b16 %v469
    %v1091 = vunpack.c.h.b16 %v469
    %v1092 = vunpack.c.l.b16 %v470
    %v1093 = vunpack.c.h.b16 %v470
    %v1094 = vunpack.c.l.b16 %v471
    %v1095 = vunpack.c.h.b16 %v471
    %v1096 = vunpack.c.l.b16 %v472
    %v1097 = vunpack.c.l.b16 %v473
    %v1098 = vunpack.c.h.b16 %v473
    %v1099 = vunpack.c.l.b16 %v474
    %v1100 = vunpack.c.h.b16 %v474
    %v1101 = vunpack.c.l.b16 %v475
    %v1102 = vunpack.c.h.b16 %v475
    %v1103 = vunpack.c.l.b16 %v476
    %v1104 = vunpack.c.h.b16 %v476
    %v1105 = vunpack.c.l.b16 %v477
    %v1106 = vunpack.c.l.b16 %v478
    %v1107 = vunpack.c.h.b16 %v478
    %v1108 = vunpack.c.l.b16 %v479
    %v1109 = vunpack.c.h.b16 %v479
    %v1110 = vunpack.c.l.b16 %v480
    %v1111 = vunpack.c.h.b16 %v480
    %v1112 = vunpack.c.l.b16 %v481
    %v1113 = vunpack.c.h.b16 %v481
    %v1114 = vunpack.c.l.b16 %v482
    %v1115 = vunpack.c.l.b16 %v483
    %v1116 = vunpack.c.h.b16 %v483
    %v1117 = vunpack.c.l.b16 %v484
    %v1118 = vunpack.c.h.b16 %v484
    %v1119 = vunpack.c.l.b16 %v485
    %v1120 = vunpack.c.h.b16 %v485
    %v1121 = vunpack.c.l.b16 %v486
    %v1122 = vunpack.c.h.b16 %v486
    %v1123 = vunpack.c.l.b16 %v487
    %v1124 = vunpack.c.l.b16 %v488
    %v1125 = vunpack.c.h.b16 %v488
    %v1126 = vunpack.c.l.b16 %v489
    %v1127 = vunpack.c.h.b16 %v489
    %v1128 = vunpack.c.l.b16 %v490
    %v1129 = vunpack.c.h.b16 %v490
    %v1130 = vunpack.c.l.b16 %v491
    %v1131 = vunpack.c.h.b16 %v491
    %v1132 = vunpack.c.l.b16 %v492
    %v1133 = vunpack.c.l.b16 %v493
    %v1134 = vunpack.c.h.b16 %v493
    %v1135 = vunpack.c.l.b16 %v494
    %v1136 = vunpack.c.h.b16 %v494
    %v1137 = vunpack.c.l.b16 %v495
    %v1138 = vunpack.c.h.b16 %v495
    %v1139 = vunpack.c.l.b16 %v496
    %v1140 = vunpack.c.h.b16 %v496
    %v1141 = vunpack.c.l.b16 %v497
    %v1142 = vunpack.c.l.b16 %v498
    %v1143 = vunpack.c.h.b16 %v498
    %v1144 = vunpack.c.l.b16 %v499
    %v1145 = vunpack.c.h.b16 %v499
    %v1146 = vunpack.c.l.b16 %v500
    %v1147 = vunpack.c.h.b16 %v500
    %v1148 = vunpack.c.l.b16 %v501
    %v1149 = vunpack.c.h.b16 %v501
    %v1150 = vunpack.c.l.b16 %v502
    %v1151 = vunpack.c.l.b16 %v503
    %v1152 = vunpack.c.h.b16 %v503
    %v1153 = vunpack.c.l.b16 %v504
    %v1154 = vunpack.c.h.b16 %v504
    %v1155 = vunpack.c.l.b16 %v505
    %v1156 = vunpack.c.h.b16 %v505
    %v1157 = vunpack.c.l.b16 %v506
    %v1158 = vunpack.c.h.b16 %v506
    %v1159 = vunpack.c.l.b16 %v507
    %v1160 = vunpack.c.l.b16 %v508
    %v1161 = vunpack.c.h.b16 %v508
    %v1162 = vunpack.c.l.b16 %v509
    %v1163 = vunpack.c.h.b16 %v509
    %v1164 = vunpack.c.l.b16 %v510
    %v1165 = vunpack.c.h.b16 %v510
    %v1166 = vunpack.c.l.b16 %v511
    %v1167 = vunpack.c.h.b16 %v511
    %v1168 = vunpack.c.l.b16 %v512
    %v1169 = vunpack.c.l.b16 %v513
    %v1170 = vunpack.c.h.b16 %v513
    %v1171 = vunpack.c.l.b16 %v514
    %v1172 = vunpack.c.h.b16 %v514
    %v1173 = vunpack.c.l.b16 %v515
    %v1174 = vunpack.c.h.b16 %v515
    %v1175 = vunpack.c.l.b16 %v516
    %v1176 = vunpack.c.h.b16 %v516
    %v1177 = vunpack.c.l.b16 %v517
    %v1178 = vunpack.c.l.b16 %v518
    %v1179 = vunpack.c.h.b16 %v518
    %v1180 = vunpack.c.l.b16 %v519
    %v1181 = vunpack.c.h.b16 %v519
    %v1182 = vunpack.c.l.b16 %v520
    %v1183 = vunpack.c.h.b16 %v520
    %v1184 = vunpack.c.l.b16 %v521
    %v1185 = vunpack.c.h.b16 %v521
    %v1186 = vunpack.c.l.b16 %v522
    %v1187 = vunpack.c.l.b16 %v523
    %v1188 = vunpack.c.h.b16 %v523
    %v1189 = vunpack.c.l.b16 %v524
    %v1190 = vunpack.c.h.b16 %v524
    %v1191 = vunpack.c.l.b16 %v525
    %v1192 = vunpack.c.h.b16 %v525
    %v1193 = vunpack.c.l.b16 %v526
    %v1194 = vunpack.c.h.b16 %v526
    %v1195 = vunpack.c.l.b16 %v527
    %v1196 = vunpack.c.l.b16 %v528
    %v1197 = vunpack.c.h.b16 %v528
    %v1198 = vunpack.c.l.b16 %v529
    %v1199 = vunpack.c.h.b16 %v529
    %v1200 = vunpack.c.l.b16 %v530
    %v1201 = vunpack.c.h.b16 %v530
    %v1202 = vunpack.c.l.b16 %v531
    %v1203 = vunpack.c.h.b16 %v531
    %v1204 = vunpack.c.l.b16 %v532
    %v1205 = vpack.c.b16 %v782, %v773
    %v1206 = vpack.c.b16 %v783, %v774
    %v1207 = vpack.c.b16 %v784, %v775
    %v1208 = vpack.c.b16 %v785, %v776
    %v1209 = vpack.c.b16 %v786, %v777
    %v1210 = vpack.c.b16 %v787, %v778
    %v1211 = vpack.c.b16 %v788, %v779
    %v1212 = vpack.c.b16 %v789, %v780
    %v1213 = vpack.c.b16 %v790, %v781
    %v1214 = vpack.c.b16 %v800, %v791
    %v1215 = vpack.c.b16 %v801, %v792
    %v1216 = vpack.c.b16 %v802, %v793
    %v1217 = vpack.c.b16 %v803, %v794
    %v1218 = vpack.c.b16 %v804, %v795
    %v1219 = vpack.c.b16 %v805, %v796
    %v1220 = vpack.c.b16 %v806, %v797
    %v1221 = vpack.c.b16 %v807, %v798
    %v1222 = vpack.c.b16 %v808, %v799
    %v1223 = vpack.c.b16 %v818, %v809
    %v1224 = vpack.c.b16 %v819, %v810
    %v1225 = vpack.c.b16 %v820, %v811
    %v1226 = vpack.c.b16 %v821, %v812
    %v1227 = vpack.c.b16 %v822, %v813
    %v1228 = vpack.c.b16 %v823, %v814
    %v1229 = vpack.c.b16 %v824, %v815
    %v1230 = vpack.c.b16 %v825, %v816
    %v1231 = vpack.c.b16 %v826, %v817
    %v1232 = vpack.c.b16 %v836, %v827
    %v1233 = vpack.c.b16 %v837, %v828
    %v1234 = vpack.c.b16 %v838, %v829
    %v1235 = vpack.c.b16 %v839, %v830
    %v1236 = vpack.c.b16 %v840, %v831
    %v1237 = vpack.c.b16 %v841, %v832
    %v1238 = vpack.c.b16 %v842, %v833
    %v1239 = vpack.c.b16 %v843, %v834
    %v1240 = vpack.c.b16 %v844, %v835
    %v1241 = vpack.c.b16 %v854, %v845
    %v1242 = vpack.c.b16 %v855, %v846
    %v1243 = vpack.c.b16 %v856, %v847
    %v1244 = vpack.c.b16 %v857, %v848
    %v1245 = vpack.c.b16 %v858, %v849
    %v1246 = vpack.c.b16 %v859, %v850
    %v1247 = vpack.c.b16 %v860, %v851
    %v1248 = vpack.c.b16 %v861, %v852
    %v1249 = vpack.c.b16 %v862, %v853
    %v1250 = vpack.c.b16 %v872, %v863
    %v1251 = vpack.c.b16 %v873, %v864
    %v1252 = vpack.c.b16 %v874, %v865
    %v1253 = vpack.c.b16 %v875, %v866
    %v1254 = vpack.c.b16 %v876, %v867
    %v1255 = vpack.c.b16 %v877, %v868
    %v1256 = vpack.c.b16 %v878, %v869
    %v1257 = vpack.c.b16 %v879, %v870
    %v1258 = vpack.c.b16 %v880, %v871
    %v1259 = vpack.c.b16 %v890, %v881
    %v1260 = vpack.c.b16 %v891, %v882
    %v1261 = vpack.c.b16 %v892, %v883
    %v1262 = vpack.c.b16 %v893, %v884
    %v1263 = vpack.c.b16 %v894, %v885
    %v1264 = vpack.c.b16 %v895, %v886
    %v1265 = vpack.c.b16 %v896, %v887
    %v1266 = vpack.c.b16 %v897, %v888
    %v1267 = vpack.c.b16 %v898, %v889
    %v1268 = vpack.c.b16 %v908, %v899
    %v1269 = vpack.c.b16 %v909, %v900
    %v1270 = vpack.c.b16 %v910, %v901
    %v1271 = vpack.c.b16 %v911, %v902
    %v1272 = vpack.c.b16 %v912, %v903
    %v1273 = vpack.c.b16 %v913, %v904
    %v1274 = vpack.c.b16 %v914, %v905
    %v1275 = vpack.c.b16 %v915, %v906
    %v1276 = vpack.c.b16 %v916, %v907
    %v1277 = vpack.c.b16 %v926, %v917
    %v1278 = vpack.c.b16 %v927, %v918
    %v1279 = vpack.c.b16 %v928, %v919
    %v1280 = vpack.c.b16 %v929, %v920
    %v1281 = vpack.c.b16 %v930, %v921
    %v1282 = vpack.c.b16 %v931, %v922
    %v1283 = vpack.c.b16 %v932, %v923
    %v1284 = vpack.c.b16 %v933, %v924
    %v1285 = vpack.c.b16 %v934, %v925
    %v1286 = vpack.c.b16 %v944, %v935
    %v1287 = vpack.c.b16 %v945, %v936
    %v1288 = vpack.c.b16 %v946, %v937
    %v1289 = vpack.c.b16 %v947, %v938
    %v1290 = vpack.c.b16 %v948, %v939
    %v1291 = vpack.c.b16 %v949, %v940
    %v1292 = vpack.c.b16 %v950, %v941
    %v1293 = vpack.c.b16 %v951, %v942
    %v1294 = vpack.c.b16 %v952, %v943
    %v1295 = vpack.c.b16 %v962, %v953
    %v1296 = vpack.c.b16 %v963, %v954
    %v1297 = vpack.c.b16 %v964, %v955
    %v1298 = vpack.c.b16 %v965, %v956
    %v1299 = vpack.c.b16 %v966, %v957
    %v1300 = vpack.c.b16 %v967, %v958
    %v1301 = vpack.c.b16 %v968, %v959
    %v1302 = vpack.c.b16 %v969, %v960
    %v1303 = vpack.c.b16 %v970, %v961
    %v1304 = vpack.c.b16 %v980, %v971
    %v1305 = vpack.c.b16 %v981, %v972
    %v1306 = vpack.c.b16 %v982, %v973
    %v1307 = vpack.c.b16 %v983, %v974
    %v1308 = vpack.c.b16 %v984, %v975
    %v1309 = vpack.c.b16 %v985, %v976
    %v1310 = vpack.c.b16 %v986, %v977
    %v1311 = vpack.c.b16 %v987, %v978
    %v1312 = vpack.c.b16 %v988, %v979
    %v1313 = vpack.c.b16 %v998, %v989
    %v1314 = vpack.c.b16 %v999, %v990
    %v1315 = vpack.c.b16 %v1000, %v991
    %v1316 = vpack.c.b16 %v1001, %v992
    %v1317 = vpack.c.b16 %v1002, %v993
    %v1318 = vpack.c.b16 %v1003, %v994
    %v1319 = vpack.c.b16 %v1004, %v995
    %v1320 = vpack.c.b16 %v1005, %v996
    %v1321 = vpack.c.b16 %v1006, %v997
    %v1322 = vpack.c.b16 %v1016, %v1007
    %v1323 = vpack.c.b16 %v1017, %v1008
    %v1324 = vpack.c.b16 %v1018, %v1009
    %v1325 = vpack.c.b16 %v1019, %v1010
    %v1326 = vpack.c.b16 %v1020, %v1011
    %v1327 = vpack.c.b16 %v1021, %v1012
    %v1328 = vpack.c.b16 %v1022, %v1013
    %v1329 = vpack.c.b16 %v1023, %v1014
    %v1330 = vpack.c.b16 %v1024, %v1015
    %v1331 = vpack.c.b16 %v1034, %v1025
    %v1332 = vpack.c.b16 %v1035, %v1026
    %v1333 = vpack.c.b16 %v1036, %v1027
    %v1334 = vpack.c.b16 %v1037, %v1028
    %v1335 = vpack.c.b16 %v1038, %v1029
    %v1336 = vpack.c.b16 %v1039, %v1030
    %v1337 = vpack.c.b16 %v1040, %v1031
    %v1338 = vpack.c.b16 %v1041, %v1032
    %v1339 = vpack.c.b16 %v1042, %v1033
    %v1340 = vpack.c.b16 %v1052, %v1043
    %v1341 = vpack.c.b16 %v1053, %v1044
    %v1342 = vpack.c.b16 %v1054, %v1045
    %v1343 = vpack.c.b16 %v1055, %v1046
    %v1344 = vpack.c.b16 %v1056, %v1047
    %v1345 = vpack.c.b16 %v1057, %v1048
    %v1346 = vpack.c.b16 %v1058, %v1049
    %v1347 = vpack.c.b16 %v1059, %v1050
    %v1348 = vpack.c.b16 %v1060, %v1051
    %v1349 = vpack.c.b16 %v1070, %v1061
    %v1350 = vpack.c.b16 %v1071, %v1062
    %v1351 = vpack.c.b16 %v1072, %v1063
    %v1352 = vpack.c.b16 %v1073, %v1064
    %v1353 = vpack.c.b16 %v1074, %v1065
    %v1354 = vpack.c.b16 %v1075, %v1066
    %v1355 = vpack.c.b16 %v1076, %v1067
    %v1356 = vpack.c.b16 %v1077, %v1068
    %v1357 = vpack.c.b16 %v1078, %v1069
    %v1358 = vpack.c.b16 %v1088, %v1079
    %v1359 = vpack.c.b16 %v1089, %v1080
    %v1360 = vpack.c.b16 %v1090, %v1081
    %v1361 = vpack.c.b16 %v1091, %v1082
    %v1362 = vpack.c.b16 %v1092, %v1083
    %v1363 = vpack.c.b16 %v1093, %v1084
    %v1364 = vpack.c.b16 %v1094, %v1085
    %v1365 = vpack.c.b16 %v1095, %v1086
    %v1366 = vpack.c.b16 %v1096, %v1087
    %v1367 = vpack.c.b16 %v1106, %v1097
    %v1368 = vpack.c.b16 %v1107, %v1098
    %v1369 = vpack.c.b16 %v1108, %v1099
    %v1370 = vpack.c.b16 %v1109, %v1100
    %v1371 = vpack.c.b16 %v1110, %v1101
    %v1372 = vpack.c.b16 %v1111, %v1102
    %v1373 = vpack.c.b16 %v1112, %v1103
    %v1374 = vpack.c.b16 %v1113, %v1104
    %v1375 = vpack.c.b16 %v1114, %v1105
    %v1376 = vpack.c.b16 %v1124, %v1115
    %v1377 = vpack.c.b16 %v1125, %v1116
    %v1378 = vpack.c.b16 %v1126, %v1117
    %v1379 = vpack.c.b16 %v1127, %v1118
    %v1380 = vpack.c.b16 %v1128, %v1119
    %v1381 = vpack.c.b16 %v1129, %v1120
    %v1382 = vpack.c.b16 %v1130, %v1121
    %v1383 = vpack.c.b16 %v1131, %v1122
    %v1384 = vpack.c.b16 %v1132, %v1123
    %v1385 = vpack.c.b16 %v1142, %v1133
    %v1386 = vpack.c.b16 %v1143, %v1134
    %v1387 = vpack.c.b16 %v1144, %v1135
    %v1388 = vpack.c.b16 %v1145, %v1136
    %v1389 = vpack.c.b16 %v1146, %v1137
    %v1390 = vpack.c.b16 %v1147, %v1138
    %v1391 = vpack.c.b16 %v1148, %v1139
    %v1392 = vpack.c.b16 %v1149, %v1140
    %v1393 = vpack.c.b16 %v1150, %v1141
    %v1394 = vpack.c.b16 %v1160, %v1151
    %v1395 = vpack.c.b16 %v1161, %v1152
    %v1396 = vpack.c.b16 %v1162, %v1153
    %v1397 = vpack.c.b16 %v1163, %v1154
    %v1398 = vpack.c.b16 %v1164, %v1155
    %v1399 = vpack.c.b16 %v1165, %v1156
    %v1400 = vpack.c.b16 %v1166, %v1157
    %v1401 = vpack.c.b16 %v1167, %v1158
    %v1402 = vpack.c.b16 %v1168, %v1159
    %v1403 = vpack.c.b16 %v1178, %v1169
    %v1404 = vpack.c.b16 %v1179, %v1170
    %v1405 = vpack.c.b16 %v1180, %v1171
    %v1406 = vpack.c.b16 %v1181, %v1172
    %v1407 = vpack.c.b16 %v1182, %v1173
    %v1408 = vpack.c.b16 %v1183, %v1174
    %v1409 = vpack.c.b16 %v1184, %v1175
    %v1410 = vpack.c.b16 %v1185, %v1176
    %v1411 = vpack.c.b16 %v1186, %v1177
    %v1412 = vpack.c.b16 %v1196, %v1187
    %v1413 = vpack.c.b16 %v1197, %v1188
    %v1414 = vpack.c.b16 %v1198, %v1189
    %v1415 = vpack.c.b16 %v1199, %v1190
    %v1416 = vpack.c.b16 %v1200, %v1191
    %v1417 = vpack.c.b16 %v1201, %v1192
    %v1418 = vpack.c.b16 %v1202, %v1193
    %v1419 = vpack.c.b16 %v1203, %v1194
    %v1420 = vpack.c.b16 %v1204, %v1195
    %1637 = vmatprep.subr.bf16.mxu0 %v1206
    %1638 = vmatpush1.bf16.msra.mxu0 %v1205
    %1639 = vmatprep.subr.bf16.mxu0 %v1215
    %1640 = vmatpush1.bf16.msra.mxu0 %v1214
    %1641 = vmatprep.subr.bf16.mxu0 %v1224
    %1642 = vmatpush1.bf16.msra.mxu0 %v1223
    %1643 = vmatprep.subr.bf16.mxu0 %v1233
    %1644 = vmatpush1.bf16.msra.mxu0 %v1232
    %1645 = vmatprep.subr.bf16.mxu0 %v1242
    %1646 = vmatpush1.bf16.msra.mxu0 %v1241
    %1647 = vmatprep.subr.bf16.mxu0 %v1251
    %1648 = vmatpush1.bf16.msra.mxu0 %v1250
    %1649 = vmatprep.subr.bf16.mxu0 %v1260
    %1650 = vmatpush1.bf16.msra.mxu0 %v1259
    %1651 = vmatprep.subr.bf16.mxu0 %v1269
    %1652 = vmatpush1.bf16.msra.mxu0 %v1268
    %1653 = vmatprep.subr.bf16.mxu0 %v1278
    %1654 = vmatpush1.bf16.msra.mxu0 %v1277
    %1655 = vmatprep.subr.bf16.mxu0 %v1287
    %1656 = vmatpush1.bf16.msra.mxu0 %v1286
    %1657 = vmatprep.subr.bf16.mxu0 %v1296
    %1658 = vmatpush1.bf16.msra.mxu0 %v1295
    %1659 = vmatprep.subr.bf16.mxu0 %v1305
    %1660 = vmatpush1.bf16.msra.mxu0 %v1304
    %1661 = vmatprep.subr.bf16.mxu0 %v1314
    %1662 = vmatpush1.bf16.msra.mxu0 %v1313
    %1663 = vmatprep.subr.bf16.mxu0 %v1323
    %1664 = vmatpush1.bf16.msra.mxu0 %v1322
    %1665 = vmatprep.subr.bf16.mxu0 %v1332
    %1666 = vmatpush1.bf16.msra.mxu0 %v1331
    %1667 = vmatprep.subr.bf16.mxu0 %v1341
    %1668 = vmatpush1.bf16.msra.mxu0 %v1340
    %1669 = vmatprep.mubr.bf16.mxu0 %v291
    %1670 = vmatmul.mubr.bf16.gmra.mrb[0].mxu0 %v290
    %v1671 = vpop.f32.mrb[0].mxu0
    %v1672 = vadd.f32 0.0, %v1671
    %v1673 = vpop.f32.mrb[0].mxu0
    %v1674 = vadd.f32 0.0, %v1673
    %v1675 = vpop.f32.mrb[0].mxu0
    %v1676 = vadd.f32 0.0, %v1675
    %v1677 = vpop.f32.mrb[0].mxu0
    %v1678 = vadd.f32 0.0, %v1677
    %1679 = vdwg.mxu0
    %1680 = vmatprep.subr.bf16.mxu0 %v1350
    %1681 = vmatpush1.bf16.msra.mxu0 %v1349
    %1682 = vmatprep.subr.bf16.mxu0 %v1359
    %1683 = vmatpush1.bf16.msra.mxu0 %v1358
    %1684 = vmatprep.subr.bf16.mxu0 %v1368
    %1685 = vmatpush1.bf16.msra.mxu0 %v1367
    %1686 = vmatprep.subr.bf16.mxu0 %v1377
    %1687 = vmatpush1.bf16.msra.mxu0 %v1376
    %1688 = vmatprep.subr.bf16.mxu0 %v1386
    %1689 = vmatpush1.bf16.msra.mxu0 %v1385
    %1690 = vmatprep.subr.bf16.mxu0 %v1395
    %1691 = vmatpush1.bf16.msra.mxu0 %v1394
    %1692 = vmatprep.subr.bf16.mxu0 %v1404
    %1693 = vmatpush1.bf16.msra.mxu0 %v1403
    %1694 = vmatprep.subr.bf16.mxu0 %v1413
    %1695 = vmatpush1.bf16.msra.mxu0 %v1412
    %1696 = vmatprep.subr.bf16.mxu0 0
    %1697 = vmatpush1.bf16.msra.mxu0 0
    %1698 = vmatprep.subr.bf16.mxu0 0
    %1699 = vmatpush1.bf16.msra.mxu0 0
    %1700 = vmatprep.subr.bf16.mxu0 0
    %1701 = vmatpush1.bf16.msra.mxu0 0
    %1702 = vmatprep.subr.bf16.mxu0 0
    %1703 = vmatpush1.bf16.msra.mxu0 0
    %1704 = vmatprep.subr.bf16.mxu0 0
    %1705 = vmatpush1.bf16.msra.mxu0 0
    %1706 = vmatprep.subr.bf16.mxu0 0
    %1707 = vmatpush1.bf16.msra.mxu0 0
    %1708 = vmatprep.subr.bf16.mxu0 0
    %1709 = vmatpush1.bf16.msra.mxu0 0
    %1710 = vmatprep.subr.bf16.mxu0 0
    %1711 = vmatpush1.bf16.msra.mxu0 0
    %1712 = vmatprep.mubr.bf16.mxu0 0
    %1713 = vmatmul.mubr.bf16.gmra.mrb[0].mxu0 %v292
    %v1714 = vpop.f32.mrb[0].mxu0
    %v1715 = vadd.f32 %v1672, %v1714
    %v1716 = vpop.f32.mrb[0].mxu0
    %v1717 = vadd.f32 %v1674, %v1716
    %v1718 = vpop.f32.mrb[0].mxu0
    %v1719 = vadd.f32 %v1676, %v1718
    %v1720 = vpop.f32.mrb[0].mxu0
    %v1721 = vadd.f32 %v1678, %v1720
    %1722 = vdwg.mxu0
    %1723 = vmatprep.subr.bf16.mxu0 %v1208
    %1724 = vmatpush1.bf16.msra.mxu0 %v1207
    %1725 = vmatprep.subr.bf16.mxu0 %v1217
    %1726 = vmatpush1.bf16.msra.mxu0 %v1216
    %1727 = vmatprep.subr.bf16.mxu0 %v1226
    %1728 = vmatpush1.bf16.msra.mxu0 %v1225
    %1729 = vmatprep.subr.bf16.mxu0 %v1235
    %1730 = vmatpush1.bf16.msra.mxu0 %v1234
    %1731 = vmatprep.subr.bf16.mxu0 %v1244
    %1732 = vmatpush1.bf16.msra.mxu0 %v1243
    %1733 = vmatprep.subr.bf16.mxu0 %v1253
    %1734 = vmatpush1.bf16.msra.mxu0 %v1252
    %1735 = vmatprep.subr.bf16.mxu0 %v1262
    %1736 = vmatpush1.bf16.msra.mxu0 %v1261
    %1737 = vmatprep.subr.bf16.mxu0 %v1271
    %1738 = vmatpush1.bf16.msra.mxu0 %v1270
    %1739 = vmatprep.subr.bf16.mxu0 %v1280
    %1740 = vmatpush1.bf16.msra.mxu0 %v1279
    %1741 = vmatprep.subr.bf16.mxu0 %v1289
    %1742 = vmatpush1.bf16.msra.mxu0 %v1288
    %1743 = vmatprep.subr.bf16.mxu0 %v1298
    %1744 = vmatpush1.bf16.msra.mxu0 %v1297
    %1745 = vmatprep.subr.bf16.mxu0 %v1307
    %1746 = vmatpush1.bf16.msra.mxu0 %v1306
    %1747 = vmatprep.subr.bf16.mxu0 %v1316
    %1748 = vmatpush1.bf16.msra.mxu0 %v1315
    %1749 = vmatprep.subr.bf16.mxu0 %v1325
    %1750 = vmatpush1.bf16.msra.mxu0 %v1324
    %1751 = vmatprep.subr.bf16.mxu0 %v1334
    %1752 = vmatpush1.bf16.msra.mxu0 %v1333
    %1753 = vmatprep.subr.bf16.mxu0 %v1343
    %1754 = vmatpush1.bf16.msra.mxu0 %v1342
    %1755 = vmatprep.mubr.bf16.mxu0 %v291
    %1756 = vmatmul.mubr.bf16.gmra.mrb[0].mxu0 %v290
    %v1757 = vpop.f32.mrb[0].mxu0
    %v1758 = vadd.f32 0.0, %v1757
    %v1759 = vpop.f32.mrb[0].mxu0
    %v1760 = vadd.f32 0.0, %v1759
    %v1761 = vpop.f32.mrb[0].mxu0
    %v1762 = vadd.f32 0.0, %v1761
    %v1763 = vpop.f32.mrb[0].mxu0
    %v1764 = vadd.f32 0.0, %v1763
    %1765 = vdwg.mxu0
    %1766 = vmatprep.subr.bf16.mxu0 %v1352
    %1767 = vmatpush1.bf16.msra.mxu0 %v1351
    %1768 = vmatprep.subr.bf16.mxu0 %v1361
    %1769 = vmatpush1.bf16.msra.mxu0 %v1360
    %1770 = vmatprep.subr.bf16.mxu0 %v1370
    %1771 = vmatpush1.bf16.msra.mxu0 %v1369
    %1772 = vmatprep.subr.bf16.mxu0 %v1379
    %1773 = vmatpush1.bf16.msra.mxu0 %v1378
    %1774 = vmatprep.subr.bf16.mxu0 %v1388
    %1775 = vmatpush1.bf16.msra.mxu0 %v1387
    %1776 = vmatprep.subr.bf16.mxu0 %v1397
    %1777 = vmatpush1.bf16.msra.mxu0 %v1396
    %1778 = vmatprep.subr.bf16.mxu0 %v1406
    %1779 = vmatpush1.bf16.msra.mxu0 %v1405
    %1780 = vmatprep.subr.bf16.mxu0 %v1415
    %1781 = vmatpush1.bf16.msra.mxu0 %v1414
    %1782 = vmatprep.subr.bf16.mxu0 0
    %1783 = vmatpush1.bf16.msra.mxu0 0
    %1784 = vmatprep.subr.bf16.mxu0 0
    %1785 = vmatpush1.bf16.msra.mxu0 0
    %1786 = vmatprep.subr.bf16.mxu0 0
    %1787 = vmatpush1.bf16.msra.mxu0 0
    %1788 = vmatprep.subr.bf16.mxu0 0
    %1789 = vmatpush1.bf16.msra.mxu0 0
    %1790 = vmatprep.subr.bf16.mxu0 0
    %1791 = vmatpush1.bf16.msra.mxu0 0
    %1792 = vmatprep.subr.bf16.mxu0 0
    %1793 = vmatpush1.bf16.msra.mxu0 0
    %1794 = vmatprep.subr.bf16.mxu0 0
    %1795 = vmatpush1.bf16.msra.mxu0 0
    %1796 = vmatprep.subr.bf16.mxu0 0
    %1797 = vmatpush1.bf16.msra.mxu0 0
    %1798 = vmatprep.mubr.bf16.mxu0 0
    %1799 = vmatmul.mubr.bf16.gmra.mrb[0].mxu0 %v292
    %v1800 = vpop.f32.mrb[0].mxu0
    %v1801 = vadd.f32 %v1758, %v1800
    %v1802 = vpop.f32.mrb[0].mxu0
    %v1803 = vadd.f32 %v1760, %v1802
    %v1804 = vpop.f32.mrb[0].mxu0
    %v1805 = vadd.f32 %v1762, %v1804
    %v1806 = vpop.f32.mrb[0].mxu0
    %v1807 = vadd.f32 %v1764, %v1806
    %1808 = vdwg.mxu0
    %1809 = vmatprep.subr.bf16.mxu0 %v1210
    %1810 = vmatpush1.bf16.msra.mxu0 %v1209
    %1811 = vmatprep.subr.bf16.mxu0 %v1219
    %1812 = vmatpush1.bf16.msra.mxu0 %v1218
    %1813 = vmatprep.subr.bf16.mxu0 %v1228
    %1814 = vmatpush1.bf16.msra.mxu0 %v1227
    %1815 = vmatprep.subr.bf16.mxu0 %v1237
    %1816 = vmatpush1.bf16.msra.mxu0 %v1236
    %1817 = vmatprep.subr.bf16.mxu0 %v1246
    %1818 = vmatpush1.bf16.msra.mxu0 %v1245
    %1819 = vmatprep.subr.bf16.mxu0 %v1255
    %1820 = vmatpush1.bf16.msra.mxu0 %v1254
    %1821 = vmatprep.subr.bf16.mxu0 %v1264
    %1822 = vmatpush1.bf16.msra.mxu0 %v1263
    %1823 = vmatprep.subr.bf16.mxu0 %v1273
    %1824 = vmatpush1.bf16.msra.mxu0 %v1272
    %1825 = vmatprep.subr.bf16.mxu0 %v1282
    %1826 = vmatpush1.bf16.msra.mxu0 %v1281
    %1827 = vmatprep.subr.bf16.mxu0 %v1291
    %1828 = vmatpush1.bf16.msra.mxu0 %v1290
    %1829 = vmatprep.subr.bf16.mxu0 %v1300
    %1830 = vmatpush1.bf16.msra.mxu0 %v1299
    %1831 = vmatprep.subr.bf16.mxu0 %v1309
    %1832 = vmatpush1.bf16.msra.mxu0 %v1308
    %1833 = vmatprep.subr.bf16.mxu0 %v1318
    %1834 = vmatpush1.bf16.msra.mxu0 %v1317
    %1835 = vmatprep.subr.bf16.mxu0 %v1327
    %1836 = vmatpush1.bf16.msra.mxu0 %v1326
    %1837 = vmatprep.subr.bf16.mxu0 %v1336
    %1838 = vmatpush1.bf16.msra.mxu0 %v1335
    %1839 = vmatprep.subr.bf16.mxu0 %v1345
    %1840 = vmatpush1.bf16.msra.mxu0 %v1344
    %1841 = vmatprep.mubr.bf16.mxu0 %v291
    %1842 = vmatmul.mubr.bf16.gmra.mrb[0].mxu0 %v290
    %v1843 = vpop.f32.mrb[0].mxu0
    %v1844 = vadd.f32 0.0, %v1843
    %v1845 = vpop.f32.mrb[0].mxu0
    %v1846 = vadd.f32 0.0, %v1845
    %v1847 = vpop.f32.mrb[0].mxu0
    %v1848 = vadd.f32 0.0, %v1847
    %v1849 = vpop.f32.mrb[0].mxu0
    %v1850 = vadd.f32 0.0, %v1849
    %1851 = vdwg.mxu0
    %1852 = vmatprep.subr.bf16.mxu0 %v1354
    %1853 = vmatpush1.bf16.msra.mxu0 %v1353
    %1854 = vmatprep.subr.bf16.mxu0 %v1363
    %1855 = vmatpush1.bf16.msra.mxu0 %v1362
    %1856 = vmatprep.subr.bf16.mxu0 %v1372
    %1857 = vmatpush1.bf16.msra.mxu0 %v1371
    %1858 = vmatprep.subr.bf16.mxu0 %v1381
    %1859 = vmatpush1.bf16.msra.mxu0 %v1380
    %1860 = vmatprep.subr.bf16.mxu0 %v1390
    %1861 = vmatpush1.bf16.msra.mxu0 %v1389
    %1862 = vmatprep.subr.bf16.mxu0 %v1399
    %1863 = vmatpush1.bf16.msra.mxu0 %v1398
    %1864 = vmatprep.subr.bf16.mxu0 %v1408
    %1865 = vmatpush1.bf16.msra.mxu0 %v1407
    %1866 = vmatprep.subr.bf16.mxu0 %v1417
    %1867 = vmatpush1.bf16.msra.mxu0 %v1416
    %1868 = vmatprep.subr.bf16.mxu0 0
    %1869 = vmatpush1.bf16.msra.mxu0 0
    %1870 = vmatprep.subr.bf16.mxu0 0
    %1871 = vmatpush1.bf16.msra.mxu0 0
    %1872 = vmatprep.subr.bf16.mxu0 0
    %1873 = vmatpush1.bf16.msra.mxu0 0
    %1874 = vmatprep.subr.bf16.mxu0 0
    %1875 = vmatpush1.bf16.msra.mxu0 0
    %1876 = vmatprep.subr.bf16.mxu0 0
    %1877 = vmatpush1.bf16.msra.mxu0 0
    %1878 = vmatprep.subr.bf16.mxu0 0
    %1879 = vmatpush1.bf16.msra.mxu0 0
    %1880 = vmatprep.subr.bf16.mxu0 0
    %1881 = vmatpush1.bf16.msra.mxu0 0
    %1882 = vmatprep.subr.bf16.mxu0 0
    %1883 = vmatpush1.bf16.msra.mxu0 0
    %1884 = vmatprep.mubr.bf16.mxu0 0
    %1885 = vmatmul.mubr.bf16.gmra.mrb[0].mxu0 %v292
    %v1886 = vpop.f32.mrb[0].mxu0
    %v1887 = vadd.f32 %v1844, %v1886
    %v1888 = vpop.f32.mrb[0].mxu0
    %v1889 = vadd.f32 %v1846, %v1888
    %v1890 = vpop.f32.mrb[0].mxu0
    %v1891 = vadd.f32 %v1848, %v1890
    %v1892 = vpop.f32.mrb[0].mxu0
    %v1893 = vadd.f32 %v1850, %v1892
    %1894 = vdwg.mxu0
    %1895 = vmatprep.subr.bf16.mxu0 %v1212
    %1896 = vmatpush1.bf16.msra.mxu0 %v1211
    %1897 = vmatprep.subr.bf16.mxu0 %v1221
    %1898 = vmatpush1.bf16.msra.mxu0 %v1220
    %1899 = vmatprep.subr.bf16.mxu0 %v1230
    %1900 = vmatpush1.bf16.msra.mxu0 %v1229
    %1901 = vmatprep.subr.bf16.mxu0 %v1239
    %1902 = vmatpush1.bf16.msra.mxu0 %v1238
    %1903 = vmatprep.subr.bf16.mxu0 %v1248
    %1904 = vmatpush1.bf16.msra.mxu0 %v1247
    %1905 = vmatprep.subr.bf16.mxu0 %v1257
    %1906 = vmatpush1.bf16.msra.mxu0 %v1256
    %1907 = vmatprep.subr.bf16.mxu0 %v1266
    %1908 = vmatpush1.bf16.msra.mxu0 %v1265
    %1909 = vmatprep.subr.bf16.mxu0 %v1275
    %1910 = vmatpush1.bf16.msra.mxu0 %v1274
    %1911 = vmatprep.subr.bf16.mxu0 %v1284
    %1912 = vmatpush1.bf16.msra.mxu0 %v1283
    %1913 = vmatprep.subr.bf16.mxu0 %v1293
    %1914 = vmatpush1.bf16.msra.mxu0 %v1292
    %1915 = vmatprep.subr.bf16.mxu0 %v1302
    %1916 = vmatpush1.bf16.msra.mxu0 %v1301
    %1917 = vmatprep.subr.bf16.mxu0 %v1311
    %1918 = vmatpush1.bf16.msra.mxu0 %v1310
    %1919 = vmatprep.subr.bf16.mxu0 %v1320
    %1920 = vmatpush1.bf16.msra.mxu0 %v1319
    %1921 = vmatprep.subr.bf16.mxu0 %v1329
    %1922 = vmatpush1.bf16.msra.mxu0 %v1328
    %1923 = vmatprep.subr.bf16.mxu0 %v1338
    %1924 = vmatpush1.bf16.msra.mxu0 %v1337
    %1925 = vmatprep.subr.bf16.mxu0 %v1347
    %1926 = vmatpush1.bf16.msra.mxu0 %v1346
    %1927 = vmatprep.mubr.bf16.mxu0 %v291
    %1928 = vmatmul.mubr.bf16.gmra.mrb[0].mxu0 %v290
    %v1929 = vpop.f32.mrb[0].mxu0
    %v1930 = vadd.f32 0.0, %v1929
    %v1931 = vpop.f32.mrb[0].mxu0
    %v1932 = vadd.f32 0.0, %v1931
    %v1933 = vpop.f32.mrb[0].mxu0
    %v1934 = vadd.f32 0.0, %v1933
    %v1935 = vpop.f32.mrb[0].mxu0
    %v1936 = vadd.f32 0.0, %v1935
    %1937 = vdwg.mxu0
    %1938 = vmatprep.subr.bf16.mxu0 %v1356
    %1939 = vmatpush1.bf16.msra.mxu0 %v1355
    %1940 = vmatprep.subr.bf16.mxu0 %v1365
    %1941 = vmatpush1.bf16.msra.mxu0 %v1364
    %1942 = vmatprep.subr.bf16.mxu0 %v1374
    %1943 = vmatpush1.bf16.msra.mxu0 %v1373
    %1944 = vmatprep.subr.bf16.mxu0 %v1383
    %1945 = vmatpush1.bf16.msra.mxu0 %v1382
    %1946 = vmatprep.subr.bf16.mxu0 %v1392
    %1947 = vmatpush1.bf16.msra.mxu0 %v1391
    %1948 = vmatprep.subr.bf16.mxu0 %v1401
    %1949 = vmatpush1.bf16.msra.mxu0 %v1400
    %1950 = vmatprep.subr.bf16.mxu0 %v1410
    %1951 = vmatpush1.bf16.msra.mxu0 %v1409
    %1952 = vmatprep.subr.bf16.mxu0 %v1419
    %1953 = vmatpush1.bf16.msra.mxu0 %v1418
    %1954 = vmatprep.subr.bf16.mxu0 0
    %1955 = vmatpush1.bf16.msra.mxu0 0
    %1956 = vmatprep.subr.bf16.mxu0 0
    %1957 = vmatpush1.bf16.msra.mxu0 0
    %1958 = vmatprep.subr.bf16.mxu0 0
    %1959 = vmatpush1.bf16.msra.mxu0 0
    %1960 = vmatprep.subr.bf16.mxu0 0
    %1961 = vmatpush1.bf16.msra.mxu0 0
    %1962 = vmatprep.subr.bf16.mxu0 0
    %1963 = vmatpush1.bf16.msra.mxu0 0
    %1964 = vmatprep.subr.bf16.mxu0 0
    %1965 = vmatpush1.bf16.msra.mxu0 0
    %1966 = vmatprep.subr.bf16.mxu0 0
    %1967 = vmatpush1.bf16.msra.mxu0 0
    %1968 = vmatprep.subr.bf16.mxu0 0
    %1969 = vmatpush1.bf16.msra.mxu0 0
    %1970 = vmatprep.mubr.bf16.mxu0 0
    %1971 = vmatmul.mubr.bf16.gmra.mrb[0].mxu0 %v292
    %v1972 = vpop.f32.mrb[0].mxu0
    %v1973 = vadd.f32 %v1930, %v1972
    %v1974 = vpop.f32.mrb[0].mxu0
    %v1975 = vadd.f32 %v1932, %v1974
    %v1976 = vpop.f32.mrb[0].mxu0
    %v1977 = vadd.f32 %v1934, %v1976
    %v1978 = vpop.f32.mrb[0].mxu0
    %v1979 = vadd.f32 %v1936, %v1978
    %1980 = vdwg.mxu0
    %1981 = vmatprep.subr.bf16.mxu0 0
    %1982 = vmatpush1.bf16.msra.mxu0 %v1213
    %1983 = vmatprep.subr.bf16.mxu0 0
    %1984 = vmatpush1.bf16.msra.mxu0 %v1222
    %1985 = vmatprep.subr.bf16.mxu0 0
    %1986 = vmatpush1.bf16.msra.mxu0 %v1231
    %1987 = vmatprep.subr.bf16.mxu0 0
    %1988 = vmatpush1.bf16.msra.mxu0 %v1240
    %1989 = vmatprep.subr.bf16.mxu0 0
    %1990 = vmatpush1.bf16.msra.mxu0 %v1249
    %1991 = vmatprep.subr.bf16.mxu0 0
    %1992 = vmatpush1.bf16.msra.mxu0 %v1258
    %1993 = vmatprep.subr.bf16.mxu0 0
    %1994 = vmatpush1.bf16.msra.mxu0 %v1267
    %1995 = vmatprep.subr.bf16.mxu0 0
    %1996 = vmatpush1.bf16.msra.mxu0 %v1276
    %1997 = vmatprep.subr.bf16.mxu0 0
    %1998 = vmatpush1.bf16.msra.mxu0 %v1285
    %1999 = vmatprep.subr.bf16.mxu0 0
    %2000 = vmatpush1.bf16.msra.mxu0 %v1294
    %2001 = vmatprep.subr.bf16.mxu0 0
    %2002 = vmatpush1.bf16.msra.mxu0 %v1303
    %2003 = vmatprep.subr.bf16.mxu0 0
    %2004 = vmatpush1.bf16.msra.mxu0 %v1312
    %2005 = vmatprep.subr.bf16.mxu0 0
    %2006 = vmatpush1.bf16.msra.mxu0 %v1321
    %2007 = vmatprep.subr.bf16.mxu0 0
    %2008 = vmatpush1.bf16.msra.mxu0 %v1330
    %2009 = vmatprep.subr.bf16.mxu0 0
    %2010 = vmatpush1.bf16.msra.mxu0 %v1339
    %2011 = vmatprep.subr.bf16.mxu0 0
    %2012 = vmatpush1.bf16.msra.mxu0 %v1348
    %2013 = vmatprep.mubr.bf16.mxu0 %v291
    %2014 = vmatmul.mubr.bf16.gmra.mrb[0].mxu0 %v290
    %v2015 = vpop.f32.mrb[0].mxu0
    %v2016 = vadd.f32 0.0, %v2015
    %v2017 = vpop.f32.mrb[0].mxu0
    %v2018 = vpop.f32.mrb[0].mxu0
    %v2019 = vadd.f32 0.0, %v2018
    %v2020 = vpop.f32.mrb[0].mxu0
    %2021 = vdwg.mxu0
    %2022 = vmatprep.subr.bf16.mxu0 0
    %2023 = vmatpush1.bf16.msra.mxu0 %v1357
    %2024 = vmatprep.subr.bf16.mxu0 0
    %2025 = vmatpush1.bf16.msra.mxu0 %v1366
    %2026 = vmatprep.subr.bf16.mxu0 0
    %2027 = vmatpush1.bf16.msra.mxu0 %v1375
    %2028 = vmatprep.subr.bf16.mxu0 0
    %2029 = vmatpush1.bf16.msra.mxu0 %v1384
    %2030 = vmatprep.subr.bf16.mxu0 0
    %2031 = vmatpush1.bf16.msra.mxu0 %v1393
    %2032 = vmatprep.subr.bf16.mxu0 0
    %2033 = vmatpush1.bf16.msra.mxu0 %v1402
    %2034 = vmatprep.subr.bf16.mxu0 0
    %2035 = vmatpush1.bf16.msra.mxu0 %v1411
    %2036 = vmatprep.subr.bf16.mxu0 0
    %2037 = vmatpush1.bf16.msra.mxu0 %v1420
    %2038 = vmatprep.subr.bf16.mxu0 0
    %2039 = vmatpush1.bf16.msra.mxu0 0
    %2040 = vmatprep.subr.bf16.mxu0 0
    %2041 = vmatpush1.bf16.msra.mxu0 0
    %2042 = vmatprep.subr.bf16.mxu0 0
    %2043 = vmatpush1.bf16.msra.mxu0 0
    %2044 = vmatprep.subr.bf16.mxu0 0
    %2045 = vmatpush1.bf16.msra.mxu0 0
    %2046 = vmatprep.subr.bf16.mxu0 0
    %2047 = vmatpush1.bf16.msra.mxu0 0
    %2048 = vmatprep.subr.bf16.mxu0 0
    %2049 = vmatpush1.bf16.msra.mxu0 0
    %2050 = vmatprep.subr.bf16.mxu0 0
    %2051 = vmatpush1.bf16.msra.mxu0 0
    %2052 = vmatprep.subr.bf16.mxu0 0
    %2053 = vmatpush1.bf16.msra.mxu0 0
    %2054 = vmatprep.mubr.bf16.mxu0 0
    %2055 = vmatmul.mubr.bf16.gmra.mrb[0].mxu0 %v292
    %v2056 = vpop.f32.mrb[0].mxu0
    %v2057 = vadd.f32 %v2016, %v2056
    %v2058 = vpop.f32.mrb[0].mxu0
    %v2059 = vpop.f32.mrb[0].mxu0
    %v2060 = vadd.f32 %v2019, %v2059
    %v2061 = vpop.f32.mrb[0].mxu0
    %2062 = vdwg.mxu0
    %v2063 = vld [vmem:[%s1] sm:$0xff]
    %v2064 = vpack.c.bf16 %v1715, %v1715
    %v2065 = vpack.c.bf16 %v1803, %v1803
    %v2066 = vpack.c.bf16 %v1973, %v1973
    %vm2067 = vcmask 523264
    %v2069 = vsel %vm2067, %v2064, 0
    %v2072 = vsel %vm2067, %v2065, 0
    %2074 = vmatprep.subr.bf16.mxu0 0
    %2075 = vmatpush1.bf16.xpose.msra.mxu0 %v2072
    %2076 = vmatprep.subr.bf16.mxu0 0
    %2077 = vmatpush1.bf16.xpose.msra.mxu0 0
    %2078 = vmatprep.subr.bf16.mxu0 0
    %2079 = vmatpush1.bf16.xpose.msra.mxu0 0
    %2080 = vmatprep.subr.bf16.mxu0 0
    %2081 = vmatpush1.bf16.xpose.msra.mxu0 0
    %2082 = vmatprep.subr.bf16.mxu0 0
    %2083 = vmatpush1.bf16.xpose.msra.mxu0 0
    %2084 = vmatprep.subr.bf16.mxu0 0
    %2085 = vmatpush1.bf16.xpose.msra.mxu0 0
    %2086 = vmatprep.subr.bf16.mxu0 0
    %2087 = vmatpush1.bf16.xpose.msra.mxu0 0
    %2088 = vmatprep.subr.bf16.mxu0 0
    %2089 = vmatpush1.bf16.xpose.msra.mxu0 0
    %2090 = vmatprep.subr.bf16.mxu0 0
    %2091 = vmatpush1.bf16.xpose.msra.mxu0 0
    %2092 = vmatprep.subr.bf16.mxu0 0
    %2093 = vmatpush1.bf16.xpose.msra.mxu0 0
    %2094 = vmatprep.subr.bf16.mxu0 0
    %2095 = vmatpush1.bf16.xpose.msra.mxu0 0
    %2096 = vmatprep.subr.bf16.mxu0 0
    %2097 = vmatpush1.bf16.xpose.msra.mxu0 0
    %2098 = vmatprep.subr.bf16.mxu0 0
    %2099 = vmatpush1.bf16.xpose.msra.mxu0 0
    %2100 = vmatprep.subr.bf16.mxu0 0
    %2101 = vmatpush1.bf16.xpose.msra.mxu0 0
    %2102 = vmatprep.subr.bf16.mxu0 0
    %2103 = vmatpush1.bf16.xpose.msra.mxu0 0
    %2104 = vmatprep.subr.bf16.mxu0 0
    %2105 = vmatpush1.bf16.xpose.msra.mxu0 0
    %2106 = vmatprep.mubr.bf16.mxu0 0
    %2107 = vmatmul.mubr.bf16.gmra.mrb[0].mxu0 %v2069
    %v2108 = vpop.f32.mrb[0].mxu0
    %v2109 = vadd.f32 %v2063, %v2108
    %v2110 = vpop.f32.mrb[0].mxu0
    %v2111 = vpop.f32.mrb[0].mxu0
    %v2112 = vpop.f32.mrb[0].mxu0
    %2113 = vdwg.mxu0
    %vm2114 = vcmask 64512
    %v2115 = vsel %vm2114, %v2109, -inf
    %2116 = vmax.xlane.f32.xlu0 %v2115
    %v2117 = vpop.xlane.xlu0 %2116
    %v2118 = vsub.f32 %v2109, %v2117
    %v2119 = vmul.f32 %v2118, 1.442695
    %v2120 = vpow.pop %v2119
    %v2121 = vsel %vm2114, %v2120, 0.0
    %2122 = vadd.xlane.f32.xlu0 %v2121
    %v2123 = vpop.xlane.xlu0 %2122
    %v2124 = vrcp.pop %v2123
    %v2125 = vpack.c.bf16 %v2120, %v2120
    %v2127 = vsel %vm2114, %v2125, 0
    %vm2129 = vcmask 1043456
    %v2131 = vsel %vm2129, %v2066, 0
    %2133 = vmatprep.subr.bf16.mxu0 0
    %2134 = vmatpush1.bf16.msra.mxu0 %v2131
    %2135 = vmatprep.subr.bf16.mxu0 0
    %2136 = vmatpush1.bf16.msra.mxu0 0
    %2137 = vmatprep.subr.bf16.mxu0 0
    %2138 = vmatpush1.bf16.msra.mxu0 0
    %2139 = vmatprep.subr.bf16.mxu0 0
    %2140 = vmatpush1.bf16.msra.mxu0 0
    %2141 = vmatprep.subr.bf16.mxu0 0
    %2142 = vmatpush1.bf16.msra.mxu0 0
    %2143 = vmatprep.subr.bf16.mxu0 0
    %2144 = vmatpush1.bf16.msra.mxu0 0
    %2145 = vmatprep.subr.bf16.mxu0 0
    %2146 = vmatpush1.bf16.msra.mxu0 0
    %2147 = vmatprep.subr.bf16.mxu0 0
    %2148 = vmatpush1.bf16.msra.mxu0 0
    %2149 = vmatprep.subr.bf16.mxu0 0
    %2150 = vmatpush1.bf16.msra.mxu0 0
    %2151 = vmatprep.subr.bf16.mxu0 0
    %2152 = vmatpush1.bf16.msra.mxu0 0
    %2153 = vmatprep.subr.bf16.mxu0 0
    %2154 = vmatpush1.bf16.msra.mxu0 0
    %2155 = vmatprep.subr.bf16.mxu0 0
    %2156 = vmatpush1.bf16.msra.mxu0 0
    %2157 = vmatprep.subr.bf16.mxu0 0
    %2158 = vmatpush1.bf16.msra.mxu0 0
    %2159 = vmatprep.subr.bf16.mxu0 0
    %2160 = vmatpush1.bf16.msra.mxu0 0
    %2161 = vmatprep.subr.bf16.mxu0 0
    %2162 = vmatpush1.bf16.msra.mxu0 0
    %2163 = vmatprep.subr.bf16.mxu0 0
    %2164 = vmatpush1.bf16.msra.mxu0 0
    %2165 = vmatprep.mubr.bf16.mxu0 0
    %2166 = vmatmul.mubr.bf16.gmra.mrb[0].mxu0 %v2127
    %v2167 = vpop.f32.mrb[0].mxu0
    %v2168 = vadd.f32 0.0, %v2167
    %v2169 = vpop.f32.mrb[0].mxu0
    %v2170 = vpop.f32.mrb[0].mxu0
    %v2171 = vpop.f32.mrb[0].mxu0
    %2172 = vdwg.mxu0
    %v2173 = vmul.f32 %v2168, %v2124
    %v2174 = vpack.c.bf16 %v2173, %v2173
    %2176 = vrot.lane.b32.xlu0 %v2064, 64
    %v2177 = vpop.permute.xlu0 %2176
    %2179 = vrot.lane.b32.xlu0 %v2065, 64
    %v2180 = vpop.permute.xlu0 %2179
    %v2182 = vsel %vm2067, %v2177, 0
    %v2185 = vsel %vm2067, %v2180, 0
    %2187 = vmatprep.subr.bf16.mxu0 0
    %2188 = vmatpush1.bf16.xpose.msra.mxu0 %v2185
    %2189 = vmatprep.subr.bf16.mxu0 0
    %2190 = vmatpush1.bf16.xpose.msra.mxu0 0
    %2191 = vmatprep.subr.bf16.mxu0 0
    %2192 = vmatpush1.bf16.xpose.msra.mxu0 0
    %2193 = vmatprep.subr.bf16.mxu0 0
    %2194 = vmatpush1.bf16.xpose.msra.mxu0 0
    %2195 = vmatprep.subr.bf16.mxu0 0
    %2196 = vmatpush1.bf16.xpose.msra.mxu0 0
    %2197 = vmatprep.subr.bf16.mxu0 0
    %2198 = vmatpush1.bf16.xpose.msra.mxu0 0
    %2199 = vmatprep.subr.bf16.mxu0 0
    %2200 = vmatpush1.bf16.xpose.msra.mxu0 0
    %2201 = vmatprep.subr.bf16.mxu0 0
    %2202 = vmatpush1.bf16.xpose.msra.mxu0 0
    %2203 = vmatprep.subr.bf16.mxu0 0
    %2204 = vmatpush1.bf16.xpose.msra.mxu0 0
    %2205 = vmatprep.subr.bf16.mxu0 0
    %2206 = vmatpush1.bf16.xpose.msra.mxu0 0
    %2207 = vmatprep.subr.bf16.mxu0 0
    %2208 = vmatpush1.bf16.xpose.msra.mxu0 0
    %2209 = vmatprep.subr.bf16.mxu0 0
    %2210 = vmatpush1.bf16.xpose.msra.mxu0 0
    %2211 = vmatprep.subr.bf16.mxu0 0
    %2212 = vmatpush1.bf16.xpose.msra.mxu0 0
    %2213 = vmatprep.subr.bf16.mxu0 0
    %2214 = vmatpush1.bf16.xpose.msra.mxu0 0
    %2215 = vmatprep.subr.bf16.mxu0 0
    %2216 = vmatpush1.bf16.xpose.msra.mxu0 0
    %2217 = vmatprep.subr.bf16.mxu0 0
    %2218 = vmatpush1.bf16.xpose.msra.mxu0 0
    %2219 = vmatprep.mubr.bf16.mxu0 0
    %2220 = vmatmul.mubr.bf16.gmra.mrb[0].mxu0 %v2182
    %v2221 = vpop.f32.mrb[0].mxu0
    %v2222 = vadd.f32 %v2063, %v2221
    %v2223 = vpop.f32.mrb[0].mxu0
    %v2224 = vpop.f32.mrb[0].mxu0
    %v2225 = vpop.f32.mrb[0].mxu0
    %2226 = vdwg.mxu0
    %v2227 = vsel %vm2114, %v2222, -inf
    %2228 = vmax.xlane.f32.xlu0 %v2227
    %v2229 = vpop.xlane.xlu0 %2228
    %v2230 = vsub.f32 %v2222, %v2229
    %v2231 = vmul.f32 %v2230, 1.442695
    %v2232 = vpow.pop %v2231
    %v2233 = vsel %vm2114, %v2232, 0.0
    %2234 = vadd.xlane.f32.xlu0 %v2233
    %v2235 = vpop.xlane.xlu0 %2234
    %v2236 = vrcp.pop %v2235
    %v2237 = vpack.c.bf16 %v2232, %v2232
    %2239 = vrot.lane.b32.xlu0 %v2066, 64
    %v2240 = vpop.permute.xlu0 %2239
    %v2242 = vsel %vm2114, %v2237, 0
    %v2245 = vsel %vm2129, %v2240, 0
    %2247 = vmatprep.subr.bf16.mxu0 0
    %2248 = vmatpush1.bf16.msra.mxu0 %v2245
    %2249 = vmatprep.subr.bf16.mxu0 0
    %2250 = vmatpush1.bf16.msra.mxu0 0
    %2251 = vmatprep.subr.bf16.mxu0 0
    %2252 = vmatpush1.bf16.msra.mxu0 0
    %2253 = vmatprep.subr.bf16.mxu0 0
    %2254 = vmatpush1.bf16.msra.mxu0 0
    %2255 = vmatprep.subr.bf16.mxu0 0
    %2256 = vmatpush1.bf16.msra.mxu0 0
    %2257 = vmatprep.subr.bf16.mxu0 0
    %2258 = vmatpush1.bf16.msra.mxu0 0
    %2259 = vmatprep.subr.bf16.mxu0 0
    %2260 = vmatpush1.bf16.msra.mxu0 0
    %2261 = vmatprep.subr.bf16.mxu0 0
    %2262 = vmatpush1.bf16.msra.mxu0 0
    %2263 = vmatprep.subr.bf16.mxu0 0
    %2264 = vmatpush1.bf16.msra.mxu0 0
    %2265 = vmatprep.subr.bf16.mxu0 0
    %2266 = vmatpush1.bf16.msra.mxu0 0
    %2267 = vmatprep.subr.bf16.mxu0 0
    %2268 = vmatpush1.bf16.msra.mxu0 0
    %2269 = vmatprep.subr.bf16.mxu0 0
    %2270 = vmatpush1.bf16.msra.mxu0 0
    %2271 = vmatprep.subr.bf16.mxu0 0
    %2272 = vmatpush1.bf16.msra.mxu0 0
    %2273 = vmatprep.subr.bf16.mxu0 0
    %2274 = vmatpush1.bf16.msra.mxu0 0
    %2275 = vmatprep.subr.bf16.mxu0 0
    %2276 = vmatpush1.bf16.msra.mxu0 0
    %2277 = vmatprep.subr.bf16.mxu0 0
    %2278 = vmatpush1.bf16.msra.mxu0 0
    %2279 = vmatprep.mubr.bf16.mxu0 0
    %2280 = vmatmul.mubr.bf16.gmra.mrb[0].mxu0 %v2242
    %v2281 = vpop.f32.mrb[0].mxu0
    %v2282 = vadd.f32 0.0, %v2281
    %v2283 = vpop.f32.mrb[0].mxu0
    %v2284 = vpop.f32.mrb[0].mxu0
    %v2285 = vpop.f32.mrb[0].mxu0
    %2286 = vdwg.mxu0
    %v2287 = vmul.f32 %v2282, %v2236
    %v2288 = vpack.c.bf16 %v2287, %v2287
    %v2289 = vpack.c.bf16 %v1717, %v1717
    %v2290 = vpack.c.bf16 %v1887, %v1887
    %v2291 = vpack.c.bf16 %v1975, %v1975
    %v2293 = vsel %vm2067, %v2289, 0
    %v2296 = vsel %vm2067, %v2290, 0
    %2298 = vmatprep.subr.bf16.mxu0 0
    %2299 = vmatpush1.bf16.xpose.msra.mxu0 %v2296
    %2300 = vmatprep.subr.bf16.mxu0 0
    %2301 = vmatpush1.bf16.xpose.msra.mxu0 0
    %2302 = vmatprep.subr.bf16.mxu0 0
    %2303 = vmatpush1.bf16.xpose.msra.mxu0 0
    %2304 = vmatprep.subr.bf16.mxu0 0
    %2305 = vmatpush1.bf16.xpose.msra.mxu0 0
    %2306 = vmatprep.subr.bf16.mxu0 0
    %2307 = vmatpush1.bf16.xpose.msra.mxu0 0
    %2308 = vmatprep.subr.bf16.mxu0 0
    %2309 = vmatpush1.bf16.xpose.msra.mxu0 0
    %2310 = vmatprep.subr.bf16.mxu0 0
    %2311 = vmatpush1.bf16.xpose.msra.mxu0 0
    %2312 = vmatprep.subr.bf16.mxu0 0
    %2313 = vmatpush1.bf16.xpose.msra.mxu0 0
    %2314 = vmatprep.subr.bf16.mxu0 0
    %2315 = vmatpush1.bf16.xpose.msra.mxu0 0
    %2316 = vmatprep.subr.bf16.mxu0 0
    %2317 = vmatpush1.bf16.xpose.msra.mxu0 0
    %2318 = vmatprep.subr.bf16.mxu0 0
    %2319 = vmatpush1.bf16.xpose.msra.mxu0 0
    %2320 = vmatprep.subr.bf16.mxu0 0
    %2321 = vmatpush1.bf16.xpose.msra.mxu0 0
    %2322 = vmatprep.subr.bf16.mxu0 0
    %2323 = vmatpush1.bf16.xpose.msra.mxu0 0
    %2324 = vmatprep.subr.bf16.mxu0 0
    %2325 = vmatpush1.bf16.xpose.msra.mxu0 0
    %2326 = vmatprep.subr.bf16.mxu0 0
    %2327 = vmatpush1.bf16.xpose.msra.mxu0 0
    %2328 = vmatprep.subr.bf16.mxu0 0
    %2329 = vmatpush1.bf16.xpose.msra.mxu0 0
    %2330 = vmatprep.mubr.bf16.mxu0 0
    %2331 = vmatmul.mubr.bf16.gmra.mrb[0].mxu0 %v2293
    %v2332 = vpop.f32.mrb[0].mxu0
    %v2333 = vadd.f32 %v2063, %v2332
    %v2334 = vpop.f32.mrb[0].mxu0
    %v2335 = vpop.f32.mrb[0].mxu0
    %v2336 = vpop.f32.mrb[0].mxu0
    %2337 = vdwg.mxu0
    %v2338 = vsel %vm2114, %v2333, -inf
    %2339 = vmax.xlane.f32.xlu0 %v2338
    %v2340 = vpop.xlane.xlu0 %2339
    %v2341 = vsub.f32 %v2333, %v2340
    %v2342 = vmul.f32 %v2341, 1.442695
    %v2343 = vpow.pop %v2342
    %v2344 = vsel %vm2114, %v2343, 0.0
    %2345 = vadd.xlane.f32.xlu0 %v2344
    %v2346 = vpop.xlane.xlu0 %2345
    %v2347 = vrcp.pop %v2346
    %v2348 = vpack.c.bf16 %v2343, %v2343
    %v2350 = vsel %vm2114, %v2348, 0
    %v2353 = vsel %vm2129, %v2291, 0
    %2355 = vmatprep.subr.bf16.mxu0 0
    %2356 = vmatpush1.bf16.msra.mxu0 %v2353
    %2357 = vmatprep.subr.bf16.mxu0 0
    %2358 = vmatpush1.bf16.msra.mxu0 0
    %2359 = vmatprep.subr.bf16.mxu0 0
    %2360 = vmatpush1.bf16.msra.mxu0 0
    %2361 = vmatprep.subr.bf16.mxu0 0
    %2362 = vmatpush1.bf16.msra.mxu0 0
    %2363 = vmatprep.subr.bf16.mxu0 0
    %2364 = vmatpush1.bf16.msra.mxu0 0
    %2365 = vmatprep.subr.bf16.mxu0 0
    %2366 = vmatpush1.bf16.msra.mxu0 0
    %2367 = vmatprep.subr.bf16.mxu0 0
    %2368 = vmatpush1.bf16.msra.mxu0 0
    %2369 = vmatprep.subr.bf16.mxu0 0
    %2370 = vmatpush1.bf16.msra.mxu0 0
    %2371 = vmatprep.subr.bf16.mxu0 0
    %2372 = vmatpush1.bf16.msra.mxu0 0
    %2373 = vmatprep.subr.bf16.mxu0 0
    %2374 = vmatpush1.bf16.msra.mxu0 0
    %2375 = vmatprep.subr.bf16.mxu0 0
    %2376 = vmatpush1.bf16.msra.mxu0 0
    %2377 = vmatprep.subr.bf16.mxu0 0
    %2378 = vmatpush1.bf16.msra.mxu0 0
    %2379 = vmatprep.subr.bf16.mxu0 0
    %2380 = vmatpush1.bf16.msra.mxu0 0
    %2381 = vmatprep.subr.bf16.mxu0 0
    %2382 = vmatpush1.bf16.msra.mxu0 0
    %2383 = vmatprep.subr.bf16.mxu0 0
    %2384 = vmatpush1.bf16.msra.mxu0 0
    %2385 = vmatprep.subr.bf16.mxu0 0
    %2386 = vmatpush1.bf16.msra.mxu0 0
    %2387 = vmatprep.mubr.bf16.mxu0 0
    %2388 = vmatmul.mubr.bf16.gmra.mrb[0].mxu0 %v2350
    %v2389 = vpop.f32.mrb[0].mxu0
    %v2390 = vadd.f32 0.0, %v2389
    %v2391 = vpop.f32.mrb[0].mxu0
    %v2392 = vpop.f32.mrb[0].mxu0
    %v2393 = vpop.f32.mrb[0].mxu0
    %2394 = vdwg.mxu0
    %v2395 = vmul.f32 %v2390, %v2347
    %v2396 = vpack.c.bf16 %v2395, %v2395
    %2398 = vrot.lane.b32.xlu0 %v2289, 64
    %v2399 = vpop.permute.xlu0 %2398
    %2401 = vrot.lane.b32.xlu0 %v2290, 64
    %v2402 = vpop.permute.xlu0 %2401
    %v2404 = vsel %vm2067, %v2399, 0
    %v2407 = vsel %vm2067, %v2402, 0
    %2409 = vmatprep.subr.bf16.mxu0 0
    %2410 = vmatpush1.bf16.xpose.msra.mxu0 %v2407
    %2411 = vmatprep.subr.bf16.mxu0 0
    %2412 = vmatpush1.bf16.xpose.msra.mxu0 0
    %2413 = vmatprep.subr.bf16.mxu0 0
    %2414 = vmatpush1.bf16.xpose.msra.mxu0 0
    %2415 = vmatprep.subr.bf16.mxu0 0
    %2416 = vmatpush1.bf16.xpose.msra.mxu0 0
    %2417 = vmatprep.subr.bf16.mxu0 0
    %2418 = vmatpush1.bf16.xpose.msra.mxu0 0
    %2419 = vmatprep.subr.bf16.mxu0 0
    %2420 = vmatpush1.bf16.xpose.msra.mxu0 0
    %2421 = vmatprep.subr.bf16.mxu0 0
    %2422 = vmatpush1.bf16.xpose.msra.mxu0 0
    %2423 = vmatprep.subr.bf16.mxu0 0
    %2424 = vmatpush1.bf16.xpose.msra.mxu0 0
    %2425 = vmatprep.subr.bf16.mxu0 0
    %2426 = vmatpush1.bf16.xpose.msra.mxu0 0
    %2427 = vmatprep.subr.bf16.mxu0 0
    %2428 = vmatpush1.bf16.xpose.msra.mxu0 0
    %2429 = vmatprep.subr.bf16.mxu0 0
    %2430 = vmatpush1.bf16.xpose.msra.mxu0 0
    %2431 = vmatprep.subr.bf16.mxu0 0
    %2432 = vmatpush1.bf16.xpose.msra.mxu0 0
    %2433 = vmatprep.subr.bf16.mxu0 0
    %2434 = vmatpush1.bf16.xpose.msra.mxu0 0
    %2435 = vmatprep.subr.bf16.mxu0 0
    %2436 = vmatpush1.bf16.xpose.msra.mxu0 0
    %2437 = vmatprep.subr.bf16.mxu0 0
    %2438 = vmatpush1.bf16.xpose.msra.mxu0 0
    %2439 = vmatprep.subr.bf16.mxu0 0
    %2440 = vmatpush1.bf16.xpose.msra.mxu0 0
    %2441 = vmatprep.mubr.bf16.mxu0 0
    %2442 = vmatmul.mubr.bf16.gmra.mrb[0].mxu0 %v2404
    %v2443 = vpop.f32.mrb[0].mxu0
    %v2444 = vadd.f32 %v2063, %v2443
    %v2445 = vpop.f32.mrb[0].mxu0
    %v2446 = vpop.f32.mrb[0].mxu0
    %v2447 = vpop.f32.mrb[0].mxu0
    %2448 = vdwg.mxu0
    %v2449 = vsel %vm2114, %v2444, -inf
    %2450 = vmax.xlane.f32.xlu0 %v2449
    %v2451 = vpop.xlane.xlu0 %2450
    %v2452 = vsub.f32 %v2444, %v2451
    %v2453 = vmul.f32 %v2452, 1.442695
    %v2454 = vpow.pop %v2453
    %v2455 = vsel %vm2114, %v2454, 0.0
    %2456 = vadd.xlane.f32.xlu0 %v2455
    %v2457 = vpop.xlane.xlu0 %2456
    %v2458 = vrcp.pop %v2457
    %v2459 = vpack.c.bf16 %v2454, %v2454
    %2461 = vrot.lane.b32.xlu0 %v2291, 64
    %v2462 = vpop.permute.xlu0 %2461
    %v2464 = vsel %vm2114, %v2459, 0
    %v2467 = vsel %vm2129, %v2462, 0
    %2469 = vmatprep.subr.bf16.mxu0 0
    %2470 = vmatpush1.bf16.msra.mxu0 %v2467
    %2471 = vmatprep.subr.bf16.mxu0 0
    %2472 = vmatpush1.bf16.msra.mxu0 0
    %2473 = vmatprep.subr.bf16.mxu0 0
    %2474 = vmatpush1.bf16.msra.mxu0 0
    %2475 = vmatprep.subr.bf16.mxu0 0
    %2476 = vmatpush1.bf16.msra.mxu0 0
    %2477 = vmatprep.subr.bf16.mxu0 0
    %2478 = vmatpush1.bf16.msra.mxu0 0
    %2479 = vmatprep.subr.bf16.mxu0 0
    %2480 = vmatpush1.bf16.msra.mxu0 0
    %2481 = vmatprep.subr.bf16.mxu0 0
    %2482 = vmatpush1.bf16.msra.mxu0 0
    %2483 = vmatprep.subr.bf16.mxu0 0
    %2484 = vmatpush1.bf16.msra.mxu0 0
    %2485 = vmatprep.subr.bf16.mxu0 0
    %2486 = vmatpush1.bf16.msra.mxu0 0
    %2487 = vmatprep.subr.bf16.mxu0 0
    %2488 = vmatpush1.bf16.msra.mxu0 0
    %2489 = vmatprep.subr.bf16.mxu0 0
    %2490 = vmatpush1.bf16.msra.mxu0 0
    %2491 = vmatprep.subr.bf16.mxu0 0
    %2492 = vmatpush1.bf16.msra.mxu0 0
    %2493 = vmatprep.subr.bf16.mxu0 0
    %2494 = vmatpush1.bf16.msra.mxu0 0
    %2495 = vmatprep.subr.bf16.mxu0 0
    %2496 = vmatpush1.bf16.msra.mxu0 0
    %2497 = vmatprep.subr.bf16.mxu0 0
    %2498 = vmatpush1.bf16.msra.mxu0 0
    %2499 = vmatprep.subr.bf16.mxu0 0
    %2500 = vmatpush1.bf16.msra.mxu0 0
    %2501 = vmatprep.mubr.bf16.mxu0 0
    %2502 = vmatmul.mubr.bf16.gmra.mrb[0].mxu0 %v2464
    %v2503 = vpop.f32.mrb[0].mxu0
    %v2504 = vadd.f32 0.0, %v2503
    %v2505 = vpop.f32.mrb[0].mxu0
    %v2506 = vpop.f32.mrb[0].mxu0
    %v2507 = vpop.f32.mrb[0].mxu0
    %2508 = vdwg.mxu0
    %v2509 = vmul.f32 %v2504, %v2458
    %v2510 = vpack.c.bf16 %v2509, %v2509
    %v2511 = vpack.c.bf16 %v1801, %v1801
    %v2512 = vpack.c.bf16 %v1889, %v1889
    %v2513 = vpack.c.bf16 %v2057, %v2057
    %v2515 = vsel %vm2067, %v2511, 0
    %v2518 = vsel %vm2067, %v2512, 0
    %2520 = vmatprep.subr.bf16.mxu0 0
    %2521 = vmatpush1.bf16.xpose.msra.mxu0 %v2518
    %2522 = vmatprep.subr.bf16.mxu0 0
    %2523 = vmatpush1.bf16.xpose.msra.mxu0 0
    %2524 = vmatprep.subr.bf16.mxu0 0
    %2525 = vmatpush1.bf16.xpose.msra.mxu0 0
    %2526 = vmatprep.subr.bf16.mxu0 0
    %2527 = vmatpush1.bf16.xpose.msra.mxu0 0
    %2528 = vmatprep.subr.bf16.mxu0 0
    %2529 = vmatpush1.bf16.xpose.msra.mxu0 0
    %2530 = vmatprep.subr.bf16.mxu0 0
    %2531 = vmatpush1.bf16.xpose.msra.mxu0 0
    %2532 = vmatprep.subr.bf16.mxu0 0
    %2533 = vmatpush1.bf16.xpose.msra.mxu0 0
    %2534 = vmatprep.subr.bf16.mxu0 0
    %2535 = vmatpush1.bf16.xpose.msra.mxu0 0
    %2536 = vmatprep.subr.bf16.mxu0 0
    %2537 = vmatpush1.bf16.xpose.msra.mxu0 0
    %2538 = vmatprep.subr.bf16.mxu0 0
    %2539 = vmatpush1.bf16.xpose.msra.mxu0 0
    %2540 = vmatprep.subr.bf16.mxu0 0
    %2541 = vmatpush1.bf16.xpose.msra.mxu0 0
    %2542 = vmatprep.subr.bf16.mxu0 0
    %2543 = vmatpush1.bf16.xpose.msra.mxu0 0
    %2544 = vmatprep.subr.bf16.mxu0 0
    %2545 = vmatpush1.bf16.xpose.msra.mxu0 0
    %2546 = vmatprep.subr.bf16.mxu0 0
    %2547 = vmatpush1.bf16.xpose.msra.mxu0 0
    %2548 = vmatprep.subr.bf16.mxu0 0
    %2549 = vmatpush1.bf16.xpose.msra.mxu0 0
    %2550 = vmatprep.subr.bf16.mxu0 0
    %2551 = vmatpush1.bf16.xpose.msra.mxu0 0
    %2552 = vmatprep.mubr.bf16.mxu0 0
    %2553 = vmatmul.mubr.bf16.gmra.mrb[0].mxu0 %v2515
    %v2554 = vpop.f32.mrb[0].mxu0
    %v2555 = vadd.f32 %v2063, %v2554
    %v2556 = vpop.f32.mrb[0].mxu0
    %v2557 = vpop.f32.mrb[0].mxu0
    %v2558 = vpop.f32.mrb[0].mxu0
    %2559 = vdwg.mxu0
    %v2560 = vsel %vm2114, %v2555, -inf
    %2561 = vmax.xlane.f32.xlu0 %v2560
    %v2562 = vpop.xlane.xlu0 %2561
    %v2563 = vsub.f32 %v2555, %v2562
    %v2564 = vmul.f32 %v2563, 1.442695
    %v2565 = vpow.pop %v2564
    %v2566 = vsel %vm2114, %v2565, 0.0
    %2567 = vadd.xlane.f32.xlu0 %v2566
    %v2568 = vpop.xlane.xlu0 %2567
    %v2569 = vrcp.pop %v2568
    %v2570 = vpack.c.bf16 %v2565, %v2565
    %v2572 = vsel %vm2114, %v2570, 0
    %v2575 = vsel %vm2129, %v2513, 0
    %2577 = vmatprep.subr.bf16.mxu0 0
    %2578 = vmatpush1.bf16.msra.mxu0 %v2575
    %2579 = vmatprep.subr.bf16.mxu0 0
    %2580 = vmatpush1.bf16.msra.mxu0 0
    %2581 = vmatprep.subr.bf16.mxu0 0
    %2582 = vmatpush1.bf16.msra.mxu0 0
    %2583 = vmatprep.subr.bf16.mxu0 0
    %2584 = vmatpush1.bf16.msra.mxu0 0
    %2585 = vmatprep.subr.bf16.mxu0 0
    %2586 = vmatpush1.bf16.msra.mxu0 0
    %2587 = vmatprep.subr.bf16.mxu0 0
    %2588 = vmatpush1.bf16.msra.mxu0 0
    %2589 = vmatprep.subr.bf16.mxu0 0
    %2590 = vmatpush1.bf16.msra.mxu0 0
    %2591 = vmatprep.subr.bf16.mxu0 0
    %2592 = vmatpush1.bf16.msra.mxu0 0
    %2593 = vmatprep.subr.bf16.mxu0 0
    %2594 = vmatpush1.bf16.msra.mxu0 0
    %2595 = vmatprep.subr.bf16.mxu0 0
    %2596 = vmatpush1.bf16.msra.mxu0 0
    %2597 = vmatprep.subr.bf16.mxu0 0
    %2598 = vmatpush1.bf16.msra.mxu0 0
    %2599 = vmatprep.subr.bf16.mxu0 0
    %2600 = vmatpush1.bf16.msra.mxu0 0
    %2601 = vmatprep.subr.bf16.mxu0 0
    %2602 = vmatpush1.bf16.msra.mxu0 0
    %2603 = vmatprep.subr.bf16.mxu0 0
    %2604 = vmatpush1.bf16.msra.mxu0 0
    %2605 = vmatprep.subr.bf16.mxu0 0
    %2606 = vmatpush1.bf16.msra.mxu0 0
    %2607 = vmatprep.subr.bf16.mxu0 0
    %2608 = vmatpush1.bf16.msra.mxu0 0
    %2609 = vmatprep.mubr.bf16.mxu0 0
    %2610 = vmatmul.mubr.bf16.gmra.mrb[0].mxu0 %v2572
    %v2611 = vpop.f32.mrb[0].mxu0
    %v2612 = vadd.f32 0.0, %v2611
    %v2613 = vpop.f32.mrb[0].mxu0
    %v2614 = vpop.f32.mrb[0].mxu0
    %v2615 = vpop.f32.mrb[0].mxu0
    %2616 = vdwg.mxu0
    %v2617 = vmul.f32 %v2612, %v2569
    %v2618 = vpack.c.bf16 %v2617, %v2617
    %2620 = vrot.lane.b32.xlu0 %v2511, 64
    %v2621 = vpop.permute.xlu0 %2620
    %2623 = vrot.lane.b32.xlu0 %v2512, 64
    %v2624 = vpop.permute.xlu0 %2623
    %v2626 = vsel %vm2067, %v2621, 0
    %v2629 = vsel %vm2067, %v2624, 0
    %2631 = vmatprep.subr.bf16.mxu0 0
    %2632 = vmatpush1.bf16.xpose.msra.mxu0 %v2629
    %2633 = vmatprep.subr.bf16.mxu0 0
    %2634 = vmatpush1.bf16.xpose.msra.mxu0 0
    %2635 = vmatprep.subr.bf16.mxu0 0
    %2636 = vmatpush1.bf16.xpose.msra.mxu0 0
    %2637 = vmatprep.subr.bf16.mxu0 0
    %2638 = vmatpush1.bf16.xpose.msra.mxu0 0
    %2639 = vmatprep.subr.bf16.mxu0 0
    %2640 = vmatpush1.bf16.xpose.msra.mxu0 0
    %2641 = vmatprep.subr.bf16.mxu0 0
    %2642 = vmatpush1.bf16.xpose.msra.mxu0 0
    %2643 = vmatprep.subr.bf16.mxu0 0
    %2644 = vmatpush1.bf16.xpose.msra.mxu0 0
    %2645 = vmatprep.subr.bf16.mxu0 0
    %2646 = vmatpush1.bf16.xpose.msra.mxu0 0
    %2647 = vmatprep.subr.bf16.mxu0 0
    %2648 = vmatpush1.bf16.xpose.msra.mxu0 0
    %2649 = vmatprep.subr.bf16.mxu0 0
    %2650 = vmatpush1.bf16.xpose.msra.mxu0 0
    %2651 = vmatprep.subr.bf16.mxu0 0
    %2652 = vmatpush1.bf16.xpose.msra.mxu0 0
    %2653 = vmatprep.subr.bf16.mxu0 0
    %2654 = vmatpush1.bf16.xpose.msra.mxu0 0
    %2655 = vmatprep.subr.bf16.mxu0 0
    %2656 = vmatpush1.bf16.xpose.msra.mxu0 0
    %2657 = vmatprep.subr.bf16.mxu0 0
    %2658 = vmatpush1.bf16.xpose.msra.mxu0 0
    %2659 = vmatprep.subr.bf16.mxu0 0
    %2660 = vmatpush1.bf16.xpose.msra.mxu0 0
    %2661 = vmatprep.subr.bf16.mxu0 0
    %2662 = vmatpush1.bf16.xpose.msra.mxu0 0
    %2663 = vmatprep.mubr.bf16.mxu0 0
    %2664 = vmatmul.mubr.bf16.gmra.mrb[0].mxu0 %v2626
    %v2665 = vpop.f32.mrb[0].mxu0
    %v2666 = vadd.f32 %v2063, %v2665
    %v2667 = vpop.f32.mrb[0].mxu0
    %v2668 = vpop.f32.mrb[0].mxu0
    %v2669 = vpop.f32.mrb[0].mxu0
    %2670 = vdwg.mxu0
    %v2671 = vsel %vm2114, %v2666, -inf
    %2672 = vmax.xlane.f32.xlu0 %v2671
    %v2673 = vpop.xlane.xlu0 %2672
    %v2674 = vsub.f32 %v2666, %v2673
    %v2675 = vmul.f32 %v2674, 1.442695
    %v2676 = vpow.pop %v2675
    %v2677 = vsel %vm2114, %v2676, 0.0
    %2678 = vadd.xlane.f32.xlu0 %v2677
    %v2679 = vpop.xlane.xlu0 %2678
    %v2680 = vrcp.pop %v2679
    %v2681 = vpack.c.bf16 %v2676, %v2676
    %2683 = vrot.lane.b32.xlu0 %v2513, 64
    %v2684 = vpop.permute.xlu0 %2683
    %v2686 = vsel %vm2114, %v2681, 0
    %v2689 = vsel %vm2129, %v2684, 0
    %2691 = vmatprep.subr.bf16.mxu0 0
    %2692 = vmatpush1.bf16.msra.mxu0 %v2689
    %2693 = vmatprep.subr.bf16.mxu0 0
    %2694 = vmatpush1.bf16.msra.mxu0 0
    %2695 = vmatprep.subr.bf16.mxu0 0
    %2696 = vmatpush1.bf16.msra.mxu0 0
    %2697 = vmatprep.subr.bf16.mxu0 0
    %2698 = vmatpush1.bf16.msra.mxu0 0
    %2699 = vmatprep.subr.bf16.mxu0 0
    %2700 = vmatpush1.bf16.msra.mxu0 0
    %2701 = vmatprep.subr.bf16.mxu0 0
    %2702 = vmatpush1.bf16.msra.mxu0 0
    %2703 = vmatprep.subr.bf16.mxu0 0
    %2704 = vmatpush1.bf16.msra.mxu0 0
    %2705 = vmatprep.subr.bf16.mxu0 0
    %2706 = vmatpush1.bf16.msra.mxu0 0
    %2707 = vmatprep.subr.bf16.mxu0 0
    %2708 = vmatpush1.bf16.msra.mxu0 0
    %2709 = vmatprep.subr.bf16.mxu0 0
    %2710 = vmatpush1.bf16.msra.mxu0 0
    %2711 = vmatprep.subr.bf16.mxu0 0
    %2712 = vmatpush1.bf16.msra.mxu0 0
    %2713 = vmatprep.subr.bf16.mxu0 0
    %2714 = vmatpush1.bf16.msra.mxu0 0
    %2715 = vmatprep.subr.bf16.mxu0 0
    %2716 = vmatpush1.bf16.msra.mxu0 0
    %2717 = vmatprep.subr.bf16.mxu0 0
    %2718 = vmatpush1.bf16.msra.mxu0 0
    %2719 = vmatprep.subr.bf16.mxu0 0
    %2720 = vmatpush1.bf16.msra.mxu0 0
    %2721 = vmatprep.subr.bf16.mxu0 0
    %2722 = vmatpush1.bf16.msra.mxu0 0
    %2723 = vmatprep.mubr.bf16.mxu0 0
    %2724 = vmatmul.mubr.bf16.gmra.mrb[0].mxu0 %v2686
    %v2725 = vpop.f32.mrb[0].mxu0
    %v2726 = vadd.f32 0.0, %v2725
    %v2727 = vpop.f32.mrb[0].mxu0
    %v2728 = vpop.f32.mrb[0].mxu0
    %v2729 = vpop.f32.mrb[0].mxu0
    %2730 = vdwg.mxu0
    %v2731 = vmul.f32 %v2726, %v2680
    %v2732 = vpack.c.bf16 %v2731, %v2731
    %2734 = vrot.lane.b32.xlu0 %v2288, 64
    %v2735 = vpop.permute.xlu0 %2734
    %2737 = vrot.lane.b32.xlu0 %v2510, 64
    %v2738 = vpop.permute.xlu0 %2737
    %2740 = vrot.lane.b32.xlu0 %v2732, 64
    %v2741 = vpop.permute.xlu0 %2740
    %v2744 = vsel %vm2067, %v2174, %v2735
    %v2747 = vsel %vm2067, %v2396, %v2738
    %v2750 = vsel %vm2067, %v2618, %v2741
    %v2751 = vpack.c.bf16 %v1719, %v1719
    %v2752 = vpack.c.bf16 %v1807, %v1807
    %v2753 = vpack.c.bf16 %v1977, %v1977
    %v2755 = vsel %vm2067, %v2751, 0
    %v2758 = vsel %vm2067, %v2752, 0
    %2760 = vmatprep.subr.bf16.mxu0 0
    %2761 = vmatpush1.bf16.xpose.msra.mxu0 %v2758
    %2762 = vmatprep.subr.bf16.mxu0 0
    %2763 = vmatpush1.bf16.xpose.msra.mxu0 0
    %2764 = vmatprep.subr.bf16.mxu0 0
    %2765 = vmatpush1.bf16.xpose.msra.mxu0 0
    %2766 = vmatprep.subr.bf16.mxu0 0
    %2767 = vmatpush1.bf16.xpose.msra.mxu0 0
    %2768 = vmatprep.subr.bf16.mxu0 0
    %2769 = vmatpush1.bf16.xpose.msra.mxu0 0
    %2770 = vmatprep.subr.bf16.mxu0 0
    %2771 = vmatpush1.bf16.xpose.msra.mxu0 0
    %2772 = vmatprep.subr.bf16.mxu0 0
    %2773 = vmatpush1.bf16.xpose.msra.mxu0 0
    %2774 = vmatprep.subr.bf16.mxu0 0
    %2775 = vmatpush1.bf16.xpose.msra.mxu0 0
    %2776 = vmatprep.subr.bf16.mxu0 0
    %2777 = vmatpush1.bf16.xpose.msra.mxu0 0
    %2778 = vmatprep.subr.bf16.mxu0 0
    %2779 = vmatpush1.bf16.xpose.msra.mxu0 0
    %2780 = vmatprep.subr.bf16.mxu0 0
    %2781 = vmatpush1.bf16.xpose.msra.mxu0 0
    %2782 = vmatprep.subr.bf16.mxu0 0
    %2783 = vmatpush1.bf16.xpose.msra.mxu0 0
    %2784 = vmatprep.subr.bf16.mxu0 0
    %2785 = vmatpush1.bf16.xpose.msra.mxu0 0
    %2786 = vmatprep.subr.bf16.mxu0 0
    %2787 = vmatpush1.bf16.xpose.msra.mxu0 0
    %2788 = vmatprep.subr.bf16.mxu0 0
    %2789 = vmatpush1.bf16.xpose.msra.mxu0 0
    %2790 = vmatprep.subr.bf16.mxu0 0
    %2791 = vmatpush1.bf16.xpose.msra.mxu0 0
    %2792 = vmatprep.mubr.bf16.mxu0 0
    %2793 = vmatmul.mubr.bf16.gmra.mrb[0].mxu0 %v2755
    %v2794 = vpop.f32.mrb[0].mxu0
    %v2795 = vadd.f32 %v2063, %v2794
    %v2796 = vpop.f32.mrb[0].mxu0
    %v2797 = vpop.f32.mrb[0].mxu0
    %v2798 = vpop.f32.mrb[0].mxu0
    %2799 = vdwg.mxu0
    %v2800 = vsel %vm2114, %v2795, -inf
    %2801 = vmax.xlane.f32.xlu0 %v2800
    %v2802 = vpop.xlane.xlu0 %2801
    %v2803 = vsub.f32 %v2795, %v2802
    %v2804 = vmul.f32 %v2803, 1.442695
    %v2805 = vpow.pop %v2804
    %v2806 = vsel %vm2114, %v2805, 0.0
    %2807 = vadd.xlane.f32.xlu0 %v2806
    %v2808 = vpop.xlane.xlu0 %2807
    %v2809 = vrcp.pop %v2808
    %v2810 = vpack.c.bf16 %v2805, %v2805
    %v2812 = vsel %vm2114, %v2810, 0
    %v2815 = vsel %vm2129, %v2753, 0
    %2817 = vmatprep.subr.bf16.mxu0 0
    %2818 = vmatpush1.bf16.msra.mxu0 %v2815
    %2819 = vmatprep.subr.bf16.mxu0 0
    %2820 = vmatpush1.bf16.msra.mxu0 0
    %2821 = vmatprep.subr.bf16.mxu0 0
    %2822 = vmatpush1.bf16.msra.mxu0 0
    %2823 = vmatprep.subr.bf16.mxu0 0
    %2824 = vmatpush1.bf16.msra.mxu0 0
    %2825 = vmatprep.subr.bf16.mxu0 0
    %2826 = vmatpush1.bf16.msra.mxu0 0
    %2827 = vmatprep.subr.bf16.mxu0 0
    %2828 = vmatpush1.bf16.msra.mxu0 0
    %2829 = vmatprep.subr.bf16.mxu0 0
    %2830 = vmatpush1.bf16.msra.mxu0 0
    %2831 = vmatprep.subr.bf16.mxu0 0
    %2832 = vmatpush1.bf16.msra.mxu0 0
    %2833 = vmatprep.subr.bf16.mxu0 0
    %2834 = vmatpush1.bf16.msra.mxu0 0
    %2835 = vmatprep.subr.bf16.mxu0 0
    %2836 = vmatpush1.bf16.msra.mxu0 0
    %2837 = vmatprep.subr.bf16.mxu0 0
    %2838 = vmatpush1.bf16.msra.mxu0 0
    %2839 = vmatprep.subr.bf16.mxu0 0
    %2840 = vmatpush1.bf16.msra.mxu0 0
    %2841 = vmatprep.subr.bf16.mxu0 0
    %2842 = vmatpush1.bf16.msra.mxu0 0
    %2843 = vmatprep.subr.bf16.mxu0 0
    %2844 = vmatpush1.bf16.msra.mxu0 0
    %2845 = vmatprep.subr.bf16.mxu0 0
    %2846 = vmatpush1.bf16.msra.mxu0 0
    %2847 = vmatprep.subr.bf16.mxu0 0
    %2848 = vmatpush1.bf16.msra.mxu0 0
    %2849 = vmatprep.mubr.bf16.mxu0 0
    %2850 = vmatmul.mubr.bf16.gmra.mrb[0].mxu0 %v2812
    %v2851 = vpop.f32.mrb[0].mxu0
    %v2852 = vadd.f32 0.0, %v2851
    %v2853 = vpop.f32.mrb[0].mxu0
    %v2854 = vpop.f32.mrb[0].mxu0
    %v2855 = vpop.f32.mrb[0].mxu0
    %2856 = vdwg.mxu0
    %v2857 = vmul.f32 %v2852, %v2809
    %v2858 = vpack.c.bf16 %v2857, %v2857
    %2860 = vrot.lane.b32.xlu0 %v2751, 64
    %v2861 = vpop.permute.xlu0 %2860
    %2863 = vrot.lane.b32.xlu0 %v2752, 64
    %v2864 = vpop.permute.xlu0 %2863
    %v2866 = vsel %vm2067, %v2861, 0
    %v2869 = vsel %vm2067, %v2864, 0
    %2871 = vmatprep.subr.bf16.mxu0 0
    %2872 = vmatpush1.bf16.xpose.msra.mxu0 %v2869
    %2873 = vmatprep.subr.bf16.mxu0 0
    %2874 = vmatpush1.bf16.xpose.msra.mxu0 0
    %2875 = vmatprep.subr.bf16.mxu0 0
    %2876 = vmatpush1.bf16.xpose.msra.mxu0 0
    %2877 = vmatprep.subr.bf16.mxu0 0
    %2878 = vmatpush1.bf16.xpose.msra.mxu0 0
    %2879 = vmatprep.subr.bf16.mxu0 0
    %2880 = vmatpush1.bf16.xpose.msra.mxu0 0
    %2881 = vmatprep.subr.bf16.mxu0 0
    %2882 = vmatpush1.bf16.xpose.msra.mxu0 0
    %2883 = vmatprep.subr.bf16.mxu0 0
    %2884 = vmatpush1.bf16.xpose.msra.mxu0 0
    %2885 = vmatprep.subr.bf16.mxu0 0
    %2886 = vmatpush1.bf16.xpose.msra.mxu0 0
    %2887 = vmatprep.subr.bf16.mxu0 0
    %2888 = vmatpush1.bf16.xpose.msra.mxu0 0
    %2889 = vmatprep.subr.bf16.mxu0 0
    %2890 = vmatpush1.bf16.xpose.msra.mxu0 0
    %2891 = vmatprep.subr.bf16.mxu0 0
    %2892 = vmatpush1.bf16.xpose.msra.mxu0 0
    %2893 = vmatprep.subr.bf16.mxu0 0
    %2894 = vmatpush1.bf16.xpose.msra.mxu0 0
    %2895 = vmatprep.subr.bf16.mxu0 0
    %2896 = vmatpush1.bf16.xpose.msra.mxu0 0
    %2897 = vmatprep.subr.bf16.mxu0 0
    %2898 = vmatpush1.bf16.xpose.msra.mxu0 0
    %2899 = vmatprep.subr.bf16.mxu0 0
    %2900 = vmatpush1.bf16.xpose.msra.mxu0 0
    %2901 = vmatprep.subr.bf16.mxu0 0
    %2902 = vmatpush1.bf16.xpose.msra.mxu0 0
    %2903 = vmatprep.mubr.bf16.mxu0 0
    %2904 = vmatmul.mubr.bf16.gmra.mrb[0].mxu0 %v2866
    %v2905 = vpop.f32.mrb[0].mxu0
    %v2906 = vadd.f32 %v2063, %v2905
    %v2907 = vpop.f32.mrb[0].mxu0
    %v2908 = vpop.f32.mrb[0].mxu0
    %v2909 = vpop.f32.mrb[0].mxu0
    %2910 = vdwg.mxu0
    %v2911 = vsel %vm2114, %v2906, -inf
    %2912 = vmax.xlane.f32.xlu0 %v2911
    %v2913 = vpop.xlane.xlu0 %2912
    %v2914 = vsub.f32 %v2906, %v2913
    %v2915 = vmul.f32 %v2914, 1.442695
    %v2916 = vpow.pop %v2915
    %v2917 = vsel %vm2114, %v2916, 0.0
    %2918 = vadd.xlane.f32.xlu0 %v2917
    %v2919 = vpop.xlane.xlu0 %2918
    %v2920 = vrcp.pop %v2919
    %v2921 = vpack.c.bf16 %v2916, %v2916
    %2923 = vrot.lane.b32.xlu0 %v2753, 64
    %v2924 = vpop.permute.xlu0 %2923
    %v2926 = vsel %vm2114, %v2921, 0
    %v2929 = vsel %vm2129, %v2924, 0
    %2931 = vmatprep.subr.bf16.mxu0 0
    %2932 = vmatpush1.bf16.msra.mxu0 %v2929
    %2933 = vmatprep.subr.bf16.mxu0 0
    %2934 = vmatpush1.bf16.msra.mxu0 0
    %2935 = vmatprep.subr.bf16.mxu0 0
    %2936 = vmatpush1.bf16.msra.mxu0 0
    %2937 = vmatprep.subr.bf16.mxu0 0
    %2938 = vmatpush1.bf16.msra.mxu0 0
    %2939 = vmatprep.subr.bf16.mxu0 0
    %2940 = vmatpush1.bf16.msra.mxu0 0
    %2941 = vmatprep.subr.bf16.mxu0 0
    %2942 = vmatpush1.bf16.msra.mxu0 0
    %2943 = vmatprep.subr.bf16.mxu0 0
    %2944 = vmatpush1.bf16.msra.mxu0 0
    %2945 = vmatprep.subr.bf16.mxu0 0
    %2946 = vmatpush1.bf16.msra.mxu0 0
    %2947 = vmatprep.subr.bf16.mxu0 0
    %2948 = vmatpush1.bf16.msra.mxu0 0
    %2949 = vmatprep.subr.bf16.mxu0 0
    %2950 = vmatpush1.bf16.msra.mxu0 0
    %2951 = vmatprep.subr.bf16.mxu0 0
    %2952 = vmatpush1.bf16.msra.mxu0 0
    %2953 = vmatprep.subr.bf16.mxu0 0
    %2954 = vmatpush1.bf16.msra.mxu0 0
    %2955 = vmatprep.subr.bf16.mxu0 0
    %2956 = vmatpush1.bf16.msra.mxu0 0
    %2957 = vmatprep.subr.bf16.mxu0 0
    %2958 = vmatpush1.bf16.msra.mxu0 0
    %2959 = vmatprep.subr.bf16.mxu0 0
    %2960 = vmatpush1.bf16.msra.mxu0 0
    %2961 = vmatprep.subr.bf16.mxu0 0
    %2962 = vmatpush1.bf16.msra.mxu0 0
    %2963 = vmatprep.mubr.bf16.mxu0 0
    %2964 = vmatmul.mubr.bf16.gmra.mrb[0].mxu0 %v2926
    %v2965 = vpop.f32.mrb[0].mxu0
    %v2966 = vadd.f32 0.0, %v2965
    %v2967 = vpop.f32.mrb[0].mxu0
    %v2968 = vpop.f32.mrb[0].mxu0
    %v2969 = vpop.f32.mrb[0].mxu0
    %2970 = vdwg.mxu0
    %v2971 = vmul.f32 %v2966, %v2920
    %v2972 = vpack.c.bf16 %v2971, %v2971
    %v2973 = vpack.c.bf16 %v1721, %v1721
    %v2974 = vpack.c.bf16 %v1891, %v1891
    %v2975 = vpack.c.bf16 %v1979, %v1979
    %v2977 = vsel %vm2067, %v2973, 0
    %v2980 = vsel %vm2067, %v2974, 0
    %2982 = vmatprep.subr.bf16.mxu0 0
    %2983 = vmatpush1.bf16.xpose.msra.mxu0 %v2980
    %2984 = vmatprep.subr.bf16.mxu0 0
    %2985 = vmatpush1.bf16.xpose.msra.mxu0 0
    %2986 = vmatprep.subr.bf16.mxu0 0
    %2987 = vmatpush1.bf16.xpose.msra.mxu0 0
    %2988 = vmatprep.subr.bf16.mxu0 0
    %2989 = vmatpush1.bf16.xpose.msra.mxu0 0
    %2990 = vmatprep.subr.bf16.mxu0 0
    %2991 = vmatpush1.bf16.xpose.msra.mxu0 0
    %2992 = vmatprep.subr.bf16.mxu0 0
    %2993 = vmatpush1.bf16.xpose.msra.mxu0 0
    %2994 = vmatprep.subr.bf16.mxu0 0
    %2995 = vmatpush1.bf16.xpose.msra.mxu0 0
    %2996 = vmatprep.subr.bf16.mxu0 0
    %2997 = vmatpush1.bf16.xpose.msra.mxu0 0
    %2998 = vmatprep.subr.bf16.mxu0 0
    %2999 = vmatpush1.bf16.xpose.msra.mxu0 0
    %3000 = vmatprep.subr.bf16.mxu0 0
    %3001 = vmatpush1.bf16.xpose.msra.mxu0 0
    %3002 = vmatprep.subr.bf16.mxu0 0
    %3003 = vmatpush1.bf16.xpose.msra.mxu0 0
    %3004 = vmatprep.subr.bf16.mxu0 0
    %3005 = vmatpush1.bf16.xpose.msra.mxu0 0
    %3006 = vmatprep.subr.bf16.mxu0 0
    %3007 = vmatpush1.bf16.xpose.msra.mxu0 0
    %3008 = vmatprep.subr.bf16.mxu0 0
    %3009 = vmatpush1.bf16.xpose.msra.mxu0 0
    %3010 = vmatprep.subr.bf16.mxu0 0
    %3011 = vmatpush1.bf16.xpose.msra.mxu0 0
    %3012 = vmatprep.subr.bf16.mxu0 0
    %3013 = vmatpush1.bf16.xpose.msra.mxu0 0
    %3014 = vmatprep.mubr.bf16.mxu0 0
    %3015 = vmatmul.mubr.bf16.gmra.mrb[0].mxu0 %v2977
    %v3016 = vpop.f32.mrb[0].mxu0
    %v3017 = vadd.f32 %v2063, %v3016
    %v3018 = vpop.f32.mrb[0].mxu0
    %v3019 = vpop.f32.mrb[0].mxu0
    %v3020 = vpop.f32.mrb[0].mxu0
    %3021 = vdwg.mxu0
    %v3022 = vsel %vm2114, %v3017, -inf
    %3023 = vmax.xlane.f32.xlu0 %v3022
    %v3024 = vpop.xlane.xlu0 %3023
    %v3025 = vsub.f32 %v3017, %v3024
    %v3026 = vmul.f32 %v3025, 1.442695
    %v3027 = vpow.pop %v3026
    %v3028 = vsel %vm2114, %v3027, 0.0
    %3029 = vadd.xlane.f32.xlu0 %v3028
    %v3030 = vpop.xlane.xlu0 %3029
    %v3031 = vrcp.pop %v3030
    %v3032 = vpack.c.bf16 %v3027, %v3027
    %v3034 = vsel %vm2114, %v3032, 0
    %v3037 = vsel %vm2129, %v2975, 0
    %3039 = vmatprep.subr.bf16.mxu0 0
    %3040 = vmatpush1.bf16.msra.mxu0 %v3037
    %3041 = vmatprep.subr.bf16.mxu0 0
    %3042 = vmatpush1.bf16.msra.mxu0 0
    %3043 = vmatprep.subr.bf16.mxu0 0
    %3044 = vmatpush1.bf16.msra.mxu0 0
    %3045 = vmatprep.subr.bf16.mxu0 0
    %3046 = vmatpush1.bf16.msra.mxu0 0
    %3047 = vmatprep.subr.bf16.mxu0 0
    %3048 = vmatpush1.bf16.msra.mxu0 0
    %3049 = vmatprep.subr.bf16.mxu0 0
    %3050 = vmatpush1.bf16.msra.mxu0 0
    %3051 = vmatprep.subr.bf16.mxu0 0
    %3052 = vmatpush1.bf16.msra.mxu0 0
    %3053 = vmatprep.subr.bf16.mxu0 0
    %3054 = vmatpush1.bf16.msra.mxu0 0
    %3055 = vmatprep.subr.bf16.mxu0 0
    %3056 = vmatpush1.bf16.msra.mxu0 0
    %3057 = vmatprep.subr.bf16.mxu0 0
    %3058 = vmatpush1.bf16.msra.mxu0 0
    %3059 = vmatprep.subr.bf16.mxu0 0
    %3060 = vmatpush1.bf16.msra.mxu0 0
    %3061 = vmatprep.subr.bf16.mxu0 0
    %3062 = vmatpush1.bf16.msra.mxu0 0
    %3063 = vmatprep.subr.bf16.mxu0 0
    %3064 = vmatpush1.bf16.msra.mxu0 0
    %3065 = vmatprep.subr.bf16.mxu0 0
    %3066 = vmatpush1.bf16.msra.mxu0 0
    %3067 = vmatprep.subr.bf16.mxu0 0
    %3068 = vmatpush1.bf16.msra.mxu0 0
    %3069 = vmatprep.subr.bf16.mxu0 0
    %3070 = vmatpush1.bf16.msra.mxu0 0
    %3071 = vmatprep.mubr.bf16.mxu0 0
    %3072 = vmatmul.mubr.bf16.gmra.mrb[0].mxu0 %v3034
    %v3073 = vpop.f32.mrb[0].mxu0
    %v3074 = vadd.f32 0.0, %v3073
    %v3075 = vpop.f32.mrb[0].mxu0
    %v3076 = vpop.f32.mrb[0].mxu0
    %v3077 = vpop.f32.mrb[0].mxu0
    %3078 = vdwg.mxu0
    %v3079 = vmul.f32 %v3074, %v3031
    %v3080 = vpack.c.bf16 %v3079, %v3079
    %3082 = vrot.lane.b32.xlu0 %v2973, 64
    %v3083 = vpop.permute.xlu0 %3082
    %3085 = vrot.lane.b32.xlu0 %v2974, 64
    %v3086 = vpop.permute.xlu0 %3085
    %v3088 = vsel %vm2067, %v3083, 0
    %v3091 = vsel %vm2067, %v3086, 0
    %3093 = vmatprep.subr.bf16.mxu0 0
    %3094 = vmatpush1.bf16.xpose.msra.mxu0 %v3091
    %3095 = vmatprep.subr.bf16.mxu0 0
    %3096 = vmatpush1.bf16.xpose.msra.mxu0 0
    %3097 = vmatprep.subr.bf16.mxu0 0
    %3098 = vmatpush1.bf16.xpose.msra.mxu0 0
    %3099 = vmatprep.subr.bf16.mxu0 0
    %3100 = vmatpush1.bf16.xpose.msra.mxu0 0
    %3101 = vmatprep.subr.bf16.mxu0 0
    %3102 = vmatpush1.bf16.xpose.msra.mxu0 0
    %3103 = vmatprep.subr.bf16.mxu0 0
    %3104 = vmatpush1.bf16.xpose.msra.mxu0 0
    %3105 = vmatprep.subr.bf16.mxu0 0
    %3106 = vmatpush1.bf16.xpose.msra.mxu0 0
    %3107 = vmatprep.subr.bf16.mxu0 0
    %3108 = vmatpush1.bf16.xpose.msra.mxu0 0
    %3109 = vmatprep.subr.bf16.mxu0 0
    %3110 = vmatpush1.bf16.xpose.msra.mxu0 0
    %3111 = vmatprep.subr.bf16.mxu0 0
    %3112 = vmatpush1.bf16.xpose.msra.mxu0 0
    %3113 = vmatprep.subr.bf16.mxu0 0
    %3114 = vmatpush1.bf16.xpose.msra.mxu0 0
    %3115 = vmatprep.subr.bf16.mxu0 0
    %3116 = vmatpush1.bf16.xpose.msra.mxu0 0
    %3117 = vmatprep.subr.bf16.mxu0 0
    %3118 = vmatpush1.bf16.xpose.msra.mxu0 0
    %3119 = vmatprep.subr.bf16.mxu0 0
    %3120 = vmatpush1.bf16.xpose.msra.mxu0 0
    %3121 = vmatprep.subr.bf16.mxu0 0
    %3122 = vmatpush1.bf16.xpose.msra.mxu0 0
    %3123 = vmatprep.subr.bf16.mxu0 0
    %3124 = vmatpush1.bf16.xpose.msra.mxu0 0
    %3125 = vmatprep.mubr.bf16.mxu0 0
    %3126 = vmatmul.mubr.bf16.gmra.mrb[0].mxu0 %v3088
    %v3127 = vpop.f32.mrb[0].mxu0
    %v3128 = vadd.f32 %v2063, %v3127
    %v3129 = vpop.f32.mrb[0].mxu0
    %v3130 = vpop.f32.mrb[0].mxu0
    %v3131 = vpop.f32.mrb[0].mxu0
    %3132 = vdwg.mxu0
    %v3133 = vsel %vm2114, %v3128, -inf
    %3134 = vmax.xlane.f32.xlu0 %v3133
    %v3135 = vpop.xlane.xlu0 %3134
    %v3136 = vsub.f32 %v3128, %v3135
    %v3137 = vmul.f32 %v3136, 1.442695
    %v3138 = vpow.pop %v3137
    %v3139 = vsel %vm2114, %v3138, 0.0
    %3140 = vadd.xlane.f32.xlu0 %v3139
    %v3141 = vpop.xlane.xlu0 %3140
    %v3142 = vrcp.pop %v3141
    %v3143 = vpack.c.bf16 %v3138, %v3138
    %3145 = vrot.lane.b32.xlu0 %v2975, 64
    %v3146 = vpop.permute.xlu0 %3145
    %v3148 = vsel %vm2114, %v3143, 0
    %v3151 = vsel %vm2129, %v3146, 0
    %3153 = vmatprep.subr.bf16.mxu0 0
    %3154 = vmatpush1.bf16.msra.mxu0 %v3151
    %3155 = vmatprep.subr.bf16.mxu0 0
    %3156 = vmatpush1.bf16.msra.mxu0 0
    %3157 = vmatprep.subr.bf16.mxu0 0
    %3158 = vmatpush1.bf16.msra.mxu0 0
    %3159 = vmatprep.subr.bf16.mxu0 0
    %3160 = vmatpush1.bf16.msra.mxu0 0
    %3161 = vmatprep.subr.bf16.mxu0 0
    %3162 = vmatpush1.bf16.msra.mxu0 0
    %3163 = vmatprep.subr.bf16.mxu0 0
    %3164 = vmatpush1.bf16.msra.mxu0 0
    %3165 = vmatprep.subr.bf16.mxu0 0
    %3166 = vmatpush1.bf16.msra.mxu0 0
    %3167 = vmatprep.subr.bf16.mxu0 0
    %3168 = vmatpush1.bf16.msra.mxu0 0
    %3169 = vmatprep.subr.bf16.mxu0 0
    %3170 = vmatpush1.bf16.msra.mxu0 0
    %3171 = vmatprep.subr.bf16.mxu0 0
    %3172 = vmatpush1.bf16.msra.mxu0 0
    %3173 = vmatprep.subr.bf16.mxu0 0
    %3174 = vmatpush1.bf16.msra.mxu0 0
    %3175 = vmatprep.subr.bf16.mxu0 0
    %3176 = vmatpush1.bf16.msra.mxu0 0
    %3177 = vmatprep.subr.bf16.mxu0 0
    %3178 = vmatpush1.bf16.msra.mxu0 0
    %3179 = vmatprep.subr.bf16.mxu0 0
    %3180 = vmatpush1.bf16.msra.mxu0 0
    %3181 = vmatprep.subr.bf16.mxu0 0
    %3182 = vmatpush1.bf16.msra.mxu0 0
    %3183 = vmatprep.subr.bf16.mxu0 0
    %3184 = vmatpush1.bf16.msra.mxu0 0
    %3185 = vmatprep.mubr.bf16.mxu0 0
    %3186 = vmatmul.mubr.bf16.gmra.mrb[0].mxu0 %v3148
    %v3187 = vpop.f32.mrb[0].mxu0
    %v3188 = vadd.f32 0.0, %v3187
    %v3189 = vpop.f32.mrb[0].mxu0
    %v3190 = vpop.f32.mrb[0].mxu0
    %v3191 = vpop.f32.mrb[0].mxu0
    %3192 = vdwg.mxu0
    %v3193 = vmul.f32 %v3188, %v3142
    %v3194 = vpack.c.bf16 %v3193, %v3193
    %v3195 = vpack.c.bf16 %v1805, %v1805
    %v3196 = vpack.c.bf16 %v1893, %v1893
    %v3197 = vpack.c.bf16 %v2060, %v2060
    %v3199 = vsel %vm2067, %v3195, 0
    %v3202 = vsel %vm2067, %v3196, 0
    %3204 = vmatprep.subr.bf16.mxu0 0
    %3205 = vmatpush1.bf16.xpose.msra.mxu0 %v3202
    %3206 = vmatprep.subr.bf16.mxu0 0
    %3207 = vmatpush1.bf16.xpose.msra.mxu0 0
    %3208 = vmatprep.subr.bf16.mxu0 0
    %3209 = vmatpush1.bf16.xpose.msra.mxu0 0
    %3210 = vmatprep.subr.bf16.mxu0 0
    %3211 = vmatpush1.bf16.xpose.msra.mxu0 0
    %3212 = vmatprep.subr.bf16.mxu0 0
    %3213 = vmatpush1.bf16.xpose.msra.mxu0 0
    %3214 = vmatprep.subr.bf16.mxu0 0
    %3215 = vmatpush1.bf16.xpose.msra.mxu0 0
    %3216 = vmatprep.subr.bf16.mxu0 0
    %3217 = vmatpush1.bf16.xpose.msra.mxu0 0
    %3218 = vmatprep.subr.bf16.mxu0 0
    %3219 = vmatpush1.bf16.xpose.msra.mxu0 0
    %3220 = vmatprep.subr.bf16.mxu0 0
    %3221 = vmatpush1.bf16.xpose.msra.mxu0 0
    %3222 = vmatprep.subr.bf16.mxu0 0
    %3223 = vmatpush1.bf16.xpose.msra.mxu0 0
    %3224 = vmatprep.subr.bf16.mxu0 0
    %3225 = vmatpush1.bf16.xpose.msra.mxu0 0
    %3226 = vmatprep.subr.bf16.mxu0 0
    %3227 = vmatpush1.bf16.xpose.msra.mxu0 0
    %3228 = vmatprep.subr.bf16.mxu0 0
    %3229 = vmatpush1.bf16.xpose.msra.mxu0 0
    %3230 = vmatprep.subr.bf16.mxu0 0
    %3231 = vmatpush1.bf16.xpose.msra.mxu0 0
    %3232 = vmatprep.subr.bf16.mxu0 0
    %3233 = vmatpush1.bf16.xpose.msra.mxu0 0
    %3234 = vmatprep.subr.bf16.mxu0 0
    %3235 = vmatpush1.bf16.xpose.msra.mxu0 0
    %3236 = vmatprep.mubr.bf16.mxu0 0
    %3237 = vmatmul.mubr.bf16.gmra.mrb[0].mxu0 %v3199
    %v3238 = vpop.f32.mrb[0].mxu0
    %v3239 = vadd.f32 %v2063, %v3238
    %v3240 = vpop.f32.mrb[0].mxu0
    %v3241 = vpop.f32.mrb[0].mxu0
    %v3242 = vpop.f32.mrb[0].mxu0
    %3243 = vdwg.mxu0
    %v3244 = vsel %vm2114, %v3239, -inf
    %3245 = vmax.xlane.f32.xlu0 %v3244
    %v3246 = vpop.xlane.xlu0 %3245
    %v3247 = vsub.f32 %v3239, %v3246
    %v3248 = vmul.f32 %v3247, 1.442695
    %v3249 = vpow.pop %v3248
    %v3250 = vsel %vm2114, %v3249, 0.0
    %3251 = vadd.xlane.f32.xlu0 %v3250
    %v3252 = vpop.xlane.xlu0 %3251
    %v3253 = vrcp.pop %v3252
    %v3254 = vpack.c.bf16 %v3249, %v3249
    %v3256 = vsel %vm2114, %v3254, 0
    %v3259 = vsel %vm2129, %v3197, 0
    %3261 = vmatprep.subr.bf16.mxu0 0
    %3262 = vmatpush1.bf16.msra.mxu0 %v3259
    %3263 = vmatprep.subr.bf16.mxu0 0
    %3264 = vmatpush1.bf16.msra.mxu0 0
    %3265 = vmatprep.subr.bf16.mxu0 0
    %3266 = vmatpush1.bf16.msra.mxu0 0
    %3267 = vmatprep.subr.bf16.mxu0 0
    %3268 = vmatpush1.bf16.msra.mxu0 0
    %3269 = vmatprep.subr.bf16.mxu0 0
    %3270 = vmatpush1.bf16.msra.mxu0 0
    %3271 = vmatprep.subr.bf16.mxu0 0
    %3272 = vmatpush1.bf16.msra.mxu0 0
    %3273 = vmatprep.subr.bf16.mxu0 0
    %3274 = vmatpush1.bf16.msra.mxu0 0
    %3275 = vmatprep.subr.bf16.mxu0 0
    %3276 = vmatpush1.bf16.msra.mxu0 0
    %3277 = vmatprep.subr.bf16.mxu0 0
    %3278 = vmatpush1.bf16.msra.mxu0 0
    %3279 = vmatprep.subr.bf16.mxu0 0
    %3280 = vmatpush1.bf16.msra.mxu0 0
    %3281 = vmatprep.subr.bf16.mxu0 0
    %3282 = vmatpush1.bf16.msra.mxu0 0
    %3283 = vmatprep.subr.bf16.mxu0 0
    %3284 = vmatpush1.bf16.msra.mxu0 0
    %3285 = vmatprep.subr.bf16.mxu0 0
    %3286 = vmatpush1.bf16.msra.mxu0 0
    %3287 = vmatprep.subr.bf16.mxu0 0
    %3288 = vmatpush1.bf16.msra.mxu0 0
    %3289 = vmatprep.subr.bf16.mxu0 0
    %3290 = vmatpush1.bf16.msra.mxu0 0
    %3291 = vmatprep.subr.bf16.mxu0 0
    %3292 = vmatpush1.bf16.msra.mxu0 0
    %3293 = vmatprep.mubr.bf16.mxu0 0
    %3294 = vmatmul.mubr.bf16.gmra.mrb[0].mxu0 %v3256
    %v3295 = vpop.f32.mrb[0].mxu0
    %v3296 = vadd.f32 0.0, %v3295
    %v3297 = vpop.f32.mrb[0].mxu0
    %v3298 = vpop.f32.mrb[0].mxu0
    %v3299 = vpop.f32.mrb[0].mxu0
    %3300 = vdwg.mxu0
    %v3301 = vmul.f32 %v3296, %v3253
    %v3302 = vpack.c.bf16 %v3301, %v3301
    %3304 = vrot.lane.b32.xlu0 %v3195, 64
    %v3305 = vpop.permute.xlu0 %3304
    %3307 = vrot.lane.b32.xlu0 %v3196, 64
    %v3308 = vpop.permute.xlu0 %3307
    %v3310 = vsel %vm2067, %v3305, 0
    %v3313 = vsel %vm2067, %v3308, 0
    %3315 = vmatprep.subr.bf16.mxu0 0
    %3316 = vmatpush1.bf16.xpose.msra.mxu0 %v3313
    %3317 = vmatprep.subr.bf16.mxu0 0
    %3318 = vmatpush1.bf16.xpose.msra.mxu0 0
    %3319 = vmatprep.subr.bf16.mxu0 0
    %3320 = vmatpush1.bf16.xpose.msra.mxu0 0
    %3321 = vmatprep.subr.bf16.mxu0 0
    %3322 = vmatpush1.bf16.xpose.msra.mxu0 0
    %3323 = vmatprep.subr.bf16.mxu0 0
    %3324 = vmatpush1.bf16.xpose.msra.mxu0 0
    %3325 = vmatprep.subr.bf16.mxu0 0
    %3326 = vmatpush1.bf16.xpose.msra.mxu0 0
    %3327 = vmatprep.subr.bf16.mxu0 0
    %3328 = vmatpush1.bf16.xpose.msra.mxu0 0
    %3329 = vmatprep.subr.bf16.mxu0 0
    %3330 = vmatpush1.bf16.xpose.msra.mxu0 0
    %3331 = vmatprep.subr.bf16.mxu0 0
    %3332 = vmatpush1.bf16.xpose.msra.mxu0 0
    %3333 = vmatprep.subr.bf16.mxu0 0
    %3334 = vmatpush1.bf16.xpose.msra.mxu0 0
    %3335 = vmatprep.subr.bf16.mxu0 0
    %3336 = vmatpush1.bf16.xpose.msra.mxu0 0
    %3337 = vmatprep.subr.bf16.mxu0 0
    %3338 = vmatpush1.bf16.xpose.msra.mxu0 0
    %3339 = vmatprep.subr.bf16.mxu0 0
    %3340 = vmatpush1.bf16.xpose.msra.mxu0 0
    %3341 = vmatprep.subr.bf16.mxu0 0
    %3342 = vmatpush1.bf16.xpose.msra.mxu0 0
    %3343 = vmatprep.subr.bf16.mxu0 0
    %3344 = vmatpush1.bf16.xpose.msra.mxu0 0
    %3345 = vmatprep.subr.bf16.mxu0 0
    %3346 = vmatpush1.bf16.xpose.msra.mxu0 0
    %3347 = vmatprep.mubr.bf16.mxu0 0
    %3348 = vmatmul.mubr.bf16.gmra.mrb[0].mxu0 %v3310
    %v3349 = vpop.f32.mrb[0].mxu0
    %v3350 = vadd.f32 %v2063, %v3349
    %v3351 = vpop.f32.mrb[0].mxu0
    %v3352 = vpop.f32.mrb[0].mxu0
    %v3353 = vpop.f32.mrb[0].mxu0
    %3354 = vdwg.mxu0
    %v3355 = vsel %vm2114, %v3350, -inf
    %3356 = vmax.xlane.f32.xlu0 %v3355
    %v3357 = vpop.xlane.xlu0 %3356
    %v3358 = vsub.f32 %v3350, %v3357
    %v3359 = vmul.f32 %v3358, 1.442695
    %v3360 = vpow.pop %v3359
    %v3361 = vsel %vm2114, %v3360, 0.0
    %3362 = vadd.xlane.f32.xlu0 %v3361
    %v3363 = vpop.xlane.xlu0 %3362
    %v3364 = vrcp.pop %v3363
    %v3365 = vpack.c.bf16 %v3360, %v3360
    %3367 = vrot.lane.b32.xlu0 %v3197, 64
    %v3368 = vpop.permute.xlu0 %3367
    %v3370 = vsel %vm2114, %v3365, 0
    %v3373 = vsel %vm2129, %v3368, 0
    %3375 = vmatprep.subr.bf16.mxu0 0
    %3376 = vmatpush1.bf16.msra.mxu0 %v3373
    %3377 = vmatprep.subr.bf16.mxu0 0
    %3378 = vmatpush1.bf16.msra.mxu0 0
    %3379 = vmatprep.subr.bf16.mxu0 0
    %3380 = vmatpush1.bf16.msra.mxu0 0
    %3381 = vmatprep.subr.bf16.mxu0 0
    %3382 = vmatpush1.bf16.msra.mxu0 0
    %3383 = vmatprep.subr.bf16.mxu0 0
    %3384 = vmatpush1.bf16.msra.mxu0 0
    %3385 = vmatprep.subr.bf16.mxu0 0
    %3386 = vmatpush1.bf16.msra.mxu0 0
    %3387 = vmatprep.subr.bf16.mxu0 0
    %3388 = vmatpush1.bf16.msra.mxu0 0
    %3389 = vmatprep.subr.bf16.mxu0 0
    %3390 = vmatpush1.bf16.msra.mxu0 0
    %3391 = vmatprep.subr.bf16.mxu0 0
    %3392 = vmatpush1.bf16.msra.mxu0 0
    %3393 = vmatprep.subr.bf16.mxu0 0
    %3394 = vmatpush1.bf16.msra.mxu0 0
    %3395 = vmatprep.subr.bf16.mxu0 0
    %3396 = vmatpush1.bf16.msra.mxu0 0
    %3397 = vmatprep.subr.bf16.mxu0 0
    %3398 = vmatpush1.bf16.msra.mxu0 0
    %3399 = vmatprep.subr.bf16.mxu0 0
    %3400 = vmatpush1.bf16.msra.mxu0 0
    %3401 = vmatprep.subr.bf16.mxu0 0
    %3402 = vmatpush1.bf16.msra.mxu0 0
    %3403 = vmatprep.subr.bf16.mxu0 0
    %3404 = vmatpush1.bf16.msra.mxu0 0
    %3405 = vmatprep.subr.bf16.mxu0 0
    %3406 = vmatpush1.bf16.msra.mxu0 0
    %3407 = vmatprep.mubr.bf16.mxu0 0
    %3408 = vmatmul.mubr.bf16.gmra.mrb[0].mxu0 %v3370
    %v3409 = vpop.f32.mrb[0].mxu0
    %v3410 = vadd.f32 0.0, %v3409
    %v3411 = vpop.f32.mrb[0].mxu0
    %v3412 = vpop.f32.mrb[0].mxu0
    %v3413 = vpop.f32.mrb[0].mxu0
    %3414 = vdwg.mxu0
    %v3415 = vmul.f32 %v3410, %v3364
    %v3416 = vpack.c.bf16 %v3415, %v3415
    %3418 = vrot.lane.b32.xlu0 %v2972, 64
    %v3419 = vpop.permute.xlu0 %3418
    %3421 = vrot.lane.b32.xlu0 %v3194, 64
    %v3422 = vpop.permute.xlu0 %3421
    %3424 = vrot.lane.b32.xlu0 %v3416, 64
    %v3425 = vpop.permute.xlu0 %3424
    %v3428 = vsel %vm2067, %v2858, %v3419
    %v3431 = vsel %vm2067, %v3080, %v3422
    %v3434 = vsel %vm2067, %v3302, %v3425
    %v3438 = vrot.slane %v3428, 4
    %v3439 = vrot.slane %v3431, 4
    %v3440 = vrot.slane %v3434, 4
    %v3442 = vsel %vm2129, %v2744, %v3438
    %v3445 = vsel %vm2129, %v2747, %v3439
    %v3448 = vsel %vm2129, %v2750, %v3440
    %v3450 = vld [vmem:[#allocation10] sm:$0xff]
    %v3451 = vld [vmem:[#allocation10 + $0x8] sm:$0xf]
    %v3452 = vld [vmem:[#allocation10 + $0xc] sm:$0xff]
    %v3453 = vld [vmem:[#allocation10 + $0x14] sm:$0xf]
    %v3454 = vld [vmem:[#allocation10 + $0x18] sm:$0xff]
    %v3455 = vld [vmem:[#allocation10 + $0x20] sm:$0xf]
    %v3456 = vld [vmem:[#allocation10 + $0x24] sm:$0xff]
    %v3457 = vld [vmem:[#allocation10 + $0x2c] sm:$0xf]
    %v3458 = vld [vmem:[#allocation10 + $0x30] sm:$0xff]
    %v3459 = vld [vmem:[#allocation10 + $0x38] sm:$0xf]
    %v3460 = vld [vmem:[#allocation10 + $0x3c] sm:$0xff]
    %v3461 = vld [vmem:[#allocation10 + $0x44] sm:$0xf]
    %v3462 = vld [vmem:[#allocation10 + $0x48] sm:$0xff]
    %v3463 = vld [vmem:[#allocation10 + $0x50] sm:$0xf]
    %v3464 = vld [vmem:[#allocation10 + $0x54] sm:$0xff]
    %v3465 = vld [vmem:[#allocation10 + $0x5c] sm:$0xf]
    %v3466 = vld [vmem:[#allocation10 + $0x60] sm:$0xff]
    %v3467 = vld [vmem:[#allocation10 + $0x68] sm:$0xf]
    %v3468 = vld [vmem:[#allocation10 + $0x6c] sm:$0xff]
    %v3469 = vld [vmem:[#allocation10 + $0x74] sm:$0xf]
    %v3470 = vld [vmem:[#allocation10 + $0x78] sm:$0xff]
    %v3471 = vld [vmem:[#allocation10 + $0x80] sm:$0xf]
    %v3472 = vld [vmem:[#allocation10 + $0x84] sm:$0xff]
    %v3473 = vld [vmem:[#allocation10 + $0x8c] sm:$0xf]
    %v3474 = vld [vmem:[#allocation10 + $0x90] sm:$0xff]
    %v3475 = vld [vmem:[#allocation10 + $0x98] sm:$0xf]
    %v3476 = vld [vmem:[#allocation10 + $0x9c] sm:$0xff]
    %v3477 = vld [vmem:[#allocation10 + $0xa4] sm:$0xf]
    %v3478 = vld [vmem:[#allocation10 + $0xa8] sm:$0xff]
    %v3479 = vld [vmem:[#allocation10 + $0xb0] sm:$0xf]
    %v3480 = vld [vmem:[#allocation10 + $0xb4] sm:$0xff]
    %v3481 = vld [vmem:[#allocation10 + $0xbc] sm:$0xf]
    %v3482 = vld [vmem:[#allocation10 + $0xc0] sm:$0xff]
    %v3483 = vld [vmem:[#allocation10 + $0xc8] sm:$0xf]
    %v3484 = vld [vmem:[#allocation10 + $0xcc] sm:$0xff]
    %v3485 = vld [vmem:[#allocation10 + $0xd4] sm:$0xf]
    %v3486 = vld [vmem:[#allocation10 + $0xd8] sm:$0xff]
    %v3487 = vld [vmem:[#allocation10 + $0xe0] sm:$0xf]
    %v3488 = vld [vmem:[#allocation10 + $0xe4] sm:$0xff]
    %v3489 = vld [vmem:[#allocation10 + $0xec] sm:$0xf]
    %v3490 = vld [vmem:[#allocation10 + $0xf0] sm:$0xff]
    %v3491 = vld [vmem:[#allocation10 + $0xf8] sm:$0xf]
    %v3492 = vld [vmem:[#allocation10 + $0xfc] sm:$0xff]
    %v3493 = vld [vmem:[#allocation10 + $0x104] sm:$0xf]
    %v3494 = vld [vmem:[#allocation10 + $0x108] sm:$0xff]
    %v3495 = vld [vmem:[#allocation10 + $0x110] sm:$0xf]
    %v3496 = vld [vmem:[#allocation10 + $0x114] sm:$0xff]
    %v3497 = vld [vmem:[#allocation10 + $0x11c] sm:$0xf]
    %v3498 = vld [vmem:[#allocation10 + $0x120] sm:$0xff]
    %v3499 = vld [vmem:[#allocation10 + $0x128] sm:$0xf]
    %v3500 = vld [vmem:[#allocation10 + $0x12c] sm:$0xff]
    %v3501 = vld [vmem:[#allocation10 + $0x134] sm:$0xf]
    %v3502 = vld [vmem:[#allocation10 + $0x138] sm:$0xff]
    %v3503 = vld [vmem:[#allocation10 + $0x140] sm:$0xf]
    %v3504 = vld [vmem:[#allocation10 + $0x144] sm:$0xff]
    %v3505 = vld [vmem:[#allocation10 + $0x14c] sm:$0xf]
    %v3506 = vld [vmem:[#allocation10 + $0x150] sm:$0xff]
    %v3507 = vld [vmem:[#allocation10 + $0x158] sm:$0xf]
    %v3508 = vld [vmem:[#allocation10 + $0x15c] sm:$0xff]
    %v3509 = vld [vmem:[#allocation10 + $0x164] sm:$0xf]
    %v3510 = vld [vmem:[#allocation10 + $0x168] sm:$0xff]
    %v3511 = vld [vmem:[#allocation10 + $0x170] sm:$0xf]
    %v3512 = vld [vmem:[#allocation10 + $0x174] sm:$0xff]
    %v3513 = vld [vmem:[#allocation10 + $0x17c] sm:$0xf]
    %v3514 = vld [vmem:[#allocation10 + $0x180] sm:$0xff]
    %v3515 = vld [vmem:[#allocation10 + $0x188] sm:$0xf]
    %v3516 = vld [vmem:[#allocation10 + $0x18c] sm:$0xff]
    %v3517 = vld [vmem:[#allocation10 + $0x194] sm:$0xf]
    %v3518 = vld [vmem:[#allocation10 + $0x198] sm:$0xff]
    %v3519 = vld [vmem:[#allocation10 + $0x1a0] sm:$0xf]
    %v3520 = vld [vmem:[#allocation10 + $0x1a4] sm:$0xff]
    %v3521 = vld [vmem:[#allocation10 + $0x1ac] sm:$0xf]
    %v3522 = vld [vmem:[#allocation10 + $0x1b0] sm:$0xff]
    %v3523 = vld [vmem:[#allocation10 + $0x1b8] sm:$0xf]
    %v3524 = vld [vmem:[#allocation10 + $0x1bc] sm:$0xff]
    %v3525 = vld [vmem:[#allocation10 + $0x1c4] sm:$0xf]
    %v3526 = vld [vmem:[#allocation10 + $0x1c8] sm:$0xff]
    %v3527 = vld [vmem:[#allocation10 + $0x1d0] sm:$0xf]
    %v3528 = vld [vmem:[#allocation10 + $0x1d4] sm:$0xff]
    %v3529 = vld [vmem:[#allocation10 + $0x1dc] sm:$0xf]
    %v3530 = vld [vmem:[#allocation10 + $0x1e0] sm:$0xff]
    %v3531 = vld [vmem:[#allocation10 + $0x1e8] sm:$0xf]
    %v3532 = vld [vmem:[#allocation10 + $0x1ec] sm:$0xff]
    %v3533 = vld [vmem:[#allocation10 + $0x1f4] sm:$0xf]
    %v3534 = vld [vmem:[#allocation10 + $0x1f8] sm:$0xff]
    %v3535 = vld [vmem:[#allocation10 + $0x200] sm:$0xf]
    %v3536 = vld [vmem:[#allocation10 + $0x204] sm:$0xff]
    %v3537 = vld [vmem:[#allocation10 + $0x20c] sm:$0xf]
    %v3538 = vld [vmem:[#allocation10 + $0x210] sm:$0xff]
    %v3539 = vld [vmem:[#allocation10 + $0x218] sm:$0xf]
    %v3540 = vld [vmem:[#allocation10 + $0x21c] sm:$0xff]
    %v3541 = vld [vmem:[#allocation10 + $0x224] sm:$0xf]
    %v3542 = vld [vmem:[#allocation10 + $0x228] sm:$0xff]
    %v3543 = vld [vmem:[#allocation10 + $0x230] sm:$0xf]
    %v3544 = vld [vmem:[#allocation10 + $0x234] sm:$0xff]
    %v3545 = vld [vmem:[#allocation10 + $0x23c] sm:$0xf]
    %v3546 = vld [vmem:[#allocation11] sm:$0x7]
    %v3548 = vlaneseq
    %v3549 = vshrl.u32 %v3548, 7
    %v3550 = vsub.s32 0, %v3549
    %v3551 = vrot.slane %v3546, %v3550
    %v3552 = vlaneseq
    %v3553 = vshrl.u32 %v3552, 7
    %v3554 = vsub.s32 1, %v3553
    %v3555 = vrot.slane %v3546, %v3554
    %v3556 = vlaneseq
    %v3557 = vshrl.u32 %v3556, 7
    %v3558 = vsub.s32 2, %v3557
    %v3559 = vrot.slane %v3546, %v3558
    %v3659 = vunpack.c.l.b16 %v3450
    %v3660 = vunpack.c.h.b16 %v3450
    %v3661 = vunpack.c.l.b16 %v3451
    %v3662 = vunpack.c.l.b16 %v3452
    %v3663 = vunpack.c.h.b16 %v3452
    %v3664 = vunpack.c.l.b16 %v3453
    %v3665 = vunpack.c.l.b16 %v3454
    %v3666 = vunpack.c.h.b16 %v3454
    %v3667 = vunpack.c.l.b16 %v3455
    %v3668 = vunpack.c.l.b16 %v3456
    %v3669 = vunpack.c.h.b16 %v3456
    %v3670 = vunpack.c.l.b16 %v3457
    %v3671 = vunpack.c.l.b16 %v3458
    %v3672 = vunpack.c.h.b16 %v3458
    %v3673 = vunpack.c.l.b16 %v3459
    %v3674 = vunpack.c.l.b16 %v3460
    %v3675 = vunpack.c.h.b16 %v3460
    %v3676 = vunpack.c.l.b16 %v3461
    %v3677 = vunpack.c.l.b16 %v3462
    %v3678 = vunpack.c.h.b16 %v3462
    %v3679 = vunpack.c.l.b16 %v3463
    %v3680 = vunpack.c.l.b16 %v3464
    %v3681 = vunpack.c.h.b16 %v3464
    %v3682 = vunpack.c.l.b16 %v3465
    %v3683 = vunpack.c.l.b16 %v3466
    %v3684 = vunpack.c.h.b16 %v3466
    %v3685 = vunpack.c.l.b16 %v3467
    %v3686 = vunpack.c.l.b16 %v3468
    %v3687 = vunpack.c.h.b16 %v3468
    %v3688 = vunpack.c.l.b16 %v3469
    %v3689 = vunpack.c.l.b16 %v3470
    %v3690 = vunpack.c.h.b16 %v3470
    %v3691 = vunpack.c.l.b16 %v3471
    %v3692 = vunpack.c.l.b16 %v3472
    %v3693 = vunpack.c.h.b16 %v3472
    %v3694 = vunpack.c.l.b16 %v3473
    %v3695 = vunpack.c.l.b16 %v3474
    %v3696 = vunpack.c.h.b16 %v3474
    %v3697 = vunpack.c.l.b16 %v3475
    %v3698 = vunpack.c.l.b16 %v3476
    %v3699 = vunpack.c.h.b16 %v3476
    %v3700 = vunpack.c.l.b16 %v3477
    %v3701 = vunpack.c.l.b16 %v3478
    %v3702 = vunpack.c.h.b16 %v3478
    %v3703 = vunpack.c.l.b16 %v3479
    %v3704 = vunpack.c.l.b16 %v3480
    %v3705 = vunpack.c.h.b16 %v3480
    %v3706 = vunpack.c.l.b16 %v3481
    %v3707 = vunpack.c.l.b16 %v3482
    %v3708 = vunpack.c.h.b16 %v3482
    %v3709 = vunpack.c.l.b16 %v3483
    %v3710 = vunpack.c.l.b16 %v3484
    %v3711 = vunpack.c.h.b16 %v3484
    %v3712 = vunpack.c.l.b16 %v3485
    %v3713 = vunpack.c.l.b16 %v3486
    %v3714 = vunpack.c.h.b16 %v3486
    %v3715 = vunpack.c.l.b16 %v3487
    %v3716 = vunpack.c.l.b16 %v3488
    %v3717 = vunpack.c.h.b16 %v3488
    %v3718 = vunpack.c.l.b16 %v3489
    %v3719 = vunpack.c.l.b16 %v3490
    %v3720 = vunpack.c.h.b16 %v3490
    %v3721 = vunpack.c.l.b16 %v3491
    %v3722 = vunpack.c.l.b16 %v3492
    %v3723 = vunpack.c.h.b16 %v3492
    %v3724 = vunpack.c.l.b16 %v3493
    %v3725 = vunpack.c.l.b16 %v3494
    %v3726 = vunpack.c.h.b16 %v3494
    %v3727 = vunpack.c.l.b16 %v3495
    %v3728 = vunpack.c.l.b16 %v3496
    %v3729 = vunpack.c.h.b16 %v3496
    %v3730 = vunpack.c.l.b16 %v3497
    %v3731 = vunpack.c.l.b16 %v3498
    %v3732 = vunpack.c.h.b16 %v3498
    %v3733 = vunpack.c.l.b16 %v3499
    %v3734 = vunpack.c.l.b16 %v3500
    %v3735 = vunpack.c.h.b16 %v3500
    %v3736 = vunpack.c.l.b16 %v3501
    %v3737 = vunpack.c.l.b16 %v3502
    %v3738 = vunpack.c.h.b16 %v3502
    %v3739 = vunpack.c.l.b16 %v3503
    %v3740 = vunpack.c.l.b16 %v3504
    %v3741 = vunpack.c.h.b16 %v3504
    %v3742 = vunpack.c.l.b16 %v3505
    %v3743 = vunpack.c.l.b16 %v3506
    %v3744 = vunpack.c.h.b16 %v3506
    %v3745 = vunpack.c.l.b16 %v3507
    %v3746 = vunpack.c.l.b16 %v3508
    %v3747 = vunpack.c.h.b16 %v3508
    %v3748 = vunpack.c.l.b16 %v3509
    %v3749 = vunpack.c.l.b16 %v3510
    %v3750 = vunpack.c.h.b16 %v3510
    %v3751 = vunpack.c.l.b16 %v3511
    %v3752 = vunpack.c.l.b16 %v3512
    %v3753 = vunpack.c.h.b16 %v3512
    %v3754 = vunpack.c.l.b16 %v3513
    %v3755 = vunpack.c.l.b16 %v3514
    %v3756 = vunpack.c.h.b16 %v3514
    %v3757 = vunpack.c.l.b16 %v3515
    %v3758 = vunpack.c.l.b16 %v3516
    %v3759 = vunpack.c.h.b16 %v3516
    %v3760 = vunpack.c.l.b16 %v3517
    %v3761 = vunpack.c.l.b16 %v3518
    %v3762 = vunpack.c.h.b16 %v3518
    %v3763 = vunpack.c.l.b16 %v3519
    %v3764 = vunpack.c.l.b16 %v3520
    %v3765 = vunpack.c.h.b16 %v3520
    %v3766 = vunpack.c.l.b16 %v3521
    %v3767 = vunpack.c.l.b16 %v3522
    %v3768 = vunpack.c.h.b16 %v3522
    %v3769 = vunpack.c.l.b16 %v3523
    %v3770 = vunpack.c.l.b16 %v3524
    %v3771 = vunpack.c.h.b16 %v3524
    %v3772 = vunpack.c.l.b16 %v3525
    %v3773 = vunpack.c.l.b16 %v3526
    %v3774 = vunpack.c.h.b16 %v3526
    %v3775 = vunpack.c.l.b16 %v3527
    %v3776 = vunpack.c.l.b16 %v3528
    %v3777 = vunpack.c.h.b16 %v3528
    %v3778 = vunpack.c.l.b16 %v3529
    %v3779 = vunpack.c.l.b16 %v3530
    %v3780 = vunpack.c.h.b16 %v3530
    %v3781 = vunpack.c.l.b16 %v3531
    %v3782 = vunpack.c.l.b16 %v3532
    %v3783 = vunpack.c.h.b16 %v3532
    %v3784 = vunpack.c.l.b16 %v3533
    %v3785 = vunpack.c.l.b16 %v3534
    %v3786 = vunpack.c.h.b16 %v3534
    %v3787 = vunpack.c.l.b16 %v3535
    %v3788 = vunpack.c.l.b16 %v3536
    %v3789 = vunpack.c.h.b16 %v3536
    %v3790 = vunpack.c.l.b16 %v3537
    %v3791 = vunpack.c.l.b16 %v3538
    %v3792 = vunpack.c.h.b16 %v3538
    %v3793 = vunpack.c.l.b16 %v3539
    %v3794 = vunpack.c.l.b16 %v3540
    %v3795 = vunpack.c.h.b16 %v3540
    %v3796 = vunpack.c.l.b16 %v3541
    %v3797 = vunpack.c.l.b16 %v3542
    %v3798 = vunpack.c.h.b16 %v3542
    %v3799 = vunpack.c.l.b16 %v3543
    %v3800 = vunpack.c.l.b16 %v3544
    %v3801 = vunpack.c.h.b16 %v3544
    %v3802 = vunpack.c.l.b16 %v3545
    %v3803 = vpack.c.b16 %v3662, %v3659
    %v3804 = vpack.c.b16 %v3663, %v3660
    %v3805 = vpack.c.b16 %v3664, %v3661
    %v3806 = vpack.c.b16 %v3668, %v3665
    %v3807 = vpack.c.b16 %v3669, %v3666
    %v3808 = vpack.c.b16 %v3670, %v3667
    %v3809 = vpack.c.b16 %v3674, %v3671
    %v3810 = vpack.c.b16 %v3675, %v3672
    %v3811 = vpack.c.b16 %v3676, %v3673
    %v3812 = vpack.c.b16 %v3680, %v3677
    %v3813 = vpack.c.b16 %v3681, %v3678
    %v3814 = vpack.c.b16 %v3682, %v3679
    %v3815 = vpack.c.b16 %v3686, %v3683
    %v3816 = vpack.c.b16 %v3687, %v3684
    %v3817 = vpack.c.b16 %v3688, %v3685
    %v3818 = vpack.c.b16 %v3692, %v3689
    %v3819 = vpack.c.b16 %v3693, %v3690
    %v3820 = vpack.c.b16 %v3694, %v3691
    %v3821 = vpack.c.b16 %v3698, %v3695
    %v3822 = vpack.c.b16 %v3699, %v3696
    %v3823 = vpack.c.b16 %v3700, %v3697
    %v3824 = vpack.c.b16 %v3704, %v3701
    %v3825 = vpack.c.b16 %v3705, %v3702
    %v3826 = vpack.c.b16 %v3706, %v3703
    %v3827 = vpack.c.b16 %v3710, %v3707
    %v3828 = vpack.c.b16 %v3711, %v3708
    %v3829 = vpack.c.b16 %v3712, %v3709
    %v3830 = vpack.c.b16 %v3716, %v3713
    %v3831 = vpack.c.b16 %v3717, %v3714
    %v3832 = vpack.c.b16 %v3718, %v3715
    %v3833 = vpack.c.b16 %v3722, %v3719
    %v3834 = vpack.c.b16 %v3723, %v3720
    %v3835 = vpack.c.b16 %v3724, %v3721
    %v3836 = vpack.c.b16 %v3728, %v3725
    %v3837 = vpack.c.b16 %v3729, %v3726
    %v3838 = vpack.c.b16 %v3730, %v3727
    %v3839 = vpack.c.b16 %v3734, %v3731
    %v3840 = vpack.c.b16 %v3735, %v3732
    %v3841 = vpack.c.b16 %v3736, %v3733
    %v3842 = vpack.c.b16 %v3740, %v3737
    %v3843 = vpack.c.b16 %v3741, %v3738
    %v3844 = vpack.c.b16 %v3742, %v3739
    %v3845 = vpack.c.b16 %v3746, %v3743
    %v3846 = vpack.c.b16 %v3747, %v3744
    %v3847 = vpack.c.b16 %v3748, %v3745
    %v3848 = vpack.c.b16 %v3752, %v3749
    %v3849 = vpack.c.b16 %v3753, %v3750
    %v3850 = vpack.c.b16 %v3754, %v3751
    %v3851 = vpack.c.b16 %v3758, %v3755
    %v3852 = vpack.c.b16 %v3759, %v3756
    %v3853 = vpack.c.b16 %v3760, %v3757
    %v3854 = vpack.c.b16 %v3764, %v3761
    %v3855 = vpack.c.b16 %v3765, %v3762
    %v3856 = vpack.c.b16 %v3766, %v3763
    %v3857 = vpack.c.b16 %v3770, %v3767
    %v3858 = vpack.c.b16 %v3771, %v3768
    %v3859 = vpack.c.b16 %v3772, %v3769
    %v3860 = vpack.c.b16 %v3776, %v3773
    %v3861 = vpack.c.b16 %v3777, %v3774
    %v3862 = vpack.c.b16 %v3778, %v3775
    %v3863 = vpack.c.b16 %v3782, %v3779
    %v3864 = vpack.c.b16 %v3783, %v3780
    %v3865 = vpack.c.b16 %v3784, %v3781
    %v3866 = vpack.c.b16 %v3788, %v3785
    %v3867 = vpack.c.b16 %v3789, %v3786
    %v3868 = vpack.c.b16 %v3790, %v3787
    %v3869 = vpack.c.b16 %v3794, %v3791
    %v3870 = vpack.c.b16 %v3795, %v3792
    %v3871 = vpack.c.b16 %v3796, %v3793
    %v3872 = vpack.c.b16 %v3800, %v3797
    %v3873 = vpack.c.b16 %v3801, %v3798
    %v3874 = vpack.c.b16 %v3802, %v3799
    %3947 = vmatprep.subr.bf16.mxu0 %v3804
    %3948 = vmatpush1.bf16.msra.mxu0 %v3803
    %3949 = vmatprep.subr.bf16.mxu0 %v3807
    %3950 = vmatpush1.bf16.msra.mxu0 %v3806
    %3951 = vmatprep.subr.bf16.mxu0 %v3810
    %3952 = vmatpush1.bf16.msra.mxu0 %v3809
    %3953 = vmatprep.subr.bf16.mxu0 %v3813
    %3954 = vmatpush1.bf16.msra.mxu0 %v3812
    %3955 = vmatprep.subr.bf16.mxu0 %v3816
    %3956 = vmatpush1.bf16.msra.mxu0 %v3815
    %3957 = vmatprep.subr.bf16.mxu0 %v3819
    %3958 = vmatpush1.bf16.msra.mxu0 %v3818
    %3959 = vmatprep.subr.bf16.mxu0 %v3822
    %3960 = vmatpush1.bf16.msra.mxu0 %v3821
    %3961 = vmatprep.subr.bf16.mxu0 %v3825
    %3962 = vmatpush1.bf16.msra.mxu0 %v3824
    %3963 = vmatprep.subr.bf16.mxu0 %v3828
    %3964 = vmatpush1.bf16.msra.mxu0 %v3827
    %3965 = vmatprep.subr.bf16.mxu0 %v3831
    %3966 = vmatpush1.bf16.msra.mxu0 %v3830
    %3967 = vmatprep.subr.bf16.mxu0 %v3834
    %3968 = vmatpush1.bf16.msra.mxu0 %v3833
    %3969 = vmatprep.subr.bf16.mxu0 %v3837
    %3970 = vmatpush1.bf16.msra.mxu0 %v3836
    %3971 = vmatprep.subr.bf16.mxu0 %v3840
    %3972 = vmatpush1.bf16.msra.mxu0 %v3839
    %3973 = vmatprep.subr.bf16.mxu0 %v3843
    %3974 = vmatpush1.bf16.msra.mxu0 %v3842
    %3975 = vmatprep.subr.bf16.mxu0 %v3846
    %3976 = vmatpush1.bf16.msra.mxu0 %v3845
    %3977 = vmatprep.subr.bf16.mxu0 %v3849
    %3978 = vmatpush1.bf16.msra.mxu0 %v3848
    %3979 = vmatprep.mubr.bf16.mxu0 %v3445
    %3980 = vmatmul.mubr.bf16.gmra.mrb[0].mxu0 %v3442
    %v3981 = vpop.f32.mrb[0].mxu0
    %v3982 = vadd.f32 %v3551, %v3981
    %v3983 = vpop.f32.mrb[0].mxu0
    %v3984 = vadd.f32 %v3555, %v3983
    %v3985 = vpop.f32.mrb[0].mxu0
    %v3986 = vadd.f32 %v3551, %v3985
    %v3987 = vpop.f32.mrb[0].mxu0
    %v3988 = vadd.f32 %v3555, %v3987
    %3989 = vdwg.mxu0
    %3990 = vmatprep.subr.bf16.mxu0 %v3852
    %3991 = vmatpush1.bf16.msra.mxu0 %v3851
    %3992 = vmatprep.subr.bf16.mxu0 %v3855
    %3993 = vmatpush1.bf16.msra.mxu0 %v3854
    %3994 = vmatprep.subr.bf16.mxu0 %v3858
    %3995 = vmatpush1.bf16.msra.mxu0 %v3857
    %3996 = vmatprep.subr.bf16.mxu0 %v3861
    %3997 = vmatpush1.bf16.msra.mxu0 %v3860
    %3998 = vmatprep.subr.bf16.mxu0 %v3864
    %3999 = vmatpush1.bf16.msra.mxu0 %v3863
    %4000 = vmatprep.subr.bf16.mxu0 %v3867
    %4001 = vmatpush1.bf16.msra.mxu0 %v3866
    %4002 = vmatprep.subr.bf16.mxu0 %v3870
    %4003 = vmatpush1.bf16.msra.mxu0 %v3869
    %4004 = vmatprep.subr.bf16.mxu0 %v3873
    %4005 = vmatpush1.bf16.msra.mxu0 %v3872
    %4006 = vmatprep.subr.bf16.mxu0 0
    %4007 = vmatpush1.bf16.msra.mxu0 0
    %4008 = vmatprep.subr.bf16.mxu0 0
    %4009 = vmatpush1.bf16.msra.mxu0 0
    %4010 = vmatprep.subr.bf16.mxu0 0
    %4011 = vmatpush1.bf16.msra.mxu0 0
    %4012 = vmatprep.subr.bf16.mxu0 0
    %4013 = vmatpush1.bf16.msra.mxu0 0
    %4014 = vmatprep.subr.bf16.mxu0 0
    %4015 = vmatpush1.bf16.msra.mxu0 0
    %4016 = vmatprep.subr.bf16.mxu0 0
    %4017 = vmatpush1.bf16.msra.mxu0 0
    %4018 = vmatprep.subr.bf16.mxu0 0
    %4019 = vmatpush1.bf16.msra.mxu0 0
    %4020 = vmatprep.subr.bf16.mxu0 0
    %4021 = vmatpush1.bf16.msra.mxu0 0
    %4022 = vmatprep.mubr.bf16.mxu0 0
    %4023 = vmatmul.mubr.bf16.gmra.mrb[0].mxu0 %v3448
    %v4024 = vpop.f32.mrb[0].mxu0
    %v4025 = vadd.f32 %v3982, %v4024
    %v4026 = vpop.f32.mrb[0].mxu0
    %v4027 = vadd.f32 %v3984, %v4026
    %v4028 = vpop.f32.mrb[0].mxu0
    %v4029 = vadd.f32 %v3986, %v4028
    %v4030 = vpop.f32.mrb[0].mxu0
    %v4031 = vadd.f32 %v3988, %v4030
    %4032 = vdwg.mxu0
    %4033 = vmatprep.subr.bf16.mxu0 0
    %4034 = vmatpush1.bf16.msra.mxu0 %v3805
    %4035 = vmatprep.subr.bf16.mxu0 0
    %4036 = vmatpush1.bf16.msra.mxu0 %v3808
    %4037 = vmatprep.subr.bf16.mxu0 0
    %4038 = vmatpush1.bf16.msra.mxu0 %v3811
    %4039 = vmatprep.subr.bf16.mxu0 0
    %4040 = vmatpush1.bf16.msra.mxu0 %v3814
    %4041 = vmatprep.subr.bf16.mxu0 0
    %4042 = vmatpush1.bf16.msra.mxu0 %v3817
    %4043 = vmatprep.subr.bf16.mxu0 0
    %4044 = vmatpush1.bf16.msra.mxu0 %v3820
    %4045 = vmatprep.subr.bf16.mxu0 0
    %4046 = vmatpush1.bf16.msra.mxu0 %v3823
    %4047 = vmatprep.subr.bf16.mxu0 0
    %4048 = vmatpush1.bf16.msra.mxu0 %v3826
    %4049 = vmatprep.subr.bf16.mxu0 0
    %4050 = vmatpush1.bf16.msra.mxu0 %v3829
    %4051 = vmatprep.subr.bf16.mxu0 0
    %4052 = vmatpush1.bf16.msra.mxu0 %v3832
    %4053 = vmatprep.subr.bf16.mxu0 0
    %4054 = vmatpush1.bf16.msra.mxu0 %v3835
    %4055 = vmatprep.subr.bf16.mxu0 0
    %4056 = vmatpush1.bf16.msra.mxu0 %v3838
    %4057 = vmatprep.subr.bf16.mxu0 0
    %4058 = vmatpush1.bf16.msra.mxu0 %v3841
    %4059 = vmatprep.subr.bf16.mxu0 0
    %4060 = vmatpush1.bf16.msra.mxu0 %v3844
    %4061 = vmatprep.subr.bf16.mxu0 0
    %4062 = vmatpush1.bf16.msra.mxu0 %v3847
    %4063 = vmatprep.subr.bf16.mxu0 0
    %4064 = vmatpush1.bf16.msra.mxu0 %v3850
    %4065 = vmatprep.mubr.bf16.mxu0 %v3445
    %4066 = vmatmul.mubr.bf16.gmra.mrb[0].mxu0 %v3442
    %v4067 = vpop.f32.mrb[0].mxu0
    %v4068 = vadd.f32 %v3559, %v4067
    %v4069 = vpop.f32.mrb[0].mxu0
    %v4070 = vpop.f32.mrb[0].mxu0
    %v4071 = vadd.f32 %v3559, %v4070
    %v4072 = vpop.f32.mrb[0].mxu0
    %4073 = vdwg.mxu0
    %4074 = vmatprep.subr.bf16.mxu0 0
    %4075 = vmatpush1.bf16.msra.mxu0 %v3853
    %4076 = vmatprep.subr.bf16.mxu0 0
    %4077 = vmatpush1.bf16.msra.mxu0 %v3856
    %4078 = vmatprep.subr.bf16.mxu0 0
    %4079 = vmatpush1.bf16.msra.mxu0 %v3859
    %4080 = vmatprep.subr.bf16.mxu0 0
    %4081 = vmatpush1.bf16.msra.mxu0 %v3862
    %4082 = vmatprep.subr.bf16.mxu0 0
    %4083 = vmatpush1.bf16.msra.mxu0 %v3865
    %4084 = vmatprep.subr.bf16.mxu0 0
    %4085 = vmatpush1.bf16.msra.mxu0 %v3868
    %4086 = vmatprep.subr.bf16.mxu0 0
    %4087 = vmatpush1.bf16.msra.mxu0 %v3871
    %4088 = vmatprep.subr.bf16.mxu0 0
    %4089 = vmatpush1.bf16.msra.mxu0 %v3874
    %4090 = vmatprep.subr.bf16.mxu0 0
    %4091 = vmatpush1.bf16.msra.mxu0 0
    %4092 = vmatprep.subr.bf16.mxu0 0
    %4093 = vmatpush1.bf16.msra.mxu0 0
    %4094 = vmatprep.subr.bf16.mxu0 0
    %4095 = vmatpush1.bf16.msra.mxu0 0
    %4096 = vmatprep.subr.bf16.mxu0 0
    %4097 = vmatpush1.bf16.msra.mxu0 0
    %4098 = vmatprep.subr.bf16.mxu0 0
    %4099 = vmatpush1.bf16.msra.mxu0 0
    %4100 = vmatprep.subr.bf16.mxu0 0
    %4101 = vmatpush1.bf16.msra.mxu0 0
    %4102 = vmatprep.subr.bf16.mxu0 0
    %4103 = vmatpush1.bf16.msra.mxu0 0
    %4104 = vmatprep.subr.bf16.mxu0 0
    %4105 = vmatpush1.bf16.msra.mxu0 0
    %4106 = vmatprep.mubr.bf16.mxu0 0
    %4107 = vmatmul.mubr.bf16.gmra.mrb[0].mxu0 %v3448
    %v4108 = vpop.f32.mrb[0].mxu0
    %v4109 = vadd.f32 %v4068, %v4108
    %v4110 = vpop.f32.mrb[0].mxu0
    %v4111 = vpop.f32.mrb[0].mxu0
    %v4112 = vadd.f32 %v4071, %v4111
    %v4113 = vpop.f32.mrb[0].mxu0
    %4114 = vdwg.mxu0
    %v4115 = vadd.f32 %v195, %v4025
    %v4116 = vadd.f32 %v196, %v4027
    %v4117 = vadd.f32 %v197, %v4109
    %v4118 = vadd.f32 %v198, %v4029
    %v4119 = vadd.f32 %v199, %v4031
    %v4120 = vadd.f32 %v200, %v4112
    %v4121 = vadd.f32 %v4115, %v4116
    %v4122 = vadd.f32 %v4121, %v4117
    %4123 = vadd.xlane.f32.xlu0 %v4122
    %v4124 = vpop.xlane.xlu0 %4123
    %v4125 = vadd.f32 %v4118, %v4119
    %v4126 = vadd.f32 %v4125, %v4120
    %4127 = vadd.xlane.f32.xlu0 %v4126
    %v4128 = vpop.xlane.xlu0 %4127
    %v4129 = vmul.f32 %v4124, %v209
    %v4130 = vmul.f32 %v4128, %v209
    %v4131 = vsub.f32 %v4115, %v4129
    %v4132 = vsub.f32 %v4116, %v4129
    %v4133 = vsub.f32 %v4117, %v4129
    %v4134 = vsub.f32 %v4118, %v4130
    %v4135 = vsub.f32 %v4119, %v4130
    %v4136 = vsub.f32 %v4120, %v4130
    %v4137 = vmul.f32 %v4131, %v4131
    %v4138 = vmul.f32 %v4132, %v4132
    %v4139 = vmul.f32 %v4133, %v4133
    %v4140 = vmul.f32 %v4134, %v4134
    %v4141 = vmul.f32 %v4135, %v4135
    %v4142 = vmul.f32 %v4136, %v4136
    %v4143 = vadd.f32 %v4137, %v4138
    %v4144 = vadd.f32 %v4143, %v4139
    %4145 = vadd.xlane.f32.xlu0 %v4144
    %v4146 = vpop.xlane.xlu0 %4145
    %v4147 = vadd.f32 %v4140, %v4141
    %v4148 = vadd.f32 %v4147, %v4142
    %4149 = vadd.xlane.f32.xlu0 %v4148
    %v4150 = vpop.xlane.xlu0 %4149
    %v4151 = vmul.f32 %v4146, %v209
    %v4152 = vmul.f32 %v4150, %v209
    %v4153 = vadd.f32 %v4151, 1e-05
    %v4154 = vadd.f32 %v4152, 1e-05
    %v4155 = vrsqrt.pop %v4153
    %v4156 = vrsqrt.pop %v4154
    %v4157 = vmul.f32 %v4131, %v4155
    %v4158 = vmul.f32 %v4132, %v4155
    %v4159 = vmul.f32 %v4133, %v4155
    %v4160 = vmul.f32 %v4134, %v4156
    %v4161 = vmul.f32 %v4135, %v4156
    %v4162 = vmul.f32 %v4136, %v4156
    %v4163 = vld [vmem:[#allocation13] sm:$0x7]
    %v4165 = vlaneseq
    %v4166 = vshrl.u32 %v4165, 7
    %v4167 = vsub.s32 0, %v4166
    %v4168 = vrot.slane %v4163, %v4167
    %v4169 = vlaneseq
    %v4170 = vshrl.u32 %v4169, 7
    %v4171 = vsub.s32 1, %v4170
    %v4172 = vrot.slane %v4163, %v4171
    %v4173 = vlaneseq
    %v4174 = vshrl.u32 %v4173, 7
    %v4175 = vsub.s32 2, %v4174
    %v4176 = vrot.slane %v4163, %v4175
    %v4180 = vmul.f32 %v4157, %v4168
    %v4181 = vmul.f32 %v4158, %v4172
    %v4182 = vmul.f32 %v4159, %v4176
    %v4183 = vmul.f32 %v4160, %v4168
    %v4184 = vmul.f32 %v4161, %v4172
    %v4185 = vmul.f32 %v4162, %v4176
    %v4186 = vld [vmem:[#allocation14] sm:$0x7]
    %v4188 = vlaneseq
    %v4189 = vshrl.u32 %v4188, 7
    %v4190 = vsub.s32 0, %v4189
    %v4191 = vrot.slane %v4186, %v4190
    %v4192 = vlaneseq
    %v4193 = vshrl.u32 %v4192, 7
    %v4194 = vsub.s32 1, %v4193
    %v4195 = vrot.slane %v4186, %v4194
    %v4196 = vlaneseq
    %v4197 = vshrl.u32 %v4196, 7
    %v4198 = vsub.s32 2, %v4197
    %v4199 = vrot.slane %v4186, %v4198
    %v4203 = vadd.f32 %v4180, %v4191
    %v4204 = vadd.f32 %v4181, %v4195
    %v4205 = vadd.f32 %v4182, %v4199
    %v4206 = vadd.f32 %v4183, %v4191
    %v4207 = vadd.f32 %v4184, %v4195
    %v4208 = vadd.f32 %v4185, %v4199
    %v4209 = vpack.c.bf16 %v4206, %v4203
    %v4210 = vpack.c.bf16 %v4207, %v4204
    %v4211 = vpack.c.bf16 %v4208, %v4205
    %v4212 = vld [vmem:[#allocation16] sm:$0xff]
    %v4213 = vld [vmem:[#allocation16 + $0x8] sm:$0xff]
    %v4214 = vld [vmem:[#allocation16 + $0x10] sm:$0xff]
    %v4215 = vld [vmem:[#allocation16 + $0x18] sm:$0xff]
    %v4216 = vld [vmem:[#allocation16 + $0x20] sm:$0xff]
    %v4217 = vld [vmem:[#allocation16 + $0x28] sm:$0xff]
    %v4218 = vld [vmem:[#allocation16 + $0x30] sm:$0xff]
    %v4219 = vld [vmem:[#allocation16 + $0x38] sm:$0xff]
    %v4220 = vld [vmem:[#allocation16 + $0x40] sm:$0xff]
    %v4221 = vld [vmem:[#allocation16 + $0x48] sm:$0xff]
    %v4222 = vld [vmem:[#allocation16 + $0x50] sm:$0xff]
    %v4223 = vld [vmem:[#allocation16 + $0x58] sm:$0xff]
    %v4224 = vld [vmem:[#allocation16 + $0x60] sm:$0xff]
    %v4225 = vld [vmem:[#allocation16 + $0x68] sm:$0xff]
    %v4226 = vld [vmem:[#allocation16 + $0x70] sm:$0xff]
    %v4227 = vld [vmem:[#allocation16 + $0x78] sm:$0xff]
    %v4228 = vld [vmem:[#allocation16 + $0x80] sm:$0xff]
    %v4229 = vld [vmem:[#allocation16 + $0x88] sm:$0xff]
    %v4230 = vld [vmem:[#allocation16 + $0x90] sm:$0xff]
    %v4231 = vld [vmem:[#allocation16 + $0x98] sm:$0xff]
    %v4232 = vld [vmem:[#allocation16 + $0xa0] sm:$0xff]
    %v4233 = vld [vmem:[#allocation16 + $0xa8] sm:$0xff]
    %v4234 = vld [vmem:[#allocation16 + $0xb0] sm:$0xff]
    %v4235 = vld [vmem:[#allocation16 + $0xb8] sm:$0xff]
    %v4236 = vld [vmem:[#allocation16 + $0xc0] sm:$0xff]
    %v4237 = vld [vmem:[#allocation16 + $0xc8] sm:$0xff]
    %v4238 = vld [vmem:[#allocation16 + $0xd0] sm:$0xff]
    %v4239 = vld [vmem:[#allocation16 + $0xd8] sm:$0xff]
    %v4240 = vld [vmem:[#allocation16 + $0xe0] sm:$0xff]
    %v4241 = vld [vmem:[#allocation16 + $0xe8] sm:$0xff]
    %v4242 = vld [vmem:[#allocation16 + $0xf0] sm:$0xff]
    %v4243 = vld [vmem:[#allocation16 + $0xf8] sm:$0xff]
    %v4244 = vld [vmem:[#allocation16 + $0x100] sm:$0xff]
    %v4245 = vld [vmem:[#allocation16 + $0x108] sm:$0xff]
    %v4246 = vld [vmem:[#allocation16 + $0x110] sm:$0xff]
    %v4247 = vld [vmem:[#allocation16 + $0x118] sm:$0xff]
    %v4248 = vld [vmem:[#allocation16 + $0x120] sm:$0xff]
    %v4249 = vld [vmem:[#allocation16 + $0x128] sm:$0xff]
    %v4250 = vld [vmem:[#allocation16 + $0x130] sm:$0xff]
    %v4251 = vld [vmem:[#allocation16 + $0x138] sm:$0xff]
    %v4252 = vld [vmem:[#allocation16 + $0x140] sm:$0xff]
    %v4253 = vld [vmem:[#allocation16 + $0x148] sm:$0xff]
    %v4254 = vld [vmem:[#allocation16 + $0x150] sm:$0xff]
    %v4255 = vld [vmem:[#allocation16 + $0x158] sm:$0xff]
    %v4256 = vld [vmem:[#allocation16 + $0x160] sm:$0xff]
    %v4257 = vld [vmem:[#allocation16 + $0x168] sm:$0xff]
    %v4258 = vld [vmem:[#allocation16 + $0x170] sm:$0xff]
    %v4259 = vld [vmem:[#allocation16 + $0x178] sm:$0xff]
    %v4260 = vld [vmem:[#allocation16 + $0x180] sm:$0xff]
    %v4261 = vld [vmem:[#allocation16 + $0x188] sm:$0xff]
    %v4262 = vld [vmem:[#allocation16 + $0x190] sm:$0xff]
    %v4263 = vld [vmem:[#allocation16 + $0x198] sm:$0xff]
    %v4264 = vld [vmem:[#allocation16 + $0x1a0] sm:$0xff]
    %v4265 = vld [vmem:[#allocation16 + $0x1a8] sm:$0xff]
    %v4266 = vld [vmem:[#allocation16 + $0x1b0] sm:$0xff]
    %v4267 = vld [vmem:[#allocation16 + $0x1b8] sm:$0xff]
    %v4268 = vld [vmem:[#allocation16 + $0x1c0] sm:$0xff]
    %v4269 = vld [vmem:[#allocation16 + $0x1c8] sm:$0xff]
    %v4270 = vld [vmem:[#allocation16 + $0x1d0] sm:$0xff]
    %v4271 = vld [vmem:[#allocation16 + $0x1d8] sm:$0xff]
    %v4272 = vld [vmem:[#allocation16 + $0x1e0] sm:$0xff]
    %v4273 = vld [vmem:[#allocation16 + $0x1e8] sm:$0xff]
    %v4274 = vld [vmem:[#allocation16 + $0x1f0] sm:$0xff]
    %v4275 = vld [vmem:[#allocation16 + $0x1f8] sm:$0xff]
    %v4276 = vld [vmem:[#allocation16 + $0x200] sm:$0xff]
    %v4277 = vld [vmem:[#allocation16 + $0x208] sm:$0xff]
    %v4278 = vld [vmem:[#allocation16 + $0x210] sm:$0xff]
    %v4279 = vld [vmem:[#allocation16 + $0x218] sm:$0xff]
    %v4280 = vld [vmem:[#allocation16 + $0x220] sm:$0xff]
    %v4281 = vld [vmem:[#allocation16 + $0x228] sm:$0xff]
    %v4282 = vld [vmem:[#allocation16 + $0x230] sm:$0xff]
    %v4283 = vld [vmem:[#allocation16 + $0x238] sm:$0xff]
    %v4284 = vld [vmem:[#allocation16 + $0x240] sm:$0xff]
    %v4285 = vld [vmem:[#allocation16 + $0x248] sm:$0xff]
    %v4286 = vld [vmem:[#allocation16 + $0x250] sm:$0xff]
    %v4287 = vld [vmem:[#allocation16 + $0x258] sm:$0xff]
    %v4288 = vld [vmem:[#allocation16 + $0x260] sm:$0xff]
    %v4289 = vld [vmem:[#allocation16 + $0x268] sm:$0xff]
    %v4290 = vld [vmem:[#allocation16 + $0x270] sm:$0xff]
    %v4291 = vld [vmem:[#allocation16 + $0x278] sm:$0xff]
    %v4292 = vld [vmem:[#allocation16 + $0x280] sm:$0xff]
    %v4293 = vld [vmem:[#allocation16 + $0x288] sm:$0xff]
    %v4294 = vld [vmem:[#allocation16 + $0x290] sm:$0xff]
    %v4295 = vld [vmem:[#allocation16 + $0x298] sm:$0xff]
    %v4296 = vld [vmem:[#allocation16 + $0x2a0] sm:$0xff]
    %v4297 = vld [vmem:[#allocation16 + $0x2a8] sm:$0xff]
    %v4298 = vld [vmem:[#allocation16 + $0x2b0] sm:$0xff]
    %v4299 = vld [vmem:[#allocation16 + $0x2b8] sm:$0xff]
    %v4300 = vld [vmem:[#allocation16 + $0x2c0] sm:$0xff]
    %v4301 = vld [vmem:[#allocation16 + $0x2c8] sm:$0xff]
    %v4302 = vld [vmem:[#allocation16 + $0x2d0] sm:$0xff]
    %v4303 = vld [vmem:[#allocation16 + $0x2d8] sm:$0xff]
    %v4304 = vld [vmem:[#allocation16 + $0x2e0] sm:$0xff]
    %v4305 = vld [vmem:[#allocation16 + $0x2e8] sm:$0xff]
    %v4306 = vld [vmem:[#allocation16 + $0x2f0] sm:$0xff]
    %v4307 = vld [vmem:[#allocation16 + $0x2f8] sm:$0xff]
    %v4308 = vld [vmem:[#allocation16 + $0x300] sm:$0xff]
    %v4309 = vld [vmem:[#allocation16 + $0x308] sm:$0xff]
    %v4310 = vld [vmem:[#allocation16 + $0x310] sm:$0xff]
    %v4311 = vld [vmem:[#allocation16 + $0x318] sm:$0xff]
    %v4312 = vld [vmem:[#allocation16 + $0x320] sm:$0xff]
    %v4313 = vld [vmem:[#allocation16 + $0x328] sm:$0xff]
    %v4314 = vld [vmem:[#allocation16 + $0x330] sm:$0xff]
    %v4315 = vld [vmem:[#allocation16 + $0x338] sm:$0xff]
    %v4316 = vld [vmem:[#allocation16 + $0x340] sm:$0xff]
    %v4317 = vld [vmem:[#allocation16 + $0x348] sm:$0xff]
    %v4318 = vld [vmem:[#allocation16 + $0x350] sm:$0xff]
    %v4319 = vld [vmem:[#allocation16 + $0x358] sm:$0xff]
    %v4320 = vld [vmem:[#allocation16 + $0x360] sm:$0xff]
    %v4321 = vld [vmem:[#allocation16 + $0x368] sm:$0xff]
    %v4322 = vld [vmem:[#allocation16 + $0x370] sm:$0xff]
    %v4323 = vld [vmem:[#allocation16 + $0x378] sm:$0xff]
    %v4324 = vld [vmem:[#allocation16 + $0x380] sm:$0xff]
    %v4325 = vld [vmem:[#allocation16 + $0x388] sm:$0xff]
    %v4326 = vld [vmem:[#allocation16 + $0x390] sm:$0xff]
    %v4327 = vld [vmem:[#allocation16 + $0x398] sm:$0xff]
    %v4328 = vld [vmem:[#allocation16 + $0x3a0] sm:$0xff]
    %v4329 = vld [vmem:[#allocation16 + $0x3a8] sm:$0xff]
    %v4330 = vld [vmem:[#allocation16 + $0x3b0] sm:$0xff]
    %v4331 = vld [vmem:[#allocation16 + $0x3b8] sm:$0xff]
    %v4332 = vld [vmem:[#allocation16 + $0x3c0] sm:$0xff]
    %v4333 = vld [vmem:[#allocation16 + $0x3c8] sm:$0xff]
    %v4334 = vld [vmem:[#allocation16 + $0x3d0] sm:$0xff]
    %v4335 = vld [vmem:[#allocation16 + $0x3d8] sm:$0xff]
    %v4336 = vld [vmem:[#allocation16 + $0x3e0] sm:$0xff]
    %v4337 = vld [vmem:[#allocation16 + $0x3e8] sm:$0xff]
    %v4338 = vld [vmem:[#allocation16 + $0x3f0] sm:$0xff]
    %v4339 = vld [vmem:[#allocation16 + $0x3f8] sm:$0xff]
    %v4340 = vld [vmem:[#allocation16 + $0x400] sm:$0xff]
    %v4341 = vld [vmem:[#allocation16 + $0x408] sm:$0xff]
    %v4342 = vld [vmem:[#allocation16 + $0x410] sm:$0xff]
    %v4343 = vld [vmem:[#allocation16 + $0x418] sm:$0xff]
    %v4344 = vld [vmem:[#allocation16 + $0x420] sm:$0xff]
    %v4345 = vld [vmem:[#allocation16 + $0x428] sm:$0xff]
    %v4346 = vld [vmem:[#allocation16 + $0x430] sm:$0xff]
    %v4347 = vld [vmem:[#allocation16 + $0x438] sm:$0xff]
    %v4348 = vld [vmem:[#allocation16 + $0x440] sm:$0xff]
    %v4349 = vld [vmem:[#allocation16 + $0x448] sm:$0xff]
    %v4350 = vld [vmem:[#allocation16 + $0x450] sm:$0xff]
    %v4351 = vld [vmem:[#allocation16 + $0x458] sm:$0xff]
    %v4352 = vld [vmem:[#allocation16 + $0x460] sm:$0xff]
    %v4353 = vld [vmem:[#allocation16 + $0x468] sm:$0xff]
    %v4354 = vld [vmem:[#allocation16 + $0x470] sm:$0xff]
    %v4355 = vld [vmem:[#allocation16 + $0x478] sm:$0xff]
    %v4356 = vld [vmem:[#allocation16 + $0x480] sm:$0xff]
    %v4357 = vld [vmem:[#allocation16 + $0x488] sm:$0xff]
    %v4358 = vld [vmem:[#allocation16 + $0x490] sm:$0xff]
    %v4359 = vld [vmem:[#allocation16 + $0x498] sm:$0xff]
    %v4360 = vld [vmem:[#allocation16 + $0x4a0] sm:$0xff]
    %v4361 = vld [vmem:[#allocation16 + $0x4a8] sm:$0xff]
    %v4362 = vld [vmem:[#allocation16 + $0x4b0] sm:$0xff]
    %v4363 = vld [vmem:[#allocation16 + $0x4b8] sm:$0xff]
    %v4364 = vld [vmem:[#allocation16 + $0x4c0] sm:$0xff]
    %v4365 = vld [vmem:[#allocation16 + $0x4c8] sm:$0xff]
    %v4366 = vld [vmem:[#allocation16 + $0x4d0] sm:$0xff]
    %v4367 = vld [vmem:[#allocation16 + $0x4d8] sm:$0xff]
    %v4368 = vld [vmem:[#allocation16 + $0x4e0] sm:$0xff]
    %v4369 = vld [vmem:[#allocation16 + $0x4e8] sm:$0xff]
    %v4370 = vld [vmem:[#allocation16 + $0x4f0] sm:$0xff]
    %v4371 = vld [vmem:[#allocation16 + $0x4f8] sm:$0xff]
    %v4372 = vld [vmem:[#allocation16 + $0x500] sm:$0xff]
    %v4373 = vld [vmem:[#allocation16 + $0x508] sm:$0xff]
    %v4374 = vld [vmem:[#allocation16 + $0x510] sm:$0xff]
    %v4375 = vld [vmem:[#allocation16 + $0x518] sm:$0xff]
    %v4376 = vld [vmem:[#allocation16 + $0x520] sm:$0xff]
    %v4377 = vld [vmem:[#allocation16 + $0x528] sm:$0xff]
    %v4378 = vld [vmem:[#allocation16 + $0x530] sm:$0xff]
    %v4379 = vld [vmem:[#allocation16 + $0x538] sm:$0xff]
    %v4380 = vld [vmem:[#allocation16 + $0x540] sm:$0xff]
    %v4381 = vld [vmem:[#allocation16 + $0x548] sm:$0xff]
    %v4382 = vld [vmem:[#allocation16 + $0x550] sm:$0xff]
    %v4383 = vld [vmem:[#allocation16 + $0x558] sm:$0xff]
    %v4384 = vld [vmem:[#allocation16 + $0x560] sm:$0xff]
    %v4385 = vld [vmem:[#allocation16 + $0x568] sm:$0xff]
    %v4386 = vld [vmem:[#allocation16 + $0x570] sm:$0xff]
    %v4387 = vld [vmem:[#allocation16 + $0x578] sm:$0xff]
    %v4388 = vld [vmem:[#allocation16 + $0x580] sm:$0xff]
    %v4389 = vld [vmem:[#allocation16 + $0x588] sm:$0xff]
    %v4390 = vld [vmem:[#allocation16 + $0x590] sm:$0xff]
    %v4391 = vld [vmem:[#allocation16 + $0x598] sm:$0xff]
    %v4392 = vld [vmem:[#allocation16 + $0x5a0] sm:$0xff]
    %v4393 = vld [vmem:[#allocation16 + $0x5a8] sm:$0xff]
    %v4394 = vld [vmem:[#allocation16 + $0x5b0] sm:$0xff]
    %v4395 = vld [vmem:[#allocation16 + $0x5b8] sm:$0xff]
    %v4396 = vld [vmem:[#allocation16 + $0x5c0] sm:$0xff]
    %v4397 = vld [vmem:[#allocation16 + $0x5c8] sm:$0xff]
    %v4398 = vld [vmem:[#allocation16 + $0x5d0] sm:$0xff]
    %v4399 = vld [vmem:[#allocation16 + $0x5d8] sm:$0xff]
    %v4400 = vld [vmem:[#allocation16 + $0x5e0] sm:$0xff]
    %v4401 = vld [vmem:[#allocation16 + $0x5e8] sm:$0xff]
    %v4402 = vld [vmem:[#allocation16 + $0x5f0] sm:$0xff]
    %v4403 = vld [vmem:[#allocation16 + $0x5f8] sm:$0xff]
    %v4404 = vld [vmem:[#allocation16 + $0x600] sm:$0xff]
    %v4405 = vld [vmem:[#allocation16 + $0x608] sm:$0xff]
    %v4406 = vld [vmem:[#allocation16 + $0x610] sm:$0xff]
    %v4407 = vld [vmem:[#allocation16 + $0x618] sm:$0xff]
    %v4408 = vld [vmem:[#allocation16 + $0x620] sm:$0xff]
    %v4409 = vld [vmem:[#allocation16 + $0x628] sm:$0xff]
    %v4410 = vld [vmem:[#allocation16 + $0x630] sm:$0xff]
    %v4411 = vld [vmem:[#allocation16 + $0x638] sm:$0xff]
    %v4412 = vld [vmem:[#allocation16 + $0x640] sm:$0xff]
    %v4413 = vld [vmem:[#allocation16 + $0x648] sm:$0xff]
    %v4414 = vld [vmem:[#allocation16 + $0x650] sm:$0xff]
    %v4415 = vld [vmem:[#allocation16 + $0x658] sm:$0xff]
    %v4416 = vld [vmem:[#allocation16 + $0x660] sm:$0xff]
    %v4417 = vld [vmem:[#allocation16 + $0x668] sm:$0xff]
    %v4418 = vld [vmem:[#allocation16 + $0x670] sm:$0xff]
    %v4419 = vld [vmem:[#allocation16 + $0x678] sm:$0xff]
    %v4420 = vld [vmem:[#allocation16 + $0x680] sm:$0xff]
    %v4421 = vld [vmem:[#allocation16 + $0x688] sm:$0xff]
    %v4422 = vld [vmem:[#allocation16 + $0x690] sm:$0xff]
    %v4423 = vld [vmem:[#allocation16 + $0x698] sm:$0xff]
    %v4424 = vld [vmem:[#allocation16 + $0x6a0] sm:$0xff]
    %v4425 = vld [vmem:[#allocation16 + $0x6a8] sm:$0xff]
    %v4426 = vld [vmem:[#allocation16 + $0x6b0] sm:$0xff]
    %v4427 = vld [vmem:[#allocation16 + $0x6b8] sm:$0xff]
    %v4428 = vld [vmem:[#allocation16 + $0x6c0] sm:$0xff]
    %v4429 = vld [vmem:[#allocation16 + $0x6c8] sm:$0xff]
    %v4430 = vld [vmem:[#allocation16 + $0x6d0] sm:$0xff]
    %v4431 = vld [vmem:[#allocation16 + $0x6d8] sm:$0xff]
    %v4432 = vld [vmem:[#allocation16 + $0x6e0] sm:$0xff]
    %v4433 = vld [vmem:[#allocation16 + $0x6e8] sm:$0xff]
    %v4434 = vld [vmem:[#allocation16 + $0x6f0] sm:$0xff]
    %v4435 = vld [vmem:[#allocation16 + $0x6f8] sm:$0xff]
    %v4436 = vld [vmem:[#allocation16 + $0x700] sm:$0xff]
    %v4437 = vld [vmem:[#allocation16 + $0x708] sm:$0xff]
    %v4438 = vld [vmem:[#allocation16 + $0x710] sm:$0xff]
    %v4439 = vld [vmem:[#allocation16 + $0x718] sm:$0xff]
    %v4440 = vld [vmem:[#allocation16 + $0x720] sm:$0xff]
    %v4441 = vld [vmem:[#allocation16 + $0x728] sm:$0xff]
    %v4442 = vld [vmem:[#allocation16 + $0x730] sm:$0xff]
    %v4443 = vld [vmem:[#allocation16 + $0x738] sm:$0xff]
    %v4444 = vld [vmem:[#allocation16 + $0x740] sm:$0xff]
    %v4445 = vld [vmem:[#allocation16 + $0x748] sm:$0xff]
    %v4446 = vld [vmem:[#allocation16 + $0x750] sm:$0xff]
    %v4447 = vld [vmem:[#allocation16 + $0x758] sm:$0xff]
    %v4448 = vld [vmem:[#allocation16 + $0x760] sm:$0xff]
    %v4449 = vld [vmem:[#allocation16 + $0x768] sm:$0xff]
    %v4450 = vld [vmem:[#allocation16 + $0x770] sm:$0xff]
    %v4451 = vld [vmem:[#allocation16 + $0x778] sm:$0xff]
    %v4452 = vld [vmem:[#allocation16 + $0x780] sm:$0xff]
    %v4453 = vld [vmem:[#allocation16 + $0x788] sm:$0xff]
    %v4454 = vld [vmem:[#allocation16 + $0x790] sm:$0xff]
    %v4455 = vld [vmem:[#allocation16 + $0x798] sm:$0xff]
    %v4456 = vld [vmem:[#allocation16 + $0x7a0] sm:$0xff]
    %v4457 = vld [vmem:[#allocation16 + $0x7a8] sm:$0xff]
    %v4458 = vld [vmem:[#allocation16 + $0x7b0] sm:$0xff]
    %v4459 = vld [vmem:[#allocation16 + $0x7b8] sm:$0xff]
    %v4460 = vld [vmem:[#allocation16 + $0x7c0] sm:$0xff]
    %v4461 = vld [vmem:[#allocation16 + $0x7c8] sm:$0xff]
    %v4462 = vld [vmem:[#allocation16 + $0x7d0] sm:$0xff]
    %v4463 = vld [vmem:[#allocation16 + $0x7d8] sm:$0xff]
    %v4464 = vld [vmem:[#allocation16 + $0x7e0] sm:$0xff]
    %v4465 = vld [vmem:[#allocation16 + $0x7e8] sm:$0xff]
    %v4466 = vld [vmem:[#allocation16 + $0x7f0] sm:$0xff]
    %v4467 = vld [vmem:[#allocation16 + $0x7f8] sm:$0xff]
    %v4468 = vld [vmem:[#allocation16 + $0x800] sm:$0xff]
    %v4469 = vld [vmem:[#allocation16 + $0x808] sm:$0xff]
    %v4470 = vld [vmem:[#allocation16 + $0x810] sm:$0xff]
    %v4471 = vld [vmem:[#allocation16 + $0x818] sm:$0xff]
    %v4472 = vld [vmem:[#allocation16 + $0x820] sm:$0xff]
    %v4473 = vld [vmem:[#allocation16 + $0x828] sm:$0xff]
    %v4474 = vld [vmem:[#allocation16 + $0x830] sm:$0xff]
    %v4475 = vld [vmem:[#allocation16 + $0x838] sm:$0xff]
    %v4476 = vld [vmem:[#allocation16 + $0x840] sm:$0xff]
    %v4477 = vld [vmem:[#allocation16 + $0x848] sm:$0xff]
    %v4478 = vld [vmem:[#allocation16 + $0x850] sm:$0xff]
    %v4479 = vld [vmem:[#allocation16 + $0x858] sm:$0xff]
    %v4480 = vld [vmem:[#allocation16 + $0x860] sm:$0xff]
    %v4481 = vld [vmem:[#allocation16 + $0x868] sm:$0xff]
    %v4482 = vld [vmem:[#allocation16 + $0x870] sm:$0xff]
    %v4483 = vld [vmem:[#allocation16 + $0x878] sm:$0xff]
    %v4484 = vld [vmem:[#allocation16 + $0x880] sm:$0xff]
    %v4485 = vld [vmem:[#allocation16 + $0x888] sm:$0xff]
    %v4486 = vld [vmem:[#allocation16 + $0x890] sm:$0xff]
    %v4487 = vld [vmem:[#allocation16 + $0x898] sm:$0xff]
    %v4488 = vld [vmem:[#allocation16 + $0x8a0] sm:$0xff]
    %v4489 = vld [vmem:[#allocation16 + $0x8a8] sm:$0xff]
    %v4490 = vld [vmem:[#allocation16 + $0x8b0] sm:$0xff]
    %v4491 = vld [vmem:[#allocation16 + $0x8b8] sm:$0xff]
    %v4492 = vld [vmem:[#allocation16 + $0x8c0] sm:$0xff]
    %v4493 = vld [vmem:[#allocation16 + $0x8c8] sm:$0xff]
    %v4494 = vld [vmem:[#allocation16 + $0x8d0] sm:$0xff]
    %v4495 = vld [vmem:[#allocation16 + $0x8d8] sm:$0xff]
    %v4496 = vld [vmem:[#allocation16 + $0x8e0] sm:$0xff]
    %v4497 = vld [vmem:[#allocation16 + $0x8e8] sm:$0xff]
    %v4498 = vld [vmem:[#allocation16 + $0x8f0] sm:$0xff]
    %v4499 = vld [vmem:[#allocation16 + $0x8f8] sm:$0xff]
    %v4500 = vld [vmem:[#allocation17] sm:$0xff]
    %v4501 = vld [vmem:[#allocation17 + $0x8] sm:$0xf]
    %v4504 = vlaneseq
    %v4505 = vshrl.u32 %v4504, 7
    %v4506 = vsub.s32 0, %v4505
    %v4507 = vrot.slane %v4500, %v4506
    %v4508 = vlaneseq
    %v4509 = vshrl.u32 %v4508, 7
    %v4510 = vsub.s32 1, %v4509
    %v4511 = vrot.slane %v4500, %v4510
    %v4512 = vlaneseq
    %v4513 = vshrl.u32 %v4512, 7
    %v4514 = vsub.s32 2, %v4513
    %v4515 = vrot.slane %v4500, %v4514
    %v4516 = vlaneseq
    %v4517 = vshrl.u32 %v4516, 7
    %v4518 = vsub.s32 3, %v4517
    %v4519 = vrot.slane %v4500, %v4518
    %v4520 = vlaneseq
    %v4521 = vshrl.u32 %v4520, 7
    %v4522 = vsub.s32 4, %v4521
    %v4523 = vrot.slane %v4500, %v4522
    %v4524 = vlaneseq
    %v4525 = vshrl.u32 %v4524, 7
    %v4526 = vsub.s32 5, %v4525
    %v4527 = vrot.slane %v4500, %v4526
    %v4528 = vlaneseq
    %v4529 = vshrl.u32 %v4528, 7
    %v4530 = vsub.s32 6, %v4529
    %v4531 = vrot.slane %v4500, %v4530
    %v4532 = vlaneseq
    %v4533 = vshrl.u32 %v4532, 7
    %v4534 = vsub.s32 7, %v4533
    %v4535 = vrot.slane %v4500, %v4534
    %v4536 = vlaneseq
    %v4537 = vshrl.u32 %v4536, 7
    %v4538 = vsub.s32 0, %v4537
    %v4539 = vrot.slane %v4501, %v4538
    %v4540 = vlaneseq
    %v4541 = vshrl.u32 %v4540, 7
    %v4542 = vsub.s32 1, %v4541
    %v4543 = vrot.slane %v4501, %v4542
    %v4544 = vlaneseq
    %v4545 = vshrl.u32 %v4544, 7
    %v4546 = vsub.s32 2, %v4545
    %v4547 = vrot.slane %v4501, %v4546
    %v4548 = vlaneseq
    %v4549 = vshrl.u32 %v4548, 7
    %v4550 = vsub.s32 3, %v4549
    %v4551 = vrot.slane %v4501, %v4550
    %v4852 = vunpack.c.l.b16 %v4212
    %v4853 = vunpack.c.h.b16 %v4212
    %v4854 = vunpack.c.l.b16 %v4213
    %v4855 = vunpack.c.h.b16 %v4213
    %v4856 = vunpack.c.l.b16 %v4214
    %v4857 = vunpack.c.h.b16 %v4214
    %v4858 = vunpack.c.l.b16 %v4215
    %v4859 = vunpack.c.h.b16 %v4215
    %v4860 = vunpack.c.l.b16 %v4216
    %v4861 = vunpack.c.h.b16 %v4216
    %v4862 = vunpack.c.l.b16 %v4217
    %v4863 = vunpack.c.h.b16 %v4217
    %v4864 = vunpack.c.l.b16 %v4218
    %v4865 = vunpack.c.h.b16 %v4218
    %v4866 = vunpack.c.l.b16 %v4219
    %v4867 = vunpack.c.h.b16 %v4219
    %v4868 = vunpack.c.l.b16 %v4220
    %v4869 = vunpack.c.h.b16 %v4220
    %v4870 = vunpack.c.l.b16 %v4221
    %v4871 = vunpack.c.h.b16 %v4221
    %v4872 = vunpack.c.l.b16 %v4222
    %v4873 = vunpack.c.h.b16 %v4222
    %v4874 = vunpack.c.l.b16 %v4223
    %v4875 = vunpack.c.h.b16 %v4223
    %v4876 = vunpack.c.l.b16 %v4224
    %v4877 = vunpack.c.h.b16 %v4224
    %v4878 = vunpack.c.l.b16 %v4225
    %v4879 = vunpack.c.h.b16 %v4225
    %v4880 = vunpack.c.l.b16 %v4226
    %v4881 = vunpack.c.h.b16 %v4226
    %v4882 = vunpack.c.l.b16 %v4227
    %v4883 = vunpack.c.h.b16 %v4227
    %v4884 = vunpack.c.l.b16 %v4228
    %v4885 = vunpack.c.h.b16 %v4228
    %v4886 = vunpack.c.l.b16 %v4229
    %v4887 = vunpack.c.h.b16 %v4229
    %v4888 = vunpack.c.l.b16 %v4230
    %v4889 = vunpack.c.h.b16 %v4230
    %v4890 = vunpack.c.l.b16 %v4231
    %v4891 = vunpack.c.h.b16 %v4231
    %v4892 = vunpack.c.l.b16 %v4232
    %v4893 = vunpack.c.h.b16 %v4232
    %v4894 = vunpack.c.l.b16 %v4233
    %v4895 = vunpack.c.h.b16 %v4233
    %v4896 = vunpack.c.l.b16 %v4234
    %v4897 = vunpack.c.h.b16 %v4234
    %v4898 = vunpack.c.l.b16 %v4235
    %v4899 = vunpack.c.h.b16 %v4235
    %v4900 = vunpack.c.l.b16 %v4236
    %v4901 = vunpack.c.h.b16 %v4236
    %v4902 = vunpack.c.l.b16 %v4237
    %v4903 = vunpack.c.h.b16 %v4237
    %v4904 = vunpack.c.l.b16 %v4238
    %v4905 = vunpack.c.h.b16 %v4238
    %v4906 = vunpack.c.l.b16 %v4239
    %v4907 = vunpack.c.h.b16 %v4239
    %v4908 = vunpack.c.l.b16 %v4240
    %v4909 = vunpack.c.h.b16 %v4240
    %v4910 = vunpack.c.l.b16 %v4241
    %v4911 = vunpack.c.h.b16 %v4241
    %v4912 = vunpack.c.l.b16 %v4242
    %v4913 = vunpack.c.h.b16 %v4242
    %v4914 = vunpack.c.l.b16 %v4243
    %v4915 = vunpack.c.h.b16 %v4243
    %v4916 = vunpack.c.l.b16 %v4244
    %v4917 = vunpack.c.h.b16 %v4244
    %v4918 = vunpack.c.l.b16 %v4245
    %v4919 = vunpack.c.h.b16 %v4245
    %v4920 = vunpack.c.l.b16 %v4246
    %v4921 = vunpack.c.h.b16 %v4246
    %v4922 = vunpack.c.l.b16 %v4247
    %v4923 = vunpack.c.h.b16 %v4247
    %v4924 = vunpack.c.l.b16 %v4248
    %v4925 = vunpack.c.h.b16 %v4248
    %v4926 = vunpack.c.l.b16 %v4249
    %v4927 = vunpack.c.h.b16 %v4249
    %v4928 = vunpack.c.l.b16 %v4250
    %v4929 = vunpack.c.h.b16 %v4250
    %v4930 = vunpack.c.l.b16 %v4251
    %v4931 = vunpack.c.h.b16 %v4251
    %v4932 = vunpack.c.l.b16 %v4252
    %v4933 = vunpack.c.h.b16 %v4252
    %v4934 = vunpack.c.l.b16 %v4253
    %v4935 = vunpack.c.h.b16 %v4253
    %v4936 = vunpack.c.l.b16 %v4254
    %v4937 = vunpack.c.h.b16 %v4254
    %v4938 = vunpack.c.l.b16 %v4255
    %v4939 = vunpack.c.h.b16 %v4255
    %v4940 = vunpack.c.l.b16 %v4256
    %v4941 = vunpack.c.h.b16 %v4256
    %v4942 = vunpack.c.l.b16 %v4257
    %v4943 = vunpack.c.h.b16 %v4257
    %v4944 = vunpack.c.l.b16 %v4258
    %v4945 = vunpack.c.h.b16 %v4258
    %v4946 = vunpack.c.l.b16 %v4259
    %v4947 = vunpack.c.h.b16 %v4259
    %v4948 = vunpack.c.l.b16 %v4260
    %v4949 = vunpack.c.h.b16 %v4260
    %v4950 = vunpack.c.l.b16 %v4261
    %v4951 = vunpack.c.h.b16 %v4261
    %v4952 = vunpack.c.l.b16 %v4262
    %v4953 = vunpack.c.h.b16 %v4262
    %v4954 = vunpack.c.l.b16 %v4263
    %v4955 = vunpack.c.h.b16 %v4263
    %v4956 = vunpack.c.l.b16 %v4264
    %v4957 = vunpack.c.h.b16 %v4264
    %v4958 = vunpack.c.l.b16 %v4265
    %v4959 = vunpack.c.h.b16 %v4265
    %v4960 = vunpack.c.l.b16 %v4266
    %v4961 = vunpack.c.h.b16 %v4266
    %v4962 = vunpack.c.l.b16 %v4267
    %v4963 = vunpack.c.h.b16 %v4267
    %v4964 = vunpack.c.l.b16 %v4268
    %v4965 = vunpack.c.h.b16 %v4268
    %v4966 = vunpack.c.l.b16 %v4269
    %v4967 = vunpack.c.h.b16 %v4269
    %v4968 = vunpack.c.l.b16 %v4270
    %v4969 = vunpack.c.h.b16 %v4270
    %v4970 = vunpack.c.l.b16 %v4271
    %v4971 = vunpack.c.h.b16 %v4271
    %v4972 = vunpack.c.l.b16 %v4272
    %v4973 = vunpack.c.h.b16 %v4272
    %v4974 = vunpack.c.l.b16 %v4273
    %v4975 = vunpack.c.h.b16 %v4273
    %v4976 = vunpack.c.l.b16 %v4274
    %v4977 = vunpack.c.h.b16 %v4274
    %v4978 = vunpack.c.l.b16 %v4275
    %v4979 = vunpack.c.h.b16 %v4275
    %v4980 = vunpack.c.l.b16 %v4276
    %v4981 = vunpack.c.h.b16 %v4276
    %v4982 = vunpack.c.l.b16 %v4277
    %v4983 = vunpack.c.h.b16 %v4277
    %v4984 = vunpack.c.l.b16 %v4278
    %v4985 = vunpack.c.h.b16 %v4278
    %v4986 = vunpack.c.l.b16 %v4279
    %v4987 = vunpack.c.h.b16 %v4279
    %v4988 = vunpack.c.l.b16 %v4280
    %v4989 = vunpack.c.h.b16 %v4280
    %v4990 = vunpack.c.l.b16 %v4281
    %v4991 = vunpack.c.h.b16 %v4281
    %v4992 = vunpack.c.l.b16 %v4282
    %v4993 = vunpack.c.h.b16 %v4282
    %v4994 = vunpack.c.l.b16 %v4283
    %v4995 = vunpack.c.h.b16 %v4283
    %v4996 = vunpack.c.l.b16 %v4284
    %v4997 = vunpack.c.h.b16 %v4284
    %v4998 = vunpack.c.l.b16 %v4285
    %v4999 = vunpack.c.h.b16 %v4285
    %v5000 = vunpack.c.l.b16 %v4286
    %v5001 = vunpack.c.h.b16 %v4286
    %v5002 = vunpack.c.l.b16 %v4287
    %v5003 = vunpack.c.h.b16 %v4287
    %v5004 = vunpack.c.l.b16 %v4288
    %v5005 = vunpack.c.h.b16 %v4288
    %v5006 = vunpack.c.l.b16 %v4289
    %v5007 = vunpack.c.h.b16 %v4289
    %v5008 = vunpack.c.l.b16 %v4290
    %v5009 = vunpack.c.h.b16 %v4290
    %v5010 = vunpack.c.l.b16 %v4291
    %v5011 = vunpack.c.h.b16 %v4291
    %v5012 = vunpack.c.l.b16 %v4292
    %v5013 = vunpack.c.h.b16 %v4292
    %v5014 = vunpack.c.l.b16 %v4293
    %v5015 = vunpack.c.h.b16 %v4293
    %v5016 = vunpack.c.l.b16 %v4294
    %v5017 = vunpack.c.h.b16 %v4294
    %v5018 = vunpack.c.l.b16 %v4295
    %v5019 = vunpack.c.h.b16 %v4295
    %v5020 = vunpack.c.l.b16 %v4296
    %v5021 = vunpack.c.h.b16 %v4296
    %v5022 = vunpack.c.l.b16 %v4297
    %v5023 = vunpack.c.h.b16 %v4297
    %v5024 = vunpack.c.l.b16 %v4298
    %v5025 = vunpack.c.h.b16 %v4298
    %v5026 = vunpack.c.l.b16 %v4299
    %v5027 = vunpack.c.h.b16 %v4299
    %v5028 = vunpack.c.l.b16 %v4300
    %v5029 = vunpack.c.h.b16 %v4300
    %v5030 = vunpack.c.l.b16 %v4301
    %v5031 = vunpack.c.h.b16 %v4301
    %v5032 = vunpack.c.l.b16 %v4302
    %v5033 = vunpack.c.h.b16 %v4302
    %v5034 = vunpack.c.l.b16 %v4303
    %v5035 = vunpack.c.h.b16 %v4303
    %v5036 = vunpack.c.l.b16 %v4304
    %v5037 = vunpack.c.h.b16 %v4304
    %v5038 = vunpack.c.l.b16 %v4305
    %v5039 = vunpack.c.h.b16 %v4305
    %v5040 = vunpack.c.l.b16 %v4306
    %v5041 = vunpack.c.h.b16 %v4306
    %v5042 = vunpack.c.l.b16 %v4307
    %v5043 = vunpack.c.h.b16 %v4307
    %v5044 = vunpack.c.l.b16 %v4308
    %v5045 = vunpack.c.h.b16 %v4308
    %v5046 = vunpack.c.l.b16 %v4309
    %v5047 = vunpack.c.h.b16 %v4309
    %v5048 = vunpack.c.l.b16 %v4310
    %v5049 = vunpack.c.h.b16 %v4310
    %v5050 = vunpack.c.l.b16 %v4311
    %v5051 = vunpack.c.h.b16 %v4311
    %v5052 = vunpack.c.l.b16 %v4312
    %v5053 = vunpack.c.h.b16 %v4312
    %v5054 = vunpack.c.l.b16 %v4313
    %v5055 = vunpack.c.h.b16 %v4313
    %v5056 = vunpack.c.l.b16 %v4314
    %v5057 = vunpack.c.h.b16 %v4314
    %v5058 = vunpack.c.l.b16 %v4315
    %v5059 = vunpack.c.h.b16 %v4315
    %v5060 = vunpack.c.l.b16 %v4316
    %v5061 = vunpack.c.h.b16 %v4316
    %v5062 = vunpack.c.l.b16 %v4317
    %v5063 = vunpack.c.h.b16 %v4317
    %v5064 = vunpack.c.l.b16 %v4318
    %v5065 = vunpack.c.h.b16 %v4318
    %v5066 = vunpack.c.l.b16 %v4319
    %v5067 = vunpack.c.h.b16 %v4319
    %v5068 = vunpack.c.l.b16 %v4320
    %v5069 = vunpack.c.h.b16 %v4320
    %v5070 = vunpack.c.l.b16 %v4321
    %v5071 = vunpack.c.h.b16 %v4321
    %v5072 = vunpack.c.l.b16 %v4322
    %v5073 = vunpack.c.h.b16 %v4322
    %v5074 = vunpack.c.l.b16 %v4323
    %v5075 = vunpack.c.h.b16 %v4323
    %v5076 = vunpack.c.l.b16 %v4324
    %v5077 = vunpack.c.h.b16 %v4324
    %v5078 = vunpack.c.l.b16 %v4325
    %v5079 = vunpack.c.h.b16 %v4325
    %v5080 = vunpack.c.l.b16 %v4326
    %v5081 = vunpack.c.h.b16 %v4326
    %v5082 = vunpack.c.l.b16 %v4327
    %v5083 = vunpack.c.h.b16 %v4327
    %v5084 = vunpack.c.l.b16 %v4328
    %v5085 = vunpack.c.h.b16 %v4328
    %v5086 = vunpack.c.l.b16 %v4329
    %v5087 = vunpack.c.h.b16 %v4329
    %v5088 = vunpack.c.l.b16 %v4330
    %v5089 = vunpack.c.h.b16 %v4330
    %v5090 = vunpack.c.l.b16 %v4331
    %v5091 = vunpack.c.h.b16 %v4331
    %v5092 = vunpack.c.l.b16 %v4332
    %v5093 = vunpack.c.h.b16 %v4332
    %v5094 = vunpack.c.l.b16 %v4333
    %v5095 = vunpack.c.h.b16 %v4333
    %v5096 = vunpack.c.l.b16 %v4334
    %v5097 = vunpack.c.h.b16 %v4334
    %v5098 = vunpack.c.l.b16 %v4335
    %v5099 = vunpack.c.h.b16 %v4335
    %v5100 = vunpack.c.l.b16 %v4336
    %v5101 = vunpack.c.h.b16 %v4336
    %v5102 = vunpack.c.l.b16 %v4337
    %v5103 = vunpack.c.h.b16 %v4337
    %v5104 = vunpack.c.l.b16 %v4338
    %v5105 = vunpack.c.h.b16 %v4338
    %v5106 = vunpack.c.l.b16 %v4339
    %v5107 = vunpack.c.h.b16 %v4339
    %v5108 = vunpack.c.l.b16 %v4340
    %v5109 = vunpack.c.h.b16 %v4340
    %v5110 = vunpack.c.l.b16 %v4341
    %v5111 = vunpack.c.h.b16 %v4341
    %v5112 = vunpack.c.l.b16 %v4342
    %v5113 = vunpack.c.h.b16 %v4342
    %v5114 = vunpack.c.l.b16 %v4343
    %v5115 = vunpack.c.h.b16 %v4343
    %v5116 = vunpack.c.l.b16 %v4344
    %v5117 = vunpack.c.h.b16 %v4344
    %v5118 = vunpack.c.l.b16 %v4345
    %v5119 = vunpack.c.h.b16 %v4345
    %v5120 = vunpack.c.l.b16 %v4346
    %v5121 = vunpack.c.h.b16 %v4346
    %v5122 = vunpack.c.l.b16 %v4347
    %v5123 = vunpack.c.h.b16 %v4347
    %v5124 = vunpack.c.l.b16 %v4348
    %v5125 = vunpack.c.h.b16 %v4348
    %v5126 = vunpack.c.l.b16 %v4349
    %v5127 = vunpack.c.h.b16 %v4349
    %v5128 = vunpack.c.l.b16 %v4350
    %v5129 = vunpack.c.h.b16 %v4350
    %v5130 = vunpack.c.l.b16 %v4351
    %v5131 = vunpack.c.h.b16 %v4351
    %v5132 = vunpack.c.l.b16 %v4352
    %v5133 = vunpack.c.h.b16 %v4352
    %v5134 = vunpack.c.l.b16 %v4353
    %v5135 = vunpack.c.h.b16 %v4353
    %v5136 = vunpack.c.l.b16 %v4354
    %v5137 = vunpack.c.h.b16 %v4354
    %v5138 = vunpack.c.l.b16 %v4355
    %v5139 = vunpack.c.h.b16 %v4355
    %v5140 = vunpack.c.l.b16 %v4356
    %v5141 = vunpack.c.h.b16 %v4356
    %v5142 = vunpack.c.l.b16 %v4357
    %v5143 = vunpack.c.h.b16 %v4357
    %v5144 = vunpack.c.l.b16 %v4358
    %v5145 = vunpack.c.h.b16 %v4358
    %v5146 = vunpack.c.l.b16 %v4359
    %v5147 = vunpack.c.h.b16 %v4359
    %v5148 = vunpack.c.l.b16 %v4360
    %v5149 = vunpack.c.h.b16 %v4360
    %v5150 = vunpack.c.l.b16 %v4361
    %v5151 = vunpack.c.h.b16 %v4361
    %v5152 = vunpack.c.l.b16 %v4362
    %v5153 = vunpack.c.h.b16 %v4362
    %v5154 = vunpack.c.l.b16 %v4363
    %v5155 = vunpack.c.h.b16 %v4363
    %v5156 = vunpack.c.l.b16 %v4364
    %v5157 = vunpack.c.h.b16 %v4364
    %v5158 = vunpack.c.l.b16 %v4365
    %v5159 = vunpack.c.h.b16 %v4365
    %v5160 = vunpack.c.l.b16 %v4366
    %v5161 = vunpack.c.h.b16 %v4366
    %v5162 = vunpack.c.l.b16 %v4367
    %v5163 = vunpack.c.h.b16 %v4367
    %v5164 = vunpack.c.l.b16 %v4368
    %v5165 = vunpack.c.h.b16 %v4368
    %v5166 = vunpack.c.l.b16 %v4369
    %v5167 = vunpack.c.h.b16 %v4369
    %v5168 = vunpack.c.l.b16 %v4370
    %v5169 = vunpack.c.h.b16 %v4370
    %v5170 = vunpack.c.l.b16 %v4371
    %v5171 = vunpack.c.h.b16 %v4371
    %v5172 = vunpack.c.l.b16 %v4372
    %v5173 = vunpack.c.h.b16 %v4372
    %v5174 = vunpack.c.l.b16 %v4373
    %v5175 = vunpack.c.h.b16 %v4373
    %v5176 = vunpack.c.l.b16 %v4374
    %v5177 = vunpack.c.h.b16 %v4374
    %v5178 = vunpack.c.l.b16 %v4375
    %v5179 = vunpack.c.h.b16 %v4375
    %v5180 = vunpack.c.l.b16 %v4376
    %v5181 = vunpack.c.h.b16 %v4376
    %v5182 = vunpack.c.l.b16 %v4377
    %v5183 = vunpack.c.h.b16 %v4377
    %v5184 = vunpack.c.l.b16 %v4378
    %v5185 = vunpack.c.h.b16 %v4378
    %v5186 = vunpack.c.l.b16 %v4379
    %v5187 = vunpack.c.h.b16 %v4379
    %v5188 = vunpack.c.l.b16 %v4380
    %v5189 = vunpack.c.h.b16 %v4380
    %v5190 = vunpack.c.l.b16 %v4381
    %v5191 = vunpack.c.h.b16 %v4381
    %v5192 = vunpack.c.l.b16 %v4382
    %v5193 = vunpack.c.h.b16 %v4382
    %v5194 = vunpack.c.l.b16 %v4383
    %v5195 = vunpack.c.h.b16 %v4383
    %v5196 = vunpack.c.l.b16 %v4384
    %v5197 = vunpack.c.h.b16 %v4384
    %v5198 = vunpack.c.l.b16 %v4385
    %v5199 = vunpack.c.h.b16 %v4385
    %v5200 = vunpack.c.l.b16 %v4386
    %v5201 = vunpack.c.h.b16 %v4386
    %v5202 = vunpack.c.l.b16 %v4387
    %v5203 = vunpack.c.h.b16 %v4387
    %v5204 = vunpack.c.l.b16 %v4388
    %v5205 = vunpack.c.h.b16 %v4388
    %v5206 = vunpack.c.l.b16 %v4389
    %v5207 = vunpack.c.h.b16 %v4389
    %v5208 = vunpack.c.l.b16 %v4390
    %v5209 = vunpack.c.h.b16 %v4390
    %v5210 = vunpack.c.l.b16 %v4391
    %v5211 = vunpack.c.h.b16 %v4391
    %v5212 = vunpack.c.l.b16 %v4392
    %v5213 = vunpack.c.h.b16 %v4392
    %v5214 = vunpack.c.l.b16 %v4393
    %v5215 = vunpack.c.h.b16 %v4393
    %v5216 = vunpack.c.l.b16 %v4394
    %v5217 = vunpack.c.h.b16 %v4394
    %v5218 = vunpack.c.l.b16 %v4395
    %v5219 = vunpack.c.h.b16 %v4395
    %v5220 = vunpack.c.l.b16 %v4396
    %v5221 = vunpack.c.h.b16 %v4396
    %v5222 = vunpack.c.l.b16 %v4397
    %v5223 = vunpack.c.h.b16 %v4397
    %v5224 = vunpack.c.l.b16 %v4398
    %v5225 = vunpack.c.h.b16 %v4398
    %v5226 = vunpack.c.l.b16 %v4399
    %v5227 = vunpack.c.h.b16 %v4399
    %v5228 = vunpack.c.l.b16 %v4400
    %v5229 = vunpack.c.h.b16 %v4400
    %v5230 = vunpack.c.l.b16 %v4401
    %v5231 = vunpack.c.h.b16 %v4401
    %v5232 = vunpack.c.l.b16 %v4402
    %v5233 = vunpack.c.h.b16 %v4402
    %v5234 = vunpack.c.l.b16 %v4403
    %v5235 = vunpack.c.h.b16 %v4403
    %v5236 = vunpack.c.l.b16 %v4404
    %v5237 = vunpack.c.h.b16 %v4404
    %v5238 = vunpack.c.l.b16 %v4405
    %v5239 = vunpack.c.h.b16 %v4405
    %v5240 = vunpack.c.l.b16 %v4406
    %v5241 = vunpack.c.h.b16 %v4406
    %v5242 = vunpack.c.l.b16 %v4407
    %v5243 = vunpack.c.h.b16 %v4407
    %v5244 = vunpack.c.l.b16 %v4408
    %v5245 = vunpack.c.h.b16 %v4408
    %v5246 = vunpack.c.l.b16 %v4409
    %v5247 = vunpack.c.h.b16 %v4409
    %v5248 = vunpack.c.l.b16 %v4410
    %v5249 = vunpack.c.h.b16 %v4410
    %v5250 = vunpack.c.l.b16 %v4411
    %v5251 = vunpack.c.h.b16 %v4411
    %v5252 = vunpack.c.l.b16 %v4412
    %v5253 = vunpack.c.h.b16 %v4412
    %v5254 = vunpack.c.l.b16 %v4413
    %v5255 = vunpack.c.h.b16 %v4413
    %v5256 = vunpack.c.l.b16 %v4414
    %v5257 = vunpack.c.h.b16 %v4414
    %v5258 = vunpack.c.l.b16 %v4415
    %v5259 = vunpack.c.h.b16 %v4415
    %v5260 = vunpack.c.l.b16 %v4416
    %v5261 = vunpack.c.h.b16 %v4416
    %v5262 = vunpack.c.l.b16 %v4417
    %v5263 = vunpack.c.h.b16 %v4417
    %v5264 = vunpack.c.l.b16 %v4418
    %v5265 = vunpack.c.h.b16 %v4418
    %v5266 = vunpack.c.l.b16 %v4419
    %v5267 = vunpack.c.h.b16 %v4419
    %v5268 = vunpack.c.l.b16 %v4420
    %v5269 = vunpack.c.h.b16 %v4420
    %v5270 = vunpack.c.l.b16 %v4421
    %v5271 = vunpack.c.h.b16 %v4421
    %v5272 = vunpack.c.l.b16 %v4422
    %v5273 = vunpack.c.h.b16 %v4422
    %v5274 = vunpack.c.l.b16 %v4423
    %v5275 = vunpack.c.h.b16 %v4423
    %v5276 = vunpack.c.l.b16 %v4424
    %v5277 = vunpack.c.h.b16 %v4424
    %v5278 = vunpack.c.l.b16 %v4425
    %v5279 = vunpack.c.h.b16 %v4425
    %v5280 = vunpack.c.l.b16 %v4426
    %v5281 = vunpack.c.h.b16 %v4426
    %v5282 = vunpack.c.l.b16 %v4427
    %v5283 = vunpack.c.h.b16 %v4427
    %v5284 = vunpack.c.l.b16 %v4428
    %v5285 = vunpack.c.h.b16 %v4428
    %v5286 = vunpack.c.l.b16 %v4429
    %v5287 = vunpack.c.h.b16 %v4429
    %v5288 = vunpack.c.l.b16 %v4430
    %v5289 = vunpack.c.h.b16 %v4430
    %v5290 = vunpack.c.l.b16 %v4431
    %v5291 = vunpack.c.h.b16 %v4431
    %v5292 = vunpack.c.l.b16 %v4432
    %v5293 = vunpack.c.h.b16 %v4432
    %v5294 = vunpack.c.l.b16 %v4433
    %v5295 = vunpack.c.h.b16 %v4433
    %v5296 = vunpack.c.l.b16 %v4434
    %v5297 = vunpack.c.h.b16 %v4434
    %v5298 = vunpack.c.l.b16 %v4435
    %v5299 = vunpack.c.h.b16 %v4435
    %v5300 = vunpack.c.l.b16 %v4436
    %v5301 = vunpack.c.h.b16 %v4436
    %v5302 = vunpack.c.l.b16 %v4437
    %v5303 = vunpack.c.h.b16 %v4437
    %v5304 = vunpack.c.l.b16 %v4438
    %v5305 = vunpack.c.h.b16 %v4438
    %v5306 = vunpack.c.l.b16 %v4439
    %v5307 = vunpack.c.h.b16 %v4439
    %v5308 = vunpack.c.l.b16 %v4440
    %v5309 = vunpack.c.h.b16 %v4440
    %v5310 = vunpack.c.l.b16 %v4441
    %v5311 = vunpack.c.h.b16 %v4441
    %v5312 = vunpack.c.l.b16 %v4442
    %v5313 = vunpack.c.h.b16 %v4442
    %v5314 = vunpack.c.l.b16 %v4443
    %v5315 = vunpack.c.h.b16 %v4443
    %v5316 = vunpack.c.l.b16 %v4444
    %v5317 = vunpack.c.h.b16 %v4444
    %v5318 = vunpack.c.l.b16 %v4445
    %v5319 = vunpack.c.h.b16 %v4445
    %v5320 = vunpack.c.l.b16 %v4446
    %v5321 = vunpack.c.h.b16 %v4446
    %v5322 = vunpack.c.l.b16 %v4447
    %v5323 = vunpack.c.h.b16 %v4447
    %v5324 = vunpack.c.l.b16 %v4448
    %v5325 = vunpack.c.h.b16 %v4448
    %v5326 = vunpack.c.l.b16 %v4449
    %v5327 = vunpack.c.h.b16 %v4449
    %v5328 = vunpack.c.l.b16 %v4450
    %v5329 = vunpack.c.h.b16 %v4450
    %v5330 = vunpack.c.l.b16 %v4451
    %v5331 = vunpack.c.h.b16 %v4451
    %v5332 = vunpack.c.l.b16 %v4452
    %v5333 = vunpack.c.h.b16 %v4452
    %v5334 = vunpack.c.l.b16 %v4453
    %v5335 = vunpack.c.h.b16 %v4453
    %v5336 = vunpack.c.l.b16 %v4454
    %v5337 = vunpack.c.h.b16 %v4454
    %v5338 = vunpack.c.l.b16 %v4455
    %v5339 = vunpack.c.h.b16 %v4455
    %v5340 = vunpack.c.l.b16 %v4456
    %v5341 = vunpack.c.h.b16 %v4456
    %v5342 = vunpack.c.l.b16 %v4457
    %v5343 = vunpack.c.h.b16 %v4457
    %v5344 = vunpack.c.l.b16 %v4458
    %v5345 = vunpack.c.h.b16 %v4458
    %v5346 = vunpack.c.l.b16 %v4459
    %v5347 = vunpack.c.h.b16 %v4459
    %v5348 = vunpack.c.l.b16 %v4460
    %v5349 = vunpack.c.h.b16 %v4460
    %v5350 = vunpack.c.l.b16 %v4461
    %v5351 = vunpack.c.h.b16 %v4461
    %v5352 = vunpack.c.l.b16 %v4462
    %v5353 = vunpack.c.h.b16 %v4462
    %v5354 = vunpack.c.l.b16 %v4463
    %v5355 = vunpack.c.h.b16 %v4463
    %v5356 = vunpack.c.l.b16 %v4464
    %v5357 = vunpack.c.h.b16 %v4464
    %v5358 = vunpack.c.l.b16 %v4465
    %v5359 = vunpack.c.h.b16 %v4465
    %v5360 = vunpack.c.l.b16 %v4466
    %v5361 = vunpack.c.h.b16 %v4466
    %v5362 = vunpack.c.l.b16 %v4467
    %v5363 = vunpack.c.h.b16 %v4467
    %v5364 = vunpack.c.l.b16 %v4468
    %v5365 = vunpack.c.h.b16 %v4468
    %v5366 = vunpack.c.l.b16 %v4469
    %v5367 = vunpack.c.h.b16 %v4469
    %v5368 = vunpack.c.l.b16 %v4470
    %v5369 = vunpack.c.h.b16 %v4470
    %v5370 = vunpack.c.l.b16 %v4471
    %v5371 = vunpack.c.h.b16 %v4471
    %v5372 = vunpack.c.l.b16 %v4472
    %v5373 = vunpack.c.h.b16 %v4472
    %v5374 = vunpack.c.l.b16 %v4473
    %v5375 = vunpack.c.h.b16 %v4473
    %v5376 = vunpack.c.l.b16 %v4474
    %v5377 = vunpack.c.h.b16 %v4474
    %v5378 = vunpack.c.l.b16 %v4475
    %v5379 = vunpack.c.h.b16 %v4475
    %v5380 = vunpack.c.l.b16 %v4476
    %v5381 = vunpack.c.h.b16 %v4476
    %v5382 = vunpack.c.l.b16 %v4477
    %v5383 = vunpack.c.h.b16 %v4477
    %v5384 = vunpack.c.l.b16 %v4478
    %v5385 = vunpack.c.h.b16 %v4478
    %v5386 = vunpack.c.l.b16 %v4479
    %v5387 = vunpack.c.h.b16 %v4479
    %v5388 = vunpack.c.l.b16 %v4480
    %v5389 = vunpack.c.h.b16 %v4480
    %v5390 = vunpack.c.l.b16 %v4481
    %v5391 = vunpack.c.h.b16 %v4481
    %v5392 = vunpack.c.l.b16 %v4482
    %v5393 = vunpack.c.h.b16 %v4482
    %v5394 = vunpack.c.l.b16 %v4483
    %v5395 = vunpack.c.h.b16 %v4483
    %v5396 = vunpack.c.l.b16 %v4484
    %v5397 = vunpack.c.h.b16 %v4484
    %v5398 = vunpack.c.l.b16 %v4485
    %v5399 = vunpack.c.h.b16 %v4485
    %v5400 = vunpack.c.l.b16 %v4486
    %v5401 = vunpack.c.h.b16 %v4486
    %v5402 = vunpack.c.l.b16 %v4487
    %v5403 = vunpack.c.h.b16 %v4487
    %v5404 = vunpack.c.l.b16 %v4488
    %v5405 = vunpack.c.h.b16 %v4488
    %v5406 = vunpack.c.l.b16 %v4489
    %v5407 = vunpack.c.h.b16 %v4489
    %v5408 = vunpack.c.l.b16 %v4490
    %v5409 = vunpack.c.h.b16 %v4490
    %v5410 = vunpack.c.l.b16 %v4491
    %v5411 = vunpack.c.h.b16 %v4491
    %v5412 = vunpack.c.l.b16 %v4492
    %v5413 = vunpack.c.h.b16 %v4492
    %v5414 = vunpack.c.l.b16 %v4493
    %v5415 = vunpack.c.h.b16 %v4493
    %v5416 = vunpack.c.l.b16 %v4494
    %v5417 = vunpack.c.h.b16 %v4494
    %v5418 = vunpack.c.l.b16 %v4495
    %v5419 = vunpack.c.h.b16 %v4495
    %v5420 = vunpack.c.l.b16 %v4496
    %v5421 = vunpack.c.h.b16 %v4496
    %v5422 = vunpack.c.l.b16 %v4497
    %v5423 = vunpack.c.h.b16 %v4497
    %v5424 = vunpack.c.l.b16 %v4498
    %v5425 = vunpack.c.h.b16 %v4498
    %v5426 = vunpack.c.l.b16 %v4499
    %v5427 = vunpack.c.h.b16 %v4499
    %v5428 = vpack.c.b16 %v4864, %v4852
    %v5429 = vpack.c.b16 %v4865, %v4853
    %v5430 = vpack.c.b16 %v4866, %v4854
    %v5431 = vpack.c.b16 %v4867, %v4855
    %v5432 = vpack.c.b16 %v4868, %v4856
    %v5433 = vpack.c.b16 %v4869, %v4857
    %v5434 = vpack.c.b16 %v4870, %v4858
    %v5435 = vpack.c.b16 %v4871, %v4859
    %v5436 = vpack.c.b16 %v4872, %v4860
    %v5437 = vpack.c.b16 %v4873, %v4861
    %v5438 = vpack.c.b16 %v4874, %v4862
    %v5439 = vpack.c.b16 %v4875, %v4863
    %v5440 = vpack.c.b16 %v4888, %v4876
    %v5441 = vpack.c.b16 %v4889, %v4877
    %v5442 = vpack.c.b16 %v4890, %v4878
    %v5443 = vpack.c.b16 %v4891, %v4879
    %v5444 = vpack.c.b16 %v4892, %v4880
    %v5445 = vpack.c.b16 %v4893, %v4881
    %v5446 = vpack.c.b16 %v4894, %v4882
    %v5447 = vpack.c.b16 %v4895, %v4883
    %v5448 = vpack.c.b16 %v4896, %v4884
    %v5449 = vpack.c.b16 %v4897, %v4885
    %v5450 = vpack.c.b16 %v4898, %v4886
    %v5451 = vpack.c.b16 %v4899, %v4887
    %v5452 = vpack.c.b16 %v4912, %v4900
    %v5453 = vpack.c.b16 %v4913, %v4901
    %v5454 = vpack.c.b16 %v4914, %v4902
    %v5455 = vpack.c.b16 %v4915, %v4903
    %v5456 = vpack.c.b16 %v4916, %v4904
    %v5457 = vpack.c.b16 %v4917, %v4905
    %v5458 = vpack.c.b16 %v4918, %v4906
    %v5459 = vpack.c.b16 %v4919, %v4907
    %v5460 = vpack.c.b16 %v4920, %v4908
    %v5461 = vpack.c.b16 %v4921, %v4909
    %v5462 = vpack.c.b16 %v4922, %v4910
    %v5463 = vpack.c.b16 %v4923, %v4911
    %v5464 = vpack.c.b16 %v4936, %v4924
    %v5465 = vpack.c.b16 %v4937, %v4925
    %v5466 = vpack.c.b16 %v4938, %v4926
    %v5467 = vpack.c.b16 %v4939, %v4927
    %v5468 = vpack.c.b16 %v4940, %v4928
    %v5469 = vpack.c.b16 %v4941, %v4929
    %v5470 = vpack.c.b16 %v4942, %v4930
    %v5471 = vpack.c.b16 %v4943, %v4931
    %v5472 = vpack.c.b16 %v4944, %v4932
    %v5473 = vpack.c.b16 %v4945, %v4933
    %v5474 = vpack.c.b16 %v4946, %v4934
    %v5475 = vpack.c.b16 %v4947, %v4935
    %v5476 = vpack.c.b16 %v4960, %v4948
    %v5477 = vpack.c.b16 %v4961, %v4949
    %v5478 = vpack.c.b16 %v4962, %v4950
    %v5479 = vpack.c.b16 %v4963, %v4951
    %v5480 = vpack.c.b16 %v4964, %v4952
    %v5481 = vpack.c.b16 %v4965, %v4953
    %v5482 = vpack.c.b16 %v4966, %v4954
    %v5483 = vpack.c.b16 %v4967, %v4955
    %v5484 = vpack.c.b16 %v4968, %v4956
    %v5485 = vpack.c.b16 %v4969, %v4957
    %v5486 = vpack.c.b16 %v4970, %v4958
    %v5487 = vpack.c.b16 %v4971, %v4959
    %v5488 = vpack.c.b16 %v4984, %v4972
    %v5489 = vpack.c.b16 %v4985, %v4973
    %v5490 = vpack.c.b16 %v4986, %v4974
    %v5491 = vpack.c.b16 %v4987, %v4975
    %v5492 = vpack.c.b16 %v4988, %v4976
    %v5493 = vpack.c.b16 %v4989, %v4977
    %v5494 = vpack.c.b16 %v4990, %v4978
    %v5495 = vpack.c.b16 %v4991, %v4979
    %v5496 = vpack.c.b16 %v4992, %v4980
    %v5497 = vpack.c.b16 %v4993, %v4981
    %v5498 = vpack.c.b16 %v4994, %v4982
    %v5499 = vpack.c.b16 %v4995, %v4983
    %v5500 = vpack.c.b16 %v5008, %v4996
    %v5501 = vpack.c.b16 %v5009, %v4997
    %v5502 = vpack.c.b16 %v5010, %v4998
    %v5503 = vpack.c.b16 %v5011, %v4999
    %v5504 = vpack.c.b16 %v5012, %v5000
    %v5505 = vpack.c.b16 %v5013, %v5001
    %v5506 = vpack.c.b16 %v5014, %v5002
    %v5507 = vpack.c.b16 %v5015, %v5003
    %v5508 = vpack.c.b16 %v5016, %v5004
    %v5509 = vpack.c.b16 %v5017, %v5005
    %v5510 = vpack.c.b16 %v5018, %v5006
    %v5511 = vpack.c.b16 %v5019, %v5007
    %v5512 = vpack.c.b16 %v5032, %v5020
    %v5513 = vpack.c.b16 %v5033, %v5021
    %v5514 = vpack.c.b16 %v5034, %v5022
    %v5515 = vpack.c.b16 %v5035, %v5023
    %v5516 = vpack.c.b16 %v5036, %v5024
    %v5517 = vpack.c.b16 %v5037, %v5025
    %v5518 = vpack.c.b16 %v5038, %v5026
    %v5519 = vpack.c.b16 %v5039, %v5027
    %v5520 = vpack.c.b16 %v5040, %v5028
    %v5521 = vpack.c.b16 %v5041, %v5029
    %v5522 = vpack.c.b16 %v5042, %v5030
    %v5523 = vpack.c.b16 %v5043, %v5031
    %v5524 = vpack.c.b16 %v5056, %v5044
    %v5525 = vpack.c.b16 %v5057, %v5045
    %v5526 = vpack.c.b16 %v5058, %v5046
    %v5527 = vpack.c.b16 %v5059, %v5047
    %v5528 = vpack.c.b16 %v5060, %v5048
    %v5529 = vpack.c.b16 %v5061, %v5049
    %v5530 = vpack.c.b16 %v5062, %v5050
    %v5531 = vpack.c.b16 %v5063, %v5051
    %v5532 = vpack.c.b16 %v5064, %v5052
    %v5533 = vpack.c.b16 %v5065, %v5053
    %v5534 = vpack.c.b16 %v5066, %v5054
    %v5535 = vpack.c.b16 %v5067, %v5055
    %v5536 = vpack.c.b16 %v5080, %v5068
    %v5537 = vpack.c.b16 %v5081, %v5069
    %v5538 = vpack.c.b16 %v5082, %v5070
    %v5539 = vpack.c.b16 %v5083, %v5071
    %v5540 = vpack.c.b16 %v5084, %v5072
    %v5541 = vpack.c.b16 %v5085, %v5073
    %v5542 = vpack.c.b16 %v5086, %v5074
    %v5543 = vpack.c.b16 %v5087, %v5075
    %v5544 = vpack.c.b16 %v5088, %v5076
    %v5545 = vpack.c.b16 %v5089, %v5077
    %v5546 = vpack.c.b16 %v5090, %v5078
    %v5547 = vpack.c.b16 %v5091, %v5079
    %v5548 = vpack.c.b16 %v5104, %v5092
    %v5549 = vpack.c.b16 %v5105, %v5093
    %v5550 = vpack.c.b16 %v5106, %v5094
    %v5551 = vpack.c.b16 %v5107, %v5095
    %v5552 = vpack.c.b16 %v5108, %v5096
    %v5553 = vpack.c.b16 %v5109, %v5097
    %v5554 = vpack.c.b16 %v5110, %v5098
    %v5555 = vpack.c.b16 %v5111, %v5099
    %v5556 = vpack.c.b16 %v5112, %v5100
    %v5557 = vpack.c.b16 %v5113, %v5101
    %v5558 = vpack.c.b16 %v5114, %v5102
    %v5559 = vpack.c.b16 %v5115, %v5103
    %v5560 = vpack.c.b16 %v5128, %v5116
    %v5561 = vpack.c.b16 %v5129, %v5117
    %v5562 = vpack.c.b16 %v5130, %v5118
    %v5563 = vpack.c.b16 %v5131, %v5119
    %v5564 = vpack.c.b16 %v5132, %v5120
    %v5565 = vpack.c.b16 %v5133, %v5121
    %v5566 = vpack.c.b16 %v5134, %v5122
    %v5567 = vpack.c.b16 %v5135, %v5123
    %v5568 = vpack.c.b16 %v5136, %v5124
    %v5569 = vpack.c.b16 %v5137, %v5125
    %v5570 = vpack.c.b16 %v5138, %v5126
    %v5571 = vpack.c.b16 %v5139, %v5127
    %v5572 = vpack.c.b16 %v5152, %v5140
    %v5573 = vpack.c.b16 %v5153, %v5141
    %v5574 = vpack.c.b16 %v5154, %v5142
    %v5575 = vpack.c.b16 %v5155, %v5143
    %v5576 = vpack.c.b16 %v5156, %v5144
    %v5577 = vpack.c.b16 %v5157, %v5145
    %v5578 = vpack.c.b16 %v5158, %v5146
    %v5579 = vpack.c.b16 %v5159, %v5147
    %v5580 = vpack.c.b16 %v5160, %v5148
    %v5581 = vpack.c.b16 %v5161, %v5149
    %v5582 = vpack.c.b16 %v5162, %v5150
    %v5583 = vpack.c.b16 %v5163, %v5151
    %v5584 = vpack.c.b16 %v5176, %v5164
    %v5585 = vpack.c.b16 %v5177, %v5165
    %v5586 = vpack.c.b16 %v5178, %v5166
    %v5587 = vpack.c.b16 %v5179, %v5167
    %v5588 = vpack.c.b16 %v5180, %v5168
    %v5589 = vpack.c.b16 %v5181, %v5169
    %v5590 = vpack.c.b16 %v5182, %v5170
    %v5591 = vpack.c.b16 %v5183, %v5171
    %v5592 = vpack.c.b16 %v5184, %v5172
    %v5593 = vpack.c.b16 %v5185, %v5173
    %v5594 = vpack.c.b16 %v5186, %v5174
    %v5595 = vpack.c.b16 %v5187, %v5175
    %v5596 = vpack.c.b16 %v5200, %v5188
    %v5597 = vpack.c.b16 %v5201, %v5189
    %v5598 = vpack.c.b16 %v5202, %v5190
    %v5599 = vpack.c.b16 %v5203, %v5191
    %v5600 = vpack.c.b16 %v5204, %v5192
    %v5601 = vpack.c.b16 %v5205, %v5193
    %v5602 = vpack.c.b16 %v5206, %v5194
    %v5603 = vpack.c.b16 %v5207, %v5195
    %v5604 = vpack.c.b16 %v5208, %v5196
    %v5605 = vpack.c.b16 %v5209, %v5197
    %v5606 = vpack.c.b16 %v5210, %v5198
    %v5607 = vpack.c.b16 %v5211, %v5199
    %v5608 = vpack.c.b16 %v5224, %v5212
    %v5609 = vpack.c.b16 %v5225, %v5213
    %v5610 = vpack.c.b16 %v5226, %v5214
    %v5611 = vpack.c.b16 %v5227, %v5215
    %v5612 = vpack.c.b16 %v5228, %v5216
    %v5613 = vpack.c.b16 %v5229, %v5217
    %v5614 = vpack.c.b16 %v5230, %v5218
    %v5615 = vpack.c.b16 %v5231, %v5219
    %v5616 = vpack.c.b16 %v5232, %v5220
    %v5617 = vpack.c.b16 %v5233, %v5221
    %v5618 = vpack.c.b16 %v5234, %v5222
    %v5619 = vpack.c.b16 %v5235, %v5223
    %v5620 = vpack.c.b16 %v5248, %v5236
    %v5621 = vpack.c.b16 %v5249, %v5237
    %v5622 = vpack.c.b16 %v5250, %v5238
    %v5623 = vpack.c.b16 %v5251, %v5239
    %v5624 = vpack.c.b16 %v5252, %v5240
    %v5625 = vpack.c.b16 %v5253, %v5241
    %v5626 = vpack.c.b16 %v5254, %v5242
    %v5627 = vpack.c.b16 %v5255, %v5243
    %v5628 = vpack.c.b16 %v5256, %v5244
    %v5629 = vpack.c.b16 %v5257, %v5245
    %v5630 = vpack.c.b16 %v5258, %v5246
    %v5631 = vpack.c.b16 %v5259, %v5247
    %v5632 = vpack.c.b16 %v5272, %v5260
    %v5633 = vpack.c.b16 %v5273, %v5261
    %v5634 = vpack.c.b16 %v5274, %v5262
    %v5635 = vpack.c.b16 %v5275, %v5263
    %v5636 = vpack.c.b16 %v5276, %v5264
    %v5637 = vpack.c.b16 %v5277, %v5265
    %v5638 = vpack.c.b16 %v5278, %v5266
    %v5639 = vpack.c.b16 %v5279, %v5267
    %v5640 = vpack.c.b16 %v5280, %v5268
    %v5641 = vpack.c.b16 %v5281, %v5269
    %v5642 = vpack.c.b16 %v5282, %v5270
    %v5643 = vpack.c.b16 %v5283, %v5271
    %v5644 = vpack.c.b16 %v5296, %v5284
    %v5645 = vpack.c.b16 %v5297, %v5285
    %v5646 = vpack.c.b16 %v5298, %v5286
    %v5647 = vpack.c.b16 %v5299, %v5287
    %v5648 = vpack.c.b16 %v5300, %v5288
    %v5649 = vpack.c.b16 %v5301, %v5289
    %v5650 = vpack.c.b16 %v5302, %v5290
    %v5651 = vpack.c.b16 %v5303, %v5291
    %v5652 = vpack.c.b16 %v5304, %v5292
    %v5653 = vpack.c.b16 %v5305, %v5293
    %v5654 = vpack.c.b16 %v5306, %v5294
    %v5655 = vpack.c.b16 %v5307, %v5295
    %v5656 = vpack.c.b16 %v5320, %v5308
    %v5657 = vpack.c.b16 %v5321, %v5309
    %v5658 = vpack.c.b16 %v5322, %v5310
    %v5659 = vpack.c.b16 %v5323, %v5311
    %v5660 = vpack.c.b16 %v5324, %v5312
    %v5661 = vpack.c.b16 %v5325, %v5313
    %v5662 = vpack.c.b16 %v5326, %v5314
    %v5663 = vpack.c.b16 %v5327, %v5315
    %v5664 = vpack.c.b16 %v5328, %v5316
    %v5665 = vpack.c.b16 %v5329, %v5317
    %v5666 = vpack.c.b16 %v5330, %v5318
    %v5667 = vpack.c.b16 %v5331, %v5319
    %v5668 = vpack.c.b16 %v5344, %v5332
    %v5669 = vpack.c.b16 %v5345, %v5333
    %v5670 = vpack.c.b16 %v5346, %v5334
    %v5671 = vpack.c.b16 %v5347, %v5335
    %v5672 = vpack.c.b16 %v5348, %v5336
    %v5673 = vpack.c.b16 %v5349, %v5337
    %v5674 = vpack.c.b16 %v5350, %v5338
    %v5675 = vpack.c.b16 %v5351, %v5339
    %v5676 = vpack.c.b16 %v5352, %v5340
    %v5677 = vpack.c.b16 %v5353, %v5341
    %v5678 = vpack.c.b16 %v5354, %v5342
    %v5679 = vpack.c.b16 %v5355, %v5343
    %v5680 = vpack.c.b16 %v5368, %v5356
    %v5681 = vpack.c.b16 %v5369, %v5357
    %v5682 = vpack.c.b16 %v5370, %v5358
    %v5683 = vpack.c.b16 %v5371, %v5359
    %v5684 = vpack.c.b16 %v5372, %v5360
    %v5685 = vpack.c.b16 %v5373, %v5361
    %v5686 = vpack.c.b16 %v5374, %v5362
    %v5687 = vpack.c.b16 %v5375, %v5363
    %v5688 = vpack.c.b16 %v5376, %v5364
    %v5689 = vpack.c.b16 %v5377, %v5365
    %v5690 = vpack.c.b16 %v5378, %v5366
    %v5691 = vpack.c.b16 %v5379, %v5367
    %v5692 = vpack.c.b16 %v5392, %v5380
    %v5693 = vpack.c.b16 %v5393, %v5381
    %v5694 = vpack.c.b16 %v5394, %v5382
    %v5695 = vpack.c.b16 %v5395, %v5383
    %v5696 = vpack.c.b16 %v5396, %v5384
    %v5697 = vpack.c.b16 %v5397, %v5385
    %v5698 = vpack.c.b16 %v5398, %v5386
    %v5699 = vpack.c.b16 %v5399, %v5387
    %v5700 = vpack.c.b16 %v5400, %v5388
    %v5701 = vpack.c.b16 %v5401, %v5389
    %v5702 = vpack.c.b16 %v5402, %v5390
    %v5703 = vpack.c.b16 %v5403, %v5391
    %v5704 = vpack.c.b16 %v5416, %v5404
    %v5705 = vpack.c.b16 %v5417, %v5405
    %v5706 = vpack.c.b16 %v5418, %v5406
    %v5707 = vpack.c.b16 %v5419, %v5407
    %v5708 = vpack.c.b16 %v5420, %v5408
    %v5709 = vpack.c.b16 %v5421, %v5409
    %v5710 = vpack.c.b16 %v5422, %v5410
    %v5711 = vpack.c.b16 %v5423, %v5411
    %v5712 = vpack.c.b16 %v5424, %v5412
    %v5713 = vpack.c.b16 %v5425, %v5413
    %v5714 = vpack.c.b16 %v5426, %v5414
    %v5715 = vpack.c.b16 %v5427, %v5415
    %6004 = vmatprep.subr.bf16.mxu0 %v5429
    %6005 = vmatpush1.bf16.msra.mxu0 %v5428
    %6006 = vmatprep.subr.bf16.mxu0 %v5441
    %6007 = vmatpush1.bf16.msra.mxu0 %v5440
    %6008 = vmatprep.subr.bf16.mxu0 %v5453
    %6009 = vmatpush1.bf16.msra.mxu0 %v5452
    %6010 = vmatprep.subr.bf16.mxu0 %v5465
    %6011 = vmatpush1.bf16.msra.mxu0 %v5464
    %6012 = vmatprep.subr.bf16.mxu0 %v5477
    %6013 = vmatpush1.bf16.msra.mxu0 %v5476
    %6014 = vmatprep.subr.bf16.mxu0 %v5489
    %6015 = vmatpush1.bf16.msra.mxu0 %v5488
    %6016 = vmatprep.subr.bf16.mxu0 %v5501
    %6017 = vmatpush1.bf16.msra.mxu0 %v5500
    %6018 = vmatprep.subr.bf16.mxu0 %v5513
    %6019 = vmatpush1.bf16.msra.mxu0 %v5512
    %6020 = vmatprep.subr.bf16.mxu0 %v5525
    %6021 = vmatpush1.bf16.msra.mxu0 %v5524
    %6022 = vmatprep.subr.bf16.mxu0 %v5537
    %6023 = vmatpush1.bf16.msra.mxu0 %v5536
    %6024 = vmatprep.subr.bf16.mxu0 %v5549
    %6025 = vmatpush1.bf16.msra.mxu0 %v5548
    %6026 = vmatprep.subr.bf16.mxu0 %v5561
    %6027 = vmatpush1.bf16.msra.mxu0 %v5560
    %6028 = vmatprep.subr.bf16.mxu0 %v5573
    %6029 = vmatpush1.bf16.msra.mxu0 %v5572
    %6030 = vmatprep.subr.bf16.mxu0 %v5585
    %6031 = vmatpush1.bf16.msra.mxu0 %v5584
    %6032 = vmatprep.subr.bf16.mxu0 %v5597
    %6033 = vmatpush1.bf16.msra.mxu0 %v5596
    %6034 = vmatprep.subr.bf16.mxu0 %v5609
    %6035 = vmatpush1.bf16.msra.mxu0 %v5608
    %6036 = vmatprep.mubr.bf16.mxu0 %v4210
    %6037 = vmatmul.mubr.bf16.gmra.mrb[0].mxu0 %v4209
    %v6038 = vpop.f32.mrb[0].mxu0
    %v6039 = vadd.f32 %v4507, %v6038
    %v6040 = vpop.f32.mrb[0].mxu0
    %v6041 = vadd.f32 %v4511, %v6040
    %v6042 = vpop.f32.mrb[0].mxu0
    %v6043 = vadd.f32 %v4507, %v6042
    %v6044 = vpop.f32.mrb[0].mxu0
    %v6045 = vadd.f32 %v4511, %v6044
    %6046 = vdwg.mxu0
    %6047 = vmatprep.subr.bf16.mxu0 %v5621
    %6048 = vmatpush1.bf16.msra.mxu0 %v5620
    %6049 = vmatprep.subr.bf16.mxu0 %v5633
    %6050 = vmatpush1.bf16.msra.mxu0 %v5632
    %6051 = vmatprep.subr.bf16.mxu0 %v5645
    %6052 = vmatpush1.bf16.msra.mxu0 %v5644
    %6053 = vmatprep.subr.bf16.mxu0 %v5657
    %6054 = vmatpush1.bf16.msra.mxu0 %v5656
    %6055 = vmatprep.subr.bf16.mxu0 %v5669
    %6056 = vmatpush1.bf16.msra.mxu0 %v5668
    %6057 = vmatprep.subr.bf16.mxu0 %v5681
    %6058 = vmatpush1.bf16.msra.mxu0 %v5680
    %6059 = vmatprep.subr.bf16.mxu0 %v5693
    %6060 = vmatpush1.bf16.msra.mxu0 %v5692
    %6061 = vmatprep.subr.bf16.mxu0 %v5705
    %6062 = vmatpush1.bf16.msra.mxu0 %v5704
    %6063 = vmatprep.subr.bf16.mxu0 0
    %6064 = vmatpush1.bf16.msra.mxu0 0
    %6065 = vmatprep.subr.bf16.mxu0 0
    %6066 = vmatpush1.bf16.msra.mxu0 0
    %6067 = vmatprep.subr.bf16.mxu0 0
    %6068 = vmatpush1.bf16.msra.mxu0 0
    %6069 = vmatprep.subr.bf16.mxu0 0
    %6070 = vmatpush1.bf16.msra.mxu0 0
    %6071 = vmatprep.subr.bf16.mxu0 0
    %6072 = vmatpush1.bf16.msra.mxu0 0
    %6073 = vmatprep.subr.bf16.mxu0 0
    %6074 = vmatpush1.bf16.msra.mxu0 0
    %6075 = vmatprep.subr.bf16.mxu0 0
    %6076 = vmatpush1.bf16.msra.mxu0 0
    %6077 = vmatprep.subr.bf16.mxu0 0
    %6078 = vmatpush1.bf16.msra.mxu0 0
    %6079 = vmatprep.mubr.bf16.mxu0 0
    %6080 = vmatmul.mubr.bf16.gmra.mrb[0].mxu0 %v4211
    %v6081 = vpop.f32.mrb[0].mxu0
    %v6082 = vadd.f32 %v6039, %v6081
    %v6083 = vpop.f32.mrb[0].mxu0
    %v6084 = vadd.f32 %v6041, %v6083
    %v6085 = vpop.f32.mrb[0].mxu0
    %v6086 = vadd.f32 %v6043, %v6085
    %v6087 = vpop.f32.mrb[0].mxu0
    %v6088 = vadd.f32 %v6045, %v6087
    %6089 = vdwg.mxu0
    %6090 = vmatprep.subr.bf16.mxu0 %v5431
    %6091 = vmatpush1.bf16.msra.mxu0 %v5430
    %6092 = vmatprep.subr.bf16.mxu0 %v5443
    %6093 = vmatpush1.bf16.msra.mxu0 %v5442
    %6094 = vmatprep.subr.bf16.mxu0 %v5455
    %6095 = vmatpush1.bf16.msra.mxu0 %v5454
    %6096 = vmatprep.subr.bf16.mxu0 %v5467
    %6097 = vmatpush1.bf16.msra.mxu0 %v5466
    %6098 = vmatprep.subr.bf16.mxu0 %v5479
    %6099 = vmatpush1.bf16.msra.mxu0 %v5478
    %6100 = vmatprep.subr.bf16.mxu0 %v5491
    %6101 = vmatpush1.bf16.msra.mxu0 %v5490
    %6102 = vmatprep.subr.bf16.mxu0 %v5503
    %6103 = vmatpush1.bf16.msra.mxu0 %v5502
    %6104 = vmatprep.subr.bf16.mxu0 %v5515
    %6105 = vmatpush1.bf16.msra.mxu0 %v5514
    %6106 = vmatprep.subr.bf16.mxu0 %v5527
    %6107 = vmatpush1.bf16.msra.mxu0 %v5526
    %6108 = vmatprep.subr.bf16.mxu0 %v5539
    %6109 = vmatpush1.bf16.msra.mxu0 %v5538
    %6110 = vmatprep.subr.bf16.mxu0 %v5551
    %6111 = vmatpush1.bf16.msra.mxu0 %v5550
    %6112 = vmatprep.subr.bf16.mxu0 %v5563
    %6113 = vmatpush1.bf16.msra.mxu0 %v5562
    %6114 = vmatprep.subr.bf16.mxu0 %v5575
    %6115 = vmatpush1.bf16.msra.mxu0 %v5574
    %6116 = vmatprep.subr.bf16.mxu0 %v5587
    %6117 = vmatpush1.bf16.msra.mxu0 %v5586
    %6118 = vmatprep.subr.bf16.mxu0 %v5599
    %6119 = vmatpush1.bf16.msra.mxu0 %v5598
    %6120 = vmatprep.subr.bf16.mxu0 %v5611
    %6121 = vmatpush1.bf16.msra.mxu0 %v5610
    %6122 = vmatprep.mubr.bf16.mxu0 %v4210
    %6123 = vmatmul.mubr.bf16.gmra.mrb[0].mxu0 %v4209
    %v6124 = vpop.f32.mrb[0].mxu0
    %v6125 = vadd.f32 %v4515, %v6124
    %v6126 = vpop.f32.mrb[0].mxu0
    %v6127 = vadd.f32 %v4519, %v6126
    %v6128 = vpop.f32.mrb[0].mxu0
    %v6129 = vadd.f32 %v4515, %v6128
    %v6130 = vpop.f32.mrb[0].mxu0
    %v6131 = vadd.f32 %v4519, %v6130
    %6132 = vdwg.mxu0
    %6133 = vmatprep.subr.bf16.mxu0 %v5623
    %6134 = vmatpush1.bf16.msra.mxu0 %v5622
    %6135 = vmatprep.subr.bf16.mxu0 %v5635
    %6136 = vmatpush1.bf16.msra.mxu0 %v5634
    %6137 = vmatprep.subr.bf16.mxu0 %v5647
    %6138 = vmatpush1.bf16.msra.mxu0 %v5646
    %6139 = vmatprep.subr.bf16.mxu0 %v5659
    %6140 = vmatpush1.bf16.msra.mxu0 %v5658
    %6141 = vmatprep.subr.bf16.mxu0 %v5671
    %6142 = vmatpush1.bf16.msra.mxu0 %v5670
    %6143 = vmatprep.subr.bf16.mxu0 %v5683
    %6144 = vmatpush1.bf16.msra.mxu0 %v5682
    %6145 = vmatprep.subr.bf16.mxu0 %v5695
    %6146 = vmatpush1.bf16.msra.mxu0 %v5694
    %6147 = vmatprep.subr.bf16.mxu0 %v5707
    %6148 = vmatpush1.bf16.msra.mxu0 %v5706
    %6149 = vmatprep.subr.bf16.mxu0 0
    %6150 = vmatpush1.bf16.msra.mxu0 0
    %6151 = vmatprep.subr.bf16.mxu0 0
    %6152 = vmatpush1.bf16.msra.mxu0 0
    %6153 = vmatprep.subr.bf16.mxu0 0
    %6154 = vmatpush1.bf16.msra.mxu0 0
    %6155 = vmatprep.subr.bf16.mxu0 0
    %6156 = vmatpush1.bf16.msra.mxu0 0
    %6157 = vmatprep.subr.bf16.mxu0 0
    %6158 = vmatpush1.bf16.msra.mxu0 0
    %6159 = vmatprep.subr.bf16.mxu0 0
    %6160 = vmatpush1.bf16.msra.mxu0 0
    %6161 = vmatprep.subr.bf16.mxu0 0
    %6162 = vmatpush1.bf16.msra.mxu0 0
    %6163 = vmatprep.subr.bf16.mxu0 0
    %6164 = vmatpush1.bf16.msra.mxu0 0
    %6165 = vmatprep.mubr.bf16.mxu0 0
    %6166 = vmatmul.mubr.bf16.gmra.mrb[0].mxu0 %v4211
    %v6167 = vpop.f32.mrb[0].mxu0
    %v6168 = vadd.f32 %v6125, %v6167
    %v6169 = vpop.f32.mrb[0].mxu0
    %v6170 = vadd.f32 %v6127, %v6169
    %v6171 = vpop.f32.mrb[0].mxu0
    %v6172 = vadd.f32 %v6129, %v6171
    %v6173 = vpop.f32.mrb[0].mxu0
    %v6174 = vadd.f32 %v6131, %v6173
    %6175 = vdwg.mxu0
    %6176 = vmatprep.subr.bf16.mxu0 %v5433
    %6177 = vmatpush1.bf16.msra.mxu0 %v5432
    %6178 = vmatprep.subr.bf16.mxu0 %v5445
    %6179 = vmatpush1.bf16.msra.mxu0 %v5444
    %6180 = vmatprep.subr.bf16.mxu0 %v5457
    %6181 = vmatpush1.bf16.msra.mxu0 %v5456
    %6182 = vmatprep.subr.bf16.mxu0 %v5469
    %6183 = vmatpush1.bf16.msra.mxu0 %v5468
    %6184 = vmatprep.subr.bf16.mxu0 %v5481
    %6185 = vmatpush1.bf16.msra.mxu0 %v5480
    %6186 = vmatprep.subr.bf16.mxu0 %v5493
    %6187 = vmatpush1.bf16.msra.mxu0 %v5492
    %6188 = vmatprep.subr.bf16.mxu0 %v5505
    %6189 = vmatpush1.bf16.msra.mxu0 %v5504
    %6190 = vmatprep.subr.bf16.mxu0 %v5517
    %6191 = vmatpush1.bf16.msra.mxu0 %v5516
    %6192 = vmatprep.subr.bf16.mxu0 %v5529
    %6193 = vmatpush1.bf16.msra.mxu0 %v5528
    %6194 = vmatprep.subr.bf16.mxu0 %v5541
    %6195 = vmatpush1.bf16.msra.mxu0 %v5540
    %6196 = vmatprep.subr.bf16.mxu0 %v5553
    %6197 = vmatpush1.bf16.msra.mxu0 %v5552
    %6198 = vmatprep.subr.bf16.mxu0 %v5565
    %6199 = vmatpush1.bf16.msra.mxu0 %v5564
    %6200 = vmatprep.subr.bf16.mxu0 %v5577
    %6201 = vmatpush1.bf16.msra.mxu0 %v5576
    %6202 = vmatprep.subr.bf16.mxu0 %v5589
    %6203 = vmatpush1.bf16.msra.mxu0 %v5588
    %6204 = vmatprep.subr.bf16.mxu0 %v5601
    %6205 = vmatpush1.bf16.msra.mxu0 %v5600
    %6206 = vmatprep.subr.bf16.mxu0 %v5613
    %6207 = vmatpush1.bf16.msra.mxu0 %v5612
    %6208 = vmatprep.mubr.bf16.mxu0 %v4210
    %6209 = vmatmul.mubr.bf16.gmra.mrb[0].mxu0 %v4209
    %v6210 = vpop.f32.mrb[0].mxu0
    %v6211 = vadd.f32 %v4523, %v6210
    %v6212 = vpop.f32.mrb[0].mxu0
    %v6213 = vadd.f32 %v4527, %v6212
    %v6214 = vpop.f32.mrb[0].mxu0
    %v6215 = vadd.f32 %v4523, %v6214
    %v6216 = vpop.f32.mrb[0].mxu0
    %v6217 = vadd.f32 %v4527, %v6216
    %6218 = vdwg.mxu0
    %6219 = vmatprep.subr.bf16.mxu0 %v5625
    %6220 = vmatpush1.bf16.msra.mxu0 %v5624
    %6221 = vmatprep.subr.bf16.mxu0 %v5637
    %6222 = vmatpush1.bf16.msra.mxu0 %v5636
    %6223 = vmatprep.subr.bf16.mxu0 %v5649
    %6224 = vmatpush1.bf16.msra.mxu0 %v5648
    %6225 = vmatprep.subr.bf16.mxu0 %v5661
    %6226 = vmatpush1.bf16.msra.mxu0 %v5660
    %6227 = vmatprep.subr.bf16.mxu0 %v5673
    %6228 = vmatpush1.bf16.msra.mxu0 %v5672
    %6229 = vmatprep.subr.bf16.mxu0 %v5685
    %6230 = vmatpush1.bf16.msra.mxu0 %v5684
    %6231 = vmatprep.subr.bf16.mxu0 %v5697
    %6232 = vmatpush1.bf16.msra.mxu0 %v5696
    %6233 = vmatprep.subr.bf16.mxu0 %v5709
    %6234 = vmatpush1.bf16.msra.mxu0 %v5708
    %6235 = vmatprep.subr.bf16.mxu0 0
    %6236 = vmatpush1.bf16.msra.mxu0 0
    %6237 = vmatprep.subr.bf16.mxu0 0
    %6238 = vmatpush1.bf16.msra.mxu0 0
    %6239 = vmatprep.subr.bf16.mxu0 0
    %6240 = vmatpush1.bf16.msra.mxu0 0
    %6241 = vmatprep.subr.bf16.mxu0 0
    %6242 = vmatpush1.bf16.msra.mxu0 0
    %6243 = vmatprep.subr.bf16.mxu0 0
    %6244 = vmatpush1.bf16.msra.mxu0 0
    %6245 = vmatprep.subr.bf16.mxu0 0
    %6246 = vmatpush1.bf16.msra.mxu0 0
    %6247 = vmatprep.subr.bf16.mxu0 0
    %6248 = vmatpush1.bf16.msra.mxu0 0
    %6249 = vmatprep.subr.bf16.mxu0 0
    %6250 = vmatpush1.bf16.msra.mxu0 0
    %6251 = vmatprep.mubr.bf16.mxu0 0
    %6252 = vmatmul.mubr.bf16.gmra.mrb[0].mxu0 %v4211
    %v6253 = vpop.f32.mrb[0].mxu0
    %v6254 = vadd.f32 %v6211, %v6253
    %v6255 = vpop.f32.mrb[0].mxu0
    %v6256 = vadd.f32 %v6213, %v6255
    %v6257 = vpop.f32.mrb[0].mxu0
    %v6258 = vadd.f32 %v6215, %v6257
    %v6259 = vpop.f32.mrb[0].mxu0
    %v6260 = vadd.f32 %v6217, %v6259
    %6261 = vdwg.mxu0
    %6262 = vmatprep.subr.bf16.mxu0 %v5435
    %6263 = vmatpush1.bf16.msra.mxu0 %v5434
    %6264 = vmatprep.subr.bf16.mxu0 %v5447
    %6265 = vmatpush1.bf16.msra.mxu0 %v5446
    %6266 = vmatprep.subr.bf16.mxu0 %v5459
    %6267 = vmatpush1.bf16.msra.mxu0 %v5458
    %6268 = vmatprep.subr.bf16.mxu0 %v5471
    %6269 = vmatpush1.bf16.msra.mxu0 %v5470
    %6270 = vmatprep.subr.bf16.mxu0 %v5483
    %6271 = vmatpush1.bf16.msra.mxu0 %v5482
    %6272 = vmatprep.subr.bf16.mxu0 %v5495
    %6273 = vmatpush1.bf16.msra.mxu0 %v5494
    %6274 = vmatprep.subr.bf16.mxu0 %v5507
    %6275 = vmatpush1.bf16.msra.mxu0 %v5506
    %6276 = vmatprep.subr.bf16.mxu0 %v5519
    %6277 = vmatpush1.bf16.msra.mxu0 %v5518
    %6278 = vmatprep.subr.bf16.mxu0 %v5531
    %6279 = vmatpush1.bf16.msra.mxu0 %v5530
    %6280 = vmatprep.subr.bf16.mxu0 %v5543
    %6281 = vmatpush1.bf16.msra.mxu0 %v5542
    %6282 = vmatprep.subr.bf16.mxu0 %v5555
    %6283 = vmatpush1.bf16.msra.mxu0 %v5554
    %6284 = vmatprep.subr.bf16.mxu0 %v5567
    %6285 = vmatpush1.bf16.msra.mxu0 %v5566
    %6286 = vmatprep.subr.bf16.mxu0 %v5579
    %6287 = vmatpush1.bf16.msra.mxu0 %v5578
    %6288 = vmatprep.subr.bf16.mxu0 %v5591
    %6289 = vmatpush1.bf16.msra.mxu0 %v5590
    %6290 = vmatprep.subr.bf16.mxu0 %v5603
    %6291 = vmatpush1.bf16.msra.mxu0 %v5602
    %6292 = vmatprep.subr.bf16.mxu0 %v5615
    %6293 = vmatpush1.bf16.msra.mxu0 %v5614
    %6294 = vmatprep.mubr.bf16.mxu0 %v4210
    %6295 = vmatmul.mubr.bf16.gmra.mrb[0].mxu0 %v4209
    %v6296 = vpop.f32.mrb[0].mxu0
    %v6297 = vadd.f32 %v4531, %v6296
    %v6298 = vpop.f32.mrb[0].mxu0
    %v6299 = vadd.f32 %v4535, %v6298
    %v6300 = vpop.f32.mrb[0].mxu0
    %v6301 = vadd.f32 %v4531, %v6300
    %v6302 = vpop.f32.mrb[0].mxu0
    %v6303 = vadd.f32 %v4535, %v6302
    %6304 = vdwg.mxu0
    %6305 = vmatprep.subr.bf16.mxu0 %v5627
    %6306 = vmatpush1.bf16.msra.mxu0 %v5626
    %6307 = vmatprep.subr.bf16.mxu0 %v5639
    %6308 = vmatpush1.bf16.msra.mxu0 %v5638
    %6309 = vmatprep.subr.bf16.mxu0 %v5651
    %6310 = vmatpush1.bf16.msra.mxu0 %v5650
    %6311 = vmatprep.subr.bf16.mxu0 %v5663
    %6312 = vmatpush1.bf16.msra.mxu0 %v5662
    %6313 = vmatprep.subr.bf16.mxu0 %v5675
    %6314 = vmatpush1.bf16.msra.mxu0 %v5674
    %6315 = vmatprep.subr.bf16.mxu0 %v5687
    %6316 = vmatpush1.bf16.msra.mxu0 %v5686
    %6317 = vmatprep.subr.bf16.mxu0 %v5699
    %6318 = vmatpush1.bf16.msra.mxu0 %v5698
    %6319 = vmatprep.subr.bf16.mxu0 %v5711
    %6320 = vmatpush1.bf16.msra.mxu0 %v5710
    %6321 = vmatprep.subr.bf16.mxu0 0
    %6322 = vmatpush1.bf16.msra.mxu0 0
    %6323 = vmatprep.subr.bf16.mxu0 0
    %6324 = vmatpush1.bf16.msra.mxu0 0
    %6325 = vmatprep.subr.bf16.mxu0 0
    %6326 = vmatpush1.bf16.msra.mxu0 0
    %6327 = vmatprep.subr.bf16.mxu0 0
    %6328 = vmatpush1.bf16.msra.mxu0 0
    %6329 = vmatprep.subr.bf16.mxu0 0
    %6330 = vmatpush1.bf16.msra.mxu0 0
    %6331 = vmatprep.subr.bf16.mxu0 0
    %6332 = vmatpush1.bf16.msra.mxu0 0
    %6333 = vmatprep.subr.bf16.mxu0 0
    %6334 = vmatpush1.bf16.msra.mxu0 0
    %6335 = vmatprep.subr.bf16.mxu0 0
    %6336 = vmatpush1.bf16.msra.mxu0 0
    %6337 = vmatprep.mubr.bf16.mxu0 0
    %6338 = vmatmul.mubr.bf16.gmra.mrb[0].mxu0 %v4211
    %v6339 = vpop.f32.mrb[0].mxu0
    %v6340 = vadd.f32 %v6297, %v6339
    %v6341 = vpop.f32.mrb[0].mxu0
    %v6342 = vadd.f32 %v6299, %v6341
    %v6343 = vpop.f32.mrb[0].mxu0
    %v6344 = vadd.f32 %v6301, %v6343
    %v6345 = vpop.f32.mrb[0].mxu0
    %v6346 = vadd.f32 %v6303, %v6345
    %6347 = vdwg.mxu0
    %6348 = vmatprep.subr.bf16.mxu0 %v5437
    %6349 = vmatpush1.bf16.msra.mxu0 %v5436
    %6350 = vmatprep.subr.bf16.mxu0 %v5449
    %6351 = vmatpush1.bf16.msra.mxu0 %v5448
    %6352 = vmatprep.subr.bf16.mxu0 %v5461
    %6353 = vmatpush1.bf16.msra.mxu0 %v5460
    %6354 = vmatprep.subr.bf16.mxu0 %v5473
    %6355 = vmatpush1.bf16.msra.mxu0 %v5472
    %6356 = vmatprep.subr.bf16.mxu0 %v5485
    %6357 = vmatpush1.bf16.msra.mxu0 %v5484
    %6358 = vmatprep.subr.bf16.mxu0 %v5497
    %6359 = vmatpush1.bf16.msra.mxu0 %v5496
    %6360 = vmatprep.subr.bf16.mxu0 %v5509
    %6361 = vmatpush1.bf16.msra.mxu0 %v5508
    %6362 = vmatprep.subr.bf16.mxu0 %v5521
    %6363 = vmatpush1.bf16.msra.mxu0 %v5520
    %6364 = vmatprep.subr.bf16.mxu0 %v5533
    %6365 = vmatpush1.bf16.msra.mxu0 %v5532
    %6366 = vmatprep.subr.bf16.mxu0 %v5545
    %6367 = vmatpush1.bf16.msra.mxu0 %v5544
    %6368 = vmatprep.subr.bf16.mxu0 %v5557
    %6369 = vmatpush1.bf16.msra.mxu0 %v5556
    %6370 = vmatprep.subr.bf16.mxu0 %v5569
    %6371 = vmatpush1.bf16.msra.mxu0 %v5568
    %6372 = vmatprep.subr.bf16.mxu0 %v5581
    %6373 = vmatpush1.bf16.msra.mxu0 %v5580
    %6374 = vmatprep.subr.bf16.mxu0 %v5593
    %6375 = vmatpush1.bf16.msra.mxu0 %v5592
    %6376 = vmatprep.subr.bf16.mxu0 %v5605
    %6377 = vmatpush1.bf16.msra.mxu0 %v5604
    %6378 = vmatprep.subr.bf16.mxu0 %v5617
    %6379 = vmatpush1.bf16.msra.mxu0 %v5616
    %6380 = vmatprep.mubr.bf16.mxu0 %v4210
    %6381 = vmatmul.mubr.bf16.gmra.mrb[0].mxu0 %v4209
    %v6382 = vpop.f32.mrb[0].mxu0
    %v6383 = vadd.f32 %v4539, %v6382
    %v6384 = vpop.f32.mrb[0].mxu0
    %v6385 = vadd.f32 %v4543, %v6384
    %v6386 = vpop.f32.mrb[0].mxu0
    %v6387 = vadd.f32 %v4539, %v6386
    %v6388 = vpop.f32.mrb[0].mxu0
    %v6389 = vadd.f32 %v4543, %v6388
    %6390 = vdwg.mxu0
    %6391 = vmatprep.subr.bf16.mxu0 %v5629
    %6392 = vmatpush1.bf16.msra.mxu0 %v5628
    %6393 = vmatprep.subr.bf16.mxu0 %v5641
    %6394 = vmatpush1.bf16.msra.mxu0 %v5640
    %6395 = vmatprep.subr.bf16.mxu0 %v5653
    %6396 = vmatpush1.bf16.msra.mxu0 %v5652
    %6397 = vmatprep.subr.bf16.mxu0 %v5665
    %6398 = vmatpush1.bf16.msra.mxu0 %v5664
    %6399 = vmatprep.subr.bf16.mxu0 %v5677
    %6400 = vmatpush1.bf16.msra.mxu0 %v5676
    %6401 = vmatprep.subr.bf16.mxu0 %v5689
    %6402 = vmatpush1.bf16.msra.mxu0 %v5688
    %6403 = vmatprep.subr.bf16.mxu0 %v5701
    %6404 = vmatpush1.bf16.msra.mxu0 %v5700
    %6405 = vmatprep.subr.bf16.mxu0 %v5713
    %6406 = vmatpush1.bf16.msra.mxu0 %v5712
    %6407 = vmatprep.subr.bf16.mxu0 0
    %6408 = vmatpush1.bf16.msra.mxu0 0
    %6409 = vmatprep.subr.bf16.mxu0 0
    %6410 = vmatpush1.bf16.msra.mxu0 0
    %6411 = vmatprep.subr.bf16.mxu0 0
    %6412 = vmatpush1.bf16.msra.mxu0 0
    %6413 = vmatprep.subr.bf16.mxu0 0
    %6414 = vmatpush1.bf16.msra.mxu0 0
    %6415 = vmatprep.subr.bf16.mxu0 0
    %6416 = vmatpush1.bf16.msra.mxu0 0
    %6417 = vmatprep.subr.bf16.mxu0 0
    %6418 = vmatpush1.bf16.msra.mxu0 0
    %6419 = vmatprep.subr.bf16.mxu0 0
    %6420 = vmatpush1.bf16.msra.mxu0 0
    %6421 = vmatprep.subr.bf16.mxu0 0
    %6422 = vmatpush1.bf16.msra.mxu0 0
    %6423 = vmatprep.mubr.bf16.mxu0 0
    %6424 = vmatmul.mubr.bf16.gmra.mrb[0].mxu0 %v4211
    %v6425 = vpop.f32.mrb[0].mxu0
    %v6426 = vadd.f32 %v6383, %v6425
    %v6427 = vpop.f32.mrb[0].mxu0
    %v6428 = vadd.f32 %v6385, %v6427
    %v6429 = vpop.f32.mrb[0].mxu0
    %v6430 = vadd.f32 %v6387, %v6429
    %v6431 = vpop.f32.mrb[0].mxu0
    %v6432 = vadd.f32 %v6389, %v6431
    %6433 = vdwg.mxu0
    %6434 = vmatprep.subr.bf16.mxu0 %v5439
    %6435 = vmatpush1.bf16.msra.mxu0 %v5438
    %6436 = vmatprep.subr.bf16.mxu0 %v5451
    %6437 = vmatpush1.bf16.msra.mxu0 %v5450
    %6438 = vmatprep.subr.bf16.mxu0 %v5463
    %6439 = vmatpush1.bf16.msra.mxu0 %v5462
    %6440 = vmatprep.subr.bf16.mxu0 %v5475
    %6441 = vmatpush1.bf16.msra.mxu0 %v5474
    %6442 = vmatprep.subr.bf16.mxu0 %v5487
    %6443 = vmatpush1.bf16.msra.mxu0 %v5486
    %6444 = vmatprep.subr.bf16.mxu0 %v5499
    %6445 = vmatpush1.bf16.msra.mxu0 %v5498
    %6446 = vmatprep.subr.bf16.mxu0 %v5511
    %6447 = vmatpush1.bf16.msra.mxu0 %v5510
    %6448 = vmatprep.subr.bf16.mxu0 %v5523
    %6449 = vmatpush1.bf16.msra.mxu0 %v5522
    %6450 = vmatprep.subr.bf16.mxu0 %v5535
    %6451 = vmatpush1.bf16.msra.mxu0 %v5534
    %6452 = vmatprep.subr.bf16.mxu0 %v5547
    %6453 = vmatpush1.bf16.msra.mxu0 %v5546
    %6454 = vmatprep.subr.bf16.mxu0 %v5559
    %6455 = vmatpush1.bf16.msra.mxu0 %v5558
    %6456 = vmatprep.subr.bf16.mxu0 %v5571
    %6457 = vmatpush1.bf16.msra.mxu0 %v5570
    %6458 = vmatprep.subr.bf16.mxu0 %v5583
    %6459 = vmatpush1.bf16.msra.mxu0 %v5582
    %6460 = vmatprep.subr.bf16.mxu0 %v5595
    %6461 = vmatpush1.bf16.msra.mxu0 %v5594
    %6462 = vmatprep.subr.bf16.mxu0 %v5607
    %6463 = vmatpush1.bf16.msra.mxu0 %v5606
    %6464 = vmatprep.subr.bf16.mxu0 %v5619
    %6465 = vmatpush1.bf16.msra.mxu0 %v5618
    %6466 = vmatprep.mubr.bf16.mxu0 %v4210
    %6467 = vmatmul.mubr.bf16.gmra.mrb[0].mxu0 %v4209
    %v6468 = vpop.f32.mrb[0].mxu0
    %v6469 = vadd.f32 %v4547, %v6468
    %v6470 = vpop.f32.mrb[0].mxu0
    %v6471 = vadd.f32 %v4551, %v6470
    %v6472 = vpop.f32.mrb[0].mxu0
    %v6473 = vadd.f32 %v4547, %v6472
    %v6474 = vpop.f32.mrb[0].mxu0
    %v6475 = vadd.f32 %v4551, %v6474
    %6476 = vdwg.mxu0
    %6477 = vmatprep.subr.bf16.mxu0 %v5631
    %6478 = vmatpush1.bf16.msra.mxu0 %v5630
    %6479 = vmatprep.subr.bf16.mxu0 %v5643
    %6480 = vmatpush1.bf16.msra.mxu0 %v5642
    %6481 = vmatprep.subr.bf16.mxu0 %v5655
    %6482 = vmatpush1.bf16.msra.mxu0 %v5654
    %6483 = vmatprep.subr.bf16.mxu0 %v5667
    %6484 = vmatpush1.bf16.msra.mxu0 %v5666
    %6485 = vmatprep.subr.bf16.mxu0 %v5679
    %6486 = vmatpush1.bf16.msra.mxu0 %v5678
    %6487 = vmatprep.subr.bf16.mxu0 %v5691
    %6488 = vmatpush1.bf16.msra.mxu0 %v5690
    %6489 = vmatprep.subr.bf16.mxu0 %v5703
    %6490 = vmatpush1.bf16.msra.mxu0 %v5702
    %6491 = vmatprep.subr.bf16.mxu0 %v5715
    %6492 = vmatpush1.bf16.msra.mxu0 %v5714
    %6493 = vmatprep.subr.bf16.mxu0 0
    %6494 = vmatpush1.bf16.msra.mxu0 0
    %6495 = vmatprep.subr.bf16.mxu0 0
    %6496 = vmatpush1.bf16.msra.mxu0 0
    %6497 = vmatprep.subr.bf16.mxu0 0
    %6498 = vmatpush1.bf16.msra.mxu0 0
    %6499 = vmatprep.subr.bf16.mxu0 0
    %6500 = vmatpush1.bf16.msra.mxu0 0
    %6501 = vmatprep.subr.bf16.mxu0 0
    %6502 = vmatpush1.bf16.msra.mxu0 0
    %6503 = vmatprep.subr.bf16.mxu0 0
    %6504 = vmatpush1.bf16.msra.mxu0 0
    %6505 = vmatprep.subr.bf16.mxu0 0
    %6506 = vmatpush1.bf16.msra.mxu0 0
    %6507 = vmatprep.subr.bf16.mxu0 0
    %6508 = vmatpush1.bf16.msra.mxu0 0
    %6509 = vmatprep.mubr.bf16.mxu0 0
    %6510 = vmatmul.mubr.bf16.gmra.mrb[0].mxu0 %v4211
    %v6511 = vpop.f32.mrb[0].mxu0
    %v6512 = vadd.f32 %v6469, %v6511
    %v6513 = vpop.f32.mrb[0].mxu0
    %v6514 = vadd.f32 %v6471, %v6513
    %v6515 = vpop.f32.mrb[0].mxu0
    %v6516 = vadd.f32 %v6473, %v6515
    %v6517 = vpop.f32.mrb[0].mxu0
    %v6518 = vadd.f32 %v6475, %v6517
    %6519 = vdwg.mxu0
    %v6520 = vmax.f32 %v6082, 0.0
    %v6521 = vmax.f32 %v6084, 0.0
    %v6522 = vmax.f32 %v6168, 0.0
    %v6523 = vmax.f32 %v6170, 0.0
    %v6524 = vmax.f32 %v6254, 0.0
    %v6525 = vmax.f32 %v6256, 0.0
    %v6526 = vmax.f32 %v6340, 0.0
    %v6527 = vmax.f32 %v6342, 0.0
    %v6528 = vmax.f32 %v6426, 0.0
    %v6529 = vmax.f32 %v6428, 0.0
    %v6530 = vmax.f32 %v6512, 0.0
    %v6531 = vmax.f32 %v6514, 0.0
    %v6532 = vmax.f32 %v6086, 0.0
    %v6533 = vmax.f32 %v6088, 0.0
    %v6534 = vmax.f32 %v6172, 0.0
    %v6535 = vmax.f32 %v6174, 0.0
    %v6536 = vmax.f32 %v6258, 0.0
    %v6537 = vmax.f32 %v6260, 0.0
    %v6538 = vmax.f32 %v6344, 0.0
    %v6539 = vmax.f32 %v6346, 0.0
    %v6540 = vmax.f32 %v6430, 0.0
    %v6541 = vmax.f32 %v6432, 0.0
    %v6542 = vmax.f32 %v6516, 0.0
    %v6543 = vmax.f32 %v6518, 0.0
    %v6544 = vpack.c.bf16 %v6532, %v6520
    %v6545 = vpack.c.bf16 %v6533, %v6521
    %v6546 = vpack.c.bf16 %v6534, %v6522
    %v6547 = vpack.c.bf16 %v6535, %v6523
    %v6548 = vpack.c.bf16 %v6536, %v6524
    %v6549 = vpack.c.bf16 %v6537, %v6525
    %v6550 = vpack.c.bf16 %v6538, %v6526
    %v6551 = vpack.c.bf16 %v6539, %v6527
    %v6552 = vpack.c.bf16 %v6540, %v6528
    %v6553 = vpack.c.bf16 %v6541, %v6529
    %v6554 = vpack.c.bf16 %v6542, %v6530
    %v6555 = vpack.c.bf16 %v6543, %v6531
    %v6556 = vld [vmem:[#allocation19] sm:$0xff]
    %v6557 = vld [vmem:[#allocation19 + $0x8] sm:$0xf]
    %v6558 = vld [vmem:[#allocation19 + $0xc] sm:$0xff]
    %v6559 = vld [vmem:[#allocation19 + $0x14] sm:$0xf]
    %v6560 = vld [vmem:[#allocation19 + $0x18] sm:$0xff]
    %v6561 = vld [vmem:[#allocation19 + $0x20] sm:$0xf]
    %v6562 = vld [vmem:[#allocation19 + $0x24] sm:$0xff]
    %v6563 = vld [vmem:[#allocation19 + $0x2c] sm:$0xf]
    %v6564 = vld [vmem:[#allocation19 + $0x30] sm:$0xff]
    %v6565 = vld [vmem:[#allocation19 + $0x38] sm:$0xf]
    %v6566 = vld [vmem:[#allocation19 + $0x3c] sm:$0xff]
    %v6567 = vld [vmem:[#allocation19 + $0x44] sm:$0xf]
    %v6568 = vld [vmem:[#allocation19 + $0x48] sm:$0xff]
    %v6569 = vld [vmem:[#allocation19 + $0x50] sm:$0xf]
    %v6570 = vld [vmem:[#allocation19 + $0x54] sm:$0xff]
    %v6571 = vld [vmem:[#allocation19 + $0x5c] sm:$0xf]
    %v6572 = vld [vmem:[#allocation19 + $0x60] sm:$0xff]
    %v6573 = vld [vmem:[#allocation19 + $0x68] sm:$0xf]
    %v6574 = vld [vmem:[#allocation19 + $0x6c] sm:$0xff]
    %v6575 = vld [vmem:[#allocation19 + $0x74] sm:$0xf]
    %v6576 = vld [vmem:[#allocation19 + $0x78] sm:$0xff]
    %v6577 = vld [vmem:[#allocation19 + $0x80] sm:$0xf]
    %v6578 = vld [vmem:[#allocation19 + $0x84] sm:$0xff]
    %v6579 = vld [vmem:[#allocation19 + $0x8c] sm:$0xf]
    %v6580 = vld [vmem:[#allocation19 + $0x90] sm:$0xff]
    %v6581 = vld [vmem:[#allocation19 + $0x98] sm:$0xf]
    %v6582 = vld [vmem:[#allocation19 + $0x9c] sm:$0xff]
    %v6583 = vld [vmem:[#allocation19 + $0xa4] sm:$0xf]
    %v6584 = vld [vmem:[#allocation19 + $0xa8] sm:$0xff]
    %v6585 = vld [vmem:[#allocation19 + $0xb0] sm:$0xf]
    %v6586 = vld [vmem:[#allocation19 + $0xb4] sm:$0xff]
    %v6587 = vld [vmem:[#allocation19 + $0xbc] sm:$0xf]
    %v6588 = vld [vmem:[#allocation19 + $0xc0] sm:$0xff]
    %v6589 = vld [vmem:[#allocation19 + $0xc8] sm:$0xf]
    %v6590 = vld [vmem:[#allocation19 + $0xcc] sm:$0xff]
    %v6591 = vld [vmem:[#allocation19 + $0xd4] sm:$0xf]
    %v6592 = vld [vmem:[#allocation19 + $0xd8] sm:$0xff]
    %v6593 = vld [vmem:[#allocation19 + $0xe0] sm:$0xf]
    %v6594 = vld [vmem:[#allocation19 + $0xe4] sm:$0xff]
    %v6595 = vld [vmem:[#allocation19 + $0xec] sm:$0xf]
    %v6596 = vld [vmem:[#allocation19 + $0xf0] sm:$0xff]
    %v6597 = vld [vmem:[#allocation19 + $0xf8] sm:$0xf]
    %v6598 = vld [vmem:[#allocation19 + $0xfc] sm:$0xff]
    %v6599 = vld [vmem:[#allocation19 + $0x104] sm:$0xf]
    %v6600 = vld [vmem:[#allocation19 + $0x108] sm:$0xff]
    %v6601 = vld [vmem:[#allocation19 + $0x110] sm:$0xf]
    %v6602 = vld [vmem:[#allocation19 + $0x114] sm:$0xff]
    %v6603 = vld [vmem:[#allocation19 + $0x11c] sm:$0xf]
    %v6604 = vld [vmem:[#allocation19 + $0x120] sm:$0xff]
    %v6605 = vld [vmem:[#allocation19 + $0x128] sm:$0xf]
    %v6606 = vld [vmem:[#allocation19 + $0x12c] sm:$0xff]
    %v6607 = vld [vmem:[#allocation19 + $0x134] sm:$0xf]
    %v6608 = vld [vmem:[#allocation19 + $0x138] sm:$0xff]
    %v6609 = vld [vmem:[#allocation19 + $0x140] sm:$0xf]
    %v6610 = vld [vmem:[#allocation19 + $0x144] sm:$0xff]
    %v6611 = vld [vmem:[#allocation19 + $0x14c] sm:$0xf]
    %v6612 = vld [vmem:[#allocation19 + $0x150] sm:$0xff]
    %v6613 = vld [vmem:[#allocation19 + $0x158] sm:$0xf]
    %v6614 = vld [vmem:[#allocation19 + $0x15c] sm:$0xff]
    %v6615 = vld [vmem:[#allocation19 + $0x164] sm:$0xf]
    %v6616 = vld [vmem:[#allocation19 + $0x168] sm:$0xff]
    %v6617 = vld [vmem:[#allocation19 + $0x170] sm:$0xf]
    %v6618 = vld [vmem:[#allocation19 + $0x174] sm:$0xff]
    %v6619 = vld [vmem:[#allocation19 + $0x17c] sm:$0xf]
    %v6620 = vld [vmem:[#allocation19 + $0x180] sm:$0xff]
    %v6621 = vld [vmem:[#allocation19 + $0x188] sm:$0xf]
    %v6622 = vld [vmem:[#allocation19 + $0x18c] sm:$0xff]
    %v6623 = vld [vmem:[#allocation19 + $0x194] sm:$0xf]
    %v6624 = vld [vmem:[#allocation19 + $0x198] sm:$0xff]
    %v6625 = vld [vmem:[#allocation19 + $0x1a0] sm:$0xf]
    %v6626 = vld [vmem:[#allocation19 + $0x1a4] sm:$0xff]
    %v6627 = vld [vmem:[#allocation19 + $0x1ac] sm:$0xf]
    %v6628 = vld [vmem:[#allocation19 + $0x1b0] sm:$0xff]
    %v6629 = vld [vmem:[#allocation19 + $0x1b8] sm:$0xf]
    %v6630 = vld [vmem:[#allocation19 + $0x1bc] sm:$0xff]
    %v6631 = vld [vmem:[#allocation19 + $0x1c4] sm:$0xf]
    %v6632 = vld [vmem:[#allocation19 + $0x1c8] sm:$0xff]
    %v6633 = vld [vmem:[#allocation19 + $0x1d0] sm:$0xf]
    %v6634 = vld [vmem:[#allocation19 + $0x1d4] sm:$0xff]
    %v6635 = vld [vmem:[#allocation19 + $0x1dc] sm:$0xf]
    %v6636 = vld [vmem:[#allocation19 + $0x1e0] sm:$0xff]
    %v6637 = vld [vmem:[#allocation19 + $0x1e8] sm:$0xf]
    %v6638 = vld [vmem:[#allocation19 + $0x1ec] sm:$0xff]
    %v6639 = vld [vmem:[#allocation19 + $0x1f4] sm:$0xf]
    %v6640 = vld [vmem:[#allocation19 + $0x1f8] sm:$0xff]
    %v6641 = vld [vmem:[#allocation19 + $0x200] sm:$0xf]
    %v6642 = vld [vmem:[#allocation19 + $0x204] sm:$0xff]
    %v6643 = vld [vmem:[#allocation19 + $0x20c] sm:$0xf]
    %v6644 = vld [vmem:[#allocation19 + $0x210] sm:$0xff]
    %v6645 = vld [vmem:[#allocation19 + $0x218] sm:$0xf]
    %v6646 = vld [vmem:[#allocation19 + $0x21c] sm:$0xff]
    %v6647 = vld [vmem:[#allocation19 + $0x224] sm:$0xf]
    %v6648 = vld [vmem:[#allocation19 + $0x228] sm:$0xff]
    %v6649 = vld [vmem:[#allocation19 + $0x230] sm:$0xf]
    %v6650 = vld [vmem:[#allocation19 + $0x234] sm:$0xff]
    %v6651 = vld [vmem:[#allocation19 + $0x23c] sm:$0xf]
    %v6652 = vld [vmem:[#allocation19 + $0x240] sm:$0xff]
    %v6653 = vld [vmem:[#allocation19 + $0x248] sm:$0xf]
    %v6654 = vld [vmem:[#allocation19 + $0x24c] sm:$0xff]
    %v6655 = vld [vmem:[#allocation19 + $0x254] sm:$0xf]
    %v6656 = vld [vmem:[#allocation19 + $0x258] sm:$0xff]
    %v6657 = vld [vmem:[#allocation19 + $0x260] sm:$0xf]
    %v6658 = vld [vmem:[#allocation19 + $0x264] sm:$0xff]
    %v6659 = vld [vmem:[#allocation19 + $0x26c] sm:$0xf]
    %v6660 = vld [vmem:[#allocation19 + $0x270] sm:$0xff]
    %v6661 = vld [vmem:[#allocation19 + $0x278] sm:$0xf]
    %v6662 = vld [vmem:[#allocation19 + $0x27c] sm:$0xff]
    %v6663 = vld [vmem:[#allocation19 + $0x284] sm:$0xf]
    %v6664 = vld [vmem:[#allocation19 + $0x288] sm:$0xff]
    %v6665 = vld [vmem:[#allocation19 + $0x290] sm:$0xf]
    %v6666 = vld [vmem:[#allocation19 + $0x294] sm:$0xff]
    %v6667 = vld [vmem:[#allocation19 + $0x29c] sm:$0xf]
    %v6668 = vld [vmem:[#allocation19 + $0x2a0] sm:$0xff]
    %v6669 = vld [vmem:[#allocation19 + $0x2a8] sm:$0xf]
    %v6670 = vld [vmem:[#allocation19 + $0x2ac] sm:$0xff]
    %v6671 = vld [vmem:[#allocation19 + $0x2b4] sm:$0xf]
    %v6672 = vld [vmem:[#allocation19 + $0x2b8] sm:$0xff]
    %v6673 = vld [vmem:[#allocation19 + $0x2c0] sm:$0xf]
    %v6674 = vld [vmem:[#allocation19 + $0x2c4] sm:$0xff]
    %v6675 = vld [vmem:[#allocation19 + $0x2cc] sm:$0xf]
    %v6676 = vld [vmem:[#allocation19 + $0x2d0] sm:$0xff]
    %v6677 = vld [vmem:[#allocation19 + $0x2d8] sm:$0xf]
    %v6678 = vld [vmem:[#allocation19 + $0x2dc] sm:$0xff]
    %v6679 = vld [vmem:[#allocation19 + $0x2e4] sm:$0xf]
    %v6680 = vld [vmem:[#allocation19 + $0x2e8] sm:$0xff]
    %v6681 = vld [vmem:[#allocation19 + $0x2f0] sm:$0xf]
    %v6682 = vld [vmem:[#allocation19 + $0x2f4] sm:$0xff]
    %v6683 = vld [vmem:[#allocation19 + $0x2fc] sm:$0xf]
    %v6684 = vld [vmem:[#allocation19 + $0x300] sm:$0xff]
    %v6685 = vld [vmem:[#allocation19 + $0x308] sm:$0xf]
    %v6686 = vld [vmem:[#allocation19 + $0x30c] sm:$0xff]
    %v6687 = vld [vmem:[#allocation19 + $0x314] sm:$0xf]
    %v6688 = vld [vmem:[#allocation19 + $0x318] sm:$0xff]
    %v6689 = vld [vmem:[#allocation19 + $0x320] sm:$0xf]
    %v6690 = vld [vmem:[#allocation19 + $0x324] sm:$0xff]
    %v6691 = vld [vmem:[#allocation19 + $0x32c] sm:$0xf]
    %v6692 = vld [vmem:[#allocation19 + $0x330] sm:$0xff]
    %v6693 = vld [vmem:[#allocation19 + $0x338] sm:$0xf]
    %v6694 = vld [vmem:[#allocation19 + $0x33c] sm:$0xff]
    %v6695 = vld [vmem:[#allocation19 + $0x344] sm:$0xf]
    %v6696 = vld [vmem:[#allocation19 + $0x348] sm:$0xff]
    %v6697 = vld [vmem:[#allocation19 + $0x350] sm:$0xf]
    %v6698 = vld [vmem:[#allocation19 + $0x354] sm:$0xff]
    %v6699 = vld [vmem:[#allocation19 + $0x35c] sm:$0xf]
    %v6700 = vld [vmem:[#allocation19 + $0x360] sm:$0xff]
    %v6701 = vld [vmem:[#allocation19 + $0x368] sm:$0xf]
    %v6702 = vld [vmem:[#allocation19 + $0x36c] sm:$0xff]
    %v6703 = vld [vmem:[#allocation19 + $0x374] sm:$0xf]
    %v6704 = vld [vmem:[#allocation19 + $0x378] sm:$0xff]
    %v6705 = vld [vmem:[#allocation19 + $0x380] sm:$0xf]
    %v6706 = vld [vmem:[#allocation19 + $0x384] sm:$0xff]
    %v6707 = vld [vmem:[#allocation19 + $0x38c] sm:$0xf]
    %v6708 = vld [vmem:[#allocation19 + $0x390] sm:$0xff]
    %v6709 = vld [vmem:[#allocation19 + $0x398] sm:$0xf]
    %v6710 = vld [vmem:[#allocation19 + $0x39c] sm:$0xff]
    %v6711 = vld [vmem:[#allocation19 + $0x3a4] sm:$0xf]
    %v6712 = vld [vmem:[#allocation19 + $0x3a8] sm:$0xff]
    %v6713 = vld [vmem:[#allocation19 + $0x3b0] sm:$0xf]
    %v6714 = vld [vmem:[#allocation19 + $0x3b4] sm:$0xff]
    %v6715 = vld [vmem:[#allocation19 + $0x3bc] sm:$0xf]
    %v6716 = vld [vmem:[#allocation19 + $0x3c0] sm:$0xff]
    %v6717 = vld [vmem:[#allocation19 + $0x3c8] sm:$0xf]
    %v6718 = vld [vmem:[#allocation19 + $0x3cc] sm:$0xff]
    %v6719 = vld [vmem:[#allocation19 + $0x3d4] sm:$0xf]
    %v6720 = vld [vmem:[#allocation19 + $0x3d8] sm:$0xff]
    %v6721 = vld [vmem:[#allocation19 + $0x3e0] sm:$0xf]
    %v6722 = vld [vmem:[#allocation19 + $0x3e4] sm:$0xff]
    %v6723 = vld [vmem:[#allocation19 + $0x3ec] sm:$0xf]
    %v6724 = vld [vmem:[#allocation19 + $0x3f0] sm:$0xff]
    %v6725 = vld [vmem:[#allocation19 + $0x3f8] sm:$0xf]
    %v6726 = vld [vmem:[#allocation19 + $0x3fc] sm:$0xff]
    %v6727 = vld [vmem:[#allocation19 + $0x404] sm:$0xf]
    %v6728 = vld [vmem:[#allocation19 + $0x408] sm:$0xff]
    %v6729 = vld [vmem:[#allocation19 + $0x410] sm:$0xf]
    %v6730 = vld [vmem:[#allocation19 + $0x414] sm:$0xff]
    %v6731 = vld [vmem:[#allocation19 + $0x41c] sm:$0xf]
    %v6732 = vld [vmem:[#allocation19 + $0x420] sm:$0xff]
    %v6733 = vld [vmem:[#allocation19 + $0x428] sm:$0xf]
    %v6734 = vld [vmem:[#allocation19 + $0x42c] sm:$0xff]
    %v6735 = vld [vmem:[#allocation19 + $0x434] sm:$0xf]
    %v6736 = vld [vmem:[#allocation19 + $0x438] sm:$0xff]
    %v6737 = vld [vmem:[#allocation19 + $0x440] sm:$0xf]
    %v6738 = vld [vmem:[#allocation19 + $0x444] sm:$0xff]
    %v6739 = vld [vmem:[#allocation19 + $0x44c] sm:$0xf]
    %v6740 = vld [vmem:[#allocation19 + $0x450] sm:$0xff]
    %v6741 = vld [vmem:[#allocation19 + $0x458] sm:$0xf]
    %v6742 = vld [vmem:[#allocation19 + $0x45c] sm:$0xff]
    %v6743 = vld [vmem:[#allocation19 + $0x464] sm:$0xf]
    %v6744 = vld [vmem:[#allocation19 + $0x468] sm:$0xff]
    %v6745 = vld [vmem:[#allocation19 + $0x470] sm:$0xf]
    %v6746 = vld [vmem:[#allocation19 + $0x474] sm:$0xff]
    %v6747 = vld [vmem:[#allocation19 + $0x47c] sm:$0xf]
    %v6748 = vld [vmem:[#allocation19 + $0x480] sm:$0xff]
    %v6749 = vld [vmem:[#allocation19 + $0x488] sm:$0xf]
    %v6750 = vld [vmem:[#allocation19 + $0x48c] sm:$0xff]
    %v6751 = vld [vmem:[#allocation19 + $0x494] sm:$0xf]
    %v6752 = vld [vmem:[#allocation19 + $0x498] sm:$0xff]
    %v6753 = vld [vmem:[#allocation19 + $0x4a0] sm:$0xf]
    %v6754 = vld [vmem:[#allocation19 + $0x4a4] sm:$0xff]
    %v6755 = vld [vmem:[#allocation19 + $0x4ac] sm:$0xf]
    %v6756 = vld [vmem:[#allocation19 + $0x4b0] sm:$0xff]
    %v6757 = vld [vmem:[#allocation19 + $0x4b8] sm:$0xf]
    %v6758 = vld [vmem:[#allocation19 + $0x4bc] sm:$0xff]
    %v6759 = vld [vmem:[#allocation19 + $0x4c4] sm:$0xf]
    %v6760 = vld [vmem:[#allocation19 + $0x4c8] sm:$0xff]
    %v6761 = vld [vmem:[#allocation19 + $0x4d0] sm:$0xf]
    %v6762 = vld [vmem:[#allocation19 + $0x4d4] sm:$0xff]
    %v6763 = vld [vmem:[#allocation19 + $0x4dc] sm:$0xf]
    %v6764 = vld [vmem:[#allocation19 + $0x4e0] sm:$0xff]
    %v6765 = vld [vmem:[#allocation19 + $0x4e8] sm:$0xf]
    %v6766 = vld [vmem:[#allocation19 + $0x4ec] sm:$0xff]
    %v6767 = vld [vmem:[#allocation19 + $0x4f4] sm:$0xf]
    %v6768 = vld [vmem:[#allocation19 + $0x4f8] sm:$0xff]
    %v6769 = vld [vmem:[#allocation19 + $0x500] sm:$0xf]
    %v6770 = vld [vmem:[#allocation19 + $0x504] sm:$0xff]
    %v6771 = vld [vmem:[#allocation19 + $0x50c] sm:$0xf]
    %v6772 = vld [vmem:[#allocation19 + $0x510] sm:$0xff]
    %v6773 = vld [vmem:[#allocation19 + $0x518] sm:$0xf]
    %v6774 = vld [vmem:[#allocation19 + $0x51c] sm:$0xff]
    %v6775 = vld [vmem:[#allocation19 + $0x524] sm:$0xf]
    %v6776 = vld [vmem:[#allocation19 + $0x528] sm:$0xff]
    %v6777 = vld [vmem:[#allocation19 + $0x530] sm:$0xf]
    %v6778 = vld [vmem:[#allocation19 + $0x534] sm:$0xff]
    %v6779 = vld [vmem:[#allocation19 + $0x53c] sm:$0xf]
    %v6780 = vld [vmem:[#allocation19 + $0x540] sm:$0xff]
    %v6781 = vld [vmem:[#allocation19 + $0x548] sm:$0xf]
    %v6782 = vld [vmem:[#allocation19 + $0x54c] sm:$0xff]
    %v6783 = vld [vmem:[#allocation19 + $0x554] sm:$0xf]
    %v6784 = vld [vmem:[#allocation19 + $0x558] sm:$0xff]
    %v6785 = vld [vmem:[#allocation19 + $0x560] sm:$0xf]
    %v6786 = vld [vmem:[#allocation19 + $0x564] sm:$0xff]
    %v6787 = vld [vmem:[#allocation19 + $0x56c] sm:$0xf]
    %v6788 = vld [vmem:[#allocation19 + $0x570] sm:$0xff]
    %v6789 = vld [vmem:[#allocation19 + $0x578] sm:$0xf]
    %v6790 = vld [vmem:[#allocation19 + $0x57c] sm:$0xff]
    %v6791 = vld [vmem:[#allocation19 + $0x584] sm:$0xf]
    %v6792 = vld [vmem:[#allocation19 + $0x588] sm:$0xff]
    %v6793 = vld [vmem:[#allocation19 + $0x590] sm:$0xf]
    %v6794 = vld [vmem:[#allocation19 + $0x594] sm:$0xff]
    %v6795 = vld [vmem:[#allocation19 + $0x59c] sm:$0xf]
    %v6796 = vld [vmem:[#allocation19 + $0x5a0] sm:$0xff]
    %v6797 = vld [vmem:[#allocation19 + $0x5a8] sm:$0xf]
    %v6798 = vld [vmem:[#allocation19 + $0x5ac] sm:$0xff]
    %v6799 = vld [vmem:[#allocation19 + $0x5b4] sm:$0xf]
    %v6800 = vld [vmem:[#allocation19 + $0x5b8] sm:$0xff]
    %v6801 = vld [vmem:[#allocation19 + $0x5c0] sm:$0xf]
    %v6802 = vld [vmem:[#allocation19 + $0x5c4] sm:$0xff]
    %v6803 = vld [vmem:[#allocation19 + $0x5cc] sm:$0xf]
    %v6804 = vld [vmem:[#allocation19 + $0x5d0] sm:$0xff]
    %v6805 = vld [vmem:[#allocation19 + $0x5d8] sm:$0xf]
    %v6806 = vld [vmem:[#allocation19 + $0x5dc] sm:$0xff]
    %v6807 = vld [vmem:[#allocation19 + $0x5e4] sm:$0xf]
    %v6808 = vld [vmem:[#allocation19 + $0x5e8] sm:$0xff]
    %v6809 = vld [vmem:[#allocation19 + $0x5f0] sm:$0xf]
    %v6810 = vld [vmem:[#allocation19 + $0x5f4] sm:$0xff]
    %v6811 = vld [vmem:[#allocation19 + $0x5fc] sm:$0xf]
    %v6812 = vld [vmem:[#allocation19 + $0x600] sm:$0xff]
    %v6813 = vld [vmem:[#allocation19 + $0x608] sm:$0xf]
    %v6814 = vld [vmem:[#allocation19 + $0x60c] sm:$0xff]
    %v6815 = vld [vmem:[#allocation19 + $0x614] sm:$0xf]
    %v6816 = vld [vmem:[#allocation19 + $0x618] sm:$0xff]
    %v6817 = vld [vmem:[#allocation19 + $0x620] sm:$0xf]
    %v6818 = vld [vmem:[#allocation19 + $0x624] sm:$0xff]
    %v6819 = vld [vmem:[#allocation19 + $0x62c] sm:$0xf]
    %v6820 = vld [vmem:[#allocation19 + $0x630] sm:$0xff]
    %v6821 = vld [vmem:[#allocation19 + $0x638] sm:$0xf]
    %v6822 = vld [vmem:[#allocation19 + $0x63c] sm:$0xff]
    %v6823 = vld [vmem:[#allocation19 + $0x644] sm:$0xf]
    %v6824 = vld [vmem:[#allocation19 + $0x648] sm:$0xff]
    %v6825 = vld [vmem:[#allocation19 + $0x650] sm:$0xf]
    %v6826 = vld [vmem:[#allocation19 + $0x654] sm:$0xff]
    %v6827 = vld [vmem:[#allocation19 + $0x65c] sm:$0xf]
    %v6828 = vld [vmem:[#allocation19 + $0x660] sm:$0xff]
    %v6829 = vld [vmem:[#allocation19 + $0x668] sm:$0xf]
    %v6830 = vld [vmem:[#allocation19 + $0x66c] sm:$0xff]
    %v6831 = vld [vmem:[#allocation19 + $0x674] sm:$0xf]
    %v6832 = vld [vmem:[#allocation19 + $0x678] sm:$0xff]
    %v6833 = vld [vmem:[#allocation19 + $0x680] sm:$0xf]
    %v6834 = vld [vmem:[#allocation19 + $0x684] sm:$0xff]
    %v6835 = vld [vmem:[#allocation19 + $0x68c] sm:$0xf]
    %v6836 = vld [vmem:[#allocation19 + $0x690] sm:$0xff]
    %v6837 = vld [vmem:[#allocation19 + $0x698] sm:$0xf]
    %v6838 = vld [vmem:[#allocation19 + $0x69c] sm:$0xff]
    %v6839 = vld [vmem:[#allocation19 + $0x6a4] sm:$0xf]
    %v6840 = vld [vmem:[#allocation19 + $0x6a8] sm:$0xff]
    %v6841 = vld [vmem:[#allocation19 + $0x6b0] sm:$0xf]
    %v6842 = vld [vmem:[#allocation19 + $0x6b4] sm:$0xff]
    %v6843 = vld [vmem:[#allocation19 + $0x6bc] sm:$0xf]
    %v6844 = vld [vmem:[#allocation19 + $0x6c0] sm:$0xff]
    %v6845 = vld [vmem:[#allocation19 + $0x6c8] sm:$0xf]
    %v6846 = vld [vmem:[#allocation19 + $0x6cc] sm:$0xff]
    %v6847 = vld [vmem:[#allocation19 + $0x6d4] sm:$0xf]
    %v6848 = vld [vmem:[#allocation19 + $0x6d8] sm:$0xff]
    %v6849 = vld [vmem:[#allocation19 + $0x6e0] sm:$0xf]
    %v6850 = vld [vmem:[#allocation19 + $0x6e4] sm:$0xff]
    %v6851 = vld [vmem:[#allocation19 + $0x6ec] sm:$0xf]
    %v6852 = vld [vmem:[#allocation19 + $0x6f0] sm:$0xff]
    %v6853 = vld [vmem:[#allocation19 + $0x6f8] sm:$0xf]
    %v6854 = vld [vmem:[#allocation19 + $0x6fc] sm:$0xff]
    %v6855 = vld [vmem:[#allocation19 + $0x704] sm:$0xf]
    %v6856 = vld [vmem:[#allocation19 + $0x708] sm:$0xff]
    %v6857 = vld [vmem:[#allocation19 + $0x710] sm:$0xf]
    %v6858 = vld [vmem:[#allocation19 + $0x714] sm:$0xff]
    %v6859 = vld [vmem:[#allocation19 + $0x71c] sm:$0xf]
    %v6860 = vld [vmem:[#allocation19 + $0x720] sm:$0xff]
    %v6861 = vld [vmem:[#allocation19 + $0x728] sm:$0xf]
    %v6862 = vld [vmem:[#allocation19 + $0x72c] sm:$0xff]
    %v6863 = vld [vmem:[#allocation19 + $0x734] sm:$0xf]
    %v6864 = vld [vmem:[#allocation19 + $0x738] sm:$0xff]
    %v6865 = vld [vmem:[#allocation19 + $0x740] sm:$0xf]
    %v6866 = vld [vmem:[#allocation19 + $0x744] sm:$0xff]
    %v6867 = vld [vmem:[#allocation19 + $0x74c] sm:$0xf]
    %v6868 = vld [vmem:[#allocation19 + $0x750] sm:$0xff]
    %v6869 = vld [vmem:[#allocation19 + $0x758] sm:$0xf]
    %v6870 = vld [vmem:[#allocation19 + $0x75c] sm:$0xff]
    %v6871 = vld [vmem:[#allocation19 + $0x764] sm:$0xf]
    %v6872 = vld [vmem:[#allocation19 + $0x768] sm:$0xff]
    %v6873 = vld [vmem:[#allocation19 + $0x770] sm:$0xf]
    %v6874 = vld [vmem:[#allocation19 + $0x774] sm:$0xff]
    %v6875 = vld [vmem:[#allocation19 + $0x77c] sm:$0xf]
    %v6876 = vld [vmem:[#allocation19 + $0x780] sm:$0xff]
    %v6877 = vld [vmem:[#allocation19 + $0x788] sm:$0xf]
    %v6878 = vld [vmem:[#allocation19 + $0x78c] sm:$0xff]
    %v6879 = vld [vmem:[#allocation19 + $0x794] sm:$0xf]
    %v6880 = vld [vmem:[#allocation19 + $0x798] sm:$0xff]
    %v6881 = vld [vmem:[#allocation19 + $0x7a0] sm:$0xf]
    %v6882 = vld [vmem:[#allocation19 + $0x7a4] sm:$0xff]
    %v6883 = vld [vmem:[#allocation19 + $0x7ac] sm:$0xf]
    %v6884 = vld [vmem:[#allocation19 + $0x7b0] sm:$0xff]
    %v6885 = vld [vmem:[#allocation19 + $0x7b8] sm:$0xf]
    %v6886 = vld [vmem:[#allocation19 + $0x7bc] sm:$0xff]
    %v6887 = vld [vmem:[#allocation19 + $0x7c4] sm:$0xf]
    %v6888 = vld [vmem:[#allocation19 + $0x7c8] sm:$0xff]
    %v6889 = vld [vmem:[#allocation19 + $0x7d0] sm:$0xf]
    %v6890 = vld [vmem:[#allocation19 + $0x7d4] sm:$0xff]
    %v6891 = vld [vmem:[#allocation19 + $0x7dc] sm:$0xf]
    %v6892 = vld [vmem:[#allocation19 + $0x7e0] sm:$0xff]
    %v6893 = vld [vmem:[#allocation19 + $0x7e8] sm:$0xf]
    %v6894 = vld [vmem:[#allocation19 + $0x7ec] sm:$0xff]
    %v6895 = vld [vmem:[#allocation19 + $0x7f4] sm:$0xf]
    %v6896 = vld [vmem:[#allocation19 + $0x7f8] sm:$0xff]
    %v6897 = vld [vmem:[#allocation19 + $0x800] sm:$0xf]
    %v6898 = vld [vmem:[#allocation19 + $0x804] sm:$0xff]
    %v6899 = vld [vmem:[#allocation19 + $0x80c] sm:$0xf]
    %v6900 = vld [vmem:[#allocation19 + $0x810] sm:$0xff]
    %v6901 = vld [vmem:[#allocation19 + $0x818] sm:$0xf]
    %v6902 = vld [vmem:[#allocation19 + $0x81c] sm:$0xff]
    %v6903 = vld [vmem:[#allocation19 + $0x824] sm:$0xf]
    %v6904 = vld [vmem:[#allocation19 + $0x828] sm:$0xff]
    %v6905 = vld [vmem:[#allocation19 + $0x830] sm:$0xf]
    %v6906 = vld [vmem:[#allocation19 + $0x834] sm:$0xff]
    %v6907 = vld [vmem:[#allocation19 + $0x83c] sm:$0xf]
    %v6908 = vld [vmem:[#allocation19 + $0x840] sm:$0xff]
    %v6909 = vld [vmem:[#allocation19 + $0x848] sm:$0xf]
    %v6910 = vld [vmem:[#allocation19 + $0x84c] sm:$0xff]
    %v6911 = vld [vmem:[#allocation19 + $0x854] sm:$0xf]
    %v6912 = vld [vmem:[#allocation19 + $0x858] sm:$0xff]
    %v6913 = vld [vmem:[#allocation19 + $0x860] sm:$0xf]
    %v6914 = vld [vmem:[#allocation19 + $0x864] sm:$0xff]
    %v6915 = vld [vmem:[#allocation19 + $0x86c] sm:$0xf]
    %v6916 = vld [vmem:[#allocation19 + $0x870] sm:$0xff]
    %v6917 = vld [vmem:[#allocation19 + $0x878] sm:$0xf]
    %v6918 = vld [vmem:[#allocation19 + $0x87c] sm:$0xff]
    %v6919 = vld [vmem:[#allocation19 + $0x884] sm:$0xf]
    %v6920 = vld [vmem:[#allocation19 + $0x888] sm:$0xff]
    %v6921 = vld [vmem:[#allocation19 + $0x890] sm:$0xf]
    %v6922 = vld [vmem:[#allocation19 + $0x894] sm:$0xff]
    %v6923 = vld [vmem:[#allocation19 + $0x89c] sm:$0xf]
    %v6924 = vld [vmem:[#allocation19 + $0x8a0] sm:$0xff]
    %v6925 = vld [vmem:[#allocation19 + $0x8a8] sm:$0xf]
    %v6926 = vld [vmem:[#allocation19 + $0x8ac] sm:$0xff]
    %v6927 = vld [vmem:[#allocation19 + $0x8b4] sm:$0xf]
    %v6928 = vld [vmem:[#allocation19 + $0x8b8] sm:$0xff]
    %v6929 = vld [vmem:[#allocation19 + $0x8c0] sm:$0xf]
    %v6930 = vld [vmem:[#allocation19 + $0x8c4] sm:$0xff]
    %v6931 = vld [vmem:[#allocation19 + $0x8cc] sm:$0xf]
    %v6932 = vld [vmem:[#allocation19 + $0x8d0] sm:$0xff]
    %v6933 = vld [vmem:[#allocation19 + $0x8d8] sm:$0xf]
    %v6934 = vld [vmem:[#allocation19 + $0x8dc] sm:$0xff]
    %v6935 = vld [vmem:[#allocation19 + $0x8e4] sm:$0xf]
    %v6936 = vld [vmem:[#allocation19 + $0x8e8] sm:$0xff]
    %v6937 = vld [vmem:[#allocation19 + $0x8f0] sm:$0xf]
    %v6938 = vld [vmem:[#allocation19 + $0x8f4] sm:$0xff]
    %v6939 = vld [vmem:[#allocation19 + $0x8fc] sm:$0xf]
    %v6940 = vld [vmem:[#allocation20] sm:$0x7]
    %v6942 = vlaneseq
    %v6943 = vshrl.u32 %v6942, 7
    %v6944 = vsub.s32 0, %v6943
    %v6945 = vrot.slane %v6940, %v6944
    %v6946 = vlaneseq
    %v6947 = vshrl.u32 %v6946, 7
    %v6948 = vsub.s32 1, %v6947
    %v6949 = vrot.slane %v6940, %v6948
    %v6950 = vlaneseq
    %v6951 = vshrl.u32 %v6950, 7
    %v6952 = vsub.s32 2, %v6951
    %v6953 = vrot.slane %v6940, %v6952
    %v7341 = vunpack.c.l.b16 %v6556
    %v7342 = vunpack.c.h.b16 %v6556
    %v7343 = vunpack.c.l.b16 %v6557
    %v7344 = vunpack.c.l.b16 %v6558
    %v7345 = vunpack.c.h.b16 %v6558
    %v7346 = vunpack.c.l.b16 %v6559
    %v7347 = vunpack.c.l.b16 %v6560
    %v7348 = vunpack.c.h.b16 %v6560
    %v7349 = vunpack.c.l.b16 %v6561
    %v7350 = vunpack.c.l.b16 %v6562
    %v7351 = vunpack.c.h.b16 %v6562
    %v7352 = vunpack.c.l.b16 %v6563
    %v7353 = vunpack.c.l.b16 %v6564
    %v7354 = vunpack.c.h.b16 %v6564
    %v7355 = vunpack.c.l.b16 %v6565
    %v7356 = vunpack.c.l.b16 %v6566
    %v7357 = vunpack.c.h.b16 %v6566
    %v7358 = vunpack.c.l.b16 %v6567
    %v7359 = vunpack.c.l.b16 %v6568
    %v7360 = vunpack.c.h.b16 %v6568
    %v7361 = vunpack.c.l.b16 %v6569
    %v7362 = vunpack.c.l.b16 %v6570
    %v7363 = vunpack.c.h.b16 %v6570
    %v7364 = vunpack.c.l.b16 %v6571
    %v7365 = vunpack.c.l.b16 %v6572
    %v7366 = vunpack.c.h.b16 %v6572
    %v7367 = vunpack.c.l.b16 %v6573
    %v7368 = vunpack.c.l.b16 %v6574
    %v7369 = vunpack.c.h.b16 %v6574
    %v7370 = vunpack.c.l.b16 %v6575
    %v7371 = vunpack.c.l.b16 %v6576
    %v7372 = vunpack.c.h.b16 %v6576
    %v7373 = vunpack.c.l.b16 %v6577
    %v7374 = vunpack.c.l.b16 %v6578
    %v7375 = vunpack.c.h.b16 %v6578
    %v7376 = vunpack.c.l.b16 %v6579
    %v7377 = vunpack.c.l.b16 %v6580
    %v7378 = vunpack.c.h.b16 %v6580
    %v7379 = vunpack.c.l.b16 %v6581
    %v7380 = vunpack.c.l.b16 %v6582
    %v7381 = vunpack.c.h.b16 %v6582
    %v7382 = vunpack.c.l.b16 %v6583
    %v7383 = vunpack.c.l.b16 %v6584
    %v7384 = vunpack.c.h.b16 %v6584
    %v7385 = vunpack.c.l.b16 %v6585
    %v7386 = vunpack.c.l.b16 %v6586
    %v7387 = vunpack.c.h.b16 %v6586
    %v7388 = vunpack.c.l.b16 %v6587
    %v7389 = vunpack.c.l.b16 %v6588
    %v7390 = vunpack.c.h.b16 %v6588
    %v7391 = vunpack.c.l.b16 %v6589
    %v7392 = vunpack.c.l.b16 %v6590
    %v7393 = vunpack.c.h.b16 %v6590
    %v7394 = vunpack.c.l.b16 %v6591
    %v7395 = vunpack.c.l.b16 %v6592
    %v7396 = vunpack.c.h.b16 %v6592
    %v7397 = vunpack.c.l.b16 %v6593
    %v7398 = vunpack.c.l.b16 %v6594
    %v7399 = vunpack.c.h.b16 %v6594
    %v7400 = vunpack.c.l.b16 %v6595
    %v7401 = vunpack.c.l.b16 %v6596
    %v7402 = vunpack.c.h.b16 %v6596
    %v7403 = vunpack.c.l.b16 %v6597
    %v7404 = vunpack.c.l.b16 %v6598
    %v7405 = vunpack.c.h.b16 %v6598
    %v7406 = vunpack.c.l.b16 %v6599
    %v7407 = vunpack.c.l.b16 %v6600
    %v7408 = vunpack.c.h.b16 %v6600
    %v7409 = vunpack.c.l.b16 %v6601
    %v7410 = vunpack.c.l.b16 %v6602
    %v7411 = vunpack.c.h.b16 %v6602
    %v7412 = vunpack.c.l.b16 %v6603
    %v7413 = vunpack.c.l.b16 %v6604
    %v7414 = vunpack.c.h.b16 %v6604
    %v7415 = vunpack.c.l.b16 %v6605
    %v7416 = vunpack.c.l.b16 %v6606
    %v7417 = vunpack.c.h.b16 %v6606
    %v7418 = vunpack.c.l.b16 %v6607
    %v7419 = vunpack.c.l.b16 %v6608
    %v7420 = vunpack.c.h.b16 %v6608
    %v7421 = vunpack.c.l.b16 %v6609
    %v7422 = vunpack.c.l.b16 %v6610
    %v7423 = vunpack.c.h.b16 %v6610
    %v7424 = vunpack.c.l.b16 %v6611
    %v7425 = vunpack.c.l.b16 %v6612
    %v7426 = vunpack.c.h.b16 %v6612
    %v7427 = vunpack.c.l.b16 %v6613
    %v7428 = vunpack.c.l.b16 %v6614
    %v7429 = vunpack.c.h.b16 %v6614
    %v7430 = vunpack.c.l.b16 %v6615
    %v7431 = vunpack.c.l.b16 %v6616
    %v7432 = vunpack.c.h.b16 %v6616
    %v7433 = vunpack.c.l.b16 %v6617
    %v7434 = vunpack.c.l.b16 %v6618
    %v7435 = vunpack.c.h.b16 %v6618
    %v7436 = vunpack.c.l.b16 %v6619
    %v7437 = vunpack.c.l.b16 %v6620
    %v7438 = vunpack.c.h.b16 %v6620
    %v7439 = vunpack.c.l.b16 %v6621
    %v7440 = vunpack.c.l.b16 %v6622
    %v7441 = vunpack.c.h.b16 %v6622
    %v7442 = vunpack.c.l.b16 %v6623
    %v7443 = vunpack.c.l.b16 %v6624
    %v7444 = vunpack.c.h.b16 %v6624
    %v7445 = vunpack.c.l.b16 %v6625
    %v7446 = vunpack.c.l.b16 %v6626
    %v7447 = vunpack.c.h.b16 %v6626
    %v7448 = vunpack.c.l.b16 %v6627
    %v7449 = vunpack.c.l.b16 %v6628
    %v7450 = vunpack.c.h.b16 %v6628
    %v7451 = vunpack.c.l.b16 %v6629
    %v7452 = vunpack.c.l.b16 %v6630
    %v7453 = vunpack.c.h.b16 %v6630
    %v7454 = vunpack.c.l.b16 %v6631
    %v7455 = vunpack.c.l.b16 %v6632
    %v7456 = vunpack.c.h.b16 %v6632
    %v7457 = vunpack.c.l.b16 %v6633
    %v7458 = vunpack.c.l.b16 %v6634
    %v7459 = vunpack.c.h.b16 %v6634
    %v7460 = vunpack.c.l.b16 %v6635
    %v7461 = vunpack.c.l.b16 %v6636
    %v7462 = vunpack.c.h.b16 %v6636
    %v7463 = vunpack.c.l.b16 %v6637
    %v7464 = vunpack.c.l.b16 %v6638
    %v7465 = vunpack.c.h.b16 %v6638
    %v7466 = vunpack.c.l.b16 %v6639
    %v7467 = vunpack.c.l.b16 %v6640
    %v7468 = vunpack.c.h.b16 %v6640
    %v7469 = vunpack.c.l.b16 %v6641
    %v7470 = vunpack.c.l.b16 %v6642
    %v7471 = vunpack.c.h.b16 %v6642
    %v7472 = vunpack.c.l.b16 %v6643
    %v7473 = vunpack.c.l.b16 %v6644
    %v7474 = vunpack.c.h.b16 %v6644
    %v7475 = vunpack.c.l.b16 %v6645
    %v7476 = vunpack.c.l.b16 %v6646
    %v7477 = vunpack.c.h.b16 %v6646
    %v7478 = vunpack.c.l.b16 %v6647
    %v7479 = vunpack.c.l.b16 %v6648
    %v7480 = vunpack.c.h.b16 %v6648
    %v7481 = vunpack.c.l.b16 %v6649
    %v7482 = vunpack.c.l.b16 %v6650
    %v7483 = vunpack.c.h.b16 %v6650
    %v7484 = vunpack.c.l.b16 %v6651
    %v7485 = vunpack.c.l.b16 %v6652
    %v7486 = vunpack.c.h.b16 %v6652
    %v7487 = vunpack.c.l.b16 %v6653
    %v7488 = vunpack.c.l.b16 %v6654
    %v7489 = vunpack.c.h.b16 %v6654
    %v7490 = vunpack.c.l.b16 %v6655
    %v7491 = vunpack.c.l.b16 %v6656
    %v7492 = vunpack.c.h.b16 %v6656
    %v7493 = vunpack.c.l.b16 %v6657
    %v7494 = vunpack.c.l.b16 %v6658
    %v7495 = vunpack.c.h.b16 %v6658
    %v7496 = vunpack.c.l.b16 %v6659
    %v7497 = vunpack.c.l.b16 %v6660
    %v7498 = vunpack.c.h.b16 %v6660
    %v7499 = vunpack.c.l.b16 %v6661
    %v7500 = vunpack.c.l.b16 %v6662
    %v7501 = vunpack.c.h.b16 %v6662
    %v7502 = vunpack.c.l.b16 %v6663
    %v7503 = vunpack.c.l.b16 %v6664
    %v7504 = vunpack.c.h.b16 %v6664
    %v7505 = vunpack.c.l.b16 %v6665
    %v7506 = vunpack.c.l.b16 %v6666
    %v7507 = vunpack.c.h.b16 %v6666
    %v7508 = vunpack.c.l.b16 %v6667
    %v7509 = vunpack.c.l.b16 %v6668
    %v7510 = vunpack.c.h.b16 %v6668
    %v7511 = vunpack.c.l.b16 %v6669
    %v7512 = vunpack.c.l.b16 %v6670
    %v7513 = vunpack.c.h.b16 %v6670
    %v7514 = vunpack.c.l.b16 %v6671
    %v7515 = vunpack.c.l.b16 %v6672
    %v7516 = vunpack.c.h.b16 %v6672
    %v7517 = vunpack.c.l.b16 %v6673
    %v7518 = vunpack.c.l.b16 %v6674
    %v7519 = vunpack.c.h.b16 %v6674
    %v7520 = vunpack.c.l.b16 %v6675
    %v7521 = vunpack.c.l.b16 %v6676
    %v7522 = vunpack.c.h.b16 %v6676
    %v7523 = vunpack.c.l.b16 %v6677
    %v7524 = vunpack.c.l.b16 %v6678
    %v7525 = vunpack.c.h.b16 %v6678
    %v7526 = vunpack.c.l.b16 %v6679
    %v7527 = vunpack.c.l.b16 %v6680
    %v7528 = vunpack.c.h.b16 %v6680
    %v7529 = vunpack.c.l.b16 %v6681
    %v7530 = vunpack.c.l.b16 %v6682
    %v7531 = vunpack.c.h.b16 %v6682
    %v7532 = vunpack.c.l.b16 %v6683
    %v7533 = vunpack.c.l.b16 %v6684
    %v7534 = vunpack.c.h.b16 %v6684
    %v7535 = vunpack.c.l.b16 %v6685
    %v7536 = vunpack.c.l.b16 %v6686
    %v7537 = vunpack.c.h.b16 %v6686
    %v7538 = vunpack.c.l.b16 %v6687
    %v7539 = vunpack.c.l.b16 %v6688
    %v7540 = vunpack.c.h.b16 %v6688
    %v7541 = vunpack.c.l.b16 %v6689
    %v7542 = vunpack.c.l.b16 %v6690
    %v7543 = vunpack.c.h.b16 %v6690
    %v7544 = vunpack.c.l.b16 %v6691
    %v7545 = vunpack.c.l.b16 %v6692
    %v7546 = vunpack.c.h.b16 %v6692
    %v7547 = vunpack.c.l.b16 %v6693
    %v7548 = vunpack.c.l.b16 %v6694
    %v7549 = vunpack.c.h.b16 %v6694
    %v7550 = vunpack.c.l.b16 %v6695
    %v7551 = vunpack.c.l.b16 %v6696
    %v7552 = vunpack.c.h.b16 %v6696
    %v7553 = vunpack.c.l.b16 %v6697
    %v7554 = vunpack.c.l.b16 %v6698
    %v7555 = vunpack.c.h.b16 %v6698
    %v7556 = vunpack.c.l.b16 %v6699
    %v7557 = vunpack.c.l.b16 %v6700
    %v7558 = vunpack.c.h.b16 %v6700
    %v7559 = vunpack.c.l.b16 %v6701
    %v7560 = vunpack.c.l.b16 %v6702
    %v7561 = vunpack.c.h.b16 %v6702
    %v7562 = vunpack.c.l.b16 %v6703
    %v7563 = vunpack.c.l.b16 %v6704
    %v7564 = vunpack.c.h.b16 %v6704
    %v7565 = vunpack.c.l.b16 %v6705
    %v7566 = vunpack.c.l.b16 %v6706
    %v7567 = vunpack.c.h.b16 %v6706
    %v7568 = vunpack.c.l.b16 %v6707
    %v7569 = vunpack.c.l.b16 %v6708
    %v7570 = vunpack.c.h.b16 %v6708
    %v7571 = vunpack.c.l.b16 %v6709
    %v7572 = vunpack.c.l.b16 %v6710
    %v7573 = vunpack.c.h.b16 %v6710
    %v7574 = vunpack.c.l.b16 %v6711
    %v7575 = vunpack.c.l.b16 %v6712
    %v7576 = vunpack.c.h.b16 %v6712
    %v7577 = vunpack.c.l.b16 %v6713
    %v7578 = vunpack.c.l.b16 %v6714
    %v7579 = vunpack.c.h.b16 %v6714
    %v7580 = vunpack.c.l.b16 %v6715
    %v7581 = vunpack.c.l.b16 %v6716
    %v7582 = vunpack.c.h.b16 %v6716
    %v7583 = vunpack.c.l.b16 %v6717
    %v7584 = vunpack.c.l.b16 %v6718
    %v7585 = vunpack.c.h.b16 %v6718
    %v7586 = vunpack.c.l.b16 %v6719
    %v7587 = vunpack.c.l.b16 %v6720
    %v7588 = vunpack.c.h.b16 %v6720
    %v7589 = vunpack.c.l.b16 %v6721
    %v7590 = vunpack.c.l.b16 %v6722
    %v7591 = vunpack.c.h.b16 %v6722
    %v7592 = vunpack.c.l.b16 %v6723
    %v7593 = vunpack.c.l.b16 %v6724
    %v7594 = vunpack.c.h.b16 %v6724
    %v7595 = vunpack.c.l.b16 %v6725
    %v7596 = vunpack.c.l.b16 %v6726
    %v7597 = vunpack.c.h.b16 %v6726
    %v7598 = vunpack.c.l.b16 %v6727
    %v7599 = vunpack.c.l.b16 %v6728
    %v7600 = vunpack.c.h.b16 %v6728
    %v7601 = vunpack.c.l.b16 %v6729
    %v7602 = vunpack.c.l.b16 %v6730
    %v7603 = vunpack.c.h.b16 %v6730
    %v7604 = vunpack.c.l.b16 %v6731
    %v7605 = vunpack.c.l.b16 %v6732
    %v7606 = vunpack.c.h.b16 %v6732
    %v7607 = vunpack.c.l.b16 %v6733
    %v7608 = vunpack.c.l.b16 %v6734
    %v7609 = vunpack.c.h.b16 %v6734
    %v7610 = vunpack.c.l.b16 %v6735
    %v7611 = vunpack.c.l.b16 %v6736
    %v7612 = vunpack.c.h.b16 %v6736
    %v7613 = vunpack.c.l.b16 %v6737
    %v7614 = vunpack.c.l.b16 %v6738
    %v7615 = vunpack.c.h.b16 %v6738
    %v7616 = vunpack.c.l.b16 %v6739
    %v7617 = vunpack.c.l.b16 %v6740
    %v7618 = vunpack.c.h.b16 %v6740
    %v7619 = vunpack.c.l.b16 %v6741
    %v7620 = vunpack.c.l.b16 %v6742
    %v7621 = vunpack.c.h.b16 %v6742
    %v7622 = vunpack.c.l.b16 %v6743
    %v7623 = vunpack.c.l.b16 %v6744
    %v7624 = vunpack.c.h.b16 %v6744
    %v7625 = vunpack.c.l.b16 %v6745
    %v7626 = vunpack.c.l.b16 %v6746
    %v7627 = vunpack.c.h.b16 %v6746
    %v7628 = vunpack.c.l.b16 %v6747
    %v7629 = vunpack.c.l.b16 %v6748
    %v7630 = vunpack.c.h.b16 %v6748
    %v7631 = vunpack.c.l.b16 %v6749
    %v7632 = vunpack.c.l.b16 %v6750
    %v7633 = vunpack.c.h.b16 %v6750
    %v7634 = vunpack.c.l.b16 %v6751
    %v7635 = vunpack.c.l.b16 %v6752
    %v7636 = vunpack.c.h.b16 %v6752
    %v7637 = vunpack.c.l.b16 %v6753
    %v7638 = vunpack.c.l.b16 %v6754
    %v7639 = vunpack.c.h.b16 %v6754
    %v7640 = vunpack.c.l.b16 %v6755
    %v7641 = vunpack.c.l.b16 %v6756
    %v7642 = vunpack.c.h.b16 %v6756
    %v7643 = vunpack.c.l.b16 %v6757
    %v7644 = vunpack.c.l.b16 %v6758
    %v7645 = vunpack.c.h.b16 %v6758
    %v7646 = vunpack.c.l.b16 %v6759
    %v7647 = vunpack.c.l.b16 %v6760
    %v7648 = vunpack.c.h.b16 %v6760
    %v7649 = vunpack.c.l.b16 %v6761
    %v7650 = vunpack.c.l.b16 %v6762
    %v7651 = vunpack.c.h.b16 %v6762
    %v7652 = vunpack.c.l.b16 %v6763
    %v7653 = vunpack.c.l.b16 %v6764
    %v7654 = vunpack.c.h.b16 %v6764
    %v7655 = vunpack.c.l.b16 %v6765
    %v7656 = vunpack.c.l.b16 %v6766
    %v7657 = vunpack.c.h.b16 %v6766
    %v7658 = vunpack.c.l.b16 %v6767
    %v7659 = vunpack.c.l.b16 %v6768
    %v7660 = vunpack.c.h.b16 %v6768
    %v7661 = vunpack.c.l.b16 %v6769
    %v7662 = vunpack.c.l.b16 %v6770
    %v7663 = vunpack.c.h.b16 %v6770
    %v7664 = vunpack.c.l.b16 %v6771
    %v7665 = vunpack.c.l.b16 %v6772
    %v7666 = vunpack.c.h.b16 %v6772
    %v7667 = vunpack.c.l.b16 %v6773
    %v7668 = vunpack.c.l.b16 %v6774
    %v7669 = vunpack.c.h.b16 %v6774
    %v7670 = vunpack.c.l.b16 %v6775
    %v7671 = vunpack.c.l.b16 %v6776
    %v7672 = vunpack.c.h.b16 %v6776
    %v7673 = vunpack.c.l.b16 %v6777
    %v7674 = vunpack.c.l.b16 %v6778
    %v7675 = vunpack.c.h.b16 %v6778
    %v7676 = vunpack.c.l.b16 %v6779
    %v7677 = vunpack.c.l.b16 %v6780
    %v7678 = vunpack.c.h.b16 %v6780
    %v7679 = vunpack.c.l.b16 %v6781
    %v7680 = vunpack.c.l.b16 %v6782
    %v7681 = vunpack.c.h.b16 %v6782
    %v7682 = vunpack.c.l.b16 %v6783
    %v7683 = vunpack.c.l.b16 %v6784
    %v7684 = vunpack.c.h.b16 %v6784
    %v7685 = vunpack.c.l.b16 %v6785
    %v7686 = vunpack.c.l.b16 %v6786
    %v7687 = vunpack.c.h.b16 %v6786
    %v7688 = vunpack.c.l.b16 %v6787
    %v7689 = vunpack.c.l.b16 %v6788
    %v7690 = vunpack.c.h.b16 %v6788
    %v7691 = vunpack.c.l.b16 %v6789
    %v7692 = vunpack.c.l.b16 %v6790
    %v7693 = vunpack.c.h.b16 %v6790
    %v7694 = vunpack.c.l.b16 %v6791
    %v7695 = vunpack.c.l.b16 %v6792
    %v7696 = vunpack.c.h.b16 %v6792
    %v7697 = vunpack.c.l.b16 %v6793
    %v7698 = vunpack.c.l.b16 %v6794
    %v7699 = vunpack.c.h.b16 %v6794
    %v7700 = vunpack.c.l.b16 %v6795
    %v7701 = vunpack.c.l.b16 %v6796
    %v7702 = vunpack.c.h.b16 %v6796
    %v7703 = vunpack.c.l.b16 %v6797
    %v7704 = vunpack.c.l.b16 %v6798
    %v7705 = vunpack.c.h.b16 %v6798
    %v7706 = vunpack.c.l.b16 %v6799
    %v7707 = vunpack.c.l.b16 %v6800
    %v7708 = vunpack.c.h.b16 %v6800
    %v7709 = vunpack.c.l.b16 %v6801
    %v7710 = vunpack.c.l.b16 %v6802
    %v7711 = vunpack.c.h.b16 %v6802
    %v7712 = vunpack.c.l.b16 %v6803
    %v7713 = vunpack.c.l.b16 %v6804
    %v7714 = vunpack.c.h.b16 %v6804
    %v7715 = vunpack.c.l.b16 %v6805
    %v7716 = vunpack.c.l.b16 %v6806
    %v7717 = vunpack.c.h.b16 %v6806
    %v7718 = vunpack.c.l.b16 %v6807
    %v7719 = vunpack.c.l.b16 %v6808
    %v7720 = vunpack.c.h.b16 %v6808
    %v7721 = vunpack.c.l.b16 %v6809
    %v7722 = vunpack.c.l.b16 %v6810
    %v7723 = vunpack.c.h.b16 %v6810
    %v7724 = vunpack.c.l.b16 %v6811
    %v7725 = vunpack.c.l.b16 %v6812
    %v7726 = vunpack.c.h.b16 %v6812
    %v7727 = vunpack.c.l.b16 %v6813
    %v7728 = vunpack.c.l.b16 %v6814
    %v7729 = vunpack.c.h.b16 %v6814
    %v7730 = vunpack.c.l.b16 %v6815
    %v7731 = vunpack.c.l.b16 %v6816
    %v7732 = vunpack.c.h.b16 %v6816
    %v7733 = vunpack.c.l.b16 %v6817
    %v7734 = vunpack.c.l.b16 %v6818
    %v7735 = vunpack.c.h.b16 %v6818
    %v7736 = vunpack.c.l.b16 %v6819
    %v7737 = vunpack.c.l.b16 %v6820
    %v7738 = vunpack.c.h.b16 %v6820
    %v7739 = vunpack.c.l.b16 %v6821
    %v7740 = vunpack.c.l.b16 %v6822
    %v7741 = vunpack.c.h.b16 %v6822
    %v7742 = vunpack.c.l.b16 %v6823
    %v7743 = vunpack.c.l.b16 %v6824
    %v7744 = vunpack.c.h.b16 %v6824
    %v7745 = vunpack.c.l.b16 %v6825
    %v7746 = vunpack.c.l.b16 %v6826
    %v7747 = vunpack.c.h.b16 %v6826
    %v7748 = vunpack.c.l.b16 %v6827
    %v7749 = vunpack.c.l.b16 %v6828
    %v7750 = vunpack.c.h.b16 %v6828
    %v7751 = vunpack.c.l.b16 %v6829
    %v7752 = vunpack.c.l.b16 %v6830
    %v7753 = vunpack.c.h.b16 %v6830
    %v7754 = vunpack.c.l.b16 %v6831
    %v7755 = vunpack.c.l.b16 %v6832
    %v7756 = vunpack.c.h.b16 %v6832
    %v7757 = vunpack.c.l.b16 %v6833
    %v7758 = vunpack.c.l.b16 %v6834
    %v7759 = vunpack.c.h.b16 %v6834
    %v7760 = vunpack.c.l.b16 %v6835
    %v7761 = vunpack.c.l.b16 %v6836
    %v7762 = vunpack.c.h.b16 %v6836
    %v7763 = vunpack.c.l.b16 %v6837
    %v7764 = vunpack.c.l.b16 %v6838
    %v7765 = vunpack.c.h.b16 %v6838
    %v7766 = vunpack.c.l.b16 %v6839
    %v7767 = vunpack.c.l.b16 %v6840
    %v7768 = vunpack.c.h.b16 %v6840
    %v7769 = vunpack.c.l.b16 %v6841
    %v7770 = vunpack.c.l.b16 %v6842
    %v7771 = vunpack.c.h.b16 %v6842
    %v7772 = vunpack.c.l.b16 %v6843
    %v7773 = vunpack.c.l.b16 %v6844
    %v7774 = vunpack.c.h.b16 %v6844
    %v7775 = vunpack.c.l.b16 %v6845
    %v7776 = vunpack.c.l.b16 %v6846
    %v7777 = vunpack.c.h.b16 %v6846
    %v7778 = vunpack.c.l.b16 %v6847
    %v7779 = vunpack.c.l.b16 %v6848
    %v7780 = vunpack.c.h.b16 %v6848
    %v7781 = vunpack.c.l.b16 %v6849
    %v7782 = vunpack.c.l.b16 %v6850
    %v7783 = vunpack.c.h.b16 %v6850
    %v7784 = vunpack.c.l.b16 %v6851
    %v7785 = vunpack.c.l.b16 %v6852
    %v7786 = vunpack.c.h.b16 %v6852
    %v7787 = vunpack.c.l.b16 %v6853
    %v7788 = vunpack.c.l.b16 %v6854
    %v7789 = vunpack.c.h.b16 %v6854
    %v7790 = vunpack.c.l.b16 %v6855
    %v7791 = vunpack.c.l.b16 %v6856
    %v7792 = vunpack.c.h.b16 %v6856
    %v7793 = vunpack.c.l.b16 %v6857
    %v7794 = vunpack.c.l.b16 %v6858
    %v7795 = vunpack.c.h.b16 %v6858
    %v7796 = vunpack.c.l.b16 %v6859
    %v7797 = vunpack.c.l.b16 %v6860
    %v7798 = vunpack.c.h.b16 %v6860
    %v7799 = vunpack.c.l.b16 %v6861
    %v7800 = vunpack.c.l.b16 %v6862
    %v7801 = vunpack.c.h.b16 %v6862
    %v7802 = vunpack.c.l.b16 %v6863
    %v7803 = vunpack.c.l.b16 %v6864
    %v7804 = vunpack.c.h.b16 %v6864
    %v7805 = vunpack.c.l.b16 %v6865
    %v7806 = vunpack.c.l.b16 %v6866
    %v7807 = vunpack.c.h.b16 %v6866
    %v7808 = vunpack.c.l.b16 %v6867
    %v7809 = vunpack.c.l.b16 %v6868
    %v7810 = vunpack.c.h.b16 %v6868
    %v7811 = vunpack.c.l.b16 %v6869
    %v7812 = vunpack.c.l.b16 %v6870
    %v7813 = vunpack.c.h.b16 %v6870
    %v7814 = vunpack.c.l.b16 %v6871
    %v7815 = vunpack.c.l.b16 %v6872
    %v7816 = vunpack.c.h.b16 %v6872
    %v7817 = vunpack.c.l.b16 %v6873
    %v7818 = vunpack.c.l.b16 %v6874
    %v7819 = vunpack.c.h.b16 %v6874
    %v7820 = vunpack.c.l.b16 %v6875
    %v7821 = vunpack.c.l.b16 %v6876
    %v7822 = vunpack.c.h.b16 %v6876
    %v7823 = vunpack.c.l.b16 %v6877
    %v7824 = vunpack.c.l.b16 %v6878
    %v7825 = vunpack.c.h.b16 %v6878
    %v7826 = vunpack.c.l.b16 %v6879
    %v7827 = vunpack.c.l.b16 %v6880
    %v7828 = vunpack.c.h.b16 %v6880
    %v7829 = vunpack.c.l.b16 %v6881
    %v7830 = vunpack.c.l.b16 %v6882
    %v7831 = vunpack.c.h.b16 %v6882
    %v7832 = vunpack.c.l.b16 %v6883
    %v7833 = vunpack.c.l.b16 %v6884
    %v7834 = vunpack.c.h.b16 %v6884
    %v7835 = vunpack.c.l.b16 %v6885
    %v7836 = vunpack.c.l.b16 %v6886
    %v7837 = vunpack.c.h.b16 %v6886
    %v7838 = vunpack.c.l.b16 %v6887
    %v7839 = vunpack.c.l.b16 %v6888
    %v7840 = vunpack.c.h.b16 %v6888
    %v7841 = vunpack.c.l.b16 %v6889
    %v7842 = vunpack.c.l.b16 %v6890
    %v7843 = vunpack.c.h.b16 %v6890
    %v7844 = vunpack.c.l.b16 %v6891
    %v7845 = vunpack.c.l.b16 %v6892
    %v7846 = vunpack.c.h.b16 %v6892
    %v7847 = vunpack.c.l.b16 %v6893
    %v7848 = vunpack.c.l.b16 %v6894
    %v7849 = vunpack.c.h.b16 %v6894
    %v7850 = vunpack.c.l.b16 %v6895
    %v7851 = vunpack.c.l.b16 %v6896
    %v7852 = vunpack.c.h.b16 %v6896
    %v7853 = vunpack.c.l.b16 %v6897
    %v7854 = vunpack.c.l.b16 %v6898
    %v7855 = vunpack.c.h.b16 %v6898
    %v7856 = vunpack.c.l.b16 %v6899
    %v7857 = vunpack.c.l.b16 %v6900
    %v7858 = vunpack.c.h.b16 %v6900
    %v7859 = vunpack.c.l.b16 %v6901
    %v7860 = vunpack.c.l.b16 %v6902
    %v7861 = vunpack.c.h.b16 %v6902
    %v7862 = vunpack.c.l.b16 %v6903
    %v7863 = vunpack.c.l.b16 %v6904
    %v7864 = vunpack.c.h.b16 %v6904
    %v7865 = vunpack.c.l.b16 %v6905
    %v7866 = vunpack.c.l.b16 %v6906
    %v7867 = vunpack.c.h.b16 %v6906
    %v7868 = vunpack.c.l.b16 %v6907
    %v7869 = vunpack.c.l.b16 %v6908
    %v7870 = vunpack.c.h.b16 %v6908
    %v7871 = vunpack.c.l.b16 %v6909
    %v7872 = vunpack.c.l.b16 %v6910
    %v7873 = vunpack.c.h.b16 %v6910
    %v7874 = vunpack.c.l.b16 %v6911
    %v7875 = vunpack.c.l.b16 %v6912
    %v7876 = vunpack.c.h.b16 %v6912
    %v7877 = vunpack.c.l.b16 %v6913
    %v7878 = vunpack.c.l.b16 %v6914
    %v7879 = vunpack.c.h.b16 %v6914
    %v7880 = vunpack.c.l.b16 %v6915
    %v7881 = vunpack.c.l.b16 %v6916
    %v7882 = vunpack.c.h.b16 %v6916
    %v7883 = vunpack.c.l.b16 %v6917
    %v7884 = vunpack.c.l.b16 %v6918
    %v7885 = vunpack.c.h.b16 %v6918
    %v7886 = vunpack.c.l.b16 %v6919
    %v7887 = vunpack.c.l.b16 %v6920
    %v7888 = vunpack.c.h.b16 %v6920
    %v7889 = vunpack.c.l.b16 %v6921
    %v7890 = vunpack.c.l.b16 %v6922
    %v7891 = vunpack.c.h.b16 %v6922
    %v7892 = vunpack.c.l.b16 %v6923
    %v7893 = vunpack.c.l.b16 %v6924
    %v7894 = vunpack.c.h.b16 %v6924
    %v7895 = vunpack.c.l.b16 %v6925
    %v7896 = vunpack.c.l.b16 %v6926
    %v7897 = vunpack.c.h.b16 %v6926
    %v7898 = vunpack.c.l.b16 %v6927
    %v7899 = vunpack.c.l.b16 %v6928
    %v7900 = vunpack.c.h.b16 %v6928
    %v7901 = vunpack.c.l.b16 %v6929
    %v7902 = vunpack.c.l.b16 %v6930
    %v7903 = vunpack.c.h.b16 %v6930
    %v7904 = vunpack.c.l.b16 %v6931
    %v7905 = vunpack.c.l.b16 %v6932
    %v7906 = vunpack.c.h.b16 %v6932
    %v7907 = vunpack.c.l.b16 %v6933
    %v7908 = vunpack.c.l.b16 %v6934
    %v7909 = vunpack.c.h.b16 %v6934
    %v7910 = vunpack.c.l.b16 %v6935
    %v7911 = vunpack.c.l.b16 %v6936
    %v7912 = vunpack.c.h.b16 %v6936
    %v7913 = vunpack.c.l.b16 %v6937
    %v7914 = vunpack.c.l.b16 %v6938
    %v7915 = vunpack.c.h.b16 %v6938
    %v7916 = vunpack.c.l.b16 %v6939
    %v7917 = vpack.c.b16 %v7344, %v7341
    %v7918 = vpack.c.b16 %v7345, %v7342
    %v7919 = vpack.c.b16 %v7346, %v7343
    %v7920 = vpack.c.b16 %v7350, %v7347
    %v7921 = vpack.c.b16 %v7351, %v7348
    %v7922 = vpack.c.b16 %v7352, %v7349
    %v7923 = vpack.c.b16 %v7356, %v7353
    %v7924 = vpack.c.b16 %v7357, %v7354
    %v7925 = vpack.c.b16 %v7358, %v7355
    %v7926 = vpack.c.b16 %v7362, %v7359
    %v7927 = vpack.c.b16 %v7363, %v7360
    %v7928 = vpack.c.b16 %v7364, %v7361
    %v7929 = vpack.c.b16 %v7368, %v7365
    %v7930 = vpack.c.b16 %v7369, %v7366
    %v7931 = vpack.c.b16 %v7370, %v7367
    %v7932 = vpack.c.b16 %v7374, %v7371
    %v7933 = vpack.c.b16 %v7375, %v7372
    %v7934 = vpack.c.b16 %v7376, %v7373
    %v7935 = vpack.c.b16 %v7380, %v7377
    %v7936 = vpack.c.b16 %v7381, %v7378
    %v7937 = vpack.c.b16 %v7382, %v7379
    %v7938 = vpack.c.b16 %v7386, %v7383
    %v7939 = vpack.c.b16 %v7387, %v7384
    %v7940 = vpack.c.b16 %v7388, %v7385
    %v7941 = vpack.c.b16 %v7392, %v7389
    %v7942 = vpack.c.b16 %v7393, %v7390
    %v7943 = vpack.c.b16 %v7394, %v7391
    %v7944 = vpack.c.b16 %v7398, %v7395
    %v7945 = vpack.c.b16 %v7399, %v7396
    %v7946 = vpack.c.b16 %v7400, %v7397
    %v7947 = vpack.c.b16 %v7404, %v7401
    %v7948 = vpack.c.b16 %v7405, %v7402
    %v7949 = vpack.c.b16 %v7406, %v7403
    %v7950 = vpack.c.b16 %v7410, %v7407
    %v7951 = vpack.c.b16 %v7411, %v7408
    %v7952 = vpack.c.b16 %v7412, %v7409
    %v7953 = vpack.c.b16 %v7416, %v7413
    %v7954 = vpack.c.b16 %v7417, %v7414
    %v7955 = vpack.c.b16 %v7418, %v7415
    %v7956 = vpack.c.b16 %v7422, %v7419
    %v7957 = vpack.c.b16 %v7423, %v7420
    %v7958 = vpack.c.b16 %v7424, %v7421
    %v7959 = vpack.c.b16 %v7428, %v7425
    %v7960 = vpack.c.b16 %v7429, %v7426
    %v7961 = vpack.c.b16 %v7430, %v7427
    %v7962 = vpack.c.b16 %v7434, %v7431
    %v7963 = vpack.c.b16 %v7435, %v7432
    %v7964 = vpack.c.b16 %v7436, %v7433
    %v7965 = vpack.c.b16 %v7440, %v7437
    %v7966 = vpack.c.b16 %v7441, %v7438
    %v7967 = vpack.c.b16 %v7442, %v7439
    %v7968 = vpack.c.b16 %v7446, %v7443
    %v7969 = vpack.c.b16 %v7447, %v7444
    %v7970 = vpack.c.b16 %v7448, %v7445
    %v7971 = vpack.c.b16 %v7452, %v7449
    %v7972 = vpack.c.b16 %v7453, %v7450
    %v7973 = vpack.c.b16 %v7454, %v7451
    %v7974 = vpack.c.b16 %v7458, %v7455
    %v7975 = vpack.c.b16 %v7459, %v7456
    %v7976 = vpack.c.b16 %v7460, %v7457
    %v7977 = vpack.c.b16 %v7464, %v7461
    %v7978 = vpack.c.b16 %v7465, %v7462
    %v7979 = vpack.c.b16 %v7466, %v7463
    %v7980 = vpack.c.b16 %v7470, %v7467
    %v7981 = vpack.c.b16 %v7471, %v7468
    %v7982 = vpack.c.b16 %v7472, %v7469
    %v7983 = vpack.c.b16 %v7476, %v7473
    %v7984 = vpack.c.b16 %v7477, %v7474
    %v7985 = vpack.c.b16 %v7478, %v7475
    %v7986 = vpack.c.b16 %v7482, %v7479
    %v7987 = vpack.c.b16 %v7483, %v7480
    %v7988 = vpack.c.b16 %v7484, %v7481
    %v7989 = vpack.c.b16 %v7488, %v7485
    %v7990 = vpack.c.b16 %v7489, %v7486
    %v7991 = vpack.c.b16 %v7490, %v7487
    %v7992 = vpack.c.b16 %v7494, %v7491
    %v7993 = vpack.c.b16 %v7495, %v7492
    %v7994 = vpack.c.b16 %v7496, %v7493
    %v7995 = vpack.c.b16 %v7500, %v7497
    %v7996 = vpack.c.b16 %v7501, %v7498
    %v7997 = vpack.c.b16 %v7502, %v7499
    %v7998 = vpack.c.b16 %v7506, %v7503
    %v7999 = vpack.c.b16 %v7507, %v7504
    %v8000 = vpack.c.b16 %v7508, %v7505
    %v8001 = vpack.c.b16 %v7512, %v7509
    %v8002 = vpack.c.b16 %v7513, %v7510
    %v8003 = vpack.c.b16 %v7514, %v7511
    %v8004 = vpack.c.b16 %v7518, %v7515
    %v8005 = vpack.c.b16 %v7519, %v7516
    %v8006 = vpack.c.b16 %v7520, %v7517
    %v8007 = vpack.c.b16 %v7524, %v7521
    %v8008 = vpack.c.b16 %v7525, %v7522
    %v8009 = vpack.c.b16 %v7526, %v7523
    %v8010 = vpack.c.b16 %v7530, %v7527
    %v8011 = vpack.c.b16 %v7531, %v7528
    %v8012 = vpack.c.b16 %v7532, %v7529
    %v8013 = vpack.c.b16 %v7536, %v7533
    %v8014 = vpack.c.b16 %v7537, %v7534
    %v8015 = vpack.c.b16 %v7538, %v7535
    %v8016 = vpack.c.b16 %v7542, %v7539
    %v8017 = vpack.c.b16 %v7543, %v7540
    %v8018 = vpack.c.b16 %v7544, %v7541
    %v8019 = vpack.c.b16 %v7548, %v7545
    %v8020 = vpack.c.b16 %v7549, %v7546
    %v8021 = vpack.c.b16 %v7550, %v7547
    %v8022 = vpack.c.b16 %v7554, %v7551
    %v8023 = vpack.c.b16 %v7555, %v7552
    %v8024 = vpack.c.b16 %v7556, %v7553
    %v8025 = vpack.c.b16 %v7560, %v7557
    %v8026 = vpack.c.b16 %v7561, %v7558
    %v8027 = vpack.c.b16 %v7562, %v7559
    %v8028 = vpack.c.b16 %v7566, %v7563
    %v8029 = vpack.c.b16 %v7567, %v7564
    %v8030 = vpack.c.b16 %v7568, %v7565
    %v8031 = vpack.c.b16 %v7572, %v7569
    %v8032 = vpack.c.b16 %v7573, %v7570
    %v8033 = vpack.c.b16 %v7574, %v7571
    %v8034 = vpack.c.b16 %v7578, %v7575
    %v8035 = vpack.c.b16 %v7579, %v7576
    %v8036 = vpack.c.b16 %v7580, %v7577
    %v8037 = vpack.c.b16 %v7584, %v7581
    %v8038 = vpack.c.b16 %v7585, %v7582
    %v8039 = vpack.c.b16 %v7586, %v7583
    %v8040 = vpack.c.b16 %v7590, %v7587
    %v8041 = vpack.c.b16 %v7591, %v7588
    %v8042 = vpack.c.b16 %v7592, %v7589
    %v8043 = vpack.c.b16 %v7596, %v7593
    %v8044 = vpack.c.b16 %v7597, %v7594
    %v8045 = vpack.c.b16 %v7598, %v7595
    %v8046 = vpack.c.b16 %v7602, %v7599
    %v8047 = vpack.c.b16 %v7603, %v7600
    %v8048 = vpack.c.b16 %v7604, %v7601
    %v8049 = vpack.c.b16 %v7608, %v7605
    %v8050 = vpack.c.b16 %v7609, %v7606
    %v8051 = vpack.c.b16 %v7610, %v7607
    %v8052 = vpack.c.b16 %v7614, %v7611
    %v8053 = vpack.c.b16 %v7615, %v7612
    %v8054 = vpack.c.b16 %v7616, %v7613
    %v8055 = vpack.c.b16 %v7620, %v7617
    %v8056 = vpack.c.b16 %v7621, %v7618
    %v8057 = vpack.c.b16 %v7622, %v7619
    %v8058 = vpack.c.b16 %v7626, %v7623
    %v8059 = vpack.c.b16 %v7627, %v7624
    %v8060 = vpack.c.b16 %v7628, %v7625
    %v8061 = vpack.c.b16 %v7632, %v7629
    %v8062 = vpack.c.b16 %v7633, %v7630
    %v8063 = vpack.c.b16 %v7634, %v7631
    %v8064 = vpack.c.b16 %v7638, %v7635
    %v8065 = vpack.c.b16 %v7639, %v7636
    %v8066 = vpack.c.b16 %v7640, %v7637
    %v8067 = vpack.c.b16 %v7644, %v7641
    %v8068 = vpack.c.b16 %v7645, %v7642
    %v8069 = vpack.c.b16 %v7646, %v7643
    %v8070 = vpack.c.b16 %v7650, %v7647
    %v8071 = vpack.c.b16 %v7651, %v7648
    %v8072 = vpack.c.b16 %v7652, %v7649
    %v8073 = vpack.c.b16 %v7656, %v7653
    %v8074 = vpack.c.b16 %v7657, %v7654
    %v8075 = vpack.c.b16 %v7658, %v7655
    %v8076 = vpack.c.b16 %v7662, %v7659
    %v8077 = vpack.c.b16 %v7663, %v7660
    %v8078 = vpack.c.b16 %v7664, %v7661
    %v8079 = vpack.c.b16 %v7668, %v7665
    %v8080 = vpack.c.b16 %v7669, %v7666
    %v8081 = vpack.c.b16 %v7670, %v7667
    %v8082 = vpack.c.b16 %v7674, %v7671
    %v8083 = vpack.c.b16 %v7675, %v7672
    %v8084 = vpack.c.b16 %v7676, %v7673
    %v8085 = vpack.c.b16 %v7680, %v7677
    %v8086 = vpack.c.b16 %v7681, %v7678
    %v8087 = vpack.c.b16 %v7682, %v7679
    %v8088 = vpack.c.b16 %v7686, %v7683
    %v8089 = vpack.c.b16 %v7687, %v7684
    %v8090 = vpack.c.b16 %v7688, %v7685
    %v8091 = vpack.c.b16 %v7692, %v7689
    %v8092 = vpack.c.b16 %v7693, %v7690
    %v8093 = vpack.c.b16 %v7694, %v7691
    %v8094 = vpack.c.b16 %v7698, %v7695
    %v8095 = vpack.c.b16 %v7699, %v7696
    %v8096 = vpack.c.b16 %v7700, %v7697
    %v8097 = vpack.c.b16 %v7704, %v7701
    %v8098 = vpack.c.b16 %v7705, %v7702
    %v8099 = vpack.c.b16 %v7706, %v7703
    %v8100 = vpack.c.b16 %v7710, %v7707
    %v8101 = vpack.c.b16 %v7711, %v7708
    %v8102 = vpack.c.b16 %v7712, %v7709
    %v8103 = vpack.c.b16 %v7716, %v7713
    %v8104 = vpack.c.b16 %v7717, %v7714
    %v8105 = vpack.c.b16 %v7718, %v7715
    %v8106 = vpack.c.b16 %v7722, %v7719
    %v8107 = vpack.c.b16 %v7723, %v7720
    %v8108 = vpack.c.b16 %v7724, %v7721
    %v8109 = vpack.c.b16 %v7728, %v7725
    %v8110 = vpack.c.b16 %v7729, %v7726
    %v8111 = vpack.c.b16 %v7730, %v7727
    %v8112 = vpack.c.b16 %v7734, %v7731
    %v8113 = vpack.c.b16 %v7735, %v7732
    %v8114 = vpack.c.b16 %v7736, %v7733
    %v8115 = vpack.c.b16 %v7740, %v7737
    %v8116 = vpack.c.b16 %v7741, %v7738
    %v8117 = vpack.c.b16 %v7742, %v7739
    %v8118 = vpack.c.b16 %v7746, %v7743
    %v8119 = vpack.c.b16 %v7747, %v7744
    %v8120 = vpack.c.b16 %v7748, %v7745
    %v8121 = vpack.c.b16 %v7752, %v7749
    %v8122 = vpack.c.b16 %v7753, %v7750
    %v8123 = vpack.c.b16 %v7754, %v7751
    %v8124 = vpack.c.b16 %v7758, %v7755
    %v8125 = vpack.c.b16 %v7759, %v7756
    %v8126 = vpack.c.b16 %v7760, %v7757
    %v8127 = vpack.c.b16 %v7764, %v7761
    %v8128 = vpack.c.b16 %v7765, %v7762
    %v8129 = vpack.c.b16 %v7766, %v7763
    %v8130 = vpack.c.b16 %v7770, %v7767
    %v8131 = vpack.c.b16 %v7771, %v7768
    %v8132 = vpack.c.b16 %v7772, %v7769
    %v8133 = vpack.c.b16 %v7776, %v7773
    %v8134 = vpack.c.b16 %v7777, %v7774
    %v8135 = vpack.c.b16 %v7778, %v7775
    %v8136 = vpack.c.b16 %v7782, %v7779
    %v8137 = vpack.c.b16 %v7783, %v7780
    %v8138 = vpack.c.b16 %v7784, %v7781
    %v8139 = vpack.c.b16 %v7788, %v7785
    %v8140 = vpack.c.b16 %v7789, %v7786
    %v8141 = vpack.c.b16 %v7790, %v7787
    %v8142 = vpack.c.b16 %v7794, %v7791
    %v8143 = vpack.c.b16 %v7795, %v7792
    %v8144 = vpack.c.b16 %v7796, %v7793
    %v8145 = vpack.c.b16 %v7800, %v7797
    %v8146 = vpack.c.b16 %v7801, %v7798
    %v8147 = vpack.c.b16 %v7802, %v7799
    %v8148 = vpack.c.b16 %v7806, %v7803
    %v8149 = vpack.c.b16 %v7807, %v7804
    %v8150 = vpack.c.b16 %v7808, %v7805
    %v8151 = vpack.c.b16 %v7812, %v7809
    %v8152 = vpack.c.b16 %v7813, %v7810
    %v8153 = vpack.c.b16 %v7814, %v7811
    %v8154 = vpack.c.b16 %v7818, %v7815
    %v8155 = vpack.c.b16 %v7819, %v7816
    %v8156 = vpack.c.b16 %v7820, %v7817
    %v8157 = vpack.c.b16 %v7824, %v7821
    %v8158 = vpack.c.b16 %v7825, %v7822
    %v8159 = vpack.c.b16 %v7826, %v7823
    %v8160 = vpack.c.b16 %v7830, %v7827
    %v8161 = vpack.c.b16 %v7831, %v7828
    %v8162 = vpack.c.b16 %v7832, %v7829
    %v8163 = vpack.c.b16 %v7836, %v7833
    %v8164 = vpack.c.b16 %v7837, %v7834
    %v8165 = vpack.c.b16 %v7838, %v7835
    %v8166 = vpack.c.b16 %v7842, %v7839
    %v8167 = vpack.c.b16 %v7843, %v7840
    %v8168 = vpack.c.b16 %v7844, %v7841
    %v8169 = vpack.c.b16 %v7848, %v7845
    %v8170 = vpack.c.b16 %v7849, %v7846
    %v8171 = vpack.c.b16 %v7850, %v7847
    %v8172 = vpack.c.b16 %v7854, %v7851
    %v8173 = vpack.c.b16 %v7855, %v7852
    %v8174 = vpack.c.b16 %v7856, %v7853
    %v8175 = vpack.c.b16 %v7860, %v7857
    %v8176 = vpack.c.b16 %v7861, %v7858
    %v8177 = vpack.c.b16 %v7862, %v7859
    %v8178 = vpack.c.b16 %v7866, %v7863
    %v8179 = vpack.c.b16 %v7867, %v7864
    %v8180 = vpack.c.b16 %v7868, %v7865
    %v8181 = vpack.c.b16 %v7872, %v7869
    %v8182 = vpack.c.b16 %v7873, %v7870
    %v8183 = vpack.c.b16 %v7874, %v7871
    %v8184 = vpack.c.b16 %v7878, %v7875
    %v8185 = vpack.c.b16 %v7879, %v7876
    %v8186 = vpack.c.b16 %v7880, %v7877
    %v8187 = vpack.c.b16 %v7884, %v7881
    %v8188 = vpack.c.b16 %v7885, %v7882
    %v8189 = vpack.c.b16 %v7886, %v7883
    %v8190 = vpack.c.b16 %v7890, %v7887
    %v8191 = vpack.c.b16 %v7891, %v7888
    %v8192 = vpack.c.b16 %v7892, %v7889
    %v8193 = vpack.c.b16 %v7896, %v7893
    %v8194 = vpack.c.b16 %v7897, %v7894
    %v8195 = vpack.c.b16 %v7898, %v7895
    %v8196 = vpack.c.b16 %v7902, %v7899
    %v8197 = vpack.c.b16 %v7903, %v7900
    %v8198 = vpack.c.b16 %v7904, %v7901
    %v8199 = vpack.c.b16 %v7908, %v7905
    %v8200 = vpack.c.b16 %v7909, %v7906
    %v8201 = vpack.c.b16 %v7910, %v7907
    %v8202 = vpack.c.b16 %v7914, %v7911
    %v8203 = vpack.c.b16 %v7915, %v7912
    %v8204 = vpack.c.b16 %v7916, %v7913
    %8493 = vmatprep.subr.bf16.mxu0 %v7918
    %8494 = vmatpush1.bf16.msra.mxu0 %v7917
    %8495 = vmatprep.subr.bf16.mxu0 %v7921
    %8496 = vmatpush1.bf16.msra.mxu0 %v7920
    %8497 = vmatprep.subr.bf16.mxu0 %v7924
    %8498 = vmatpush1.bf16.msra.mxu0 %v7923
    %8499 = vmatprep.subr.bf16.mxu0 %v7927
    %8500 = vmatpush1.bf16.msra.mxu0 %v7926
    %8501 = vmatprep.subr.bf16.mxu0 %v7930
    %8502 = vmatpush1.bf16.msra.mxu0 %v7929
    %8503 = vmatprep.subr.bf16.mxu0 %v7933
    %8504 = vmatpush1.bf16.msra.mxu0 %v7932
    %8505 = vmatprep.subr.bf16.mxu0 %v7936
    %8506 = vmatpush1.bf16.msra.mxu0 %v7935
    %8507 = vmatprep.subr.bf16.mxu0 %v7939
    %8508 = vmatpush1.bf16.msra.mxu0 %v7938
    %8509 = vmatprep.subr.bf16.mxu0 %v7942
    %8510 = vmatpush1.bf16.msra.mxu0 %v7941
    %8511 = vmatprep.subr.bf16.mxu0 %v7945
    %8512 = vmatpush1.bf16.msra.mxu0 %v7944
    %8513 = vmatprep.subr.bf16.mxu0 %v7948
    %8514 = vmatpush1.bf16.msra.mxu0 %v7947
    %8515 = vmatprep.subr.bf16.mxu0 %v7951
    %8516 = vmatpush1.bf16.msra.mxu0 %v7950
    %8517 = vmatprep.subr.bf16.mxu0 %v7954
    %8518 = vmatpush1.bf16.msra.mxu0 %v7953
    %8519 = vmatprep.subr.bf16.mxu0 %v7957
    %8520 = vmatpush1.bf16.msra.mxu0 %v7956
    %8521 = vmatprep.subr.bf16.mxu0 %v7960
    %8522 = vmatpush1.bf16.msra.mxu0 %v7959
    %8523 = vmatprep.subr.bf16.mxu0 %v7963
    %8524 = vmatpush1.bf16.msra.mxu0 %v7962
    %8525 = vmatprep.mubr.bf16.mxu0 %v6545
    %8526 = vmatmul.mubr.bf16.gmra.mrb[0].mxu0 %v6544
    %v8527 = vpop.f32.mrb[0].mxu0
    %v8528 = vadd.f32 %v6945, %v8527
    %v8529 = vpop.f32.mrb[0].mxu0
    %v8530 = vadd.f32 %v6949, %v8529
    %v8531 = vpop.f32.mrb[0].mxu0
    %v8532 = vadd.f32 %v6945, %v8531
    %v8533 = vpop.f32.mrb[0].mxu0
    %v8534 = vadd.f32 %v6949, %v8533
    %8535 = vdwg.mxu0
    %8536 = vmatprep.subr.bf16.mxu0 %v7966
    %8537 = vmatpush1.bf16.msra.mxu0 %v7965
    %8538 = vmatprep.subr.bf16.mxu0 %v7969
    %8539 = vmatpush1.bf16.msra.mxu0 %v7968
    %8540 = vmatprep.subr.bf16.mxu0 %v7972
    %8541 = vmatpush1.bf16.msra.mxu0 %v7971
    %8542 = vmatprep.subr.bf16.mxu0 %v7975
    %8543 = vmatpush1.bf16.msra.mxu0 %v7974
    %8544 = vmatprep.subr.bf16.mxu0 %v7978
    %8545 = vmatpush1.bf16.msra.mxu0 %v7977
    %8546 = vmatprep.subr.bf16.mxu0 %v7981
    %8547 = vmatpush1.bf16.msra.mxu0 %v7980
    %8548 = vmatprep.subr.bf16.mxu0 %v7984
    %8549 = vmatpush1.bf16.msra.mxu0 %v7983
    %8550 = vmatprep.subr.bf16.mxu0 %v7987
    %8551 = vmatpush1.bf16.msra.mxu0 %v7986
    %8552 = vmatprep.subr.bf16.mxu0 %v7990
    %8553 = vmatpush1.bf16.msra.mxu0 %v7989
    %8554 = vmatprep.subr.bf16.mxu0 %v7993
    %8555 = vmatpush1.bf16.msra.mxu0 %v7992
    %8556 = vmatprep.subr.bf16.mxu0 %v7996
    %8557 = vmatpush1.bf16.msra.mxu0 %v7995
    %8558 = vmatprep.subr.bf16.mxu0 %v7999
    %8559 = vmatpush1.bf16.msra.mxu0 %v7998
    %8560 = vmatprep.subr.bf16.mxu0 %v8002
    %8561 = vmatpush1.bf16.msra.mxu0 %v8001
    %8562 = vmatprep.subr.bf16.mxu0 %v8005
    %8563 = vmatpush1.bf16.msra.mxu0 %v8004
    %8564 = vmatprep.subr.bf16.mxu0 %v8008
    %8565 = vmatpush1.bf16.msra.mxu0 %v8007
    %8566 = vmatprep.subr.bf16.mxu0 %v8011
    %8567 = vmatpush1.bf16.msra.mxu0 %v8010
    %8568 = vmatprep.mubr.bf16.mxu0 %v6547
    %8569 = vmatmul.mubr.bf16.gmra.mrb[0].mxu0 %v6546
    %v8570 = vpop.f32.mrb[0].mxu0
    %v8571 = vadd.f32 %v8528, %v8570
    %v8572 = vpop.f32.mrb[0].mxu0
    %v8573 = vadd.f32 %v8530, %v8572
    %v8574 = vpop.f32.mrb[0].mxu0
    %v8575 = vadd.f32 %v8532, %v8574
    %v8576 = vpop.f32.mrb[0].mxu0
    %v8577 = vadd.f32 %v8534, %v8576
    %8578 = vdwg.mxu0
    %8579 = vmatprep.subr.bf16.mxu0 %v8014
    %8580 = vmatpush1.bf16.msra.mxu0 %v8013
    %8581 = vmatprep.subr.bf16.mxu0 %v8017
    %8582 = vmatpush1.bf16.msra.mxu0 %v8016
    %8583 = vmatprep.subr.bf16.mxu0 %v8020
    %8584 = vmatpush1.bf16.msra.mxu0 %v8019
    %8585 = vmatprep.subr.bf16.mxu0 %v8023
    %8586 = vmatpush1.bf16.msra.mxu0 %v8022
    %8587 = vmatprep.subr.bf16.mxu0 %v8026
    %8588 = vmatpush1.bf16.msra.mxu0 %v8025
    %8589 = vmatprep.subr.bf16.mxu0 %v8029
    %8590 = vmatpush1.bf16.msra.mxu0 %v8028
    %8591 = vmatprep.subr.bf16.mxu0 %v8032
    %8592 = vmatpush1.bf16.msra.mxu0 %v8031
    %8593 = vmatprep.subr.bf16.mxu0 %v8035
    %8594 = vmatpush1.bf16.msra.mxu0 %v8034
    %8595 = vmatprep.subr.bf16.mxu0 %v8038
    %8596 = vmatpush1.bf16.msra.mxu0 %v8037
    %8597 = vmatprep.subr.bf16.mxu0 %v8041
    %8598 = vmatpush1.bf16.msra.mxu0 %v8040
    %8599 = vmatprep.subr.bf16.mxu0 %v8044
    %8600 = vmatpush1.bf16.msra.mxu0 %v8043
    %8601 = vmatprep.subr.bf16.mxu0 %v8047
    %8602 = vmatpush1.bf16.msra.mxu0 %v8046
    %8603 = vmatprep.subr.bf16.mxu0 %v8050
    %8604 = vmatpush1.bf16.msra.mxu0 %v8049
    %8605 = vmatprep.subr.bf16.mxu0 %v8053
    %8606 = vmatpush1.bf16.msra.mxu0 %v8052
    %8607 = vmatprep.subr.bf16.mxu0 %v8056
    %8608 = vmatpush1.bf16.msra.mxu0 %v8055
    %8609 = vmatprep.subr.bf16.mxu0 %v8059
    %8610 = vmatpush1.bf16.msra.mxu0 %v8058
    %8611 = vmatprep.mubr.bf16.mxu0 %v6549
    %8612 = vmatmul.mubr.bf16.gmra.mrb[0].mxu0 %v6548
    %v8613 = vpop.f32.mrb[0].mxu0
    %v8614 = vadd.f32 %v8571, %v8613
    %v8615 = vpop.f32.mrb[0].mxu0
    %v8616 = vadd.f32 %v8573, %v8615
    %v8617 = vpop.f32.mrb[0].mxu0
    %v8618 = vadd.f32 %v8575, %v8617
    %v8619 = vpop.f32.mrb[0].mxu0
    %v8620 = vadd.f32 %v8577, %v8619
    %8621 = vdwg.mxu0
    %8622 = vmatprep.subr.bf16.mxu0 %v8062
    %8623 = vmatpush1.bf16.msra.mxu0 %v8061
    %8624 = vmatprep.subr.bf16.mxu0 %v8065
    %8625 = vmatpush1.bf16.msra.mxu0 %v8064
    %8626 = vmatprep.subr.bf16.mxu0 %v8068
    %8627 = vmatpush1.bf16.msra.mxu0 %v8067
    %8628 = vmatprep.subr.bf16.mxu0 %v8071
    %8629 = vmatpush1.bf16.msra.mxu0 %v8070
    %8630 = vmatprep.subr.bf16.mxu0 %v8074
    %8631 = vmatpush1.bf16.msra.mxu0 %v8073
    %8632 = vmatprep.subr.bf16.mxu0 %v8077
    %8633 = vmatpush1.bf16.msra.mxu0 %v8076
    %8634 = vmatprep.subr.bf16.mxu0 %v8080
    %8635 = vmatpush1.bf16.msra.mxu0 %v8079
    %8636 = vmatprep.subr.bf16.mxu0 %v8083
    %8637 = vmatpush1.bf16.msra.mxu0 %v8082
    %8638 = vmatprep.subr.bf16.mxu0 %v8086
    %8639 = vmatpush1.bf16.msra.mxu0 %v8085
    %8640 = vmatprep.subr.bf16.mxu0 %v8089
    %8641 = vmatpush1.bf16.msra.mxu0 %v8088
    %8642 = vmatprep.subr.bf16.mxu0 %v8092
    %8643 = vmatpush1.bf16.msra.mxu0 %v8091
    %8644 = vmatprep.subr.bf16.mxu0 %v8095
    %8645 = vmatpush1.bf16.msra.mxu0 %v8094
    %8646 = vmatprep.subr.bf16.mxu0 %v8098
    %8647 = vmatpush1.bf16.msra.mxu0 %v8097
    %8648 = vmatprep.subr.bf16.mxu0 %v8101
    %8649 = vmatpush1.bf16.msra.mxu0 %v8100
    %8650 = vmatprep.subr.bf16.mxu0 %v8104
    %8651 = vmatpush1.bf16.msra.mxu0 %v8103
    %8652 = vmatprep.subr.bf16.mxu0 %v8107
    %8653 = vmatpush1.bf16.msra.mxu0 %v8106
    %8654 = vmatprep.mubr.bf16.mxu0 %v6551
    %8655 = vmatmul.mubr.bf16.gmra.mrb[0].mxu0 %v6550
    %v8656 = vpop.f32.mrb[0].mxu0
    %v8657 = vadd.f32 %v8614, %v8656
    %v8658 = vpop.f32.mrb[0].mxu0
    %v8659 = vadd.f32 %v8616, %v8658
    %v8660 = vpop.f32.mrb[0].mxu0
    %v8661 = vadd.f32 %v8618, %v8660
    %v8662 = vpop.f32.mrb[0].mxu0
    %v8663 = vadd.f32 %v8620, %v8662
    %8664 = vdwg.mxu0
    %8665 = vmatprep.subr.bf16.mxu0 %v8110
    %8666 = vmatpush1.bf16.msra.mxu0 %v8109
    %8667 = vmatprep.subr.bf16.mxu0 %v8113
    %8668 = vmatpush1.bf16.msra.mxu0 %v8112
    %8669 = vmatprep.subr.bf16.mxu0 %v8116
    %8670 = vmatpush1.bf16.msra.mxu0 %v8115
    %8671 = vmatprep.subr.bf16.mxu0 %v8119
    %8672 = vmatpush1.bf16.msra.mxu0 %v8118
    %8673 = vmatprep.subr.bf16.mxu0 %v8122
    %8674 = vmatpush1.bf16.msra.mxu0 %v8121
    %8675 = vmatprep.subr.bf16.mxu0 %v8125
    %8676 = vmatpush1.bf16.msra.mxu0 %v8124
    %8677 = vmatprep.subr.bf16.mxu0 %v8128
    %8678 = vmatpush1.bf16.msra.mxu0 %v8127
    %8679 = vmatprep.subr.bf16.mxu0 %v8131
    %8680 = vmatpush1.bf16.msra.mxu0 %v8130
    %8681 = vmatprep.subr.bf16.mxu0 %v8134
    %8682 = vmatpush1.bf16.msra.mxu0 %v8133
    %8683 = vmatprep.subr.bf16.mxu0 %v8137
    %8684 = vmatpush1.bf16.msra.mxu0 %v8136
    %8685 = vmatprep.subr.bf16.mxu0 %v8140
    %8686 = vmatpush1.bf16.msra.mxu0 %v8139
    %8687 = vmatprep.subr.bf16.mxu0 %v8143
    %8688 = vmatpush1.bf16.msra.mxu0 %v8142
    %8689 = vmatprep.subr.bf16.mxu0 %v8146
    %8690 = vmatpush1.bf16.msra.mxu0 %v8145
    %8691 = vmatprep.subr.bf16.mxu0 %v8149
    %8692 = vmatpush1.bf16.msra.mxu0 %v8148
    %8693 = vmatprep.subr.bf16.mxu0 %v8152
    %8694 = vmatpush1.bf16.msra.mxu0 %v8151
    %8695 = vmatprep.subr.bf16.mxu0 %v8155
    %8696 = vmatpush1.bf16.msra.mxu0 %v8154
    %8697 = vmatprep.mubr.bf16.mxu0 %v6553
    %8698 = vmatmul.mubr.bf16.gmra.mrb[0].mxu0 %v6552
    %v8699 = vpop.f32.mrb[0].mxu0
    %v8700 = vadd.f32 %v8657, %v8699
    %v8701 = vpop.f32.mrb[0].mxu0
    %v8702 = vadd.f32 %v8659, %v8701
    %v8703 = vpop.f32.mrb[0].mxu0
    %v8704 = vadd.f32 %v8661, %v8703
    %v8705 = vpop.f32.mrb[0].mxu0
    %v8706 = vadd.f32 %v8663, %v8705
    %8707 = vdwg.mxu0
    %8708 = vmatprep.subr.bf16.mxu0 %v8158
    %8709 = vmatpush1.bf16.msra.mxu0 %v8157
    %8710 = vmatprep.subr.bf16.mxu0 %v8161
    %8711 = vmatpush1.bf16.msra.mxu0 %v8160
    %8712 = vmatprep.subr.bf16.mxu0 %v8164
    %8713 = vmatpush1.bf16.msra.mxu0 %v8163
    %8714 = vmatprep.subr.bf16.mxu0 %v8167
    %8715 = vmatpush1.bf16.msra.mxu0 %v8166
    %8716 = vmatprep.subr.bf16.mxu0 %v8170
    %8717 = vmatpush1.bf16.msra.mxu0 %v8169
    %8718 = vmatprep.subr.bf16.mxu0 %v8173
    %8719 = vmatpush1.bf16.msra.mxu0 %v8172
    %8720 = vmatprep.subr.bf16.mxu0 %v8176
    %8721 = vmatpush1.bf16.msra.mxu0 %v8175
    %8722 = vmatprep.subr.bf16.mxu0 %v8179
    %8723 = vmatpush1.bf16.msra.mxu0 %v8178
    %8724 = vmatprep.subr.bf16.mxu0 %v8182
    %8725 = vmatpush1.bf16.msra.mxu0 %v8181
    %8726 = vmatprep.subr.bf16.mxu0 %v8185
    %8727 = vmatpush1.bf16.msra.mxu0 %v8184
    %8728 = vmatprep.subr.bf16.mxu0 %v8188
    %8729 = vmatpush1.bf16.msra.mxu0 %v8187
    %8730 = vmatprep.subr.bf16.mxu0 %v8191
    %8731 = vmatpush1.bf16.msra.mxu0 %v8190
    %8732 = vmatprep.subr.bf16.mxu0 %v8194
    %8733 = vmatpush1.bf16.msra.mxu0 %v8193
    %8734 = vmatprep.subr.bf16.mxu0 %v8197
    %8735 = vmatpush1.bf16.msra.mxu0 %v8196
    %8736 = vmatprep.subr.bf16.mxu0 %v8200
    %8737 = vmatpush1.bf16.msra.mxu0 %v8199
    %8738 = vmatprep.subr.bf16.mxu0 %v8203
    %8739 = vmatpush1.bf16.msra.mxu0 %v8202
    %8740 = vmatprep.mubr.bf16.mxu0 %v6555
    %8741 = vmatmul.mubr.bf16.gmra.mrb[0].mxu0 %v6554
    %v8742 = vpop.f32.mrb[0].mxu0
    %v8743 = vadd.f32 %v8700, %v8742
    %v8744 = vpop.f32.mrb[0].mxu0
    %v8745 = vadd.f32 %v8702, %v8744
    %v8746 = vpop.f32.mrb[0].mxu0
    %v8747 = vadd.f32 %v8704, %v8746
    %v8748 = vpop.f32.mrb[0].mxu0
    %v8749 = vadd.f32 %v8706, %v8748
    %8750 = vdwg.mxu0
    %8751 = vmatprep.subr.bf16.mxu0 0
    %8752 = vmatpush1.bf16.msra.mxu0 %v7919
    %8753 = vmatprep.subr.bf16.mxu0 0
    %8754 = vmatpush1.bf16.msra.mxu0 %v7922
    %8755 = vmatprep.subr.bf16.mxu0 0
    %8756 = vmatpush1.bf16.msra.mxu0 %v7925
    %8757 = vmatprep.subr.bf16.mxu0 0
    %8758 = vmatpush1.bf16.msra.mxu0 %v7928
    %8759 = vmatprep.subr.bf16.mxu0 0
    %8760 = vmatpush1.bf16.msra.mxu0 %v7931
    %8761 = vmatprep.subr.bf16.mxu0 0
    %8762 = vmatpush1.bf16.msra.mxu0 %v7934
    %8763 = vmatprep.subr.bf16.mxu0 0
    %8764 = vmatpush1.bf16.msra.mxu0 %v7937
    %8765 = vmatprep.subr.bf16.mxu0 0
    %8766 = vmatpush1.bf16.msra.mxu0 %v7940
    %8767 = vmatprep.subr.bf16.mxu0 0
    %8768 = vmatpush1.bf16.msra.mxu0 %v7943
    %8769 = vmatprep.subr.bf16.mxu0 0
    %8770 = vmatpush1.bf16.msra.mxu0 %v7946
    %8771 = vmatprep.subr.bf16.mxu0 0
    %8772 = vmatpush1.bf16.msra.mxu0 %v7949
    %8773 = vmatprep.subr.bf16.mxu0 0
    %8774 = vmatpush1.bf16.msra.mxu0 %v7952
    %8775 = vmatprep.subr.bf16.mxu0 0
    %8776 = vmatpush1.bf16.msra.mxu0 %v7955
    %8777 = vmatprep.subr.bf16.mxu0 0
    %8778 = vmatpush1.bf16.msra.mxu0 %v7958
    %8779 = vmatprep.subr.bf16.mxu0 0
    %8780 = vmatpush1.bf16.msra.mxu0 %v7961
    %8781 = vmatprep.subr.bf16.mxu0 0
    %8782 = vmatpush1.bf16.msra.mxu0 %v7964
    %8783 = vmatprep.mubr.bf16.mxu0 %v6545
    %8784 = vmatmul.mubr.bf16.gmra.mrb[0].mxu0 %v6544
    %v8785 = vpop.f32.mrb[0].mxu0
    %v8786 = vadd.f32 %v6953, %v8785
    %v8787 = vpop.f32.mrb[0].mxu0
    %v8788 = vpop.f32.mrb[0].mxu0
    %v8789 = vadd.f32 %v6953, %v8788
    %v8790 = vpop.f32.mrb[0].mxu0
    %8791 = vdwg.mxu0
    %8792 = vmatprep.subr.bf16.mxu0 0
    %8793 = vmatpush1.bf16.msra.mxu0 %v7967
    %8794 = vmatprep.subr.bf16.mxu0 0
    %8795 = vmatpush1.bf16.msra.mxu0 %v7970
    %8796 = vmatprep.subr.bf16.mxu0 0
    %8797 = vmatpush1.bf16.msra.mxu0 %v7973
    %8798 = vmatprep.subr.bf16.mxu0 0
    %8799 = vmatpush1.bf16.msra.mxu0 %v7976
    %8800 = vmatprep.subr.bf16.mxu0 0
    %8801 = vmatpush1.bf16.msra.mxu0 %v7979
    %8802 = vmatprep.subr.bf16.mxu0 0
    %8803 = vmatpush1.bf16.msra.mxu0 %v7982
    %8804 = vmatprep.subr.bf16.mxu0 0
    %8805 = vmatpush1.bf16.msra.mxu0 %v7985
    %8806 = vmatprep.subr.bf16.mxu0 0
    %8807 = vmatpush1.bf16.msra.mxu0 %v7988
    %8808 = vmatprep.subr.bf16.mxu0 0
    %8809 = vmatpush1.bf16.msra.mxu0 %v7991
    %8810 = vmatprep.subr.bf16.mxu0 0
    %8811 = vmatpush1.bf16.msra.mxu0 %v7994
    %8812 = vmatprep.subr.bf16.mxu0 0
    %8813 = vmatpush1.bf16.msra.mxu0 %v7997
    %8814 = vmatprep.subr.bf16.mxu0 0
    %8815 = vmatpush1.bf16.msra.mxu0 %v8000
    %8816 = vmatprep.subr.bf16.mxu0 0
    %8817 = vmatpush1.bf16.msra.mxu0 %v8003
    %8818 = vmatprep.subr.bf16.mxu0 0
    %8819 = vmatpush1.bf16.msra.mxu0 %v8006
    %8820 = vmatprep.subr.bf16.mxu0 0
    %8821 = vmatpush1.bf16.msra.mxu0 %v8009
    %8822 = vmatprep.subr.bf16.mxu0 0
    %8823 = vmatpush1.bf16.msra.mxu0 %v8012
    %8824 = vmatprep.mubr.bf16.mxu0 %v6547
    %8825 = vmatmul.mubr.bf16.gmra.mrb[0].mxu0 %v6546
    %v8826 = vpop.f32.mrb[0].mxu0
    %v8827 = vadd.f32 %v8786, %v8826
    %v8828 = vpop.f32.mrb[0].mxu0
    %v8829 = vpop.f32.mrb[0].mxu0
    %v8830 = vadd.f32 %v8789, %v8829
    %v8831 = vpop.f32.mrb[0].mxu0
    %8832 = vdwg.mxu0
    %8833 = vmatprep.subr.bf16.mxu0 0
    %8834 = vmatpush1.bf16.msra.mxu0 %v8015
    %8835 = vmatprep.subr.bf16.mxu0 0
    %8836 = vmatpush1.bf16.msra.mxu0 %v8018
    %8837 = vmatprep.subr.bf16.mxu0 0
    %8838 = vmatpush1.bf16.msra.mxu0 %v8021
    %8839 = vmatprep.subr.bf16.mxu0 0
    %8840 = vmatpush1.bf16.msra.mxu0 %v8024
    %8841 = vmatprep.subr.bf16.mxu0 0
    %8842 = vmatpush1.bf16.msra.mxu0 %v8027
    %8843 = vmatprep.subr.bf16.mxu0 0
    %8844 = vmatpush1.bf16.msra.mxu0 %v8030
    %8845 = vmatprep.subr.bf16.mxu0 0
    %8846 = vmatpush1.bf16.msra.mxu0 %v8033
    %8847 = vmatprep.subr.bf16.mxu0 0
    %8848 = vmatpush1.bf16.msra.mxu0 %v8036
    %8849 = vmatprep.subr.bf16.mxu0 0
    %8850 = vmatpush1.bf16.msra.mxu0 %v8039
    %8851 = vmatprep.subr.bf16.mxu0 0
    %8852 = vmatpush1.bf16.msra.mxu0 %v8042
    %8853 = vmatprep.subr.bf16.mxu0 0
    %8854 = vmatpush1.bf16.msra.mxu0 %v8045
    %8855 = vmatprep.subr.bf16.mxu0 0
    %8856 = vmatpush1.bf16.msra.mxu0 %v8048
    %8857 = vmatprep.subr.bf16.mxu0 0
    %8858 = vmatpush1.bf16.msra.mxu0 %v8051
    %8859 = vmatprep.subr.bf16.mxu0 0
    %8860 = vmatpush1.bf16.msra.mxu0 %v8054
    %8861 = vmatprep.subr.bf16.mxu0 0
    %8862 = vmatpush1.bf16.msra.mxu0 %v8057
    %8863 = vmatprep.subr.bf16.mxu0 0
    %8864 = vmatpush1.bf16.msra.mxu0 %v8060
    %8865 = vmatprep.mubr.bf16.mxu0 %v6549
    %8866 = vmatmul.mubr.bf16.gmra.mrb[0].mxu0 %v6548
    %v8867 = vpop.f32.mrb[0].mxu0
    %v8868 = vadd.f32 %v8827, %v8867
    %v8869 = vpop.f32.mrb[0].mxu0
    %v8870 = vpop.f32.mrb[0].mxu0
    %v8871 = vadd.f32 %v8830, %v8870
    %v8872 = vpop.f32.mrb[0].mxu0
    %8873 = vdwg.mxu0
    %8874 = vmatprep.subr.bf16.mxu0 0
    %8875 = vmatpush1.bf16.msra.mxu0 %v8063
    %8876 = vmatprep.subr.bf16.mxu0 0
    %8877 = vmatpush1.bf16.msra.mxu0 %v8066
    %8878 = vmatprep.subr.bf16.mxu0 0
    %8879 = vmatpush1.bf16.msra.mxu0 %v8069
    %8880 = vmatprep.subr.bf16.mxu0 0
    %8881 = vmatpush1.bf16.msra.mxu0 %v8072
    %8882 = vmatprep.subr.bf16.mxu0 0
    %8883 = vmatpush1.bf16.msra.mxu0 %v8075
    %8884 = vmatprep.subr.bf16.mxu0 0
    %8885 = vmatpush1.bf16.msra.mxu0 %v8078
    %8886 = vmatprep.subr.bf16.mxu0 0
    %8887 = vmatpush1.bf16.msra.mxu0 %v8081
    %8888 = vmatprep.subr.bf16.mxu0 0
    %8889 = vmatpush1.bf16.msra.mxu0 %v8084
    %8890 = vmatprep.subr.bf16.mxu0 0
    %8891 = vmatpush1.bf16.msra.mxu0 %v8087
    %8892 = vmatprep.subr.bf16.mxu0 0
    %8893 = vmatpush1.bf16.msra.mxu0 %v8090
    %8894 = vmatprep.subr.bf16.mxu0 0
    %8895 = vmatpush1.bf16.msra.mxu0 %v8093
    %8896 = vmatprep.subr.bf16.mxu0 0
    %8897 = vmatpush1.bf16.msra.mxu0 %v8096
    %8898 = vmatprep.subr.bf16.mxu0 0
    %8899 = vmatpush1.bf16.msra.mxu0 %v8099
    %8900 = vmatprep.subr.bf16.mxu0 0
    %8901 = vmatpush1.bf16.msra.mxu0 %v8102
    %8902 = vmatprep.subr.bf16.mxu0 0
    %8903 = vmatpush1.bf16.msra.mxu0 %v8105
    %8904 = vmatprep.subr.bf16.mxu0 0
    %8905 = vmatpush1.bf16.msra.mxu0 %v8108
    %8906 = vmatprep.mubr.bf16.mxu0 %v6551
    %8907 = vmatmul.mubr.bf16.gmra.mrb[0].mxu0 %v6550
    %v8908 = vpop.f32.mrb[0].mxu0
    %v8909 = vadd.f32 %v8868, %v8908
    %v8910 = vpop.f32.mrb[0].mxu0
    %v8911 = vpop.f32.mrb[0].mxu0
    %v8912 = vadd.f32 %v8871, %v8911
    %v8913 = vpop.f32.mrb[0].mxu0
    %8914 = vdwg.mxu0
    %8915 = vmatprep.subr.bf16.mxu0 0
    %8916 = vmatpush1.bf16.msra.mxu0 %v8111
    %8917 = vmatprep.subr.bf16.mxu0 0
    %8918 = vmatpush1.bf16.msra.mxu0 %v8114
    %8919 = vmatprep.subr.bf16.mxu0 0
    %8920 = vmatpush1.bf16.msra.mxu0 %v8117
    %8921 = vmatprep.subr.bf16.mxu0 0
    %8922 = vmatpush1.bf16.msra.mxu0 %v8120
    %8923 = vmatprep.subr.bf16.mxu0 0
    %8924 = vmatpush1.bf16.msra.mxu0 %v8123
    %8925 = vmatprep.subr.bf16.mxu0 0
    %8926 = vmatpush1.bf16.msra.mxu0 %v8126
    %8927 = vmatprep.subr.bf16.mxu0 0
    %8928 = vmatpush1.bf16.msra.mxu0 %v8129
    %8929 = vmatprep.subr.bf16.mxu0 0
    %8930 = vmatpush1.bf16.msra.mxu0 %v8132
    %8931 = vmatprep.subr.bf16.mxu0 0
    %8932 = vmatpush1.bf16.msra.mxu0 %v8135
    %8933 = vmatprep.subr.bf16.mxu0 0
    %8934 = vmatpush1.bf16.msra.mxu0 %v8138
    %8935 = vmatprep.subr.bf16.mxu0 0
    %8936 = vmatpush1.bf16.msra.mxu0 %v8141
    %8937 = vmatprep.subr.bf16.mxu0 0
    %8938 = vmatpush1.bf16.msra.mxu0 %v8144
    %8939 = vmatprep.subr.bf16.mxu0 0
    %8940 = vmatpush1.bf16.msra.mxu0 %v8147
    %8941 = vmatprep.subr.bf16.mxu0 0
    %8942 = vmatpush1.bf16.msra.mxu0 %v8150
    %8943 = vmatprep.subr.bf16.mxu0 0
    %8944 = vmatpush1.bf16.msra.mxu0 %v8153
    %8945 = vmatprep.subr.bf16.mxu0 0
    %8946 = vmatpush1.bf16.msra.mxu0 %v8156
    %8947 = vmatprep.mubr.bf16.mxu0 %v6553
    %8948 = vmatmul.mubr.bf16.gmra.mrb[0].mxu0 %v6552
    %v8949 = vpop.f32.mrb[0].mxu0
    %v8950 = vadd.f32 %v8909, %v8949
    %v8951 = vpop.f32.mrb[0].mxu0
    %v8952 = vpop.f32.mrb[0].mxu0
    %v8953 = vadd.f32 %v8912, %v8952
    %v8954 = vpop.f32.mrb[0].mxu0
    %8955 = vdwg.mxu0
    %8956 = vmatprep.subr.bf16.mxu0 0
    %8957 = vmatpush1.bf16.msra.mxu0 %v8159
    %8958 = vmatprep.subr.bf16.mxu0 0
    %8959 = vmatpush1.bf16.msra.mxu0 %v8162
    %8960 = vmatprep.subr.bf16.mxu0 0
    %8961 = vmatpush1.bf16.msra.mxu0 %v8165
    %8962 = vmatprep.subr.bf16.mxu0 0
    %8963 = vmatpush1.bf16.msra.mxu0 %v8168
    %8964 = vmatprep.subr.bf16.mxu0 0
    %8965 = vmatpush1.bf16.msra.mxu0 %v8171
    %8966 = vmatprep.subr.bf16.mxu0 0
    %8967 = vmatpush1.bf16.msra.mxu0 %v8174
    %8968 = vmatprep.subr.bf16.mxu0 0
    %8969 = vmatpush1.bf16.msra.mxu0 %v8177
    %8970 = vmatprep.subr.bf16.mxu0 0
    %8971 = vmatpush1.bf16.msra.mxu0 %v8180
    %8972 = vmatprep.subr.bf16.mxu0 0
    %8973 = vmatpush1.bf16.msra.mxu0 %v8183
    %8974 = vmatprep.subr.bf16.mxu0 0
    %8975 = vmatpush1.bf16.msra.mxu0 %v8186
    %8976 = vmatprep.subr.bf16.mxu0 0
    %8977 = vmatpush1.bf16.msra.mxu0 %v8189
    %8978 = vmatprep.subr.bf16.mxu0 0
    %8979 = vmatpush1.bf16.msra.mxu0 %v8192
    %8980 = vmatprep.subr.bf16.mxu0 0
    %8981 = vmatpush1.bf16.msra.mxu0 %v8195
    %8982 = vmatprep.subr.bf16.mxu0 0
    %8983 = vmatpush1.bf16.msra.mxu0 %v8198
    %8984 = vmatprep.subr.bf16.mxu0 0
    %8985 = vmatpush1.bf16.msra.mxu0 %v8201
    %8986 = vmatprep.subr.bf16.mxu0 0
    %8987 = vmatpush1.bf16.msra.mxu0 %v8204
    %8988 = vmatprep.mubr.bf16.mxu0 %v6555
    %8989 = vmatmul.mubr.bf16.gmra.mrb[0].mxu0 %v6554
    %v8990 = vpop.f32.mrb[0].mxu0
    %v8991 = vadd.f32 %v8950, %v8990
    %v8992 = vpop.f32.mrb[0].mxu0
    %v8993 = vpop.f32.mrb[0].mxu0
    %v8994 = vadd.f32 %v8953, %v8993
    %v8995 = vpop.f32.mrb[0].mxu0
    %8996 = vdwg.mxu0
    %v8997 = vadd.f32 %v4115, %v8743
    %v8998 = vadd.f32 %v4116, %v8745
    %v8999 = vadd.f32 %v4117, %v8991
    %v9000 = vadd.f32 %v4118, %v8747
    %v9001 = vadd.f32 %v4119, %v8749
    %v9002 = vadd.f32 %v4120, %v8994
    %9003 = vst [vmem:[#allocation22] sm:$0xff] %v8997
    %9004 = vst [vmem:[#allocation22 + $0x8] sm:$0xff] %v8998
    %9005 = vst [vmem:[#allocation22 + $0x10] sm:$0xff] %v8999
    %9006 = vst [vmem:[#allocation22 + $0x18] sm:$0xff] %v9000
    %9007 = vst [vmem:[#allocation22 + $0x20] sm:$0xff] %v9001
    %9008 = vst [vmem:[#allocation22 + $0x28] sm:$0xff] %v9002
    // Predicated region
    $region102: #{transformer_block_forward.1} parent=1 // pred_check
      _
    $region103: #{transformer_block_forward.1} parent=1 // pred_check_branch
      %9010 = sbr.rel (0) target = $region105
    $region104: #{transformer_block_forward.1} parent=1 // pred_region
      %s9012 = ssub.s32 768, 768
      %9013 = vsyncadd [#allocation4], %s9012
      %s9014 = sshll.u32 [#allocation22], 4
      %s9015 = int_to_ptr.vmem [resolvable:$true] %s9014
      %9020 = dma.vmem_to_hbm [thread:$0]  %s9015, 768, %s13, [#allocation4], 384, 384, 24
    $region105: #{transformer_block_forward.1} parent=1 // pred_fallthru
      _
    // Predicated region
    $region106: #{transformer_block_forward.1} parent=1 // pred_check
      _
    $region107: #{transformer_block_forward.1} parent=1 // pred_check_branch
      %9022 = sbr.rel (0) target = $region109
    $region108: #{transformer_block_forward.1} parent=1 // pred_region
      %9023 = dma.done [#allocation4], 768
    $region109: #{transformer_block_forward.1} parent=1 // pred_fallthru
      _
    %9024 = vsyncpa [#allocation3], 1
    %9025 = vsyncpa [#allocation6], 1
    %9026 = vsyncpa [#allocation9], 1
    %9027 = vsyncpa [#allocation12], 1
    %9028 = vsyncpa [#allocation15], 1
    %9029 = vsyncpa [#allocation18], 1
    %9030 = vsyncpa [#allocation21], 1
    %9031 = vsyncpa [#allocation4], 1

</llo_original>
